<compile_context>
chip_gen: v5e
topology: v5e:2x2
jax: 0.10.0
libtpu: 0.0.40
codegen_flags: <defaults>
</compile_context>

<pallas_src>
import jax
import jax.numpy as jnp
from jax.experimental import pallas as pl
from jax.experimental.pallas import tpu as pltpu

KSIZE = 3
PAD = KSIZE // 2
BN_EPS = 1e-5
LANE = 128


def _refinement_fused_kernel(x_ref, w0_ref, w1_ref, w2_ref,
                             b0_ref, b1_ref, b2_ref, o_ref,
                             xpad_ref, stag_ref):
    """Fused 3-layer refinement head for one image.

    x_ref   : (H, W, CP)        channel-padded, bf16 input (concat done in wrapper)
    w*_ref  : (3, 3*CP, CP)     BN-folded, channel-padded, dx-merged bf16 weights
    b*_ref  : (1, CP)           channel-padded f32 biases
    o_ref   : (H*W, CP)         lane-dense bf16 output (channel 0 is the result)
    xpad_ref: (H+2, Wp, CP)     zero-halo padded bf16 activation scratch
    stag_ref: ((H+2)*W, 3*CP)   bf16 im2col (dx-merged) staging buffer
    """
    H, W, CP = x_ref.shape
    Hp, Wp, _ = xpad_ref.shape
    HW = H * W

    # ---- zero the 1-pixel halo (every step: scratch is per-core under the
    # "parallel" batch axis, so program_id==0 gating would be unsafe). -------
    zrow = jnp.zeros((PAD, Wp, CP), xpad_ref.dtype)
    xpad_ref[pl.ds(0, PAD), :, :] = zrow
    xpad_ref[pl.ds(H + PAD, PAD), :, :] = zrow
    zcol = jnp.zeros((H, PAD, CP), xpad_ref.dtype)
    xpad_ref[pl.ds(PAD, H), pl.ds(0, PAD), :] = zcol
    xpad_ref[pl.ds(PAD, H), pl.ds(W + PAD, PAD), :] = zcol
    # Columns >= W + 2*PAD (alignment padding) are never read.

    # ---- interior <- lane-dense, channel-padded input. ---------------------
    xpad_ref[pl.ds(PAD, H), pl.ds(PAD, W), :] = x_ref[...]

    def conv3x3(w_ref, b_ref, apply_relu):
        # im2col along dx: stag[r*W + x, k*CP + c] = xpad[r, x + k, c]
        # (3 whole-plane shifted copies per layer instead of 9 tap slices).
        for k in range(KSIZE):
            stag_ref[:, k * CP:(k + 1) * CP] = (
                xpad_ref[:, pl.ds(k, W), :].reshape(Hp * W, CP))
        # 3 MXU matmuls with K = 3*CP; f32 accumulation.
        acc = None
        for dy in range(KSIZE):
            patch = stag_ref[pl.ds(dy * W, HW), :]          # aligned 2-D slice
            part = jnp.dot(patch, w_ref[dy],
                           preferred_element_type=jnp.float32)
            acc = part if acc is None else acc + part
        y = acc + b_ref[...]
        if apply_relu:
            y = jnp.maximum(y, 0.0)
        return y

    # Layer 0: conv0 + folded bn0 + relu  -> write back into scratch interior.
    y0 = conv3x3(w0_ref, b0_ref, True)
    xpad_ref[pl.ds(PAD, H), pl.ds(PAD, W), :] = (
        y0.reshape(H, W, CP).astype(xpad_ref.dtype))
    # Layer 1: conv1 + folded bn1 + relu.
    y1 = conv3x3(w1_ref, b1_ref, True)
    xpad_ref[pl.ds(PAD, H), pl.ds(PAD, W), :] = (
        y1.reshape(H, W, CP).astype(xpad_ref.dtype))
    # Layer 2: conv2 + bias (no relu); lane-dense bf16 padded output slab.
    y2 = conv3x3(w2_ref, b2_ref, False)
    o_ref[...] = y2.astype(o_ref.dtype)


def _refinement_pallas(x_in, w0m, w1m, w2m, b0p, b1p, b2p):
    N, H, W, CP = x_in.shape
    Hp = H + 2 * PAD
    Wp = 8 * pl.cdiv(W + 2 * PAD, 8)          # sublane-aligned scratch width

    # VMEM budget: scratch + staging + double-buffered inputs/weights/output.
    est_bytes = (
        Hp * Wp * CP * 2                      # xpad scratch (bf16)
        + Hp * W * 3 * CP * 2                 # im2col staging (bf16)
        + 2 * H * W * CP * 2                  # input block, double-buffered
        + 2 * H * W * CP * 2                  # output block, double-buffered
        + 2 * 3 * KSIZE * KSIZE * CP * CP * 2 # 3 weight blocks, double-buffered
        + 2 * 3 * CP * 4                      # biases
        + H * W * CP * 4)                     # f32 accumulator headroom
    vmem_limit = int(min(48 * 2**20, max(8 * 2**20, 2 * est_bytes)))

    return pl.pallas_call(
        _refinement_fused_kernel,
        out_shape=jax.ShapeDtypeStruct((N, H * W, CP), jnp.bfloat16),
        grid_spec=pltpu.PrefetchScalarGridSpec(
            num_scalar_prefetch=0,
            grid=(N,),
            in_specs=[
                pl.BlockSpec((pl.Squeezed(), H, W, CP),
                             lambda n: (n, 0, 0, 0)),
                pl.BlockSpec((KSIZE, KSIZE * CP, CP), lambda n: (0, 0, 0)),
                pl.BlockSpec((KSIZE, KSIZE * CP, CP), lambda n: (0, 0, 0)),
                pl.BlockSpec((KSIZE, KSIZE * CP, CP), lambda n: (0, 0, 0)),
                pl.BlockSpec((1, CP), lambda n: (0, 0)),
                pl.BlockSpec((1, CP), lambda n: (0, 0)),
                pl.BlockSpec((1, CP), lambda n: (0, 0)),
            ],
            out_specs=pl.BlockSpec((pl.Squeezed(), H * W, CP),
                                   lambda n: (n, 0, 0)),
            scratch_shapes=[
                pltpu.VMEM((Hp, Wp, CP), jnp.bfloat16),
                pltpu.VMEM((Hp * W, KSIZE * CP), jnp.bfloat16),
            ],
        ),
        compiler_params=pltpu.CompilerParams(
            dimension_semantics=("parallel",),
            vmem_limit_bytes=vmem_limit),
    )(x_in, w0m, w1m, w2m, b0p, b1p, b2p)


def init_refinement_params(key, block_channel, ksize=KSIZE):
    """Deterministic synthetic parameters (HWIO conv weights, BN stats)."""
    nf = 64 + block_channel[0]
    ks = jax.random.split(key, 12)

    def w_init(k, cin, cout):
        fan_in = cin * ksize * ksize
        return (jax.random.normal(k, (ksize, ksize, cin, cout), jnp.float32)
                / jnp.sqrt(jnp.float32(fan_in)))

    params = {
        "w0": w_init(ks[0], nf, nf),
        "bn0_gamma": 1.0 + 0.1 * jax.random.normal(ks[1], (nf,), jnp.float32),
        "bn0_beta": 0.1 * jax.random.normal(ks[2], (nf,), jnp.float32),
        "bn0_mean": 0.1 * jax.random.normal(ks[3], (nf,), jnp.float32),
        "bn0_var": 1.0 + 0.1 * jnp.abs(
            jax.random.normal(ks[4], (nf,), jnp.float32)),
        "w1": w_init(ks[5], nf, nf),
        "bn1_gamma": 1.0 + 0.1 * jax.random.normal(ks[6], (nf,), jnp.float32),
        "bn1_beta": 0.1 * jax.random.normal(ks[7], (nf,), jnp.float32),
        "bn1_mean": 0.1 * jax.random.normal(ks[8], (nf,), jnp.float32),
        "bn1_var": 1.0 + 0.1 * jnp.abs(
            jax.random.normal(ks[9], (nf,), jnp.float32)),
        "w2": w_init(ks[10], nf, 1),
        "b2": 0.1 * jax.random.normal(ks[11], (1,), jnp.float32),
    }
    return params


@jax.jit
def refinement_forward(params, decoder_output, mff_output):
    """decoder_output: (N, 64, H, W), mff_output: (N, C0, H, W) in NCHW."""
    N, Cdec, H, W = decoder_output.shape
    Cmff = mff_output.shape[1]
    nf = Cdec + Cmff
    CP = LANE * pl.cdiv(nf, LANE)          # pad channels to a multiple of 128

    # Channel concat + zero-pad to CP lanes in the wrapper -> one lane-dense
    # bf16 NHWC input for the kernel.
    x = jnp.concatenate([jnp.transpose(decoder_output, (0, 2, 3, 1)),
                         jnp.transpose(mff_output, (0, 2, 3, 1))], axis=-1)
    x = jnp.pad(x, ((0, 0), (0, 0), (0, 0), (0, CP - nf))).astype(jnp.bfloat16)

    # Fold BN running stats into per-output-channel scale (into the weights)
    # and bias; zero-pad Cin/Cout to CP so padding is exact; merge the dx tap
    # axis into the contraction: (3, 3, CP, CP) -> (3, 3*CP, CP) in bf16.
    s0 = params["bn0_gamma"] * jax.lax.rsqrt(params["bn0_var"] + BN_EPS)
    b0 = params["bn0_beta"] - params["bn0_mean"] * s0
    s1 = params["bn1_gamma"] * jax.lax.rsqrt(params["bn1_var"] + BN_EPS)
    b1 = params["bn1_beta"] - params["bn1_mean"] * s1

    def prep_w(w, scale=None):
        if scale is not None:
            w = w * scale[None, None, None, :]
        ci, co = w.shape[2], w.shape[3]
        w = jnp.pad(w, ((0, 0), (0, 0), (0, CP - ci), (0, CP - co)))
        return w.reshape(KSIZE, KSIZE * CP, CP).astype(jnp.bfloat16)

    def prep_b(b):
        return jnp.pad(b, (0, CP - b.shape[0])).reshape(1, CP).astype(
            jnp.float32)

    w0m, b0p = prep_w(params["w0"], s0), prep_b(b0)
    w1m, b1p = prep_w(params["w1"], s1), prep_b(b1)
    w2m, b2p = prep_w(params["w2"]), prep_b(params["b2"])

    out_flat = _refinement_pallas(x, w0m, w1m, w2m, b0p, b1p, b2p)
    return out_flat[:, :, 0].astype(jnp.float32).reshape(N, 1, H, W)


def refinement_reference(params, decoder_output, mff_output):
    """Pure-JAX f32 reference mirroring the PyTorch forward (NCHW)."""
    x = jnp.concatenate([decoder_output, mff_output], axis=1)

    def conv(x, w_hwio, b=None):
        y = jax.lax.conv_general_dilated(
            x, w_hwio, window_strides=(1, 1), padding="SAME",
            dimension_numbers=("NCHW", "HWIO", "NCHW"))
        if b is not None:
            y = y + b.reshape(1, -1, 1, 1)
        return y

    def bn(x, g, b, m, v):
        inv = jax.lax.rsqrt(v + BN_EPS)
        return ((x - m.reshape(1, -1, 1, 1)) * (g * inv).reshape(1, -1, 1, 1)
                + b.reshape(1, -1, 1, 1))

    x0 = jax.nn.relu(bn(conv(x, params["w0"]), params["bn0_gamma"],
                        params["bn0_beta"], params["bn0_mean"],
                        params["bn0_var"]))
    x1 = jax.nn.relu(bn(conv(x0, params["w1"]), params["bn1_gamma"],
                        params["bn1_beta"], params["bn1_mean"],
                        params["bn1_var"]))
    return conv(x1, params["w2"], params["b2"])


if __name__ == "__main__":
    key = jax.random.PRNGKey(0)
    block_channel = (4, 8, 16, 32)          # num_features = 64 + 4 = 68
    N, H, W = 2, 16, 16

    kp, kd, km = jax.random.split(key, 3)
    params = init_refinement_params(kp, block_channel)
    decoder_output = jax.random.normal(kd, (N, 64, H, W), jnp.float32)
    mff_output = jax.random.normal(km, (N, block_channel[0], H, W),
                                   jnp.float32)

    out = refinement_forward(params, decoder_output, mff_output)
    out = jax.block_until_ready(out)

    ref = refinement_reference(params, decoder_output, mff_output)
    assert out.shape == (N, 1, H, W), out.shape
    # bf16 MXU operands (f32 accumulation) per perf feedback -> relaxed
    # tolerance vs. the f32 reference.
    max_err = float(jnp.max(jnp.abs(out - ref)))
    assert jnp.allclose(out, ref, atol=5e-2, rtol=5e-2), max_err

    print("KERNEL_OK")
</pallas_src>

<mosaic_0001>
module attributes {stable_mosaic.version = 11 : i64} {
  func.func @_refinement_fused_kernel(%arg0: i32, %arg1: memref<1x16x16x128xbf16, #tpu.memory_space<vmem>>, %arg2: memref<3x384x128xbf16, #tpu.memory_space<vmem>>, %arg3: memref<3x384x128xbf16, #tpu.memory_space<vmem>>, %arg4: memref<3x384x128xbf16, #tpu.memory_space<vmem>>, %arg5: memref<1x128xf32, #tpu.memory_space<vmem>>, %arg6: memref<1x128xf32, #tpu.memory_space<vmem>>, %arg7: memref<1x128xf32, #tpu.memory_space<vmem>>, %arg8: memref<1x256x128xbf16, #tpu.memory_space<vmem>>, %arg9: memref<18x24x128xbf16, #tpu.memory_space<vmem>>, %arg10: memref<288x384xbf16, #tpu.memory_space<vmem>>) attributes {dimension_semantics = [#tpu.dimension_semantics<parallel>], iteration_bounds = array<i64: 2>, scalar_prefetch = 0 : i64, scratch_operands = 2 : i64, tpu.core_type = #tpu.core_type<tc>, window_params = [{transform_indices = @transform_0, window_bounds = array<i64: 1, 16, 16, 128>}, {pipeline_mode = #tpu.pipeline_mode<synchronous>, transform_indices = @transform_1, window_bounds = array<i64: 3, 384, 128>}, {pipeline_mode = #tpu.pipeline_mode<synchronous>, transform_indices = @transform_2, window_bounds = array<i64: 3, 384, 128>}, {pipeline_mode = #tpu.pipeline_mode<synchronous>, transform_indices = @transform_3, window_bounds = array<i64: 3, 384, 128>}, {pipeline_mode = #tpu.pipeline_mode<synchronous>, transform_indices = @transform_4, window_bounds = array<i64: 1, 128>}, {pipeline_mode = #tpu.pipeline_mode<synchronous>, transform_indices = @transform_5, window_bounds = array<i64: 1, 128>}, {pipeline_mode = #tpu.pipeline_mode<synchronous>, transform_indices = @transform_6, window_bounds = array<i64: 1, 128>}, {transform_indices = @transform_7, window_bounds = array<i64: 1, 256, 128>}]} {
    %cst = arith.constant 0.000000e+00 : bf16
    %0 = vector.broadcast %cst : bf16 to vector<1x24x128xbf16>
    %c0 = arith.constant 0 : index
    %c0_0 = arith.constant 0 : index
    %c0_1 = arith.constant 0 : index
    %1 = vector.load %arg9[%c0, %c0_0, %c0_1] : memref<18x24x128xbf16, #tpu.memory_space<vmem>>, vector<1x24x128xbf16>
    tpu.vector_store %arg9[%c0, %c0_0, %c0_1], %0 {strides = array<i32>} : memref<18x24x128xbf16, #tpu.memory_space<vmem>>, vector<1x24x128xbf16>,
    %c17 = arith.constant 17 : index
    %c0_2 = arith.constant 0 : index
    %c0_3 = arith.constant 0 : index
    %2 = vector.load %arg9[%c17, %c0_2, %c0_3] : memref<18x24x128xbf16, #tpu.memory_space<vmem>>, vector<1x24x128xbf16>
    tpu.vector_store %arg9[%c17, %c0_2, %c0_3], %0 {strides = array<i32>} : memref<18x24x128xbf16, #tpu.memory_space<vmem>>, vector<1x24x128xbf16>,
    %cst_4 = arith.constant 0.000000e+00 : bf16
    %3 = vector.broadcast %cst_4 : bf16 to vector<16x1x128xbf16>
    %c1 = arith.constant 1 : index
    %c0_5 = arith.constant 0 : index
    %c0_6 = arith.constant 0 : index
    %4 = vector.load %arg9[%c1, %c0_5, %c0_6] : memref<18x24x128xbf16, #tpu.memory_space<vmem>>, vector<16x1x128xbf16>
    tpu.vector_store %arg9[%c1, %c0_5, %c0_6], %3 {strides = array<i32>} : memref<18x24x128xbf16, #tpu.memory_space<vmem>>, vector<16x1x128xbf16>,
    %c1_7 = arith.constant 1 : index
    %c17_8 = arith.constant 17 : index
    %c0_9 = arith.constant 0 : index
    %5 = vector.load %arg9[%c1_7, %c17_8, %c0_9] : memref<18x24x128xbf16, #tpu.memory_space<vmem>>, vector<16x1x128xbf16>
    tpu.vector_store %arg9[%c1_7, %c17_8, %c0_9], %3 {strides = array<i32>} : memref<18x24x128xbf16, #tpu.memory_space<vmem>>, vector<16x1x128xbf16>,
    %c0_10 = arith.constant 0 : index
    %c0_11 = arith.constant 0 : index
    %c0_12 = arith.constant 0 : index
    %c0_13 = arith.constant 0 : index
    %6 = vector.load %arg1[%c0_10, %c0_11, %c0_12, %c0_13] : memref<1x16x16x128xbf16, #tpu.memory_space<vmem>>, vector<1x16x16x128xbf16>
    %7 = vector.shape_cast %6 : vector<1x16x16x128xbf16> to vector<16x16x128xbf16>
    %c1_14 = arith.constant 1 : index
    %c1_15 = arith.constant 1 : index
    %c0_16 = arith.constant 0 : index
    %8 = vector.load %arg9[%c1_14, %c1_15, %c0_16] : memref<18x24x128xbf16, #tpu.memory_space<vmem>>, vector<16x16x128xbf16>
    tpu.vector_store %arg9[%c1_14, %c1_15, %c0_16], %7 {strides = array<i32>} : memref<18x24x128xbf16, #tpu.memory_space<vmem>>, vector<16x16x128xbf16>,
    %c0_17 = arith.constant 0 : index
    %c0_18 = arith.constant 0 : index
    %c0_19 = arith.constant 0 : index
    %9 = vector.load %arg9[%c0_17, %c0_18, %c0_19] : memref<18x24x128xbf16, #tpu.memory_space<vmem>>, vector<18x16x128xbf16>
    %10 = vector.shape_cast %9 : vector<18x16x128xbf16> to vector<288x128xbf16>
    %c0_20 = arith.constant 0 : index
    %c0_21 = arith.constant 0 : index
    %11 = vector.load %arg10[%c0_20, %c0_21] : memref<288x384xbf16, #tpu.memory_space<vmem>>, vector<288x128xbf16>
    tpu.vector_store %arg10[%c0_20, %c0_21], %10 {strides = array<i32>} : memref<288x384xbf16, #tpu.memory_space<vmem>>, vector<288x128xbf16>,
    %c0_22 = arith.constant 0 : index
    %c1_23 = arith.constant 1 : index
    %c0_24 = arith.constant 0 : index
    %12 = vector.load %arg9[%c0_22, %c1_23, %c0_24] : memref<18x24x128xbf16, #tpu.memory_space<vmem>>, vector<18x16x128xbf16>
    %13 = vector.shape_cast %12 : vector<18x16x128xbf16> to vector<288x128xbf16>
    %c0_25 = arith.constant 0 : index
    %c128 = arith.constant 128 : index
    %14 = vector.load %arg10[%c0_25, %c128] : memref<288x384xbf16, #tpu.memory_space<vmem>>, vector<288x128xbf16>
    tpu.vector_store %arg10[%c0_25, %c128], %13 {strides = array<i32>} : memref<288x384xbf16, #tpu.memory_space<vmem>>, vector<288x128xbf16>,
    %c0_26 = arith.constant 0 : index
    %c2 = arith.constant 2 : index
    %c0_27 = arith.constant 0 : index
    %15 = vector.load %arg9[%c0_26, %c2, %c0_27] : memref<18x24x128xbf16, #tpu.memory_space<vmem>>, vector<18x16x128xbf16>
    %16 = vector.shape_cast %15 : vector<18x16x128xbf16> to vector<288x128xbf16>
    %c0_28 = arith.constant 0 : index
    %c256 = arith.constant 256 : index
    %17 = vector.load %arg10[%c0_28, %c256] : memref<288x384xbf16, #tpu.memory_space<vmem>>, vector<288x128xbf16>
    tpu.vector_store %arg10[%c0_28, %c256], %16 {strides = array<i32>} : memref<288x384xbf16, #tpu.memory_space<vmem>>, vector<288x128xbf16>,
    %c0_29 = arith.constant 0 : index
    %c0_30 = arith.constant 0 : index
    %18 = vector.load %arg10[%c0_29, %c0_30] : memref<288x384xbf16, #tpu.memory_space<vmem>>, vector<256x384xbf16>
    %c0_31 = arith.constant 0 : index
    %c0_32 = arith.constant 0 : index
    %c0_33 = arith.constant 0 : index
    %19 = vector.load %arg2[%c0_31, %c0_32, %c0_33] : memref<3x384x128xbf16, #tpu.memory_space<vmem>>, vector<1x384x128xbf16>
    %20 = vector.shape_cast %19 : vector<1x384x128xbf16> to vector<384x128xbf16>
    %cst_34 = arith.constant dense<0.000000e+00> : vector<256x128xf32>
    %21 = tpu.matmul %18, %20, %cst_34 {dimension_numbers = #tpu.dot_dimension_numbers<[1], [0], [0], [1], [0, 0, 1, 1], [], []>} : vector<256x384xbf16>, vector<384x128xbf16>, vector<256x128xf32> -> vector<256x128xf32>
    %c16 = arith.constant 16 : index
    %c0_35 = arith.constant 0 : index
    %22 = vector.load %arg10[%c16, %c0_35] : memref<288x384xbf16, #tpu.memory_space<vmem>>, vector<256x384xbf16>
    %c1_36 = arith.constant 1 : index
    %c0_37 = arith.constant 0 : index
    %c0_38 = arith.constant 0 : index
    %23 = vector.load %arg2[%c1_36, %c0_37, %c0_38] : memref<3x384x128xbf16, #tpu.memory_space<vmem>>, vector<1x384x128xbf16>
    %24 = vector.shape_cast %23 : vector<1x384x128xbf16> to vector<384x128xbf16>
    %cst_39 = arith.constant dense<0.000000e+00> : vector<256x128xf32>
    %25 = tpu.matmul %22, %24, %cst_39 {dimension_numbers = #tpu.dot_dimension_numbers<[1], [0], [0], [1], [0, 0, 1, 1], [], []>} : vector<256x384xbf16>, vector<384x128xbf16>, vector<256x128xf32> -> vector<256x128xf32>
    %26 = arith.addf %21, %25 : vector<256x128xf32>
    %c32 = arith.constant 32 : index
    %c0_40 = arith.constant 0 : index
    %27 = vector.load %arg10[%c32, %c0_40] : memref<288x384xbf16, #tpu.memory_space<vmem>>, vector<256x384xbf16>
    %c2_41 = arith.constant 2 : index
    %c0_42 = arith.constant 0 : index
    %c0_43 = arith.constant 0 : index
    %28 = vector.load %arg2[%c2_41, %c0_42, %c0_43] : memref<3x384x128xbf16, #tpu.memory_space<vmem>>, vector<1x384x128xbf16>
    %29 = vector.shape_cast %28 : vector<1x384x128xbf16> to vector<384x128xbf16>
    %cst_44 = arith.constant dense<0.000000e+00> : vector<256x128xf32>
    %30 = tpu.matmul %27, %29, %cst_44 {dimension_numbers = #tpu.dot_dimension_numbers<[1], [0], [0], [1], [0, 0, 1, 1], [], []>} : vector<256x384xbf16>, vector<384x128xbf16>, vector<256x128xf32> -> vector<256x128xf32>
    %31 = arith.addf %26, %30 : vector<256x128xf32>
    %c0_45 = arith.constant 0 : index
    %c0_46 = arith.constant 0 : index
    %32 = vector.load %arg5[%c0_45, %c0_46] : memref<1x128xf32, #tpu.memory_space<vmem>>, vector<1x128xf32>
    %33 = vector.broadcast %32 : vector<1x128xf32> to vector<256x128xf32>
    %34 = arith.addf %31, %33 : vector<256x128xf32>
    %cst_47 = arith.constant 0.000000e+00 : f32
    %35 = vector.broadcast %cst_47 : f32 to vector<256x128xf32>
    %36 = arith.maximumf %34, %35 : vector<256x128xf32>
    %37 = vector.shape_cast %36 : vector<256x128xf32> to vector<16x16x128xf32>
    %38 = arith.truncf %37 : vector<16x16x128xf32> to vector<16x16x128xbf16>
    %c1_48 = arith.constant 1 : index
    %c1_49 = arith.constant 1 : index
    %c0_50 = arith.constant 0 : index
    %39 = vector.load %arg9[%c1_48, %c1_49, %c0_50] : memref<18x24x128xbf16, #tpu.memory_space<vmem>>, vector<16x16x128xbf16>
    tpu.vector_store %arg9[%c1_48, %c1_49, %c0_50], %38 {strides = array<i32>} : memref<18x24x128xbf16, #tpu.memory_space<vmem>>, vector<16x16x128xbf16>,
    %c0_51 = arith.constant 0 : index
    %c0_52 = arith.constant 0 : index
    %c0_53 = arith.constant 0 : index
    %40 = vector.load %arg9[%c0_51, %c0_52, %c0_53] : memref<18x24x128xbf16, #tpu.memory_space<vmem>>, vector<18x16x128xbf16>
    %41 = vector.shape_cast %40 : vector<18x16x128xbf16> to vector<288x128xbf16>
    %c0_54 = arith.constant 0 : index
    %c0_55 = arith.constant 0 : index
    %42 = vector.load %arg10[%c0_54, %c0_55] : memref<288x384xbf16, #tpu.memory_space<vmem>>, vector<288x128xbf16>
    tpu.vector_store %arg10[%c0_54, %c0_55], %41 {strides = array<i32>} : memref<288x384xbf16, #tpu.memory_space<vmem>>, vector<288x128xbf16>,
    %c0_56 = arith.constant 0 : index
    %c1_57 = arith.constant 1 : index
    %c0_58 = arith.constant 0 : index
    %43 = vector.load %arg9[%c0_56, %c1_57, %c0_58] : memref<18x24x128xbf16, #tpu.memory_space<vmem>>, vector<18x16x128xbf16>
    %44 = vector.shape_cast %43 : vector<18x16x128xbf16> to vector<288x128xbf16>
    %c0_59 = arith.constant 0 : index
    %c128_60 = arith.constant 128 : index
    %45 = vector.load %arg10[%c0_59, %c128_60] : memref<288x384xbf16, #tpu.memory_space<vmem>>, vector<288x128xbf16>
    tpu.vector_store %arg10[%c0_59, %c128_60], %44 {strides = array<i32>} : memref<288x384xbf16, #tpu.memory_space<vmem>>, vector<288x128xbf16>,
    %c0_61 = arith.constant 0 : index
    %c2_62 = arith.constant 2 : index
    %c0_63 = arith.constant 0 : index
    %46 = vector.load %arg9[%c0_61, %c2_62, %c0_63] : memref<18x24x128xbf16, #tpu.memory_space<vmem>>, vector<18x16x128xbf16>
    %47 = vector.shape_cast %46 : vector<18x16x128xbf16> to vector<288x128xbf16>
    %c0_64 = arith.constant 0 : index
    %c256_65 = arith.constant 256 : index
    %48 = vector.load %arg10[%c0_64, %c256_65] : memref<288x384xbf16, #tpu.memory_space<vmem>>, vector<288x128xbf16>
    tpu.vector_store %arg10[%c0_64, %c256_65], %47 {strides = array<i32>} : memref<288x384xbf16, #tpu.memory_space<vmem>>, vector<288x128xbf16>,
    %c0_66 = arith.constant 0 : index
    %c0_67 = arith.constant 0 : index
    %49 = vector.load %arg10[%c0_66, %c0_67] : memref<288x384xbf16, #tpu.memory_space<vmem>>, vector<256x384xbf16>
    %c0_68 = arith.constant 0 : index
    %c0_69 = arith.constant 0 : index
    %c0_70 = arith.constant 0 : index
    %50 = vector.load %arg3[%c0_68, %c0_69, %c0_70] : memref<3x384x128xbf16, #tpu.memory_space<vmem>>, vector<1x384x128xbf16>
    %51 = vector.shape_cast %50 : vector<1x384x128xbf16> to vector<384x128xbf16>
    %cst_71 = arith.constant dense<0.000000e+00> : vector<256x128xf32>
    %52 = tpu.matmul %49, %51, %cst_71 {dimension_numbers = #tpu.dot_dimension_numbers<[1], [0], [0], [1], [0, 0, 1, 1], [], []>} : vector<256x384xbf16>, vector<384x128xbf16>, vector<256x128xf32> -> vector<256x128xf32>
    %c16_72 = arith.constant 16 : index
    %c0_73 = arith.constant 0 : index
    %53 = vector.load %arg10[%c16_72, %c0_73] : memref<288x384xbf16, #tpu.memory_space<vmem>>, vector<256x384xbf16>
    %c1_74 = arith.constant 1 : index
    %c0_75 = arith.constant 0 : index
    %c0_76 = arith.constant 0 : index
    %54 = vector.load %arg3[%c1_74, %c0_75, %c0_76] : memref<3x384x128xbf16, #tpu.memory_space<vmem>>, vector<1x384x128xbf16>
    %55 = vector.shape_cast %54 : vector<1x384x128xbf16> to vector<384x128xbf16>
    %cst_77 = arith.constant dense<0.000000e+00> : vector<256x128xf32>
    %56 = tpu.matmul %53, %55, %cst_77 {dimension_numbers = #tpu.dot_dimension_numbers<[1], [0], [0], [1], [0, 0, 1, 1], [], []>} : vector<256x384xbf16>, vector<384x128xbf16>, vector<256x128xf32> -> vector<256x128xf32>
    %57 = arith.addf %52, %56 : vector<256x128xf32>
    %c32_78 = arith.constant 32 : index
    %c0_79 = arith.constant 0 : index
    %58 = vector.load %arg10[%c32_78, %c0_79] : memref<288x384xbf16, #tpu.memory_space<vmem>>, vector<256x384xbf16>
    %c2_80 = arith.constant 2 : index
    %c0_81 = arith.constant 0 : index
    %c0_82 = arith.constant 0 : index
    %59 = vector.load %arg3[%c2_80, %c0_81, %c0_82] : memref<3x384x128xbf16, #tpu.memory_space<vmem>>, vector<1x384x128xbf16>
    %60 = vector.shape_cast %59 : vector<1x384x128xbf16> to vector<384x128xbf16>
    %cst_83 = arith.constant dense<0.000000e+00> : vector<256x128xf32>
    %61 = tpu.matmul %58, %60, %cst_83 {dimension_numbers = #tpu.dot_dimension_numbers<[1], [0], [0], [1], [0, 0, 1, 1], [], []>} : vector<256x384xbf16>, vector<384x128xbf16>, vector<256x128xf32> -> vector<256x128xf32>
    %62 = arith.addf %57, %61 : vector<256x128xf32>
    %c0_84 = arith.constant 0 : index
    %c0_85 = arith.constant 0 : index
    %63 = vector.load %arg6[%c0_84, %c0_85] : memref<1x128xf32, #tpu.memory_space<vmem>>, vector<1x128xf32>
    %64 = vector.broadcast %63 : vector<1x128xf32> to vector<256x128xf32>
    %65 = arith.addf %62, %64 : vector<256x128xf32>
    %cst_86 = arith.constant 0.000000e+00 : f32
    %66 = vector.broadcast %cst_86 : f32 to vector<256x128xf32>
    %67 = arith.maximumf %65, %66 : vector<256x128xf32>
    %68 = vector.shape_cast %67 : vector<256x128xf32> to vector<16x16x128xf32>
    %69 = arith.truncf %68 : vector<16x16x128xf32> to vector<16x16x128xbf16>
    %c1_87 = arith.constant 1 : index
    %c1_88 = arith.constant 1 : index
    %c0_89 = arith.constant 0 : index
    %70 = vector.load %arg9[%c1_87, %c1_88, %c0_89] : memref<18x24x128xbf16, #tpu.memory_space<vmem>>, vector<16x16x128xbf16>
    tpu.vector_store %arg9[%c1_87, %c1_88, %c0_89], %69 {strides = array<i32>} : memref<18x24x128xbf16, #tpu.memory_space<vmem>>, vector<16x16x128xbf16>,
    %c0_90 = arith.constant 0 : index
    %c0_91 = arith.constant 0 : index
    %c0_92 = arith.constant 0 : index
    %71 = vector.load %arg9[%c0_90, %c0_91, %c0_92] : memref<18x24x128xbf16, #tpu.memory_space<vmem>>, vector<18x16x128xbf16>
    %72 = vector.shape_cast %71 : vector<18x16x128xbf16> to vector<288x128xbf16>
    %c0_93 = arith.constant 0 : index
    %c0_94 = arith.constant 0 : index
    %73 = vector.load %arg10[%c0_93, %c0_94] : memref<288x384xbf16, #tpu.memory_space<vmem>>, vector<288x128xbf16>
    tpu.vector_store %arg10[%c0_93, %c0_94], %72 {strides = array<i32>} : memref<288x384xbf16, #tpu.memory_space<vmem>>, vector<288x128xbf16>,
    %c0_95 = arith.constant 0 : index
    %c1_96 = arith.constant 1 : index
    %c0_97 = arith.constant 0 : index
    %74 = vector.load %arg9[%c0_95, %c1_96, %c0_97] : memref<18x24x128xbf16, #tpu.memory_space<vmem>>, vector<18x16x128xbf16>
    %75 = vector.shape_cast %74 : vector<18x16x128xbf16> to vector<288x128xbf16>
    %c0_98 = arith.constant 0 : index
    %c128_99 = arith.constant 128 : index
    %76 = vector.load %arg10[%c0_98, %c128_99] : memref<288x384xbf16, #tpu.memory_space<vmem>>, vector<288x128xbf16>
    tpu.vector_store %arg10[%c0_98, %c128_99], %75 {strides = array<i32>} : memref<288x384xbf16, #tpu.memory_space<vmem>>, vector<288x128xbf16>,
    %c0_100 = arith.constant 0 : index
    %c2_101 = arith.constant 2 : index
    %c0_102 = arith.constant 0 : index
    %77 = vector.load %arg9[%c0_100, %c2_101, %c0_102] : memref<18x24x128xbf16, #tpu.memory_space<vmem>>, vector<18x16x128xbf16>
    %78 = vector.shape_cast %77 : vector<18x16x128xbf16> to vector<288x128xbf16>
    %c0_103 = arith.constant 0 : index
    %c256_104 = arith.constant 256 : index
    %79 = vector.load %arg10[%c0_103, %c256_104] : memref<288x384xbf16, #tpu.memory_space<vmem>>, vector<288x128xbf16>
    tpu.vector_store %arg10[%c0_103, %c256_104], %78 {strides = array<i32>} : memref<288x384xbf16, #tpu.memory_space<vmem>>, vector<288x128xbf16>,
    %c0_105 = arith.constant 0 : index
    %c0_106 = arith.constant 0 : index
    %80 = vector.load %arg10[%c0_105, %c0_106] : memref<288x384xbf16, #tpu.memory_space<vmem>>, vector<256x384xbf16>
    %c0_107 = arith.constant 0 : index
    %c0_108 = arith.constant 0 : index
    %c0_109 = arith.constant 0 : index
    %81 = vector.load %arg4[%c0_107, %c0_108, %c0_109] : memref<3x384x128xbf16, #tpu.memory_space<vmem>>, vector<1x384x128xbf16>
    %82 = vector.shape_cast %81 : vector<1x384x128xbf16> to vector<384x128xbf16>
    %cst_110 = arith.constant dense<0.000000e+00> : vector<256x128xf32>
    %83 = tpu.matmul %80, %82, %cst_110 {dimension_numbers = #tpu.dot_dimension_numbers<[1], [0], [0], [1], [0, 0, 1, 1], [], []>} : vector<256x384xbf16>, vector<384x128xbf16>, vector<256x128xf32> -> vector<256x128xf32>
    %c16_111 = arith.constant 16 : index
    %c0_112 = arith.constant 0 : index
    %84 = vector.load %arg10[%c16_111, %c0_112] : memref<288x384xbf16, #tpu.memory_space<vmem>>, vector<256x384xbf16>
    %c1_113 = arith.constant 1 : index
    %c0_114 = arith.constant 0 : index
    %c0_115 = arith.constant 0 : index
    %85 = vector.load %arg4[%c1_113, %c0_114, %c0_115] : memref<3x384x128xbf16, #tpu.memory_space<vmem>>, vector<1x384x128xbf16>
    %86 = vector.shape_cast %85 : vector<1x384x128xbf16> to vector<384x128xbf16>
    %cst_116 = arith.constant dense<0.000000e+00> : vector<256x128xf32>
    %87 = tpu.matmul %84, %86, %cst_116 {dimension_numbers = #tpu.dot_dimension_numbers<[1], [0], [0], [1], [0, 0, 1, 1], [], []>} : vector<256x384xbf16>, vector<384x128xbf16>, vector<256x128xf32> -> vector<256x128xf32>
    %88 = arith.addf %83, %87 : vector<256x128xf32>
    %c32_117 = arith.constant 32 : index
    %c0_118 = arith.constant 0 : index
    %89 = vector.load %arg10[%c32_117, %c0_118] : memref<288x384xbf16, #tpu.memory_space<vmem>>, vector<256x384xbf16>
    %c2_119 = arith.constant 2 : index
    %c0_120 = arith.constant 0 : index
    %c0_121 = arith.constant 0 : index
    %90 = vector.load %arg4[%c2_119, %c0_120, %c0_121] : memref<3x384x128xbf16, #tpu.memory_space<vmem>>, vector<1x384x128xbf16>
    %91 = vector.shape_cast %90 : vector<1x384x128xbf16> to vector<384x128xbf16>
    %cst_122 = arith.constant dense<0.000000e+00> : vector<256x128xf32>
    %92 = tpu.matmul %89, %91, %cst_122 {dimension_numbers = #tpu.dot_dimension_numbers<[1], [0], [0], [1], [0, 0, 1, 1], [], []>} : vector<256x384xbf16>, vector<384x128xbf16>, vector<256x128xf32> -> vector<256x128xf32>
    %93 = arith.addf %88, %92 : vector<256x128xf32>
    %c0_123 = arith.constant 0 : index
    %c0_124 = arith.constant 0 : index
    %94 = vector.load %arg7[%c0_123, %c0_124] : memref<1x128xf32, #tpu.memory_space<vmem>>, vector<1x128xf32>
    %95 = vector.broadcast %94 : vector<1x128xf32> to vector<256x128xf32>
    %96 = arith.addf %93, %95 : vector<256x128xf32>
    %97 = arith.truncf %96 : vector<256x128xf32> to vector<256x128xbf16>
    %c0_125 = arith.constant 0 : index
    %c0_126 = arith.constant 0 : index
    %c0_127 = arith.constant 0 : index
    %98 = vector.load %arg8[%c0_125, %c0_126, %c0_127] : memref<1x256x128xbf16, #tpu.memory_space<vmem>>, vector<1x256x128xbf16>
    %99 = vector.shape_cast %98 : vector<1x256x128xbf16> to vector<256x128xbf16>
    %100 = vector.shape_cast %97 : vector<256x128xbf16> to vector<1x256x128xbf16>
    tpu.vector_store %arg8[%c0_125, %c0_126, %c0_127], %100 {strides = array<i32>} : memref<1x256x128xbf16, #tpu.memory_space<vmem>>, vector<1x256x128xbf16>,
    return
  }
  func.func @transform_0(%arg0: i32) -> (i32, i32, i32, i32) {
    %c0_i32 = arith.constant 0 : i32
    %c0_i32_0 = arith.constant 0 : i32
    %c0_i32_1 = arith.constant 0 : i32
    %c0_i32_2 = arith.constant 0 : i32
    return %arg0, %c0_i32, %c0_i32_0, %c0_i32_1 : i32, i32, i32, i32
  }
  func.func @transform_1(%arg0: i32) -> (i32, i32, i32) {
    %c0_i32 = arith.constant 0 : i32
    %c0_i32_0 = arith.constant 0 : i32
    %c0_i32_1 = arith.constant 0 : i32
    %c0_i32_2 = arith.constant 0 : i32
    return %c0_i32, %c0_i32_0, %c0_i32_1 : i32, i32, i32
  }
  func.func @transform_2(%arg0: i32) -> (i32, i32, i32) {
    %c0_i32 = arith.constant 0 : i32
    %c0_i32_0 = arith.constant 0 : i32
    %c0_i32_1 = arith.constant 0 : i32
    %c0_i32_2 = arith.constant 0 : i32
    return %c0_i32, %c0_i32_0, %c0_i32_1 : i32, i32, i32
  }
  func.func @transform_3(%arg0: i32) -> (i32, i32, i32) {
    %c0_i32 = arith.constant 0 : i32
    %c0_i32_0 = arith.constant 0 : i32
    %c0_i32_1 = arith.constant 0 : i32
    %c0_i32_2 = arith.constant 0 : i32
    return %c0_i32, %c0_i32_0, %c0_i32_1 : i32, i32, i32
  }
  func.func @transform_4(%arg0: i32) -> (i32, i32) {
    %c0_i32 = arith.constant 0 : i32
    %c0_i32_0 = arith.constant 0 : i32
    %c0_i32_1 = arith.constant 0 : i32
    return %c0_i32, %c0_i32_0 : i32, i32
  }
  func.func @transform_5(%arg0: i32) -> (i32, i32) {
    %c0_i32 = arith.constant 0 : i32
    %c0_i32_0 = arith.constant 0 : i32
    %c0_i32_1 = arith.constant 0 : i32
    return %c0_i32, %c0_i32_0 : i32, i32
  }
  func.func @transform_6(%arg0: i32) -> (i32, i32) {
    %c0_i32 = arith.constant 0 : i32
    %c0_i32_0 = arith.constant 0 : i32
    %c0_i32_1 = arith.constant 0 : i32
    return %c0_i32, %c0_i32_0 : i32, i32
  }
  func.func @transform_7(%arg0: i32) -> (i32, i32, i32) {
    %c0_i32 = arith.constant 0 : i32
    %c0_i32_0 = arith.constant 0 : i32
    %c0_i32_1 = arith.constant 0 : i32
    return %arg0, %c0_i32, %c0_i32_0 : i32, i32, i32
  }
}

</mosaic_0001>

<llo_original>
// kernel: refinement_forward.1
$region0: #{refinement_forward.1}
  #allocation0 [shape = 'u32[]', space=smem, size = 0x4, offset = 0x4, fixed_abs, tag = 'smem constant byte address 0x4 - core index']
  #allocation1 [shape = 'u32[72,128]{1,0:T(1,128)}', space=vmem, size = 0x9000, scoped, tag = 'internal scratch']
  #allocation2 [shape = 'bf16[18,24,128]{2,1,0:T(8,128)(2,1)}', space=vmem, size = 0x1b000, scoped, tag = 'scratch operand']
  #allocation3 [shape = 'bf16[288,384]{1,0:T(8,128)(2,1)}', space=vmem, size = 0x36000, scoped, tag = 'scratch operand']
  %s0 = inlined_call_operand.vmem [shape: bf16[2,16,16,128], index: 0, kind: input, shape index: {}]
  %s1 = inlined_call_operand.vmem [shape: bf16[3,384,128], index: 1, kind: input, shape index: {}]
  %s2 = inlined_call_operand.vmem [shape: bf16[3,384,128], index: 2, kind: input, shape index: {}]
  %s3 = inlined_call_operand.vmem [shape: bf16[3,384,128], index: 3, kind: input, shape index: {}]
  %s4 = inlined_call_operand.vmem [shape: f32[1,128], index: 4, kind: input, shape index: {}]
  %s5 = inlined_call_operand.vmem [shape: f32[1,128], index: 5, kind: input, shape index: {}]
  %s6 = inlined_call_operand.vmem [shape: f32[1,128], index: 6, kind: input, shape index: {}]
  %s7 = inlined_call_operand.vmem [shape: bf16[2,256,128], index: 7, kind: output, shape index: {}]
  %s8 = sld [smem:[#allocation0]]
  $region61: #{refinement_forward.1} parent=0
    _
  %s10 = ssub.s32 1, %s8
  %s11 = scalar_select 0, %s10, %s8
  loop: start=0, step=1, limit=4
  $region2: #{refinement_forward.1} parent=0 // loop_pre_header
    _
  $region3: #{refinement_forward.1} parent=0 // loop_header
    %s13 = sphi 0, %s17
    %p14 = scmp.ge.s32.totalorder %s13, 4
    %s23 = sphi 0, %s25
    %s26 = sphi 0, %s23
    %s27 = sphi 0, %s26
    %s43 = sphi 0, %s27
    %s47 = sphi 0, %s47
    %s49 = sphi 0, %s47
    %s50 = sphi 0, %s49
    %s64 = sphi 0, %s50
    %s68 = sphi 0, %s68
    %s70 = sphi 0, %s68
    %s71 = sphi 0, %s70
    %s85 = sphi 0, %s71
    %s89 = sphi 0, %s89
    %s91 = sphi 0, %s89
    %s92 = sphi 0, %s91
    %s106 = sphi 0, %s92
    %s110 = sphi 0, %s110
    %s112 = sphi 0, %s110
    %s113 = sphi 0, %s112
    %s127 = sphi 0, %s113
    %s131 = sphi 0, %s131
    %s133 = sphi 0, %s131
    %s134 = sphi 0, %s133
    %s148 = sphi 0, %s134
    %s152 = sphi 0, %s152
    %s154 = sphi 0, %s152
    %s155 = sphi 0, %s154
    %s169 = sphi 0, %s155
    %s175 = sphi 0, %s177
    %s178 = sphi 0, %s175
    %s179 = sphi 0, %s178
    %s195 = sphi 0, %s179
  $region4: #{refinement_forward.1} parent=0 // loop_header_branch
    %16 = sbr.rel (%p14) target = $region8
  $region5: #{refinement_forward.1} parent=0 // loop_body
    %s18 = ssub.s32 %s13, 1
    %s19 = ssub.s32 %s13, 2
    %s20 = sadd.s32 %s13, 1
    %s21 = ssub.s32 %s13, %s20
    %p22 = scmp.eq.s32.totalorder %s21, 0
    %s24 = sadd.s32 %s23, 1
    %s25 = scalar_select %p22, %s23, %s24
    %p28 = pneg %p22
    %p29 = scmp.eq.s32.totalorder %s13, 1
    %p30 = por %p28, %p29
    %p31 = scmp.ne.s32.totalorder %s23, %s26
    %p32 = scmp.eq.s32.totalorder %s13, 0
    %p33 = por %p31, %p32
    %p34 = scmp.ne.s32.totalorder %s23, %s26
    %p35 = scmp.eq.s32.totalorder %s18, 1
    %p36 = por %p34, %p35
    %p37 = scmp.ne.s32.totalorder %s26, %s27
    %p38 = scmp.eq.s32.totalorder %s18, 0
    %p39 = por %p37, %p38
    %p40 = scmp.ne.s32.totalorder %s26, %s27
    %p41 = scmp.eq.s32.totalorder %s19, 1
    %p42 = por %p40, %p41
    %p44 = scmp.ne.s32.totalorder %s27, %s43
    %p45 = scmp.eq.s32.totalorder %s19, 0
    %p46 = por %p44, %p45
    %s48 = sadd.s32 %s47, 1
    %p51 = scmp.eq.s32.totalorder %s13, 1
    %p52 = scmp.ne.s32.totalorder %s47, %s49
    %p53 = scmp.eq.s32.totalorder %s13, 0
    %p54 = por %p52, %p53
    %p55 = scmp.ne.s32.totalorder %s47, %s49
    %p56 = scmp.eq.s32.totalorder %s18, 1
    %p57 = por %p55, %p56
    %p58 = scmp.ne.s32.totalorder %s49, %s50
    %p59 = scmp.eq.s32.totalorder %s18, 0
    %p60 = por %p58, %p59
    %p61 = scmp.ne.s32.totalorder %s49, %s50
    %p62 = scmp.eq.s32.totalorder %s19, 1
    %p63 = por %p61, %p62
    %p65 = scmp.ne.s32.totalorder %s50, %s64
    %p66 = scmp.eq.s32.totalorder %s19, 0
    %p67 = por %p65, %p66
    %s69 = sadd.s32 %s68, 1
    %p72 = scmp.eq.s32.totalorder %s13, 1
    %p73 = scmp.ne.s32.totalorder %s68, %s70
    %p74 = scmp.eq.s32.totalorder %s13, 0
    %p75 = por %p73, %p74
    %p76 = scmp.ne.s32.totalorder %s68, %s70
    %p77 = scmp.eq.s32.totalorder %s18, 1
    %p78 = por %p76, %p77
    %p79 = scmp.ne.s32.totalorder %s70, %s71
    %p80 = scmp.eq.s32.totalorder %s18, 0
    %p81 = por %p79, %p80
    %p82 = scmp.ne.s32.totalorder %s70, %s71
    %p83 = scmp.eq.s32.totalorder %s19, 1
    %p84 = por %p82, %p83
    %p86 = scmp.ne.s32.totalorder %s71, %s85
    %p87 = scmp.eq.s32.totalorder %s19, 0
    %p88 = por %p86, %p87
    %s90 = sadd.s32 %s89, 1
    %p93 = scmp.eq.s32.totalorder %s13, 1
    %p94 = scmp.ne.s32.totalorder %s89, %s91
    %p95 = scmp.eq.s32.totalorder %s13, 0
    %p96 = por %p94, %p95
    %p97 = scmp.ne.s32.totalorder %s89, %s91
    %p98 = scmp.eq.s32.totalorder %s18, 1
    %p99 = por %p97, %p98
    %p100 = scmp.ne.s32.totalorder %s91, %s92
    %p101 = scmp.eq.s32.totalorder %s18, 0
    %p102 = por %p100, %p101
    %p103 = scmp.ne.s32.totalorder %s91, %s92
    %p104 = scmp.eq.s32.totalorder %s19, 1
    %p105 = por %p103, %p104
    %p107 = scmp.ne.s32.totalorder %s92, %s106
    %p108 = scmp.eq.s32.totalorder %s19, 0
    %p109 = por %p107, %p108
    %s111 = sadd.s32 %s110, 1
    %p114 = scmp.eq.s32.totalorder %s13, 1
    %p115 = scmp.ne.s32.totalorder %s110, %s112
    %p116 = scmp.eq.s32.totalorder %s13, 0
    %p117 = por %p115, %p116
    %p118 = scmp.ne.s32.totalorder %s110, %s112
    %p119 = scmp.eq.s32.totalorder %s18, 1
    %p120 = por %p118, %p119
    %p121 = scmp.ne.s32.totalorder %s112, %s113
    %p122 = scmp.eq.s32.totalorder %s18, 0
    %p123 = por %p121, %p122
    %p124 = scmp.ne.s32.totalorder %s112, %s113
    %p125 = scmp.eq.s32.totalorder %s19, 1
    %p126 = por %p124, %p125
    %p128 = scmp.ne.s32.totalorder %s113, %s127
    %p129 = scmp.eq.s32.totalorder %s19, 0
    %p130 = por %p128, %p129
    %s132 = sadd.s32 %s131, 1
    %p135 = scmp.eq.s32.totalorder %s13, 1
    %p136 = scmp.ne.s32.totalorder %s131, %s133
    %p137 = scmp.eq.s32.totalorder %s13, 0
    %p138 = por %p136, %p137
    %p139 = scmp.ne.s32.totalorder %s131, %s133
    %p140 = scmp.eq.s32.totalorder %s18, 1
    %p141 = por %p139, %p140
    %p142 = scmp.ne.s32.totalorder %s133, %s134
    %p143 = scmp.eq.s32.totalorder %s18, 0
    %p144 = por %p142, %p143
    %p145 = scmp.ne.s32.totalorder %s133, %s134
    %p146 = scmp.eq.s32.totalorder %s19, 1
    %p147 = por %p145, %p146
    %p149 = scmp.ne.s32.totalorder %s134, %s148
    %p150 = scmp.eq.s32.totalorder %s19, 0
    %p151 = por %p149, %p150
    %s153 = sadd.s32 %s152, 1
    %p156 = scmp.eq.s32.totalorder %s13, 1
    %p157 = scmp.ne.s32.totalorder %s152, %s154
    %p158 = scmp.eq.s32.totalorder %s13, 0
    %p159 = por %p157, %p158
    %p160 = scmp.ne.s32.totalorder %s152, %s154
    %p161 = scmp.eq.s32.totalorder %s18, 1
    %p162 = por %p160, %p161
    %p163 = scmp.ne.s32.totalorder %s154, %s155
    %p164 = scmp.eq.s32.totalorder %s18, 0
    %p165 = por %p163, %p164
    %p166 = scmp.ne.s32.totalorder %s154, %s155
    %p167 = scmp.eq.s32.totalorder %s19, 1
    %p168 = por %p166, %p167
    %p170 = scmp.ne.s32.totalorder %s155, %s169
    %p171 = scmp.eq.s32.totalorder %s19, 0
    %p172 = por %p170, %p171
    %s173 = ssub.s32 %s13, %s20
    %p174 = scmp.eq.s32.totalorder %s173, 0
    %s176 = sadd.s32 %s175, 1
    %s177 = scalar_select %p174, %s175, %s176
    %p180 = pneg %p174
    %p181 = scmp.eq.s32.totalorder %s13, 1
    %p182 = por %p180, %p181
    %p183 = scmp.ne.s32.totalorder %s175, %s178
    %p184 = scmp.eq.s32.totalorder %s13, 0
    %p185 = por %p183, %p184
    %p186 = scmp.ne.s32.totalorder %s175, %s178
    %p187 = scmp.eq.s32.totalorder %s18, 1
    %p188 = por %p186, %p187
    %p189 = scmp.ne.s32.totalorder %s178, %s179
    %p190 = scmp.eq.s32.totalorder %s18, 0
    %p191 = por %p189, %p190
    %p192 = scmp.ne.s32.totalorder %s178, %s179
    %p193 = scmp.eq.s32.totalorder %s19, 1
    %p194 = por %p192, %p193
    %p196 = scmp.ne.s32.totalorder %s179, %s195
    %p197 = scmp.eq.s32.totalorder %s19, 0
    %p198 = por %p196, %p197
    %p199 = scmp.le.s32.totalorder 1, %s13
    %p200 = scmp.lt.s32.totalorder %s13, 3
    %p201 = pnand %p199, %p200
    %p202 = pneg %p201
    // Predicated region
    $region9: #{refinement_forward.1} parent=5 // pred_check
      _
    $region10: #{refinement_forward.1} parent=5 // pred_check_branch
      %204 = sbr.rel (%p201) target = $region12
    $region11: #{refinement_forward.1} parent=5 // pred_region
      %s205 = ssub.s32 %s13, 1
      // Predicated region
      $region13: #{refinement_forward.1} parent=11 // pred_check
        %p206 = pneg %p60
      $region14: #{refinement_forward.1} parent=11 // pred_check_branch
        %208 = sbr.rel (%p206) target = $region16
      $region15: #{refinement_forward.1} parent=11 // pred_region
        _
      $region16: #{refinement_forward.1} parent=11 // pred_fallthru
        _
      // Predicated region
      $region17: #{refinement_forward.1} parent=11 // pred_check
        %p209 = pneg %p81
      $region18: #{refinement_forward.1} parent=11 // pred_check_branch
        %211 = sbr.rel (%p209) target = $region20
      $region19: #{refinement_forward.1} parent=11 // pred_region
        _
      $region20: #{refinement_forward.1} parent=11 // pred_fallthru
        _
      // Predicated region
      $region21: #{refinement_forward.1} parent=11 // pred_check
        %p212 = pneg %p102
      $region22: #{refinement_forward.1} parent=11 // pred_check_branch
        %214 = sbr.rel (%p212) target = $region24
      $region23: #{refinement_forward.1} parent=11 // pred_region
        _
      $region24: #{refinement_forward.1} parent=11 // pred_fallthru
        _
      // Predicated region
      $region25: #{refinement_forward.1} parent=11 // pred_check
        %p215 = pneg %p123
      $region26: #{refinement_forward.1} parent=11 // pred_check_branch
        %217 = sbr.rel (%p215) target = $region28
      $region27: #{refinement_forward.1} parent=11 // pred_region
        _
      $region28: #{refinement_forward.1} parent=11 // pred_fallthru
        _
      // Predicated region
      $region29: #{refinement_forward.1} parent=11 // pred_check
        %p218 = pneg %p144
      $region30: #{refinement_forward.1} parent=11 // pred_check_branch
        %220 = sbr.rel (%p218) target = $region32
      $region31: #{refinement_forward.1} parent=11 // pred_region
        _
      $region32: #{refinement_forward.1} parent=11 // pred_fallthru
        _
      // Predicated region
      $region33: #{refinement_forward.1} parent=11 // pred_check
        %p221 = pneg %p165
      $region34: #{refinement_forward.1} parent=11 // pred_check_branch
        %223 = sbr.rel (%p221) target = $region36
      $region35: #{refinement_forward.1} parent=11 // pred_region
        _
      $region36: #{refinement_forward.1} parent=11 // pred_fallthru
        _
    $region12: #{refinement_forward.1} parent=5 // pred_fallthru
      _
    %p224 = scmp.lt.s32.totalorder %s13, 2
    // Predicated region
    $region37: #{refinement_forward.1} parent=5 // pred_check
      %p225 = pneg %p224
    $region38: #{refinement_forward.1} parent=5 // pred_check_branch
      %227 = sbr.rel (%p225) target = $region40
    $region39: #{refinement_forward.1} parent=5 // pred_region
      // Predicated region
      $region41: #{refinement_forward.1} parent=39 // pred_check
        %p228 = pneg %p33
      $region42: #{refinement_forward.1} parent=39 // pred_check_branch
        %230 = sbr.rel (%p228) target = $region44
      $region43: #{refinement_forward.1} parent=39 // pred_region
        %p231 = scmp.lt.s32.totalorder %s13, 1
        %s232 = scalar_select %p231, %s13, 1
        %s233 = smul.addr %s232, 32
        %s234 = smul.addr %s233, 4
        %s235 = scalar_lea.vmem %s0, %s234
      $region44: #{refinement_forward.1} parent=39 // pred_fallthru
        _
    $region40: #{refinement_forward.1} parent=5 // pred_fallthru
      _
    %p236 = scmp.le.s32.totalorder 1, %s13
    %p237 = scmp.lt.s32.totalorder %s13, 3
    %p238 = pnand %p236, %p237
    %p239 = pneg %p238
    // Predicated region
    $region45: #{refinement_forward.1} parent=5 // pred_check
      _
    $region46: #{refinement_forward.1} parent=5 // pred_check_branch
      %241 = sbr.rel (%p238) target = $region48
    $region47: #{refinement_forward.1} parent=5 // pred_region
      %s242 = ssub.s32 %s13, 1
      %p243 = scmp.lt.s32.totalorder %s18, 1
      %s244 = scalar_select %p243, %s18, 1
      %s245 = smul.addr %s244, 32
      %s246 = smul.addr %s245, 4
      %s247 = scalar_lea.vmem %s0, %s246
      %p248 = pneg %p39
      %p249 = pneg %p36
      %p250 = pneg %p60
      %p251 = pneg %p57
      %p252 = pneg %p81
      %p253 = pneg %p78
      %p254 = pneg %p102
      %p255 = pneg %p99
      %p256 = pneg %p123
      %p257 = pneg %p120
      %p258 = pneg %p144
      %p259 = pneg %p141
      %p260 = pneg %p165
      %p261 = pneg %p162
      %p262 = pneg %p191
      %p263 = pneg %p188
      %p264 = scmp.lt.s32.totalorder %s18, 1
      %s265 = scalar_select %p264, %s18, 1
      %s266 = smul.addr %s265, 32
      %s267 = smul.addr %s266, 4
      %s268 = scalar_lea.vmem %s7, %s267
      %p269 = scmp.lt.s32.totalorder %s18, 1
      %s270 = scalar_select %p269, %s18, 1
      %s271 = smul.addr %s270, 32
      %s272 = smul.addr %s271, 4
      %s273 = scalar_lea.vmem %s0, %s272
      %p274 = scmp.lt.s32.totalorder %s18, 1
      %s275 = scalar_select %p274, %s18, 1
      %s276 = smul.addr %s275, 32
      %s277 = smul.addr %s276, 4
      %s278 = scalar_lea.vmem %s7, %s277
      %280 = vst [vmem:[#allocation2] sm:$0xf] 0
      %281 = vst [vmem:[#allocation2 + $0x4] sm:$0xf] 0
      %282 = vst [vmem:[#allocation2 + $0x8] sm:$0xf] 0
      %s283 = scalar_lea.vmem [#allocation2], 204
      %284 = vst [vmem:[%s283] sm:$0xf] 0
      %285 = vst [vmem:[%s283 + $0x4] sm:$0xf] 0
      %286 = vst [vmem:[%s283 + $0x8] sm:$0xf] 0
      %s287 = scalar_lea.vmem [#allocation2], 12
      %vm288 = vcmask 1040384
      %vm289 = vsmask.f32 256
      %vm290 = vmand %vm288, %vm289
      %v291 = vld [vmem:[%s287] sm:$0x1]
      %v292 = vsel %vm290, 0, %v291
      %293 = vst [vmem:[%s287] sm:$0x1] %v292
      %v294 = vld [vmem:[%s287 + $0xc] sm:$0x1]
      %v295 = vsel %vm290, 0, %v294
      %296 = vst [vmem:[%s287 + $0xc] sm:$0x1] %v295
      %v297 = vld [vmem:[%s287 + $0x18] sm:$0x1]
      %v298 = vsel %vm290, 0, %v297
      %299 = vst [vmem:[%s287 + $0x18] sm:$0x1] %v298
      %v300 = vld [vmem:[%s287 + $0x24] sm:$0x1]
      %v301 = vsel %vm290, 0, %v300
      %302 = vst [vmem:[%s287 + $0x24] sm:$0x1] %v301
      %v303 = vld [vmem:[%s287 + $0x30] sm:$0x1]
      %v304 = vsel %vm290, 0, %v303
      %305 = vst [vmem:[%s287 + $0x30] sm:$0x1] %v304
      %v306 = vld [vmem:[%s287 + $0x3c] sm:$0x1]
      %v307 = vsel %vm290, 0, %v306
      %308 = vst [vmem:[%s287 + $0x3c] sm:$0x1] %v307
      %v309 = vld [vmem:[%s287 + $0x48] sm:$0x1]
      %v310 = vsel %vm290, 0, %v309
      %311 = vst [vmem:[%s287 + $0x48] sm:$0x1] %v310
      %v312 = vld [vmem:[%s287 + $0x54] sm:$0x1]
      %v313 = vsel %vm290, 0, %v312
      %314 = vst [vmem:[%s287 + $0x54] sm:$0x1] %v313
      %v315 = vld [vmem:[%s287 + $0x60] sm:$0x1]
      %v316 = vsel %vm290, 0, %v315
      %317 = vst [vmem:[%s287 + $0x60] sm:$0x1] %v316
      %v318 = vld [vmem:[%s287 + $0x6c] sm:$0x1]
      %v319 = vsel %vm290, 0, %v318
      %320 = vst [vmem:[%s287 + $0x6c] sm:$0x1] %v319
      %v321 = vld [vmem:[%s287 + $0x78] sm:$0x1]
      %v322 = vsel %vm290, 0, %v321
      %323 = vst [vmem:[%s287 + $0x78] sm:$0x1] %v322
      %v324 = vld [vmem:[%s287 + $0x84] sm:$0x1]
      %v325 = vsel %vm290, 0, %v324
      %326 = vst [vmem:[%s287 + $0x84] sm:$0x1] %v325
      %v327 = vld [vmem:[%s287 + $0x90] sm:$0x1]
      %v328 = vsel %vm290, 0, %v327
      %329 = vst [vmem:[%s287 + $0x90] sm:$0x1] %v328
      %v330 = vld [vmem:[%s287 + $0x9c] sm:$0x1]
      %v331 = vsel %vm290, 0, %v330
      %332 = vst [vmem:[%s287 + $0x9c] sm:$0x1] %v331
      %v333 = vld [vmem:[%s287 + $0xa8] sm:$0x1]
      %v334 = vsel %vm290, 0, %v333
      %335 = vst [vmem:[%s287 + $0xa8] sm:$0x1] %v334
      %v336 = vld [vmem:[%s287 + $0xb4] sm:$0x1]
      %v337 = vsel %vm290, 0, %v336
      %338 = vst [vmem:[%s287 + $0xb4] sm:$0x1] %v337
      %vm339 = vsmask.f32 7938
      %vm340 = vmand %vm288, %vm339
      %v341 = vld [vmem:[%s287 + $0x8] sm:$0x1]
      %v342 = vsel %vm340, 0, %v341
      %343 = vst [vmem:[%s287 + $0x8] sm:$0x1] %v342
      %v344 = vld [vmem:[%s287 + $0x14] sm:$0x1]
      %v345 = vsel %vm340, 0, %v344
      %346 = vst [vmem:[%s287 + $0x14] sm:$0x1] %v345
      %v347 = vld [vmem:[%s287 + $0x20] sm:$0x1]
      %v348 = vsel %vm340, 0, %v347
      %349 = vst [vmem:[%s287 + $0x20] sm:$0x1] %v348
      %v350 = vld [vmem:[%s287 + $0x2c] sm:$0x1]
      %v351 = vsel %vm340, 0, %v350
      %352 = vst [vmem:[%s287 + $0x2c] sm:$0x1] %v351
      %v353 = vld [vmem:[%s287 + $0x38] sm:$0x1]
      %v354 = vsel %vm340, 0, %v353
      %355 = vst [vmem:[%s287 + $0x38] sm:$0x1] %v354
      %v356 = vld [vmem:[%s287 + $0x44] sm:$0x1]
      %v357 = vsel %vm340, 0, %v356
      %358 = vst [vmem:[%s287 + $0x44] sm:$0x1] %v357
      %v359 = vld [vmem:[%s287 + $0x50] sm:$0x1]
      %v360 = vsel %vm340, 0, %v359
      %361 = vst [vmem:[%s287 + $0x50] sm:$0x1] %v360
      %v362 = vld [vmem:[%s287 + $0x5c] sm:$0x1]
      %v363 = vsel %vm340, 0, %v362
      %364 = vst [vmem:[%s287 + $0x5c] sm:$0x1] %v363
      %v365 = vld [vmem:[%s287 + $0x68] sm:$0x1]
      %v366 = vsel %vm340, 0, %v365
      %367 = vst [vmem:[%s287 + $0x68] sm:$0x1] %v366
      %v368 = vld [vmem:[%s287 + $0x74] sm:$0x1]
      %v369 = vsel %vm340, 0, %v368
      %370 = vst [vmem:[%s287 + $0x74] sm:$0x1] %v369
      %v371 = vld [vmem:[%s287 + $0x80] sm:$0x1]
      %v372 = vsel %vm340, 0, %v371
      %373 = vst [vmem:[%s287 + $0x80] sm:$0x1] %v372
      %v374 = vld [vmem:[%s287 + $0x8c] sm:$0x1]
      %v375 = vsel %vm340, 0, %v374
      %376 = vst [vmem:[%s287 + $0x8c] sm:$0x1] %v375
      %v377 = vld [vmem:[%s287 + $0x98] sm:$0x1]
      %v378 = vsel %vm340, 0, %v377
      %379 = vst [vmem:[%s287 + $0x98] sm:$0x1] %v378
      %v380 = vld [vmem:[%s287 + $0xa4] sm:$0x1]
      %v381 = vsel %vm340, 0, %v380
      %382 = vst [vmem:[%s287 + $0xa4] sm:$0x1] %v381
      %v383 = vld [vmem:[%s287 + $0xb0] sm:$0x1]
      %v384 = vsel %vm340, 0, %v383
      %385 = vst [vmem:[%s287 + $0xb0] sm:$0x1] %v384
      %v386 = vld [vmem:[%s287 + $0xbc] sm:$0x1]
      %v387 = vsel %vm340, 0, %v386
      %388 = vst [vmem:[%s287 + $0xbc] sm:$0x1] %v387
      %v389 = vld [vmem:[%s273] sm:$0xf]
      %v390 = vld [vmem:[%s273 + $0x4] sm:$0xf]
      %v391 = vld [vmem:[%s273 + $0x8] sm:$0xf]
      %v392 = vld [vmem:[%s273 + $0xc] sm:$0xf]
      %v393 = vld [vmem:[%s273 + $0x10] sm:$0xf]
      %v394 = vld [vmem:[%s273 + $0x14] sm:$0xf]
      %v395 = vld [vmem:[%s273 + $0x18] sm:$0xf]
      %v396 = vld [vmem:[%s273 + $0x1c] sm:$0xf]
      %v397 = vld [vmem:[%s273 + $0x20] sm:$0xf]
      %v398 = vld [vmem:[%s273 + $0x24] sm:$0xf]
      %v399 = vld [vmem:[%s273 + $0x28] sm:$0xf]
      %v400 = vld [vmem:[%s273 + $0x2c] sm:$0xf]
      %v401 = vld [vmem:[%s273 + $0x30] sm:$0xf]
      %v402 = vld [vmem:[%s273 + $0x34] sm:$0xf]
      %v403 = vld [vmem:[%s273 + $0x38] sm:$0xf]
      %v404 = vld [vmem:[%s273 + $0x3c] sm:$0xf]
      %v405 = vld [vmem:[%s273 + $0x40] sm:$0xf]
      %v406 = vld [vmem:[%s273 + $0x44] sm:$0xf]
      %v407 = vld [vmem:[%s273 + $0x48] sm:$0xf]
      %v408 = vld [vmem:[%s273 + $0x4c] sm:$0xf]
      %v409 = vld [vmem:[%s273 + $0x50] sm:$0xf]
      %v410 = vld [vmem:[%s273 + $0x54] sm:$0xf]
      %v411 = vld [vmem:[%s273 + $0x58] sm:$0xf]
      %v412 = vld [vmem:[%s273 + $0x5c] sm:$0xf]
      %v413 = vld [vmem:[%s273 + $0x60] sm:$0xf]
      %v414 = vld [vmem:[%s273 + $0x64] sm:$0xf]
      %v415 = vld [vmem:[%s273 + $0x68] sm:$0xf]
      %v416 = vld [vmem:[%s273 + $0x6c] sm:$0xf]
      %v417 = vld [vmem:[%s273 + $0x70] sm:$0xf]
      %v418 = vld [vmem:[%s273 + $0x74] sm:$0xf]
      %v419 = vld [vmem:[%s273 + $0x78] sm:$0xf]
      %v420 = vld [vmem:[%s273 + $0x7c] sm:$0xf]
      %vm421 = vsmask.f32 4368
      %vm422 = vmor %vm289, %vm421
      %v424 = vshrl.u32 %v389, 16
      %v426 = vrot.slane %v424, 7
      %v427 = vshll.u32 %v389, 16
      %v429 = vor.u32 %v426, %v427
      %v430 = vrot.slane %v426, 4
      %v432 = vshrl.u32 %v390, 16
      %v434 = vrot.slane %v432, 7
      %v435 = vshll.u32 %v390, 16
      %v437 = vor.u32 %v434, %v435
      %v438 = vsel %vm422, %v430, %v437
      %v439 = vrot.slane %v434, 4
      %v441 = vshrl.u32 %v391, 16
      %v443 = vrot.slane %v441, 7
      %v444 = vshll.u32 %v391, 16
      %v446 = vor.u32 %v443, %v444
      %v447 = vrot.slane %v443, 4
      %v449 = vshrl.u32 %v392, 16
      %v451 = vrot.slane %v449, 7
      %v452 = vshll.u32 %v392, 16
      %v454 = vor.u32 %v451, %v452
      %v455 = vsel %vm422, %v447, %v454
      %v456 = vrot.slane %v451, 4
      %v458 = vshrl.u32 %v393, 16
      %v460 = vrot.slane %v458, 7
      %v461 = vshll.u32 %v393, 16
      %v463 = vor.u32 %v460, %v461
      %v464 = vrot.slane %v460, 4
      %v466 = vshrl.u32 %v394, 16
      %v468 = vrot.slane %v466, 7
      %v469 = vshll.u32 %v394, 16
      %v471 = vor.u32 %v468, %v469
      %v472 = vsel %vm422, %v464, %v471
      %v473 = vrot.slane %v468, 4
      %v475 = vshrl.u32 %v395, 16
      %v477 = vrot.slane %v475, 7
      %v478 = vshll.u32 %v395, 16
      %v480 = vor.u32 %v477, %v478
      %v481 = vrot.slane %v477, 4
      %v483 = vshrl.u32 %v396, 16
      %v485 = vrot.slane %v483, 7
      %v486 = vshll.u32 %v396, 16
      %v488 = vor.u32 %v485, %v486
      %v489 = vsel %vm422, %v481, %v488
      %v490 = vrot.slane %v485, 4
      %v492 = vshrl.u32 %v397, 16
      %v494 = vrot.slane %v492, 7
      %v495 = vshll.u32 %v397, 16
      %v497 = vor.u32 %v494, %v495
      %v498 = vrot.slane %v494, 4
      %v500 = vshrl.u32 %v398, 16
      %v502 = vrot.slane %v500, 7
      %v503 = vshll.u32 %v398, 16
      %v505 = vor.u32 %v502, %v503
      %v506 = vsel %vm422, %v498, %v505
      %v507 = vrot.slane %v502, 4
      %v509 = vshrl.u32 %v399, 16
      %v511 = vrot.slane %v509, 7
      %v512 = vshll.u32 %v399, 16
      %v514 = vor.u32 %v511, %v512
      %v515 = vrot.slane %v511, 4
      %v517 = vshrl.u32 %v400, 16
      %v519 = vrot.slane %v517, 7
      %v520 = vshll.u32 %v400, 16
      %v522 = vor.u32 %v519, %v520
      %v523 = vsel %vm422, %v515, %v522
      %v524 = vrot.slane %v519, 4
      %v526 = vshrl.u32 %v401, 16
      %v528 = vrot.slane %v526, 7
      %v529 = vshll.u32 %v401, 16
      %v531 = vor.u32 %v528, %v529
      %v532 = vrot.slane %v528, 4
      %v534 = vshrl.u32 %v402, 16
      %v536 = vrot.slane %v534, 7
      %v537 = vshll.u32 %v402, 16
      %v539 = vor.u32 %v536, %v537
      %v540 = vsel %vm422, %v532, %v539
      %v541 = vrot.slane %v536, 4
      %v543 = vshrl.u32 %v403, 16
      %v545 = vrot.slane %v543, 7
      %v546 = vshll.u32 %v403, 16
      %v548 = vor.u32 %v545, %v546
      %v549 = vrot.slane %v545, 4
      %v551 = vshrl.u32 %v404, 16
      %v553 = vrot.slane %v551, 7
      %v554 = vshll.u32 %v404, 16
      %v556 = vor.u32 %v553, %v554
      %v557 = vsel %vm422, %v549, %v556
      %v558 = vrot.slane %v553, 4
      %v560 = vshrl.u32 %v405, 16
      %v562 = vrot.slane %v560, 7
      %v563 = vshll.u32 %v405, 16
      %v565 = vor.u32 %v562, %v563
      %v566 = vrot.slane %v562, 4
      %v568 = vshrl.u32 %v406, 16
      %v570 = vrot.slane %v568, 7
      %v571 = vshll.u32 %v406, 16
      %v573 = vor.u32 %v570, %v571
      %v574 = vsel %vm422, %v566, %v573
      %v575 = vrot.slane %v570, 4
      %v577 = vshrl.u32 %v407, 16
      %v579 = vrot.slane %v577, 7
      %v580 = vshll.u32 %v407, 16
      %v582 = vor.u32 %v579, %v580
      %v583 = vrot.slane %v579, 4
      %v585 = vshrl.u32 %v408, 16
      %v587 = vrot.slane %v585, 7
      %v588 = vshll.u32 %v408, 16
      %v590 = vor.u32 %v587, %v588
      %v591 = vsel %vm422, %v583, %v590
      %v592 = vrot.slane %v587, 4
      %v594 = vshrl.u32 %v409, 16
      %v596 = vrot.slane %v594, 7
      %v597 = vshll.u32 %v409, 16
      %v599 = vor.u32 %v596, %v597
      %v600 = vrot.slane %v596, 4
      %v602 = vshrl.u32 %v410, 16
      %v604 = vrot.slane %v602, 7
      %v605 = vshll.u32 %v410, 16
      %v607 = vor.u32 %v604, %v605
      %v608 = vsel %vm422, %v600, %v607
      %v609 = vrot.slane %v604, 4
      %v611 = vshrl.u32 %v411, 16
      %v613 = vrot.slane %v611, 7
      %v614 = vshll.u32 %v411, 16
      %v616 = vor.u32 %v613, %v614
      %v617 = vrot.slane %v613, 4
      %v619 = vshrl.u32 %v412, 16
      %v621 = vrot.slane %v619, 7
      %v622 = vshll.u32 %v412, 16
      %v624 = vor.u32 %v621, %v622
      %v625 = vsel %vm422, %v617, %v624
      %v626 = vrot.slane %v621, 4
      %v628 = vshrl.u32 %v413, 16
      %v630 = vrot.slane %v628, 7
      %v631 = vshll.u32 %v413, 16
      %v633 = vor.u32 %v630, %v631
      %v634 = vrot.slane %v630, 4
      %v636 = vshrl.u32 %v414, 16
      %v638 = vrot.slane %v636, 7
      %v639 = vshll.u32 %v414, 16
      %v641 = vor.u32 %v638, %v639
      %v642 = vsel %vm422, %v634, %v641
      %v643 = vrot.slane %v638, 4
      %v645 = vshrl.u32 %v415, 16
      %v647 = vrot.slane %v645, 7
      %v648 = vshll.u32 %v415, 16
      %v650 = vor.u32 %v647, %v648
      %v651 = vrot.slane %v647, 4
      %v653 = vshrl.u32 %v416, 16
      %v655 = vrot.slane %v653, 7
      %v656 = vshll.u32 %v416, 16
      %v658 = vor.u32 %v655, %v656
      %v659 = vsel %vm422, %v651, %v658
      %v660 = vrot.slane %v655, 4
      %v662 = vshrl.u32 %v417, 16
      %v664 = vrot.slane %v662, 7
      %v665 = vshll.u32 %v417, 16
      %v667 = vor.u32 %v664, %v665
      %v668 = vrot.slane %v664, 4
      %v670 = vshrl.u32 %v418, 16
      %v672 = vrot.slane %v670, 7
      %v673 = vshll.u32 %v418, 16
      %v675 = vor.u32 %v672, %v673
      %v676 = vsel %vm422, %v668, %v675
      %v677 = vrot.slane %v672, 4
      %v679 = vshrl.u32 %v419, 16
      %v681 = vrot.slane %v679, 7
      %v682 = vshll.u32 %v419, 16
      %v684 = vor.u32 %v681, %v682
      %v685 = vrot.slane %v681, 4
      %v687 = vshrl.u32 %v420, 16
      %v689 = vrot.slane %v687, 7
      %v690 = vshll.u32 %v420, 16
      %v692 = vor.u32 %v689, %v690
      %v693 = vsel %vm422, %v685, %v692
      %v694 = vrot.slane %v689, 4
      %vm743 = vcmask 1043456
      %vm744 = vmand %vm743, %vm339
      %v745 = vld [vmem:[%s287] sm:$0xf]
      %v746 = vsel %vm744, %v429, %v745
      %747 = vst [vmem:[%s287] sm:$0xf] %v746
      %748 = vst [vmem:[%s287 + $0x4] sm:$0xf] %v438
      %v749 = vld [vmem:[%s287 + $0x8] sm:$0x1]
      %v750 = vsel %vm290, %v439, %v749
      %751 = vst [vmem:[%s287 + $0x8] sm:$0x1] %v750
      %v752 = vld [vmem:[%s287 + $0xc] sm:$0xf]
      %v753 = vsel %vm744, %v446, %v752
      %754 = vst [vmem:[%s287 + $0xc] sm:$0xf] %v753
      %755 = vst [vmem:[%s287 + $0x10] sm:$0xf] %v455
      %v756 = vld [vmem:[%s287 + $0x14] sm:$0x1]
      %v757 = vsel %vm290, %v456, %v756
      %758 = vst [vmem:[%s287 + $0x14] sm:$0x1] %v757
      %v759 = vld [vmem:[%s287 + $0x18] sm:$0xf]
      %v760 = vsel %vm744, %v463, %v759
      %761 = vst [vmem:[%s287 + $0x18] sm:$0xf] %v760
      %762 = vst [vmem:[%s287 + $0x1c] sm:$0xf] %v472
      %v763 = vld [vmem:[%s287 + $0x20] sm:$0x1]
      %v764 = vsel %vm290, %v473, %v763
      %765 = vst [vmem:[%s287 + $0x20] sm:$0x1] %v764
      %v766 = vld [vmem:[%s287 + $0x24] sm:$0xf]
      %v767 = vsel %vm744, %v480, %v766
      %768 = vst [vmem:[%s287 + $0x24] sm:$0xf] %v767
      %769 = vst [vmem:[%s287 + $0x28] sm:$0xf] %v489
      %v770 = vld [vmem:[%s287 + $0x2c] sm:$0x1]
      %v771 = vsel %vm290, %v490, %v770
      %772 = vst [vmem:[%s287 + $0x2c] sm:$0x1] %v771
      %v773 = vld [vmem:[%s287 + $0x30] sm:$0xf]
      %v774 = vsel %vm744, %v497, %v773
      %775 = vst [vmem:[%s287 + $0x30] sm:$0xf] %v774
      %776 = vst [vmem:[%s287 + $0x34] sm:$0xf] %v506
      %v777 = vld [vmem:[%s287 + $0x38] sm:$0x1]
      %v778 = vsel %vm290, %v507, %v777
      %779 = vst [vmem:[%s287 + $0x38] sm:$0x1] %v778
      %v780 = vld [vmem:[%s287 + $0x3c] sm:$0xf]
      %v781 = vsel %vm744, %v514, %v780
      %782 = vst [vmem:[%s287 + $0x3c] sm:$0xf] %v781
      %783 = vst [vmem:[%s287 + $0x40] sm:$0xf] %v523
      %v784 = vld [vmem:[%s287 + $0x44] sm:$0x1]
      %v785 = vsel %vm290, %v524, %v784
      %786 = vst [vmem:[%s287 + $0x44] sm:$0x1] %v785
      %v787 = vld [vmem:[%s287 + $0x48] sm:$0xf]
      %v788 = vsel %vm744, %v531, %v787
      %789 = vst [vmem:[%s287 + $0x48] sm:$0xf] %v788
      %790 = vst [vmem:[%s287 + $0x4c] sm:$0xf] %v540
      %v791 = vld [vmem:[%s287 + $0x50] sm:$0x1]
      %v792 = vsel %vm290, %v541, %v791
      %793 = vst [vmem:[%s287 + $0x50] sm:$0x1] %v792
      %v794 = vld [vmem:[%s287 + $0x54] sm:$0xf]
      %v795 = vsel %vm744, %v548, %v794
      %796 = vst [vmem:[%s287 + $0x54] sm:$0xf] %v795
      %797 = vst [vmem:[%s287 + $0x58] sm:$0xf] %v557
      %v798 = vld [vmem:[%s287 + $0x5c] sm:$0x1]
      %v799 = vsel %vm290, %v558, %v798
      %800 = vst [vmem:[%s287 + $0x5c] sm:$0x1] %v799
      %v801 = vld [vmem:[%s287 + $0x60] sm:$0xf]
      %v802 = vsel %vm744, %v565, %v801
      %803 = vst [vmem:[%s287 + $0x60] sm:$0xf] %v802
      %804 = vst [vmem:[%s287 + $0x64] sm:$0xf] %v574
      %v805 = vld [vmem:[%s287 + $0x68] sm:$0x1]
      %v806 = vsel %vm290, %v575, %v805
      %807 = vst [vmem:[%s287 + $0x68] sm:$0x1] %v806
      %v808 = vld [vmem:[%s287 + $0x6c] sm:$0xf]
      %v809 = vsel %vm744, %v582, %v808
      %810 = vst [vmem:[%s287 + $0x6c] sm:$0xf] %v809
      %811 = vst [vmem:[%s287 + $0x70] sm:$0xf] %v591
      %v812 = vld [vmem:[%s287 + $0x74] sm:$0x1]
      %v813 = vsel %vm290, %v592, %v812
      %814 = vst [vmem:[%s287 + $0x74] sm:$0x1] %v813
      %v815 = vld [vmem:[%s287 + $0x78] sm:$0xf]
      %v816 = vsel %vm744, %v599, %v815
      %817 = vst [vmem:[%s287 + $0x78] sm:$0xf] %v816
      %818 = vst [vmem:[%s287 + $0x7c] sm:$0xf] %v608
      %v819 = vld [vmem:[%s287 + $0x80] sm:$0x1]
      %v820 = vsel %vm290, %v609, %v819
      %821 = vst [vmem:[%s287 + $0x80] sm:$0x1] %v820
      %v822 = vld [vmem:[%s287 + $0x84] sm:$0xf]
      %v823 = vsel %vm744, %v616, %v822
      %824 = vst [vmem:[%s287 + $0x84] sm:$0xf] %v823
      %825 = vst [vmem:[%s287 + $0x88] sm:$0xf] %v625
      %v826 = vld [vmem:[%s287 + $0x8c] sm:$0x1]
      %v827 = vsel %vm290, %v626, %v826
      %828 = vst [vmem:[%s287 + $0x8c] sm:$0x1] %v827
      %v829 = vld [vmem:[%s287 + $0x90] sm:$0xf]
      %v830 = vsel %vm744, %v633, %v829
      %831 = vst [vmem:[%s287 + $0x90] sm:$0xf] %v830
      %832 = vst [vmem:[%s287 + $0x94] sm:$0xf] %v642
      %v833 = vld [vmem:[%s287 + $0x98] sm:$0x1]
      %v834 = vsel %vm290, %v643, %v833
      %835 = vst [vmem:[%s287 + $0x98] sm:$0x1] %v834
      %v836 = vld [vmem:[%s287 + $0x9c] sm:$0xf]
      %v837 = vsel %vm744, %v650, %v836
      %838 = vst [vmem:[%s287 + $0x9c] sm:$0xf] %v837
      %839 = vst [vmem:[%s287 + $0xa0] sm:$0xf] %v659
      %v840 = vld [vmem:[%s287 + $0xa4] sm:$0x1]
      %v841 = vsel %vm290, %v660, %v840
      %842 = vst [vmem:[%s287 + $0xa4] sm:$0x1] %v841
      %v843 = vld [vmem:[%s287 + $0xa8] sm:$0xf]
      %v844 = vsel %vm744, %v667, %v843
      %845 = vst [vmem:[%s287 + $0xa8] sm:$0xf] %v844
      %846 = vst [vmem:[%s287 + $0xac] sm:$0xf] %v676
      %v847 = vld [vmem:[%s287 + $0xb0] sm:$0x1]
      %v848 = vsel %vm290, %v677, %v847
      %849 = vst [vmem:[%s287 + $0xb0] sm:$0x1] %v848
      %v850 = vld [vmem:[%s287 + $0xb4] sm:$0xf]
      %v851 = vsel %vm744, %v684, %v850
      %852 = vst [vmem:[%s287 + $0xb4] sm:$0xf] %v851
      %853 = vst [vmem:[%s287 + $0xb8] sm:$0xf] %v693
      %v854 = vld [vmem:[%s287 + $0xbc] sm:$0x1]
      %v855 = vsel %vm290, %v694, %v854
      %856 = vst [vmem:[%s287 + $0xbc] sm:$0x1] %v855
      %v857 = vld [vmem:[#allocation2] sm:$0xf]
      %v858 = vld [vmem:[#allocation2 + $0x4] sm:$0xf]
      %v859 = vld [vmem:[#allocation2 + $0xc] sm:$0xf]
      %v860 = vld [vmem:[#allocation2 + $0x10] sm:$0xf]
      %v861 = vld [vmem:[#allocation2 + $0x18] sm:$0xf]
      %v862 = vld [vmem:[#allocation2 + $0x1c] sm:$0xf]
      %v863 = vld [vmem:[#allocation2 + $0x24] sm:$0xf]
      %v864 = vld [vmem:[#allocation2 + $0x28] sm:$0xf]
      %v865 = vld [vmem:[#allocation2 + $0x30] sm:$0xf]
      %v866 = vld [vmem:[#allocation2 + $0x34] sm:$0xf]
      %v867 = vld [vmem:[#allocation2 + $0x3c] sm:$0xf]
      %v868 = vld [vmem:[#allocation2 + $0x40] sm:$0xf]
      %v869 = vld [vmem:[#allocation2 + $0x48] sm:$0xf]
      %v870 = vld [vmem:[#allocation2 + $0x4c] sm:$0xf]
      %v871 = vld [vmem:[#allocation2 + $0x54] sm:$0xf]
      %v872 = vld [vmem:[#allocation2 + $0x58] sm:$0xf]
      %v873 = vld [vmem:[#allocation2 + $0x60] sm:$0xf]
      %v874 = vld [vmem:[#allocation2 + $0x64] sm:$0xf]
      %v875 = vld [vmem:[#allocation2 + $0x6c] sm:$0xf]
      %v876 = vld [vmem:[#allocation2 + $0x70] sm:$0xf]
      %v877 = vld [vmem:[#allocation2 + $0x78] sm:$0xf]
      %v878 = vld [vmem:[#allocation2 + $0x7c] sm:$0xf]
      %v879 = vld [vmem:[#allocation2 + $0x84] sm:$0xf]
      %v880 = vld [vmem:[#allocation2 + $0x88] sm:$0xf]
      %v881 = vld [vmem:[#allocation2 + $0x90] sm:$0xf]
      %v882 = vld [vmem:[#allocation2 + $0x94] sm:$0xf]
      %v883 = vld [vmem:[#allocation2 + $0x9c] sm:$0xf]
      %v884 = vld [vmem:[#allocation2 + $0xa0] sm:$0xf]
      %v885 = vld [vmem:[#allocation2 + $0xa8] sm:$0xf]
      %v886 = vld [vmem:[#allocation2 + $0xac] sm:$0xf]
      %v887 = vld [vmem:[#allocation2 + $0xb4] sm:$0xf]
      %v888 = vld [vmem:[#allocation2 + $0xb8] sm:$0xf]
      %v889 = vld [vmem:[#allocation2 + $0xc0] sm:$0xf]
      %v890 = vld [vmem:[#allocation2 + $0xc4] sm:$0xf]
      %v891 = vld [vmem:[#allocation2 + $0xcc] sm:$0xf]
      %v892 = vld [vmem:[#allocation2 + $0xd0] sm:$0xf]
      %893 = vst [vmem:[#allocation3] sm:$0xf] %v857
      %894 = vst [vmem:[#allocation3 + $0xc] sm:$0xf] %v858
      %895 = vst [vmem:[#allocation3 + $0x18] sm:$0xf] %v859
      %896 = vst [vmem:[#allocation3 + $0x24] sm:$0xf] %v860
      %897 = vst [vmem:[#allocation3 + $0x30] sm:$0xf] %v861
      %898 = vst [vmem:[#allocation3 + $0x3c] sm:$0xf] %v862
      %899 = vst [vmem:[#allocation3 + $0x48] sm:$0xf] %v863
      %900 = vst [vmem:[#allocation3 + $0x54] sm:$0xf] %v864
      %901 = vst [vmem:[#allocation3 + $0x60] sm:$0xf] %v865
      %902 = vst [vmem:[#allocation3 + $0x6c] sm:$0xf] %v866
      %903 = vst [vmem:[#allocation3 + $0x78] sm:$0xf] %v867
      %904 = vst [vmem:[#allocation3 + $0x84] sm:$0xf] %v868
      %905 = vst [vmem:[#allocation3 + $0x90] sm:$0xf] %v869
      %906 = vst [vmem:[#allocation3 + $0x9c] sm:$0xf] %v870
      %907 = vst [vmem:[#allocation3 + $0xa8] sm:$0xf] %v871
      %908 = vst [vmem:[#allocation3 + $0xb4] sm:$0xf] %v872
      %909 = vst [vmem:[#allocation3 + $0xc0] sm:$0xf] %v873
      %910 = vst [vmem:[#allocation3 + $0xcc] sm:$0xf] %v874
      %911 = vst [vmem:[#allocation3 + $0xd8] sm:$0xf] %v875
      %912 = vst [vmem:[#allocation3 + $0xe4] sm:$0xf] %v876
      %913 = vst [vmem:[#allocation3 + $0xf0] sm:$0xf] %v877
      %914 = vst [vmem:[#allocation3 + $0xfc] sm:$0xf] %v878
      %915 = vst [vmem:[#allocation3 + $0x108] sm:$0xf] %v879
      %916 = vst [vmem:[#allocation3 + $0x114] sm:$0xf] %v880
      %917 = vst [vmem:[#allocation3 + $0x120] sm:$0xf] %v881
      %918 = vst [vmem:[#allocation3 + $0x12c] sm:$0xf] %v882
      %919 = vst [vmem:[#allocation3 + $0x138] sm:$0xf] %v883
      %920 = vst [vmem:[#allocation3 + $0x144] sm:$0xf] %v884
      %921 = vst [vmem:[#allocation3 + $0x150] sm:$0xf] %v885
      %922 = vst [vmem:[#allocation3 + $0x15c] sm:$0xf] %v886
      %923 = vst [vmem:[#allocation3 + $0x168] sm:$0xf] %v887
      %924 = vst [vmem:[#allocation3 + $0x174] sm:$0xf] %v888
      %925 = vst [vmem:[#allocation3 + $0x180] sm:$0xf] %v889
      %926 = vst [vmem:[#allocation3 + $0x18c] sm:$0xf] %v890
      %927 = vst [vmem:[#allocation3 + $0x198] sm:$0xf] %v891
      %928 = vst [vmem:[#allocation3 + $0x1a4] sm:$0xf] %v892
      %v929 = vld [vmem:[#allocation2] sm:$0xf]
      %v930 = vld [vmem:[#allocation2 + $0x4] sm:$0xf]
      %v931 = vld [vmem:[#allocation2 + $0x8] sm:$0x1]
      %v932 = vld [vmem:[#allocation2 + $0xc] sm:$0xf]
      %v933 = vld [vmem:[#allocation2 + $0x10] sm:$0xf]
      %v934 = vld [vmem:[#allocation2 + $0x14] sm:$0x1]
      %v935 = vld [vmem:[#allocation2 + $0x18] sm:$0xf]
      %v936 = vld [vmem:[#allocation2 + $0x1c] sm:$0xf]
      %v937 = vld [vmem:[#allocation2 + $0x20] sm:$0x1]
      %v938 = vld [vmem:[#allocation2 + $0x24] sm:$0xf]
      %v939 = vld [vmem:[#allocation2 + $0x28] sm:$0xf]
      %v940 = vld [vmem:[#allocation2 + $0x2c] sm:$0x1]
      %v941 = vld [vmem:[#allocation2 + $0x30] sm:$0xf]
      %v942 = vld [vmem:[#allocation2 + $0x34] sm:$0xf]
      %v943 = vld [vmem:[#allocation2 + $0x38] sm:$0x1]
      %v944 = vld [vmem:[#allocation2 + $0x3c] sm:$0xf]
      %v945 = vld [vmem:[#allocation2 + $0x40] sm:$0xf]
      %v946 = vld [vmem:[#allocation2 + $0x44] sm:$0x1]
      %v947 = vld [vmem:[#allocation2 + $0x48] sm:$0xf]
      %v948 = vld [vmem:[#allocation2 + $0x4c] sm:$0xf]
      %v949 = vld [vmem:[#allocation2 + $0x50] sm:$0x1]
      %v950 = vld [vmem:[#allocation2 + $0x54] sm:$0xf]
      %v951 = vld [vmem:[#allocation2 + $0x58] sm:$0xf]
      %v952 = vld [vmem:[#allocation2 + $0x5c] sm:$0x1]
      %v953 = vld [vmem:[#allocation2 + $0x60] sm:$0xf]
      %v954 = vld [vmem:[#allocation2 + $0x64] sm:$0xf]
      %v955 = vld [vmem:[#allocation2 + $0x68] sm:$0x1]
      %v956 = vld [vmem:[#allocation2 + $0x6c] sm:$0xf]
      %v957 = vld [vmem:[#allocation2 + $0x70] sm:$0xf]
      %v958 = vld [vmem:[#allocation2 + $0x74] sm:$0x1]
      %v959 = vld [vmem:[#allocation2 + $0x78] sm:$0xf]
      %v960 = vld [vmem:[#allocation2 + $0x7c] sm:$0xf]
      %v961 = vld [vmem:[#allocation2 + $0x80] sm:$0x1]
      %v962 = vld [vmem:[#allocation2 + $0x84] sm:$0xf]
      %v963 = vld [vmem:[#allocation2 + $0x88] sm:$0xf]
      %v964 = vld [vmem:[#allocation2 + $0x8c] sm:$0x1]
      %v965 = vld [vmem:[#allocation2 + $0x90] sm:$0xf]
      %v966 = vld [vmem:[#allocation2 + $0x94] sm:$0xf]
      %v967 = vld [vmem:[#allocation2 + $0x98] sm:$0x1]
      %v968 = vld [vmem:[#allocation2 + $0x9c] sm:$0xf]
      %v969 = vld [vmem:[#allocation2 + $0xa0] sm:$0xf]
      %v970 = vld [vmem:[#allocation2 + $0xa4] sm:$0x1]
      %v971 = vld [vmem:[#allocation2 + $0xa8] sm:$0xf]
      %v972 = vld [vmem:[#allocation2 + $0xac] sm:$0xf]
      %v973 = vld [vmem:[#allocation2 + $0xb0] sm:$0x1]
      %v974 = vld [vmem:[#allocation2 + $0xb4] sm:$0xf]
      %v975 = vld [vmem:[#allocation2 + $0xb8] sm:$0xf]
      %v976 = vld [vmem:[#allocation2 + $0xbc] sm:$0x1]
      %v977 = vld [vmem:[#allocation2 + $0xc0] sm:$0xf]
      %v978 = vld [vmem:[#allocation2 + $0xc4] sm:$0xf]
      %v979 = vld [vmem:[#allocation2 + $0xc8] sm:$0x1]
      %v980 = vld [vmem:[#allocation2 + $0xcc] sm:$0xf]
      %v981 = vld [vmem:[#allocation2 + $0xd0] sm:$0xf]
      %v982 = vld [vmem:[#allocation2 + $0xd4] sm:$0x1]
      %vm983 = vsmask.f32 3328
      %vm984 = vsmask.f32 7440
      %vm985 = vmor %vm983, %vm984
      %v987 = vshrl.u32 %v929, 16
      %v989 = vrot.slane %v987, 4
      %v990 = vshll.u32 %v929, 16
      %v992 = vrot.slane %v990, 5
      %v993 = vor.u32 %v989, %v992
      %v994 = vrot.slane %v993, 4
      %v996 = vshll.u32 %v930, 16
      %v998 = vrot.slane %v996, 5
      %v999 = vsel %vm985, %v994, %v998
      %v1000 = vshrl.u32 %v930, 16
      %v1002 = vrot.slane %v1000, 4
      %v1003 = vor.u32 %v1002, %v998
      %v1004 = vrot.slane %v1003, 4
      %v1006 = vshll.u32 %v931, 16
      %v1008 = vrot.slane %v1006, 5
      %v1009 = vsel %vm985, %v1004, %v1008
      %v1011 = vshrl.u32 %v932, 16
      %v1013 = vrot.slane %v1011, 4
      %v1014 = vshll.u32 %v932, 16
      %v1016 = vrot.slane %v1014, 5
      %v1017 = vor.u32 %v1013, %v1016
      %v1018 = vrot.slane %v1017, 4
      %v1020 = vshll.u32 %v933, 16
      %v1022 = vrot.slane %v1020, 5
      %v1023 = vsel %vm985, %v1018, %v1022
      %v1024 = vshrl.u32 %v933, 16
      %v1026 = vrot.slane %v1024, 4
      %v1027 = vor.u32 %v1026, %v1022
      %v1028 = vrot.slane %v1027, 4
      %v1030 = vshll.u32 %v934, 16
      %v1032 = vrot.slane %v1030, 5
      %v1033 = vsel %vm985, %v1028, %v1032
      %v1035 = vshrl.u32 %v935, 16
      %v1037 = vrot.slane %v1035, 4
      %v1038 = vshll.u32 %v935, 16
      %v1040 = vrot.slane %v1038, 5
      %v1041 = vor.u32 %v1037, %v1040
      %v1042 = vrot.slane %v1041, 4
      %v1044 = vshll.u32 %v936, 16
      %v1046 = vrot.slane %v1044, 5
      %v1047 = vsel %vm985, %v1042, %v1046
      %v1048 = vshrl.u32 %v936, 16
      %v1050 = vrot.slane %v1048, 4
      %v1051 = vor.u32 %v1050, %v1046
      %v1052 = vrot.slane %v1051, 4
      %v1054 = vshll.u32 %v937, 16
      %v1056 = vrot.slane %v1054, 5
      %v1057 = vsel %vm985, %v1052, %v1056
      %v1059 = vshrl.u32 %v938, 16
      %v1061 = vrot.slane %v1059, 4
      %v1062 = vshll.u32 %v938, 16
      %v1064 = vrot.slane %v1062, 5
      %v1065 = vor.u32 %v1061, %v1064
      %v1066 = vrot.slane %v1065, 4
      %v1068 = vshll.u32 %v939, 16
      %v1070 = vrot.slane %v1068, 5
      %v1071 = vsel %vm985, %v1066, %v1070
      %v1072 = vshrl.u32 %v939, 16
      %v1074 = vrot.slane %v1072, 4
      %v1075 = vor.u32 %v1074, %v1070
      %v1076 = vrot.slane %v1075, 4
      %v1078 = vshll.u32 %v940, 16
      %v1080 = vrot.slane %v1078, 5
      %v1081 = vsel %vm985, %v1076, %v1080
      %v1083 = vshrl.u32 %v941, 16
      %v1085 = vrot.slane %v1083, 4
      %v1086 = vshll.u32 %v941, 16
      %v1088 = vrot.slane %v1086, 5
      %v1089 = vor.u32 %v1085, %v1088
      %v1090 = vrot.slane %v1089, 4
      %v1092 = vshll.u32 %v942, 16
      %v1094 = vrot.slane %v1092, 5
      %v1095 = vsel %vm985, %v1090, %v1094
      %v1096 = vshrl.u32 %v942, 16
      %v1098 = vrot.slane %v1096, 4
      %v1099 = vor.u32 %v1098, %v1094
      %v1100 = vrot.slane %v1099, 4
      %v1102 = vshll.u32 %v943, 16
      %v1104 = vrot.slane %v1102, 5
      %v1105 = vsel %vm985, %v1100, %v1104
      %v1107 = vshrl.u32 %v944, 16
      %v1109 = vrot.slane %v1107, 4
      %v1110 = vshll.u32 %v944, 16
      %v1112 = vrot.slane %v1110, 5
      %v1113 = vor.u32 %v1109, %v1112
      %v1114 = vrot.slane %v1113, 4
      %v1116 = vshll.u32 %v945, 16
      %v1118 = vrot.slane %v1116, 5
      %v1119 = vsel %vm985, %v1114, %v1118
      %v1120 = vshrl.u32 %v945, 16
      %v1122 = vrot.slane %v1120, 4
      %v1123 = vor.u32 %v1122, %v1118
      %v1124 = vrot.slane %v1123, 4
      %v1126 = vshll.u32 %v946, 16
      %v1128 = vrot.slane %v1126, 5
      %v1129 = vsel %vm985, %v1124, %v1128
      %v1131 = vshrl.u32 %v947, 16
      %v1133 = vrot.slane %v1131, 4
      %v1134 = vshll.u32 %v947, 16
      %v1136 = vrot.slane %v1134, 5
      %v1137 = vor.u32 %v1133, %v1136
      %v1138 = vrot.slane %v1137, 4
      %v1140 = vshll.u32 %v948, 16
      %v1142 = vrot.slane %v1140, 5
      %v1143 = vsel %vm985, %v1138, %v1142
      %v1144 = vshrl.u32 %v948, 16
      %v1146 = vrot.slane %v1144, 4
      %v1147 = vor.u32 %v1146, %v1142
      %v1148 = vrot.slane %v1147, 4
      %v1150 = vshll.u32 %v949, 16
      %v1152 = vrot.slane %v1150, 5
      %v1153 = vsel %vm985, %v1148, %v1152
      %v1155 = vshrl.u32 %v950, 16
      %v1157 = vrot.slane %v1155, 4
      %v1158 = vshll.u32 %v950, 16
      %v1160 = vrot.slane %v1158, 5
      %v1161 = vor.u32 %v1157, %v1160
      %v1162 = vrot.slane %v1161, 4
      %v1164 = vshll.u32 %v951, 16
      %v1166 = vrot.slane %v1164, 5
      %v1167 = vsel %vm985, %v1162, %v1166
      %v1168 = vshrl.u32 %v951, 16
      %v1170 = vrot.slane %v1168, 4
      %v1171 = vor.u32 %v1170, %v1166
      %v1172 = vrot.slane %v1171, 4
      %v1174 = vshll.u32 %v952, 16
      %v1176 = vrot.slane %v1174, 5
      %v1177 = vsel %vm985, %v1172, %v1176
      %v1179 = vshrl.u32 %v953, 16
      %v1181 = vrot.slane %v1179, 4
      %v1182 = vshll.u32 %v953, 16
      %v1184 = vrot.slane %v1182, 5
      %v1185 = vor.u32 %v1181, %v1184
      %v1186 = vrot.slane %v1185, 4
      %v1188 = vshll.u32 %v954, 16
      %v1190 = vrot.slane %v1188, 5
      %v1191 = vsel %vm985, %v1186, %v1190
      %v1192 = vshrl.u32 %v954, 16
      %v1194 = vrot.slane %v1192, 4
      %v1195 = vor.u32 %v1194, %v1190
      %v1196 = vrot.slane %v1195, 4
      %v1198 = vshll.u32 %v955, 16
      %v1200 = vrot.slane %v1198, 5
      %v1201 = vsel %vm985, %v1196, %v1200
      %v1203 = vshrl.u32 %v956, 16
      %v1205 = vrot.slane %v1203, 4
      %v1206 = vshll.u32 %v956, 16
      %v1208 = vrot.slane %v1206, 5
      %v1209 = vor.u32 %v1205, %v1208
      %v1210 = vrot.slane %v1209, 4
      %v1212 = vshll.u32 %v957, 16
      %v1214 = vrot.slane %v1212, 5
      %v1215 = vsel %vm985, %v1210, %v1214
      %v1216 = vshrl.u32 %v957, 16
      %v1218 = vrot.slane %v1216, 4
      %v1219 = vor.u32 %v1218, %v1214
      %v1220 = vrot.slane %v1219, 4
      %v1222 = vshll.u32 %v958, 16
      %v1224 = vrot.slane %v1222, 5
      %v1225 = vsel %vm985, %v1220, %v1224
      %v1227 = vshrl.u32 %v959, 16
      %v1229 = vrot.slane %v1227, 4
      %v1230 = vshll.u32 %v959, 16
      %v1232 = vrot.slane %v1230, 5
      %v1233 = vor.u32 %v1229, %v1232
      %v1234 = vrot.slane %v1233, 4
      %v1236 = vshll.u32 %v960, 16
      %v1238 = vrot.slane %v1236, 5
      %v1239 = vsel %vm985, %v1234, %v1238
      %v1240 = vshrl.u32 %v960, 16
      %v1242 = vrot.slane %v1240, 4
      %v1243 = vor.u32 %v1242, %v1238
      %v1244 = vrot.slane %v1243, 4
      %v1246 = vshll.u32 %v961, 16
      %v1248 = vrot.slane %v1246, 5
      %v1249 = vsel %vm985, %v1244, %v1248
      %v1251 = vshrl.u32 %v962, 16
      %v1253 = vrot.slane %v1251, 4
      %v1254 = vshll.u32 %v962, 16
      %v1256 = vrot.slane %v1254, 5
      %v1257 = vor.u32 %v1253, %v1256
      %v1258 = vrot.slane %v1257, 4
      %v1260 = vshll.u32 %v963, 16
      %v1262 = vrot.slane %v1260, 5
      %v1263 = vsel %vm985, %v1258, %v1262
      %v1264 = vshrl.u32 %v963, 16
      %v1266 = vrot.slane %v1264, 4
      %v1267 = vor.u32 %v1266, %v1262
      %v1268 = vrot.slane %v1267, 4
      %v1270 = vshll.u32 %v964, 16
      %v1272 = vrot.slane %v1270, 5
      %v1273 = vsel %vm985, %v1268, %v1272
      %v1275 = vshrl.u32 %v965, 16
      %v1277 = vrot.slane %v1275, 4
      %v1278 = vshll.u32 %v965, 16
      %v1280 = vrot.slane %v1278, 5
      %v1281 = vor.u32 %v1277, %v1280
      %v1282 = vrot.slane %v1281, 4
      %v1284 = vshll.u32 %v966, 16
      %v1286 = vrot.slane %v1284, 5
      %v1287 = vsel %vm985, %v1282, %v1286
      %v1288 = vshrl.u32 %v966, 16
      %v1290 = vrot.slane %v1288, 4
      %v1291 = vor.u32 %v1290, %v1286
      %v1292 = vrot.slane %v1291, 4
      %v1294 = vshll.u32 %v967, 16
      %v1296 = vrot.slane %v1294, 5
      %v1297 = vsel %vm985, %v1292, %v1296
      %v1299 = vshrl.u32 %v968, 16
      %v1301 = vrot.slane %v1299, 4
      %v1302 = vshll.u32 %v968, 16
      %v1304 = vrot.slane %v1302, 5
      %v1305 = vor.u32 %v1301, %v1304
      %v1306 = vrot.slane %v1305, 4
      %v1308 = vshll.u32 %v969, 16
      %v1310 = vrot.slane %v1308, 5
      %v1311 = vsel %vm985, %v1306, %v1310
      %v1312 = vshrl.u32 %v969, 16
      %v1314 = vrot.slane %v1312, 4
      %v1315 = vor.u32 %v1314, %v1310
      %v1316 = vrot.slane %v1315, 4
      %v1318 = vshll.u32 %v970, 16
      %v1320 = vrot.slane %v1318, 5
      %v1321 = vsel %vm985, %v1316, %v1320
      %v1323 = vshrl.u32 %v971, 16
      %v1325 = vrot.slane %v1323, 4
      %v1326 = vshll.u32 %v971, 16
      %v1328 = vrot.slane %v1326, 5
      %v1329 = vor.u32 %v1325, %v1328
      %v1330 = vrot.slane %v1329, 4
      %v1332 = vshll.u32 %v972, 16
      %v1334 = vrot.slane %v1332, 5
      %v1335 = vsel %vm985, %v1330, %v1334
      %v1336 = vshrl.u32 %v972, 16
      %v1338 = vrot.slane %v1336, 4
      %v1339 = vor.u32 %v1338, %v1334
      %v1340 = vrot.slane %v1339, 4
      %v1342 = vshll.u32 %v973, 16
      %v1344 = vrot.slane %v1342, 5
      %v1345 = vsel %vm985, %v1340, %v1344
      %v1347 = vshrl.u32 %v974, 16
      %v1349 = vrot.slane %v1347, 4
      %v1350 = vshll.u32 %v974, 16
      %v1352 = vrot.slane %v1350, 5
      %v1353 = vor.u32 %v1349, %v1352
      %v1354 = vrot.slane %v1353, 4
      %v1356 = vshll.u32 %v975, 16
      %v1358 = vrot.slane %v1356, 5
      %v1359 = vsel %vm985, %v1354, %v1358
      %v1360 = vshrl.u32 %v975, 16
      %v1362 = vrot.slane %v1360, 4
      %v1363 = vor.u32 %v1362, %v1358
      %v1364 = vrot.slane %v1363, 4
      %v1366 = vshll.u32 %v976, 16
      %v1368 = vrot.slane %v1366, 5
      %v1369 = vsel %vm985, %v1364, %v1368
      %v1371 = vshrl.u32 %v977, 16
      %v1373 = vrot.slane %v1371, 4
      %v1374 = vshll.u32 %v977, 16
      %v1376 = vrot.slane %v1374, 5
      %v1377 = vor.u32 %v1373, %v1376
      %v1378 = vrot.slane %v1377, 4
      %v1380 = vshll.u32 %v978, 16
      %v1382 = vrot.slane %v1380, 5
      %v1383 = vsel %vm985, %v1378, %v1382
      %v1384 = vshrl.u32 %v978, 16
      %v1386 = vrot.slane %v1384, 4
      %v1387 = vor.u32 %v1386, %v1382
      %v1388 = vrot.slane %v1387, 4
      %v1390 = vshll.u32 %v979, 16
      %v1392 = vrot.slane %v1390, 5
      %v1393 = vsel %vm985, %v1388, %v1392
      %v1395 = vshrl.u32 %v980, 16
      %v1397 = vrot.slane %v1395, 4
      %v1398 = vshll.u32 %v980, 16
      %v1400 = vrot.slane %v1398, 5
      %v1401 = vor.u32 %v1397, %v1400
      %v1402 = vrot.slane %v1401, 4
      %v1404 = vshll.u32 %v981, 16
      %v1406 = vrot.slane %v1404, 5
      %v1407 = vsel %vm985, %v1402, %v1406
      %v1408 = vshrl.u32 %v981, 16
      %v1410 = vrot.slane %v1408, 4
      %v1411 = vor.u32 %v1410, %v1406
      %v1412 = vrot.slane %v1411, 4
      %v1414 = vshll.u32 %v982, 16
      %v1416 = vrot.slane %v1414, 5
      %v1417 = vsel %vm985, %v1412, %v1416
      %1454 = vst [vmem:[#allocation3 + $0x4] sm:$0xf] %v999
      %1455 = vst [vmem:[#allocation3 + $0x10] sm:$0xf] %v1009
      %1456 = vst [vmem:[#allocation3 + $0x1c] sm:$0xf] %v1023
      %1457 = vst [vmem:[#allocation3 + $0x28] sm:$0xf] %v1033
      %1458 = vst [vmem:[#allocation3 + $0x34] sm:$0xf] %v1047
      %1459 = vst [vmem:[#allocation3 + $0x40] sm:$0xf] %v1057
      %1460 = vst [vmem:[#allocation3 + $0x4c] sm:$0xf] %v1071
      %1461 = vst [vmem:[#allocation3 + $0x58] sm:$0xf] %v1081
      %1462 = vst [vmem:[#allocation3 + $0x64] sm:$0xf] %v1095
      %1463 = vst [vmem:[#allocation3 + $0x70] sm:$0xf] %v1105
      %1464 = vst [vmem:[#allocation3 + $0x7c] sm:$0xf] %v1119
      %1465 = vst [vmem:[#allocation3 + $0x88] sm:$0xf] %v1129
      %1466 = vst [vmem:[#allocation3 + $0x94] sm:$0xf] %v1143
      %1467 = vst [vmem:[#allocation3 + $0xa0] sm:$0xf] %v1153
      %1468 = vst [vmem:[#allocation3 + $0xac] sm:$0xf] %v1167
      %1469 = vst [vmem:[#allocation3 + $0xb8] sm:$0xf] %v1177
      %1470 = vst [vmem:[#allocation3 + $0xc4] sm:$0xf] %v1191
      %1471 = vst [vmem:[#allocation3 + $0xd0] sm:$0xf] %v1201
      %1472 = vst [vmem:[#allocation3 + $0xdc] sm:$0xf] %v1215
      %1473 = vst [vmem:[#allocation3 + $0xe8] sm:$0xf] %v1225
      %1474 = vst [vmem:[#allocation3 + $0xf4] sm:$0xf] %v1239
      %1475 = vst [vmem:[#allocation3 + $0x100] sm:$0xf] %v1249
      %1476 = vst [vmem:[#allocation3 + $0x10c] sm:$0xf] %v1263
      %1477 = vst [vmem:[#allocation3 + $0x118] sm:$0xf] %v1273
      %1478 = vst [vmem:[#allocation3 + $0x124] sm:$0xf] %v1287
      %1479 = vst [vmem:[#allocation3 + $0x130] sm:$0xf] %v1297
      %1480 = vst [vmem:[#allocation3 + $0x13c] sm:$0xf] %v1311
      %1481 = vst [vmem:[#allocation3 + $0x148] sm:$0xf] %v1321
      %1482 = vst [vmem:[#allocation3 + $0x154] sm:$0xf] %v1335
      %1483 = vst [vmem:[#allocation3 + $0x160] sm:$0xf] %v1345
      %1484 = vst [vmem:[#allocation3 + $0x16c] sm:$0xf] %v1359
      %1485 = vst [vmem:[#allocation3 + $0x178] sm:$0xf] %v1369
      %1486 = vst [vmem:[#allocation3 + $0x184] sm:$0xf] %v1383
      %1487 = vst [vmem:[#allocation3 + $0x190] sm:$0xf] %v1393
      %1488 = vst [vmem:[#allocation3 + $0x19c] sm:$0xf] %v1407
      %1489 = vst [vmem:[#allocation3 + $0x1a8] sm:$0xf] %v1417
      %v1490 = vld [vmem:[#allocation2] sm:$0xe]
      %v1491 = vld [vmem:[#allocation2 + $0x4] sm:$0xf]
      %v1492 = vld [vmem:[#allocation2 + $0x8] sm:$0x1]
      %v1493 = vld [vmem:[#allocation2 + $0xc] sm:$0xe]
      %v1494 = vld [vmem:[#allocation2 + $0x10] sm:$0xf]
      %v1495 = vld [vmem:[#allocation2 + $0x14] sm:$0x1]
      %v1496 = vld [vmem:[#allocation2 + $0x18] sm:$0xe]
      %v1497 = vld [vmem:[#allocation2 + $0x1c] sm:$0xf]
      %v1498 = vld [vmem:[#allocation2 + $0x20] sm:$0x1]
      %v1499 = vld [vmem:[#allocation2 + $0x24] sm:$0xe]
      %v1500 = vld [vmem:[#allocation2 + $0x28] sm:$0xf]
      %v1501 = vld [vmem:[#allocation2 + $0x2c] sm:$0x1]
      %v1502 = vld [vmem:[#allocation2 + $0x30] sm:$0xe]
      %v1503 = vld [vmem:[#allocation2 + $0x34] sm:$0xf]
      %v1504 = vld [vmem:[#allocation2 + $0x38] sm:$0x1]
      %v1505 = vld [vmem:[#allocation2 + $0x3c] sm:$0xe]
      %v1506 = vld [vmem:[#allocation2 + $0x40] sm:$0xf]
      %v1507 = vld [vmem:[#allocation2 + $0x44] sm:$0x1]
      %v1508 = vld [vmem:[#allocation2 + $0x48] sm:$0xe]
      %v1509 = vld [vmem:[#allocation2 + $0x4c] sm:$0xf]
      %v1510 = vld [vmem:[#allocation2 + $0x50] sm:$0x1]
      %v1511 = vld [vmem:[#allocation2 + $0x54] sm:$0xe]
      %v1512 = vld [vmem:[#allocation2 + $0x58] sm:$0xf]
      %v1513 = vld [vmem:[#allocation2 + $0x5c] sm:$0x1]
      %v1514 = vld [vmem:[#allocation2 + $0x60] sm:$0xe]
      %v1515 = vld [vmem:[#allocation2 + $0x64] sm:$0xf]
      %v1516 = vld [vmem:[#allocation2 + $0x68] sm:$0x1]
      %v1517 = vld [vmem:[#allocation2 + $0x6c] sm:$0xe]
      %v1518 = vld [vmem:[#allocation2 + $0x70] sm:$0xf]
      %v1519 = vld [vmem:[#allocation2 + $0x74] sm:$0x1]
      %v1520 = vld [vmem:[#allocation2 + $0x78] sm:$0xe]
      %v1521 = vld [vmem:[#allocation2 + $0x7c] sm:$0xf]
      %v1522 = vld [vmem:[#allocation2 + $0x80] sm:$0x1]
      %v1523 = vld [vmem:[#allocation2 + $0x84] sm:$0xe]
      %v1524 = vld [vmem:[#allocation2 + $0x88] sm:$0xf]
      %v1525 = vld [vmem:[#allocation2 + $0x8c] sm:$0x1]
      %v1526 = vld [vmem:[#allocation2 + $0x90] sm:$0xe]
      %v1527 = vld [vmem:[#allocation2 + $0x94] sm:$0xf]
      %v1528 = vld [vmem:[#allocation2 + $0x98] sm:$0x1]
      %v1529 = vld [vmem:[#allocation2 + $0x9c] sm:$0xe]
      %v1530 = vld [vmem:[#allocation2 + $0xa0] sm:$0xf]
      %v1531 = vld [vmem:[#allocation2 + $0xa4] sm:$0x1]
      %v1532 = vld [vmem:[#allocation2 + $0xa8] sm:$0xe]
      %v1533 = vld [vmem:[#allocation2 + $0xac] sm:$0xf]
      %v1534 = vld [vmem:[#allocation2 + $0xb0] sm:$0x1]
      %v1535 = vld [vmem:[#allocation2 + $0xb4] sm:$0xe]
      %v1536 = vld [vmem:[#allocation2 + $0xb8] sm:$0xf]
      %v1537 = vld [vmem:[#allocation2 + $0xbc] sm:$0x1]
      %v1538 = vld [vmem:[#allocation2 + $0xc0] sm:$0xe]
      %v1539 = vld [vmem:[#allocation2 + $0xc4] sm:$0xf]
      %v1540 = vld [vmem:[#allocation2 + $0xc8] sm:$0x1]
      %v1541 = vld [vmem:[#allocation2 + $0xcc] sm:$0xe]
      %v1542 = vld [vmem:[#allocation2 + $0xd0] sm:$0xf]
      %v1543 = vld [vmem:[#allocation2 + $0xd4] sm:$0x1]
      %vm1598 = vcmask 1042432
      %vm1599 = vcmask 1046532
      %vm1600 = vmor %vm1598, %vm1599
      %v1601 = vrot.slane %v1490, 5
      %v1602 = vrot.slane %v1601, 4
      %v1603 = vrot.slane %v1491, 5
      %v1604 = vsel %vm1600, %v1602, %v1603
      %v1605 = vrot.slane %v1603, 4
      %v1606 = vrot.slane %v1492, 5
      %v1607 = vsel %vm1600, %v1605, %v1606
      %v1608 = vrot.slane %v1493, 5
      %v1609 = vrot.slane %v1608, 4
      %v1610 = vrot.slane %v1494, 5
      %v1611 = vsel %vm1600, %v1609, %v1610
      %v1612 = vrot.slane %v1610, 4
      %v1613 = vrot.slane %v1495, 5
      %v1614 = vsel %vm1600, %v1612, %v1613
      %v1615 = vrot.slane %v1496, 5
      %v1616 = vrot.slane %v1615, 4
      %v1617 = vrot.slane %v1497, 5
      %v1618 = vsel %vm1600, %v1616, %v1617
      %v1619 = vrot.slane %v1617, 4
      %v1620 = vrot.slane %v1498, 5
      %v1621 = vsel %vm1600, %v1619, %v1620
      %v1622 = vrot.slane %v1499, 5
      %v1623 = vrot.slane %v1622, 4
      %v1624 = vrot.slane %v1500, 5
      %v1625 = vsel %vm1600, %v1623, %v1624
      %v1626 = vrot.slane %v1624, 4
      %v1627 = vrot.slane %v1501, 5
      %v1628 = vsel %vm1600, %v1626, %v1627
      %v1629 = vrot.slane %v1502, 5
      %v1630 = vrot.slane %v1629, 4
      %v1631 = vrot.slane %v1503, 5
      %v1632 = vsel %vm1600, %v1630, %v1631
      %v1633 = vrot.slane %v1631, 4
      %v1634 = vrot.slane %v1504, 5
      %v1635 = vsel %vm1600, %v1633, %v1634
      %v1636 = vrot.slane %v1505, 5
      %v1637 = vrot.slane %v1636, 4
      %v1638 = vrot.slane %v1506, 5
      %v1639 = vsel %vm1600, %v1637, %v1638
      %v1640 = vrot.slane %v1638, 4
      %v1641 = vrot.slane %v1507, 5
      %v1642 = vsel %vm1600, %v1640, %v1641
      %v1643 = vrot.slane %v1508, 5
      %v1644 = vrot.slane %v1643, 4
      %v1645 = vrot.slane %v1509, 5
      %v1646 = vsel %vm1600, %v1644, %v1645
      %v1647 = vrot.slane %v1645, 4
      %v1648 = vrot.slane %v1510, 5
      %v1649 = vsel %vm1600, %v1647, %v1648
      %v1650 = vrot.slane %v1511, 5
      %v1651 = vrot.slane %v1650, 4
      %v1652 = vrot.slane %v1512, 5
      %v1653 = vsel %vm1600, %v1651, %v1652
      %v1654 = vrot.slane %v1652, 4
      %v1655 = vrot.slane %v1513, 5
      %v1656 = vsel %vm1600, %v1654, %v1655
      %v1657 = vrot.slane %v1514, 5
      %v1658 = vrot.slane %v1657, 4
      %v1659 = vrot.slane %v1515, 5
      %v1660 = vsel %vm1600, %v1658, %v1659
      %v1661 = vrot.slane %v1659, 4
      %v1662 = vrot.slane %v1516, 5
      %v1663 = vsel %vm1600, %v1661, %v1662
      %v1664 = vrot.slane %v1517, 5
      %v1665 = vrot.slane %v1664, 4
      %v1666 = vrot.slane %v1518, 5
      %v1667 = vsel %vm1600, %v1665, %v1666
      %v1668 = vrot.slane %v1666, 4
      %v1669 = vrot.slane %v1519, 5
      %v1670 = vsel %vm1600, %v1668, %v1669
      %v1671 = vrot.slane %v1520, 5
      %v1672 = vrot.slane %v1671, 4
      %v1673 = vrot.slane %v1521, 5
      %v1674 = vsel %vm1600, %v1672, %v1673
      %v1675 = vrot.slane %v1673, 4
      %v1676 = vrot.slane %v1522, 5
      %v1677 = vsel %vm1600, %v1675, %v1676
      %v1678 = vrot.slane %v1523, 5
      %v1679 = vrot.slane %v1678, 4
      %v1680 = vrot.slane %v1524, 5
      %v1681 = vsel %vm1600, %v1679, %v1680
      %v1682 = vrot.slane %v1680, 4
      %v1683 = vrot.slane %v1525, 5
      %v1684 = vsel %vm1600, %v1682, %v1683
      %v1685 = vrot.slane %v1526, 5
      %v1686 = vrot.slane %v1685, 4
      %v1687 = vrot.slane %v1527, 5
      %v1688 = vsel %vm1600, %v1686, %v1687
      %v1689 = vrot.slane %v1687, 4
      %v1690 = vrot.slane %v1528, 5
      %v1691 = vsel %vm1600, %v1689, %v1690
      %v1692 = vrot.slane %v1529, 5
      %v1693 = vrot.slane %v1692, 4
      %v1694 = vrot.slane %v1530, 5
      %v1695 = vsel %vm1600, %v1693, %v1694
      %v1696 = vrot.slane %v1694, 4
      %v1697 = vrot.slane %v1531, 5
      %v1698 = vsel %vm1600, %v1696, %v1697
      %v1699 = vrot.slane %v1532, 5
      %v1700 = vrot.slane %v1699, 4
      %v1701 = vrot.slane %v1533, 5
      %v1702 = vsel %vm1600, %v1700, %v1701
      %v1703 = vrot.slane %v1701, 4
      %v1704 = vrot.slane %v1534, 5
      %v1705 = vsel %vm1600, %v1703, %v1704
      %v1706 = vrot.slane %v1535, 5
      %v1707 = vrot.slane %v1706, 4
      %v1708 = vrot.slane %v1536, 5
      %v1709 = vsel %vm1600, %v1707, %v1708
      %v1710 = vrot.slane %v1708, 4
      %v1711 = vrot.slane %v1537, 5
      %v1712 = vsel %vm1600, %v1710, %v1711
      %v1713 = vrot.slane %v1538, 5
      %v1714 = vrot.slane %v1713, 4
      %v1715 = vrot.slane %v1539, 5
      %v1716 = vsel %vm1600, %v1714, %v1715
      %v1717 = vrot.slane %v1715, 4
      %v1718 = vrot.slane %v1540, 5
      %v1719 = vsel %vm1600, %v1717, %v1718
      %v1720 = vrot.slane %v1541, 5
      %v1721 = vrot.slane %v1720, 4
      %v1722 = vrot.slane %v1542, 5
      %v1723 = vsel %vm1600, %v1721, %v1722
      %v1724 = vrot.slane %v1722, 4
      %v1725 = vrot.slane %v1543, 5
      %v1726 = vsel %vm1600, %v1724, %v1725
      %1763 = vst [vmem:[#allocation3 + $0x8] sm:$0xf] %v1604
      %1764 = vst [vmem:[#allocation3 + $0x14] sm:$0xf] %v1607
      %1765 = vst [vmem:[#allocation3 + $0x20] sm:$0xf] %v1611
      %1766 = vst [vmem:[#allocation3 + $0x2c] sm:$0xf] %v1614
      %1767 = vst [vmem:[#allocation3 + $0x38] sm:$0xf] %v1618
      %1768 = vst [vmem:[#allocation3 + $0x44] sm:$0xf] %v1621
      %1769 = vst [vmem:[#allocation3 + $0x50] sm:$0xf] %v1625
      %1770 = vst [vmem:[#allocation3 + $0x5c] sm:$0xf] %v1628
      %1771 = vst [vmem:[#allocation3 + $0x68] sm:$0xf] %v1632
      %1772 = vst [vmem:[#allocation3 + $0x74] sm:$0xf] %v1635
      %1773 = vst [vmem:[#allocation3 + $0x80] sm:$0xf] %v1639
      %1774 = vst [vmem:[#allocation3 + $0x8c] sm:$0xf] %v1642
      %1775 = vst [vmem:[#allocation3 + $0x98] sm:$0xf] %v1646
      %1776 = vst [vmem:[#allocation3 + $0xa4] sm:$0xf] %v1649
      %1777 = vst [vmem:[#allocation3 + $0xb0] sm:$0xf] %v1653
      %1778 = vst [vmem:[#allocation3 + $0xbc] sm:$0xf] %v1656
      %1779 = vst [vmem:[#allocation3 + $0xc8] sm:$0xf] %v1660
      %1780 = vst [vmem:[#allocation3 + $0xd4] sm:$0xf] %v1663
      %1781 = vst [vmem:[#allocation3 + $0xe0] sm:$0xf] %v1667
      %1782 = vst [vmem:[#allocation3 + $0xec] sm:$0xf] %v1670
      %1783 = vst [vmem:[#allocation3 + $0xf8] sm:$0xf] %v1674
      %1784 = vst [vmem:[#allocation3 + $0x104] sm:$0xf] %v1677
      %1785 = vst [vmem:[#allocation3 + $0x110] sm:$0xf] %v1681
      %1786 = vst [vmem:[#allocation3 + $0x11c] sm:$0xf] %v1684
      %1787 = vst [vmem:[#allocation3 + $0x128] sm:$0xf] %v1688
      %1788 = vst [vmem:[#allocation3 + $0x134] sm:$0xf] %v1691
      %1789 = vst [vmem:[#allocation3 + $0x140] sm:$0xf] %v1695
      %1790 = vst [vmem:[#allocation3 + $0x14c] sm:$0xf] %v1698
      %1791 = vst [vmem:[#allocation3 + $0x158] sm:$0xf] %v1702
      %1792 = vst [vmem:[#allocation3 + $0x164] sm:$0xf] %v1705
      %1793 = vst [vmem:[#allocation3 + $0x170] sm:$0xf] %v1709
      %1794 = vst [vmem:[#allocation3 + $0x17c] sm:$0xf] %v1712
      %1795 = vst [vmem:[#allocation3 + $0x188] sm:$0xf] %v1716
      %1796 = vst [vmem:[#allocation3 + $0x194] sm:$0xf] %v1719
      %1797 = vst [vmem:[#allocation3 + $0x1a0] sm:$0xf] %v1723
      %1798 = vst [vmem:[#allocation3 + $0x1ac] sm:$0xf] %v1726
      %v1799 = vld [vmem:[#allocation3] sm:$0xff]
      %v1800 = vld [vmem:[#allocation3 + $0x8] sm:$0xf]
      %v1801 = vld [vmem:[#allocation3 + $0xc] sm:$0xff]
      %v1802 = vld [vmem:[#allocation3 + $0x14] sm:$0xf]
      %v1803 = vld [vmem:[#allocation3 + $0x18] sm:$0xff]
      %v1804 = vld [vmem:[#allocation3 + $0x20] sm:$0xf]
      %v1805 = vld [vmem:[#allocation3 + $0x24] sm:$0xff]
      %v1806 = vld [vmem:[#allocation3 + $0x2c] sm:$0xf]
      %v1807 = vld [vmem:[#allocation3 + $0x30] sm:$0xff]
      %v1808 = vld [vmem:[#allocation3 + $0x38] sm:$0xf]
      %v1809 = vld [vmem:[#allocation3 + $0x3c] sm:$0xff]
      %v1810 = vld [vmem:[#allocation3 + $0x44] sm:$0xf]
      %v1811 = vld [vmem:[#allocation3 + $0x48] sm:$0xff]
      %v1812 = vld [vmem:[#allocation3 + $0x50] sm:$0xf]
      %v1813 = vld [vmem:[#allocation3 + $0x54] sm:$0xff]
      %v1814 = vld [vmem:[#allocation3 + $0x5c] sm:$0xf]
      %v1815 = vld [vmem:[#allocation3 + $0x60] sm:$0xff]
      %v1816 = vld [vmem:[#allocation3 + $0x68] sm:$0xf]
      %v1817 = vld [vmem:[#allocation3 + $0x6c] sm:$0xff]
      %v1818 = vld [vmem:[#allocation3 + $0x74] sm:$0xf]
      %v1819 = vld [vmem:[#allocation3 + $0x78] sm:$0xff]
      %v1820 = vld [vmem:[#allocation3 + $0x80] sm:$0xf]
      %v1821 = vld [vmem:[#allocation3 + $0x84] sm:$0xff]
      %v1822 = vld [vmem:[#allocation3 + $0x8c] sm:$0xf]
      %v1823 = vld [vmem:[#allocation3 + $0x90] sm:$0xff]
      %v1824 = vld [vmem:[#allocation3 + $0x98] sm:$0xf]
      %v1825 = vld [vmem:[#allocation3 + $0x9c] sm:$0xff]
      %v1826 = vld [vmem:[#allocation3 + $0xa4] sm:$0xf]
      %v1827 = vld [vmem:[#allocation3 + $0xa8] sm:$0xff]
      %v1828 = vld [vmem:[#allocation3 + $0xb0] sm:$0xf]
      %v1829 = vld [vmem:[#allocation3 + $0xb4] sm:$0xff]
      %v1830 = vld [vmem:[#allocation3 + $0xbc] sm:$0xf]
      %v1831 = vld [vmem:[#allocation3 + $0xc0] sm:$0xff]
      %v1832 = vld [vmem:[#allocation3 + $0xc8] sm:$0xf]
      %v1833 = vld [vmem:[#allocation3 + $0xcc] sm:$0xff]
      %v1834 = vld [vmem:[#allocation3 + $0xd4] sm:$0xf]
      %v1835 = vld [vmem:[#allocation3 + $0xd8] sm:$0xff]
      %v1836 = vld [vmem:[#allocation3 + $0xe0] sm:$0xf]
      %v1837 = vld [vmem:[#allocation3 + $0xe4] sm:$0xff]
      %v1838 = vld [vmem:[#allocation3 + $0xec] sm:$0xf]
      %v1839 = vld [vmem:[#allocation3 + $0xf0] sm:$0xff]
      %v1840 = vld [vmem:[#allocation3 + $0xf8] sm:$0xf]
      %v1841 = vld [vmem:[#allocation3 + $0xfc] sm:$0xff]
      %v1842 = vld [vmem:[#allocation3 + $0x104] sm:$0xf]
      %v1843 = vld [vmem:[#allocation3 + $0x108] sm:$0xff]
      %v1844 = vld [vmem:[#allocation3 + $0x110] sm:$0xf]
      %v1845 = vld [vmem:[#allocation3 + $0x114] sm:$0xff]
      %v1846 = vld [vmem:[#allocation3 + $0x11c] sm:$0xf]
      %v1847 = vld [vmem:[#allocation3 + $0x120] sm:$0xff]
      %v1848 = vld [vmem:[#allocation3 + $0x128] sm:$0xf]
      %v1849 = vld [vmem:[#allocation3 + $0x12c] sm:$0xff]
      %v1850 = vld [vmem:[#allocation3 + $0x134] sm:$0xf]
      %v1851 = vld [vmem:[#allocation3 + $0x138] sm:$0xff]
      %v1852 = vld [vmem:[#allocation3 + $0x140] sm:$0xf]
      %v1853 = vld [vmem:[#allocation3 + $0x144] sm:$0xff]
      %v1854 = vld [vmem:[#allocation3 + $0x14c] sm:$0xf]
      %v1855 = vld [vmem:[#allocation3 + $0x150] sm:$0xff]
      %v1856 = vld [vmem:[#allocation3 + $0x158] sm:$0xf]
      %v1857 = vld [vmem:[#allocation3 + $0x15c] sm:$0xff]
      %v1858 = vld [vmem:[#allocation3 + $0x164] sm:$0xf]
      %v1859 = vld [vmem:[#allocation3 + $0x168] sm:$0xff]
      %v1860 = vld [vmem:[#allocation3 + $0x170] sm:$0xf]
      %v1861 = vld [vmem:[#allocation3 + $0x174] sm:$0xff]
      %v1862 = vld [vmem:[#allocation3 + $0x17c] sm:$0xf]
      %v1863 = vld [vmem:[%s1] sm:$0xf]
      %v1864 = vld [vmem:[%s1 + $0x4] sm:$0xf]
      %v1865 = vld [vmem:[%s1 + $0x8] sm:$0xf]
      %v1866 = vld [vmem:[%s1 + $0xc] sm:$0xf]
      %v1867 = vld [vmem:[%s1 + $0x10] sm:$0xf]
      %v1868 = vld [vmem:[%s1 + $0x14] sm:$0xf]
      %v1869 = vld [vmem:[%s1 + $0x18] sm:$0xf]
      %v1870 = vld [vmem:[%s1 + $0x1c] sm:$0xf]
      %v1871 = vld [vmem:[%s1 + $0x20] sm:$0xf]
      %v1872 = vld [vmem:[%s1 + $0x24] sm:$0xf]
      %v1873 = vld [vmem:[%s1 + $0x28] sm:$0xf]
      %v1874 = vld [vmem:[%s1 + $0x2c] sm:$0xf]
      %v1875 = vld [vmem:[%s1 + $0x30] sm:$0xf]
      %v1876 = vld [vmem:[%s1 + $0x34] sm:$0xf]
      %v1877 = vld [vmem:[%s1 + $0x38] sm:$0xf]
      %v1878 = vld [vmem:[%s1 + $0x3c] sm:$0xf]
      %v1879 = vld [vmem:[%s1 + $0x40] sm:$0xf]
      %v1880 = vld [vmem:[%s1 + $0x44] sm:$0xf]
      %v1881 = vld [vmem:[%s1 + $0x48] sm:$0xf]
      %v1882 = vld [vmem:[%s1 + $0x4c] sm:$0xf]
      %v1883 = vld [vmem:[%s1 + $0x50] sm:$0xf]
      %v1884 = vld [vmem:[%s1 + $0x54] sm:$0xf]
      %v1885 = vld [vmem:[%s1 + $0x58] sm:$0xf]
      %v1886 = vld [vmem:[%s1 + $0x5c] sm:$0xf]
      %v1887 = vld [vmem:[%s1 + $0x60] sm:$0xf]
      %v1888 = vld [vmem:[%s1 + $0x64] sm:$0xf]
      %v1889 = vld [vmem:[%s1 + $0x68] sm:$0xf]
      %v1890 = vld [vmem:[%s1 + $0x6c] sm:$0xf]
      %v1891 = vld [vmem:[%s1 + $0x70] sm:$0xf]
      %v1892 = vld [vmem:[%s1 + $0x74] sm:$0xf]
      %v1893 = vld [vmem:[%s1 + $0x78] sm:$0xf]
      %v1894 = vld [vmem:[%s1 + $0x7c] sm:$0xf]
      %v1895 = vld [vmem:[%s1 + $0x80] sm:$0xf]
      %v1896 = vld [vmem:[%s1 + $0x84] sm:$0xf]
      %v1897 = vld [vmem:[%s1 + $0x88] sm:$0xf]
      %v1898 = vld [vmem:[%s1 + $0x8c] sm:$0xf]
      %v1899 = vld [vmem:[%s1 + $0x90] sm:$0xf]
      %v1900 = vld [vmem:[%s1 + $0x94] sm:$0xf]
      %v1901 = vld [vmem:[%s1 + $0x98] sm:$0xf]
      %v1902 = vld [vmem:[%s1 + $0x9c] sm:$0xf]
      %v1903 = vld [vmem:[%s1 + $0xa0] sm:$0xf]
      %v1904 = vld [vmem:[%s1 + $0xa4] sm:$0xf]
      %v1905 = vld [vmem:[%s1 + $0xa8] sm:$0xf]
      %v1906 = vld [vmem:[%s1 + $0xac] sm:$0xf]
      %v1907 = vld [vmem:[%s1 + $0xb0] sm:$0xf]
      %v1908 = vld [vmem:[%s1 + $0xb4] sm:$0xf]
      %v1909 = vld [vmem:[%s1 + $0xb8] sm:$0xf]
      %v1910 = vld [vmem:[%s1 + $0xbc] sm:$0xf]
      %v1911 = vld [vmem:[#allocation3 + $0x180] sm:$0xff]
      %v1912 = vld [vmem:[#allocation3 + $0x188] sm:$0xf]
      %v1913 = vld [vmem:[#allocation3 + $0x18c] sm:$0xff]
      %v1914 = vld [vmem:[#allocation3 + $0x194] sm:$0xf]
      %s1915 = scalar_lea.vmem %s1, 192
      %v1916 = vld [vmem:[%s1915] sm:$0xf]
      %v1917 = vld [vmem:[%s1915 + $0x4] sm:$0xf]
      %v1918 = vld [vmem:[%s1915 + $0x8] sm:$0xf]
      %v1919 = vld [vmem:[%s1915 + $0xc] sm:$0xf]
      %v1920 = vld [vmem:[%s1915 + $0x10] sm:$0xf]
      %v1921 = vld [vmem:[%s1915 + $0x14] sm:$0xf]
      %v1922 = vld [vmem:[%s1915 + $0x18] sm:$0xf]
      %v1923 = vld [vmem:[%s1915 + $0x1c] sm:$0xf]
      %v1924 = vld [vmem:[%s1915 + $0x20] sm:$0xf]
      %v1925 = vld [vmem:[%s1915 + $0x24] sm:$0xf]
      %v1926 = vld [vmem:[%s1915 + $0x28] sm:$0xf]
      %v1927 = vld [vmem:[%s1915 + $0x2c] sm:$0xf]
      %v1928 = vld [vmem:[%s1915 + $0x30] sm:$0xf]
      %v1929 = vld [vmem:[%s1915 + $0x34] sm:$0xf]
      %v1930 = vld [vmem:[%s1915 + $0x38] sm:$0xf]
      %v1931 = vld [vmem:[%s1915 + $0x3c] sm:$0xf]
      %v1932 = vld [vmem:[%s1915 + $0x40] sm:$0xf]
      %v1933 = vld [vmem:[%s1915 + $0x44] sm:$0xf]
      %v1934 = vld [vmem:[%s1915 + $0x48] sm:$0xf]
      %v1935 = vld [vmem:[%s1915 + $0x4c] sm:$0xf]
      %v1936 = vld [vmem:[%s1915 + $0x50] sm:$0xf]
      %v1937 = vld [vmem:[%s1915 + $0x54] sm:$0xf]
      %v1938 = vld [vmem:[%s1915 + $0x58] sm:$0xf]
      %v1939 = vld [vmem:[%s1915 + $0x5c] sm:$0xf]
      %v1940 = vld [vmem:[%s1915 + $0x60] sm:$0xf]
      %v1941 = vld [vmem:[%s1915 + $0x64] sm:$0xf]
      %v1942 = vld [vmem:[%s1915 + $0x68] sm:$0xf]
      %v1943 = vld [vmem:[%s1915 + $0x6c] sm:$0xf]
      %v1944 = vld [vmem:[%s1915 + $0x70] sm:$0xf]
      %v1945 = vld [vmem:[%s1915 + $0x74] sm:$0xf]
      %v1946 = vld [vmem:[%s1915 + $0x78] sm:$0xf]
      %v1947 = vld [vmem:[%s1915 + $0x7c] sm:$0xf]
      %v1948 = vld [vmem:[%s1915 + $0x80] sm:$0xf]
      %v1949 = vld [vmem:[%s1915 + $0x84] sm:$0xf]
      %v1950 = vld [vmem:[%s1915 + $0x88] sm:$0xf]
      %v1951 = vld [vmem:[%s1915 + $0x8c] sm:$0xf]
      %v1952 = vld [vmem:[%s1915 + $0x90] sm:$0xf]
      %v1953 = vld [vmem:[%s1915 + $0x94] sm:$0xf]
      %v1954 = vld [vmem:[%s1915 + $0x98] sm:$0xf]
      %v1955 = vld [vmem:[%s1915 + $0x9c] sm:$0xf]
      %v1956 = vld [vmem:[%s1915 + $0xa0] sm:$0xf]
      %v1957 = vld [vmem:[%s1915 + $0xa4] sm:$0xf]
      %v1958 = vld [vmem:[%s1915 + $0xa8] sm:$0xf]
      %v1959 = vld [vmem:[%s1915 + $0xac] sm:$0xf]
      %v1960 = vld [vmem:[%s1915 + $0xb0] sm:$0xf]
      %v1961 = vld [vmem:[%s1915 + $0xb4] sm:$0xf]
      %v1962 = vld [vmem:[%s1915 + $0xb8] sm:$0xf]
      %v1963 = vld [vmem:[%s1915 + $0xbc] sm:$0xf]
      %v2028 = vunpack.c.l.b16 %v1803
      %v2029 = vunpack.c.h.b16 %v1803
      %v2030 = vunpack.c.l.b16 %v1804
      %v2031 = vunpack.c.l.b16 %v1805
      %v2032 = vunpack.c.h.b16 %v1805
      %v2033 = vunpack.c.l.b16 %v1806
      %v2034 = vunpack.c.l.b16 %v1807
      %v2035 = vunpack.c.h.b16 %v1807
      %v2036 = vunpack.c.l.b16 %v1808
      %v2037 = vunpack.c.l.b16 %v1809
      %v2038 = vunpack.c.h.b16 %v1809
      %v2039 = vunpack.c.l.b16 %v1810
      %v2040 = vunpack.c.l.b16 %v1811
      %v2041 = vunpack.c.h.b16 %v1811
      %v2042 = vunpack.c.l.b16 %v1812
      %v2043 = vunpack.c.l.b16 %v1813
      %v2044 = vunpack.c.h.b16 %v1813
      %v2045 = vunpack.c.l.b16 %v1814
      %v2046 = vunpack.c.l.b16 %v1815
      %v2047 = vunpack.c.h.b16 %v1815
      %v2048 = vunpack.c.l.b16 %v1816
      %v2049 = vunpack.c.l.b16 %v1817
      %v2050 = vunpack.c.h.b16 %v1817
      %v2051 = vunpack.c.l.b16 %v1818
      %v2052 = vunpack.c.l.b16 %v1819
      %v2053 = vunpack.c.h.b16 %v1819
      %v2054 = vunpack.c.l.b16 %v1820
      %v2055 = vunpack.c.l.b16 %v1821
      %v2056 = vunpack.c.h.b16 %v1821
      %v2057 = vunpack.c.l.b16 %v1822
      %v2058 = vunpack.c.l.b16 %v1823
      %v2059 = vunpack.c.h.b16 %v1823
      %v2060 = vunpack.c.l.b16 %v1824
      %v2061 = vunpack.c.l.b16 %v1825
      %v2062 = vunpack.c.h.b16 %v1825
      %v2063 = vunpack.c.l.b16 %v1826
      %v2064 = vunpack.c.l.b16 %v1827
      %v2065 = vunpack.c.h.b16 %v1827
      %v2066 = vunpack.c.l.b16 %v1828
      %v2067 = vunpack.c.l.b16 %v1829
      %v2068 = vunpack.c.h.b16 %v1829
      %v2069 = vunpack.c.l.b16 %v1830
      %v2070 = vunpack.c.l.b16 %v1831
      %v2071 = vunpack.c.h.b16 %v1831
      %v2072 = vunpack.c.l.b16 %v1832
      %v2073 = vunpack.c.l.b16 %v1833
      %v2074 = vunpack.c.h.b16 %v1833
      %v2075 = vunpack.c.l.b16 %v1834
      %v2076 = vunpack.c.l.b16 %v1835
      %v2077 = vunpack.c.h.b16 %v1835
      %v2078 = vunpack.c.l.b16 %v1836
      %v2079 = vunpack.c.l.b16 %v1837
      %v2080 = vunpack.c.h.b16 %v1837
      %v2081 = vunpack.c.l.b16 %v1838
      %v2082 = vunpack.c.l.b16 %v1839
      %v2083 = vunpack.c.h.b16 %v1839
      %v2084 = vunpack.c.l.b16 %v1840
      %v2085 = vunpack.c.l.b16 %v1841
      %v2086 = vunpack.c.h.b16 %v1841
      %v2087 = vunpack.c.l.b16 %v1842
      %v2088 = vunpack.c.l.b16 %v1843
      %v2089 = vunpack.c.h.b16 %v1843
      %v2090 = vunpack.c.l.b16 %v1844
      %v2091 = vunpack.c.l.b16 %v1845
      %v2092 = vunpack.c.h.b16 %v1845
      %v2093 = vunpack.c.l.b16 %v1846
      %v2094 = vunpack.c.l.b16 %v1847
      %v2095 = vunpack.c.h.b16 %v1847
      %v2096 = vunpack.c.l.b16 %v1848
      %v2097 = vunpack.c.l.b16 %v1849
      %v2098 = vunpack.c.h.b16 %v1849
      %v2099 = vunpack.c.l.b16 %v1850
      %v2100 = vunpack.c.l.b16 %v1851
      %v2101 = vunpack.c.h.b16 %v1851
      %v2102 = vunpack.c.l.b16 %v1852
      %v2103 = vunpack.c.l.b16 %v1853
      %v2104 = vunpack.c.h.b16 %v1853
      %v2105 = vunpack.c.l.b16 %v1854
      %v2106 = vunpack.c.l.b16 %v1855
      %v2107 = vunpack.c.h.b16 %v1855
      %v2108 = vunpack.c.l.b16 %v1856
      %v2109 = vunpack.c.l.b16 %v1857
      %v2110 = vunpack.c.h.b16 %v1857
      %v2111 = vunpack.c.l.b16 %v1858
      %v2112 = vunpack.c.l.b16 %v1859
      %v2113 = vunpack.c.h.b16 %v1859
      %v2114 = vunpack.c.l.b16 %v1860
      %v2115 = vunpack.c.l.b16 %v1861
      %v2116 = vunpack.c.h.b16 %v1861
      %v2117 = vunpack.c.l.b16 %v1862
      %v2118 = vunpack.c.l.b16 %v1911
      %v2119 = vunpack.c.h.b16 %v1911
      %v2120 = vunpack.c.l.b16 %v1912
      %v2121 = vunpack.c.l.b16 %v1913
      %v2122 = vunpack.c.h.b16 %v1913
      %v2123 = vunpack.c.l.b16 %v1914
      %v2124 = vpack.c.b16 %v2031, %v2028
      %v2125 = vpack.c.b16 %v2032, %v2029
      %v2126 = vpack.c.b16 %v2033, %v2030
      %v2127 = vpack.c.b16 %v2037, %v2034
      %v2128 = vpack.c.b16 %v2038, %v2035
      %v2129 = vpack.c.b16 %v2039, %v2036
      %v2130 = vpack.c.b16 %v2043, %v2040
      %v2131 = vpack.c.b16 %v2044, %v2041
      %v2132 = vpack.c.b16 %v2045, %v2042
      %v2133 = vpack.c.b16 %v2049, %v2046
      %v2134 = vpack.c.b16 %v2050, %v2047
      %v2135 = vpack.c.b16 %v2051, %v2048
      %v2136 = vpack.c.b16 %v2055, %v2052
      %v2137 = vpack.c.b16 %v2056, %v2053
      %v2138 = vpack.c.b16 %v2057, %v2054
      %v2139 = vpack.c.b16 %v2061, %v2058
      %v2140 = vpack.c.b16 %v2062, %v2059
      %v2141 = vpack.c.b16 %v2063, %v2060
      %v2142 = vpack.c.b16 %v2067, %v2064
      %v2143 = vpack.c.b16 %v2068, %v2065
      %v2144 = vpack.c.b16 %v2069, %v2066
      %v2145 = vpack.c.b16 %v2073, %v2070
      %v2146 = vpack.c.b16 %v2074, %v2071
      %v2147 = vpack.c.b16 %v2075, %v2072
      %v2148 = vpack.c.b16 %v2079, %v2076
      %v2149 = vpack.c.b16 %v2080, %v2077
      %v2150 = vpack.c.b16 %v2081, %v2078
      %v2151 = vpack.c.b16 %v2085, %v2082
      %v2152 = vpack.c.b16 %v2086, %v2083
      %v2153 = vpack.c.b16 %v2087, %v2084
      %v2154 = vpack.c.b16 %v2091, %v2088
      %v2155 = vpack.c.b16 %v2092, %v2089
      %v2156 = vpack.c.b16 %v2093, %v2090
      %v2157 = vpack.c.b16 %v2097, %v2094
      %v2158 = vpack.c.b16 %v2098, %v2095
      %v2159 = vpack.c.b16 %v2099, %v2096
      %v2160 = vpack.c.b16 %v2103, %v2100
      %v2161 = vpack.c.b16 %v2104, %v2101
      %v2162 = vpack.c.b16 %v2105, %v2102
      %v2163 = vpack.c.b16 %v2109, %v2106
      %v2164 = vpack.c.b16 %v2110, %v2107
      %v2165 = vpack.c.b16 %v2111, %v2108
      %v2166 = vpack.c.b16 %v2115, %v2112
      %v2167 = vpack.c.b16 %v2116, %v2113
      %v2168 = vpack.c.b16 %v2117, %v2114
      %v2169 = vpack.c.b16 %v2121, %v2118
      %v2170 = vpack.c.b16 %v2122, %v2119
      %v2171 = vpack.c.b16 %v2123, %v2120
      %v2268 = vunpack.c.l.b16 %v1916
      %v2269 = vunpack.c.l.b16 %v1917
      %v2270 = vunpack.c.l.b16 %v1918
      %v2271 = vunpack.c.l.b16 %v1919
      %v2272 = vunpack.c.l.b16 %v1920
      %v2273 = vunpack.c.l.b16 %v1921
      %v2274 = vunpack.c.l.b16 %v1922
      %v2275 = vunpack.c.l.b16 %v1923
      %v2276 = vunpack.c.l.b16 %v1924
      %v2277 = vunpack.c.l.b16 %v1925
      %v2278 = vunpack.c.l.b16 %v1926
      %v2279 = vunpack.c.l.b16 %v1927
      %v2280 = vunpack.c.l.b16 %v1928
      %v2281 = vunpack.c.l.b16 %v1929
      %v2282 = vunpack.c.l.b16 %v1930
      %v2283 = vunpack.c.l.b16 %v1931
      %v2284 = vunpack.c.l.b16 %v1932
      %v2285 = vunpack.c.l.b16 %v1933
      %v2286 = vunpack.c.l.b16 %v1934
      %v2287 = vunpack.c.l.b16 %v1935
      %v2288 = vunpack.c.l.b16 %v1936
      %v2289 = vunpack.c.l.b16 %v1937
      %v2290 = vunpack.c.l.b16 %v1938
      %v2291 = vunpack.c.l.b16 %v1939
      %v2292 = vunpack.c.l.b16 %v1940
      %v2293 = vunpack.c.l.b16 %v1941
      %v2294 = vunpack.c.l.b16 %v1942
      %v2295 = vunpack.c.l.b16 %v1943
      %v2296 = vunpack.c.l.b16 %v1944
      %v2297 = vunpack.c.l.b16 %v1945
      %v2298 = vunpack.c.l.b16 %v1946
      %v2299 = vunpack.c.l.b16 %v1947
      %v2300 = vunpack.c.l.b16 %v1948
      %v2301 = vunpack.c.l.b16 %v1949
      %v2302 = vunpack.c.l.b16 %v1950
      %v2303 = vunpack.c.l.b16 %v1951
      %v2304 = vunpack.c.l.b16 %v1952
      %v2305 = vunpack.c.l.b16 %v1953
      %v2306 = vunpack.c.l.b16 %v1954
      %v2307 = vunpack.c.l.b16 %v1955
      %v2308 = vunpack.c.l.b16 %v1956
      %v2309 = vunpack.c.l.b16 %v1957
      %v2310 = vunpack.c.l.b16 %v1958
      %v2311 = vunpack.c.l.b16 %v1959
      %v2312 = vunpack.c.l.b16 %v1960
      %v2313 = vunpack.c.l.b16 %v1961
      %v2314 = vunpack.c.l.b16 %v1962
      %v2315 = vunpack.c.l.b16 %v1963
      %v2316 = vpack.c.b16 %v2269, %v2268
      %v2317 = vpack.c.b16 %v2271, %v2270
      %v2318 = vpack.c.b16 %v2273, %v2272
      %v2319 = vpack.c.b16 %v2275, %v2274
      %v2320 = vpack.c.b16 %v2277, %v2276
      %v2321 = vpack.c.b16 %v2279, %v2278
      %v2322 = vpack.c.b16 %v2281, %v2280
      %v2323 = vpack.c.b16 %v2283, %v2282
      %v2324 = vpack.c.b16 %v2285, %v2284
      %v2325 = vpack.c.b16 %v2287, %v2286
      %v2326 = vpack.c.b16 %v2289, %v2288
      %v2327 = vpack.c.b16 %v2291, %v2290
      %v2328 = vpack.c.b16 %v2293, %v2292
      %v2329 = vpack.c.b16 %v2295, %v2294
      %v2330 = vpack.c.b16 %v2297, %v2296
      %v2331 = vpack.c.b16 %v2299, %v2298
      %v2332 = vpack.c.b16 %v2301, %v2300
      %v2333 = vpack.c.b16 %v2303, %v2302
      %v2334 = vpack.c.b16 %v2305, %v2304
      %v2335 = vpack.c.b16 %v2307, %v2306
      %v2336 = vpack.c.b16 %v2309, %v2308
      %v2337 = vpack.c.b16 %v2311, %v2310
      %v2338 = vpack.c.b16 %v2313, %v2312
      %v2339 = vpack.c.b16 %v2315, %v2314
      %2364 = vmatpush.bf16.msra.mxu0 %v2323
      %2365 = vmatpush.bf16.msra.mxu0 %v2322
      %2366 = vmatpush.bf16.msra.mxu0 %v2321
      %2367 = vmatpush.bf16.msra.mxu0 %v2320
      %2368 = vmatpush.bf16.msra.mxu0 %v2319
      %2369 = vmatpush.bf16.msra.mxu0 %v2318
      %2370 = vmatpush.bf16.msra.mxu0 %v2317
      %2371 = vmatpush.bf16.msra.mxu0 %v2316
      %2372 = vmatmul.bf16.gmra.mxu0 %v2124
      %v2373 = vpop.f32.mrf.mxu0
      %v2374 = vadd.f32 0.0, %v2373
      %v2375 = vpop.f32.mrf.mxu0
      %v2376 = vadd.f32 0.0, %v2375
      %2377 = vmatmul.bf16.gmra.mxu0 %v2127
      %v2378 = vpop.f32.mrf.mxu0
      %v2379 = vadd.f32 0.0, %v2378
      %v2380 = vpop.f32.mrf.mxu0
      %v2381 = vadd.f32 0.0, %v2380
      %2382 = vmatmul.bf16.gmra.mxu0 %v2130
      %v2383 = vpop.f32.mrf.mxu0
      %v2384 = vadd.f32 0.0, %v2383
      %v2385 = vpop.f32.mrf.mxu0
      %v2386 = vadd.f32 0.0, %v2385
      %2387 = vmatmul.bf16.gmra.mxu0 %v2133
      %v2388 = vpop.f32.mrf.mxu0
      %v2389 = vadd.f32 0.0, %v2388
      %v2390 = vpop.f32.mrf.mxu0
      %v2391 = vadd.f32 0.0, %v2390
      %2392 = vmatmul.bf16.gmra.mxu0 %v2136
      %v2393 = vpop.f32.mrf.mxu0
      %v2394 = vadd.f32 0.0, %v2393
      %v2395 = vpop.f32.mrf.mxu0
      %v2396 = vadd.f32 0.0, %v2395
      %2397 = vmatmul.bf16.gmra.mxu0 %v2139
      %v2398 = vpop.f32.mrf.mxu0
      %v2399 = vadd.f32 0.0, %v2398
      %v2400 = vpop.f32.mrf.mxu0
      %v2401 = vadd.f32 0.0, %v2400
      %2402 = vmatmul.bf16.gmra.mxu0 %v2142
      %v2403 = vpop.f32.mrf.mxu0
      %v2404 = vadd.f32 0.0, %v2403
      %v2405 = vpop.f32.mrf.mxu0
      %v2406 = vadd.f32 0.0, %v2405
      %2407 = vmatmul.bf16.gmra.mxu0 %v2145
      %v2408 = vpop.f32.mrf.mxu0
      %v2409 = vadd.f32 0.0, %v2408
      %v2410 = vpop.f32.mrf.mxu0
      %v2411 = vadd.f32 0.0, %v2410
      %2412 = vmatmul.bf16.gmra.mxu0 %v2148
      %v2413 = vpop.f32.mrf.mxu0
      %v2414 = vadd.f32 0.0, %v2413
      %v2415 = vpop.f32.mrf.mxu0
      %v2416 = vadd.f32 0.0, %v2415
      %2417 = vmatmul.bf16.gmra.mxu0 %v2151
      %v2418 = vpop.f32.mrf.mxu0
      %v2419 = vadd.f32 0.0, %v2418
      %v2420 = vpop.f32.mrf.mxu0
      %v2421 = vadd.f32 0.0, %v2420
      %2422 = vmatmul.bf16.gmra.mxu0 %v2154
      %v2423 = vpop.f32.mrf.mxu0
      %v2424 = vadd.f32 0.0, %v2423
      %v2425 = vpop.f32.mrf.mxu0
      %v2426 = vadd.f32 0.0, %v2425
      %2427 = vmatmul.bf16.gmra.mxu0 %v2157
      %v2428 = vpop.f32.mrf.mxu0
      %v2429 = vadd.f32 0.0, %v2428
      %v2430 = vpop.f32.mrf.mxu0
      %v2431 = vadd.f32 0.0, %v2430
      %2432 = vmatmul.bf16.gmra.mxu0 %v2160
      %v2433 = vpop.f32.mrf.mxu0
      %v2434 = vadd.f32 0.0, %v2433
      %v2435 = vpop.f32.mrf.mxu0
      %v2436 = vadd.f32 0.0, %v2435
      %2437 = vmatmul.bf16.gmra.mxu0 %v2163
      %v2438 = vpop.f32.mrf.mxu0
      %v2439 = vadd.f32 0.0, %v2438
      %v2440 = vpop.f32.mrf.mxu0
      %v2441 = vadd.f32 0.0, %v2440
      %2442 = vmatmul.bf16.gmra.mxu0 %v2166
      %v2443 = vpop.f32.mrf.mxu0
      %v2444 = vadd.f32 0.0, %v2443
      %v2445 = vpop.f32.mrf.mxu0
      %v2446 = vadd.f32 0.0, %v2445
      %2447 = vmatmul.bf16.gmra.mxu0 %v2169
      %v2448 = vpop.f32.mrf.mxu0
      %v2449 = vadd.f32 0.0, %v2448
      %v2450 = vpop.f32.mrf.mxu0
      %v2451 = vadd.f32 0.0, %v2450
      %2452 = vdwg.mxu0
      %2453 = vmatpush.bf16.msra.mxu0 %v2331
      %2454 = vmatpush.bf16.msra.mxu0 %v2330
      %2455 = vmatpush.bf16.msra.mxu0 %v2329
      %2456 = vmatpush.bf16.msra.mxu0 %v2328
      %2457 = vmatpush.bf16.msra.mxu0 %v2327
      %2458 = vmatpush.bf16.msra.mxu0 %v2326
      %2459 = vmatpush.bf16.msra.mxu0 %v2325
      %2460 = vmatpush.bf16.msra.mxu0 %v2324
      %2461 = vmatmul.bf16.gmra.mxu0 %v2125
      %v2462 = vpop.f32.mrf.mxu0
      %v2463 = vadd.f32 %v2374, %v2462
      %v2464 = vpop.f32.mrf.mxu0
      %v2465 = vadd.f32 %v2376, %v2464
      %2466 = vmatmul.bf16.gmra.mxu0 %v2128
      %v2467 = vpop.f32.mrf.mxu0
      %v2468 = vadd.f32 %v2379, %v2467
      %v2469 = vpop.f32.mrf.mxu0
      %v2470 = vadd.f32 %v2381, %v2469
      %2471 = vmatmul.bf16.gmra.mxu0 %v2131
      %v2472 = vpop.f32.mrf.mxu0
      %v2473 = vadd.f32 %v2384, %v2472
      %v2474 = vpop.f32.mrf.mxu0
      %v2475 = vadd.f32 %v2386, %v2474
      %2476 = vmatmul.bf16.gmra.mxu0 %v2134
      %v2477 = vpop.f32.mrf.mxu0
      %v2478 = vadd.f32 %v2389, %v2477
      %v2479 = vpop.f32.mrf.mxu0
      %v2480 = vadd.f32 %v2391, %v2479
      %2481 = vmatmul.bf16.gmra.mxu0 %v2137
      %v2482 = vpop.f32.mrf.mxu0
      %v2483 = vadd.f32 %v2394, %v2482
      %v2484 = vpop.f32.mrf.mxu0
      %v2485 = vadd.f32 %v2396, %v2484
      %2486 = vmatmul.bf16.gmra.mxu0 %v2140
      %v2487 = vpop.f32.mrf.mxu0
      %v2488 = vadd.f32 %v2399, %v2487
      %v2489 = vpop.f32.mrf.mxu0
      %v2490 = vadd.f32 %v2401, %v2489
      %2491 = vmatmul.bf16.gmra.mxu0 %v2143
      %v2492 = vpop.f32.mrf.mxu0
      %v2493 = vadd.f32 %v2404, %v2492
      %v2494 = vpop.f32.mrf.mxu0
      %v2495 = vadd.f32 %v2406, %v2494
      %2496 = vmatmul.bf16.gmra.mxu0 %v2146
      %v2497 = vpop.f32.mrf.mxu0
      %v2498 = vadd.f32 %v2409, %v2497
      %v2499 = vpop.f32.mrf.mxu0
      %v2500 = vadd.f32 %v2411, %v2499
      %2501 = vmatmul.bf16.gmra.mxu0 %v2149
      %v2502 = vpop.f32.mrf.mxu0
      %v2503 = vadd.f32 %v2414, %v2502
      %v2504 = vpop.f32.mrf.mxu0
      %v2505 = vadd.f32 %v2416, %v2504
      %2506 = vmatmul.bf16.gmra.mxu0 %v2152
      %v2507 = vpop.f32.mrf.mxu0
      %v2508 = vadd.f32 %v2419, %v2507
      %v2509 = vpop.f32.mrf.mxu0
      %v2510 = vadd.f32 %v2421, %v2509
      %2511 = vmatmul.bf16.gmra.mxu0 %v2155
      %v2512 = vpop.f32.mrf.mxu0
      %v2513 = vadd.f32 %v2424, %v2512
      %v2514 = vpop.f32.mrf.mxu0
      %v2515 = vadd.f32 %v2426, %v2514
      %2516 = vmatmul.bf16.gmra.mxu0 %v2158
      %v2517 = vpop.f32.mrf.mxu0
      %v2518 = vadd.f32 %v2429, %v2517
      %v2519 = vpop.f32.mrf.mxu0
      %v2520 = vadd.f32 %v2431, %v2519
      %2521 = vmatmul.bf16.gmra.mxu0 %v2161
      %v2522 = vpop.f32.mrf.mxu0
      %v2523 = vadd.f32 %v2434, %v2522
      %v2524 = vpop.f32.mrf.mxu0
      %v2525 = vadd.f32 %v2436, %v2524
      %2526 = vmatmul.bf16.gmra.mxu0 %v2164
      %v2527 = vpop.f32.mrf.mxu0
      %v2528 = vadd.f32 %v2439, %v2527
      %v2529 = vpop.f32.mrf.mxu0
      %v2530 = vadd.f32 %v2441, %v2529
      %2531 = vmatmul.bf16.gmra.mxu0 %v2167
      %v2532 = vpop.f32.mrf.mxu0
      %v2533 = vadd.f32 %v2444, %v2532
      %v2534 = vpop.f32.mrf.mxu0
      %v2535 = vadd.f32 %v2446, %v2534
      %2536 = vmatmul.bf16.gmra.mxu0 %v2170
      %v2537 = vpop.f32.mrf.mxu0
      %v2538 = vadd.f32 %v2449, %v2537
      %v2539 = vpop.f32.mrf.mxu0
      %v2540 = vadd.f32 %v2451, %v2539
      %2541 = vdwg.mxu0
      %2542 = vmatpush.bf16.msra.mxu0 %v2339
      %2543 = vmatpush.bf16.msra.mxu0 %v2338
      %2544 = vmatpush.bf16.msra.mxu0 %v2337
      %2545 = vmatpush.bf16.msra.mxu0 %v2336
      %2546 = vmatpush.bf16.msra.mxu0 %v2335
      %2547 = vmatpush.bf16.msra.mxu0 %v2334
      %2548 = vmatpush.bf16.msra.mxu0 %v2333
      %2549 = vmatpush.bf16.msra.mxu0 %v2332
      %2550 = vmatmul.bf16.gmra.mxu0 %v2126
      %v2551 = vpop.f32.mrf.mxu0
      %v2552 = vadd.f32 %v2463, %v2551
      %v2553 = vpop.f32.mrf.mxu0
      %v2554 = vadd.f32 %v2465, %v2553
      %2555 = vmatmul.bf16.gmra.mxu0 %v2129
      %v2556 = vpop.f32.mrf.mxu0
      %v2557 = vadd.f32 %v2468, %v2556
      %v2558 = vpop.f32.mrf.mxu0
      %v2559 = vadd.f32 %v2470, %v2558
      %2560 = vmatmul.bf16.gmra.mxu0 %v2132
      %v2561 = vpop.f32.mrf.mxu0
      %v2562 = vadd.f32 %v2473, %v2561
      %v2563 = vpop.f32.mrf.mxu0
      %v2564 = vadd.f32 %v2475, %v2563
      %2565 = vmatmul.bf16.gmra.mxu0 %v2135
      %v2566 = vpop.f32.mrf.mxu0
      %v2567 = vadd.f32 %v2478, %v2566
      %v2568 = vpop.f32.mrf.mxu0
      %v2569 = vadd.f32 %v2480, %v2568
      %2570 = vmatmul.bf16.gmra.mxu0 %v2138
      %v2571 = vpop.f32.mrf.mxu0
      %v2572 = vadd.f32 %v2483, %v2571
      %v2573 = vpop.f32.mrf.mxu0
      %v2574 = vadd.f32 %v2485, %v2573
      %2575 = vmatmul.bf16.gmra.mxu0 %v2141
      %v2576 = vpop.f32.mrf.mxu0
      %v2577 = vadd.f32 %v2488, %v2576
      %v2578 = vpop.f32.mrf.mxu0
      %v2579 = vadd.f32 %v2490, %v2578
      %2580 = vmatmul.bf16.gmra.mxu0 %v2144
      %v2581 = vpop.f32.mrf.mxu0
      %v2582 = vadd.f32 %v2493, %v2581
      %v2583 = vpop.f32.mrf.mxu0
      %v2584 = vadd.f32 %v2495, %v2583
      %2585 = vmatmul.bf16.gmra.mxu0 %v2147
      %v2586 = vpop.f32.mrf.mxu0
      %v2587 = vadd.f32 %v2498, %v2586
      %v2588 = vpop.f32.mrf.mxu0
      %v2589 = vadd.f32 %v2500, %v2588
      %2590 = vmatmul.bf16.gmra.mxu0 %v2150
      %v2591 = vpop.f32.mrf.mxu0
      %v2592 = vadd.f32 %v2503, %v2591
      %v2593 = vpop.f32.mrf.mxu0
      %v2594 = vadd.f32 %v2505, %v2593
      %2595 = vmatmul.bf16.gmra.mxu0 %v2153
      %v2596 = vpop.f32.mrf.mxu0
      %v2597 = vadd.f32 %v2508, %v2596
      %v2598 = vpop.f32.mrf.mxu0
      %v2599 = vadd.f32 %v2510, %v2598
      %2600 = vmatmul.bf16.gmra.mxu0 %v2156
      %v2601 = vpop.f32.mrf.mxu0
      %v2602 = vadd.f32 %v2513, %v2601
      %v2603 = vpop.f32.mrf.mxu0
      %v2604 = vadd.f32 %v2515, %v2603
      %2605 = vmatmul.bf16.gmra.mxu0 %v2159
      %v2606 = vpop.f32.mrf.mxu0
      %v2607 = vadd.f32 %v2518, %v2606
      %v2608 = vpop.f32.mrf.mxu0
      %v2609 = vadd.f32 %v2520, %v2608
      %2610 = vmatmul.bf16.gmra.mxu0 %v2162
      %v2611 = vpop.f32.mrf.mxu0
      %v2612 = vadd.f32 %v2523, %v2611
      %v2613 = vpop.f32.mrf.mxu0
      %v2614 = vadd.f32 %v2525, %v2613
      %2615 = vmatmul.bf16.gmra.mxu0 %v2165
      %v2616 = vpop.f32.mrf.mxu0
      %v2617 = vadd.f32 %v2528, %v2616
      %v2618 = vpop.f32.mrf.mxu0
      %v2619 = vadd.f32 %v2530, %v2618
      %2620 = vmatmul.bf16.gmra.mxu0 %v2168
      %v2621 = vpop.f32.mrf.mxu0
      %v2622 = vadd.f32 %v2533, %v2621
      %v2623 = vpop.f32.mrf.mxu0
      %v2624 = vadd.f32 %v2535, %v2623
      %2625 = vmatmul.bf16.gmra.mxu0 %v2171
      %v2626 = vpop.f32.mrf.mxu0
      %v2627 = vadd.f32 %v2538, %v2626
      %v2628 = vpop.f32.mrf.mxu0
      %v2629 = vadd.f32 %v2540, %v2628
      %2630 = vdwg.mxu0
      %v2635 = vunpack.c.l.b16 %v1799
      %v2636 = vunpack.c.h.b16 %v1799
      %v2637 = vunpack.c.l.b16 %v1800
      %v2638 = vunpack.c.l.b16 %v1801
      %v2639 = vunpack.c.h.b16 %v1801
      %v2640 = vunpack.c.l.b16 %v1802
      %v2641 = vpack.c.b16 %v2638, %v2635
      %v2642 = vpack.c.b16 %v2639, %v2636
      %v2643 = vpack.c.b16 %v2640, %v2637
      %v2695 = vunpack.c.l.b16 %v1863
      %v2696 = vunpack.c.l.b16 %v1864
      %v2697 = vunpack.c.l.b16 %v1865
      %v2698 = vunpack.c.l.b16 %v1866
      %v2699 = vunpack.c.l.b16 %v1867
      %v2700 = vunpack.c.l.b16 %v1868
      %v2701 = vunpack.c.l.b16 %v1869
      %v2702 = vunpack.c.l.b16 %v1870
      %v2703 = vunpack.c.l.b16 %v1871
      %v2704 = vunpack.c.l.b16 %v1872
      %v2705 = vunpack.c.l.b16 %v1873
      %v2706 = vunpack.c.l.b16 %v1874
      %v2707 = vunpack.c.l.b16 %v1875
      %v2708 = vunpack.c.l.b16 %v1876
      %v2709 = vunpack.c.l.b16 %v1877
      %v2710 = vunpack.c.l.b16 %v1878
      %v2711 = vunpack.c.l.b16 %v1879
      %v2712 = vunpack.c.l.b16 %v1880
      %v2713 = vunpack.c.l.b16 %v1881
      %v2714 = vunpack.c.l.b16 %v1882
      %v2715 = vunpack.c.l.b16 %v1883
      %v2716 = vunpack.c.l.b16 %v1884
      %v2717 = vunpack.c.l.b16 %v1885
      %v2718 = vunpack.c.l.b16 %v1886
      %v2719 = vunpack.c.l.b16 %v1887
      %v2720 = vunpack.c.l.b16 %v1888
      %v2721 = vunpack.c.l.b16 %v1889
      %v2722 = vunpack.c.l.b16 %v1890
      %v2723 = vunpack.c.l.b16 %v1891
      %v2724 = vunpack.c.l.b16 %v1892
      %v2725 = vunpack.c.l.b16 %v1893
      %v2726 = vunpack.c.l.b16 %v1894
      %v2727 = vunpack.c.l.b16 %v1895
      %v2728 = vunpack.c.l.b16 %v1896
      %v2729 = vunpack.c.l.b16 %v1897
      %v2730 = vunpack.c.l.b16 %v1898
      %v2731 = vunpack.c.l.b16 %v1899
      %v2732 = vunpack.c.l.b16 %v1900
      %v2733 = vunpack.c.l.b16 %v1901
      %v2734 = vunpack.c.l.b16 %v1902
      %v2735 = vunpack.c.l.b16 %v1903
      %v2736 = vunpack.c.l.b16 %v1904
      %v2737 = vunpack.c.l.b16 %v1905
      %v2738 = vunpack.c.l.b16 %v1906
      %v2739 = vunpack.c.l.b16 %v1907
      %v2740 = vunpack.c.l.b16 %v1908
      %v2741 = vunpack.c.l.b16 %v1909
      %v2742 = vunpack.c.l.b16 %v1910
      %v2743 = vpack.c.b16 %v2696, %v2695
      %v2744 = vpack.c.b16 %v2698, %v2697
      %v2745 = vpack.c.b16 %v2700, %v2699
      %v2746 = vpack.c.b16 %v2702, %v2701
      %v2747 = vpack.c.b16 %v2704, %v2703
      %v2748 = vpack.c.b16 %v2706, %v2705
      %v2749 = vpack.c.b16 %v2708, %v2707
      %v2750 = vpack.c.b16 %v2710, %v2709
      %v2751 = vpack.c.b16 %v2712, %v2711
      %v2752 = vpack.c.b16 %v2714, %v2713
      %v2753 = vpack.c.b16 %v2716, %v2715
      %v2754 = vpack.c.b16 %v2718, %v2717
      %v2755 = vpack.c.b16 %v2720, %v2719
      %v2756 = vpack.c.b16 %v2722, %v2721
      %v2757 = vpack.c.b16 %v2724, %v2723
      %v2758 = vpack.c.b16 %v2726, %v2725
      %v2759 = vpack.c.b16 %v2728, %v2727
      %v2760 = vpack.c.b16 %v2730, %v2729
      %v2761 = vpack.c.b16 %v2732, %v2731
      %v2762 = vpack.c.b16 %v2734, %v2733
      %v2763 = vpack.c.b16 %v2736, %v2735
      %v2764 = vpack.c.b16 %v2738, %v2737
      %v2765 = vpack.c.b16 %v2740, %v2739
      %v2766 = vpack.c.b16 %v2742, %v2741
      %2791 = vmatpush.bf16.msra.mxu0 %v2750
      %2792 = vmatpush.bf16.msra.mxu0 %v2749
      %2793 = vmatpush.bf16.msra.mxu0 %v2748
      %2794 = vmatpush.bf16.msra.mxu0 %v2747
      %2795 = vmatpush.bf16.msra.mxu0 %v2746
      %2796 = vmatpush.bf16.msra.mxu0 %v2745
      %2797 = vmatpush.bf16.msra.mxu0 %v2744
      %2798 = vmatpush.bf16.msra.mxu0 %v2743
      %2799 = vmatmul.bf16.gmra.mxu0 %v2641
      %v2800 = vpop.f32.mrf.mxu0
      %v2801 = vadd.f32 %v2552, %v2800
      %v2802 = vpop.f32.mrf.mxu0
      %v2803 = vadd.f32 %v2554, %v2802
      %2804 = vmatmul.bf16.gmra.mxu0 %v2124
      %v2805 = vpop.f32.mrf.mxu0
      %v2806 = vadd.f32 %v2557, %v2805
      %v2807 = vpop.f32.mrf.mxu0
      %v2808 = vadd.f32 %v2559, %v2807
      %2809 = vmatmul.bf16.gmra.mxu0 %v2127
      %v2810 = vpop.f32.mrf.mxu0
      %v2811 = vadd.f32 %v2562, %v2810
      %v2812 = vpop.f32.mrf.mxu0
      %v2813 = vadd.f32 %v2564, %v2812
      %2814 = vmatmul.bf16.gmra.mxu0 %v2130
      %v2815 = vpop.f32.mrf.mxu0
      %v2816 = vadd.f32 %v2567, %v2815
      %v2817 = vpop.f32.mrf.mxu0
      %v2818 = vadd.f32 %v2569, %v2817
      %2819 = vmatmul.bf16.gmra.mxu0 %v2133
      %v2820 = vpop.f32.mrf.mxu0
      %v2821 = vadd.f32 %v2572, %v2820
      %v2822 = vpop.f32.mrf.mxu0
      %v2823 = vadd.f32 %v2574, %v2822
      %2824 = vmatmul.bf16.gmra.mxu0 %v2136
      %v2825 = vpop.f32.mrf.mxu0
      %v2826 = vadd.f32 %v2577, %v2825
      %v2827 = vpop.f32.mrf.mxu0
      %v2828 = vadd.f32 %v2579, %v2827
      %2829 = vmatmul.bf16.gmra.mxu0 %v2139
      %v2830 = vpop.f32.mrf.mxu0
      %v2831 = vadd.f32 %v2582, %v2830
      %v2832 = vpop.f32.mrf.mxu0
      %v2833 = vadd.f32 %v2584, %v2832
      %2834 = vmatmul.bf16.gmra.mxu0 %v2142
      %v2835 = vpop.f32.mrf.mxu0
      %v2836 = vadd.f32 %v2587, %v2835
      %v2837 = vpop.f32.mrf.mxu0
      %v2838 = vadd.f32 %v2589, %v2837
      %2839 = vmatmul.bf16.gmra.mxu0 %v2145
      %v2840 = vpop.f32.mrf.mxu0
      %v2841 = vadd.f32 %v2592, %v2840
      %v2842 = vpop.f32.mrf.mxu0
      %v2843 = vadd.f32 %v2594, %v2842
      %2844 = vmatmul.bf16.gmra.mxu0 %v2148
      %v2845 = vpop.f32.mrf.mxu0
      %v2846 = vadd.f32 %v2597, %v2845
      %v2847 = vpop.f32.mrf.mxu0
      %v2848 = vadd.f32 %v2599, %v2847
      %2849 = vmatmul.bf16.gmra.mxu0 %v2151
      %v2850 = vpop.f32.mrf.mxu0
      %v2851 = vadd.f32 %v2602, %v2850
      %v2852 = vpop.f32.mrf.mxu0
      %v2853 = vadd.f32 %v2604, %v2852
      %2854 = vmatmul.bf16.gmra.mxu0 %v2154
      %v2855 = vpop.f32.mrf.mxu0
      %v2856 = vadd.f32 %v2607, %v2855
      %v2857 = vpop.f32.mrf.mxu0
      %v2858 = vadd.f32 %v2609, %v2857
      %2859 = vmatmul.bf16.gmra.mxu0 %v2157
      %v2860 = vpop.f32.mrf.mxu0
      %v2861 = vadd.f32 %v2612, %v2860
      %v2862 = vpop.f32.mrf.mxu0
      %v2863 = vadd.f32 %v2614, %v2862
      %2864 = vmatmul.bf16.gmra.mxu0 %v2160
      %v2865 = vpop.f32.mrf.mxu0
      %v2866 = vadd.f32 %v2617, %v2865
      %v2867 = vpop.f32.mrf.mxu0
      %v2868 = vadd.f32 %v2619, %v2867
      %2869 = vmatmul.bf16.gmra.mxu0 %v2163
      %v2870 = vpop.f32.mrf.mxu0
      %v2871 = vadd.f32 %v2622, %v2870
      %v2872 = vpop.f32.mrf.mxu0
      %v2873 = vadd.f32 %v2624, %v2872
      %2874 = vmatmul.bf16.gmra.mxu0 %v2166
      %v2875 = vpop.f32.mrf.mxu0
      %v2876 = vadd.f32 %v2627, %v2875
      %v2877 = vpop.f32.mrf.mxu0
      %v2878 = vadd.f32 %v2629, %v2877
      %2879 = vdwg.mxu0
      %2880 = vmatpush.bf16.msra.mxu0 %v2758
      %2881 = vmatpush.bf16.msra.mxu0 %v2757
      %2882 = vmatpush.bf16.msra.mxu0 %v2756
      %2883 = vmatpush.bf16.msra.mxu0 %v2755
      %2884 = vmatpush.bf16.msra.mxu0 %v2754
      %2885 = vmatpush.bf16.msra.mxu0 %v2753
      %2886 = vmatpush.bf16.msra.mxu0 %v2752
      %2887 = vmatpush.bf16.msra.mxu0 %v2751
      %2888 = vmatmul.bf16.gmra.mxu0 %v2642
      %v2889 = vpop.f32.mrf.mxu0
      %v2890 = vadd.f32 %v2801, %v2889
      %v2891 = vpop.f32.mrf.mxu0
      %v2892 = vadd.f32 %v2803, %v2891
      %2893 = vmatmul.bf16.gmra.mxu0 %v2125
      %v2894 = vpop.f32.mrf.mxu0
      %v2895 = vadd.f32 %v2806, %v2894
      %v2896 = vpop.f32.mrf.mxu0
      %v2897 = vadd.f32 %v2808, %v2896
      %2898 = vmatmul.bf16.gmra.mxu0 %v2128
      %v2899 = vpop.f32.mrf.mxu0
      %v2900 = vadd.f32 %v2811, %v2899
      %v2901 = vpop.f32.mrf.mxu0
      %v2902 = vadd.f32 %v2813, %v2901
      %2903 = vmatmul.bf16.gmra.mxu0 %v2131
      %v2904 = vpop.f32.mrf.mxu0
      %v2905 = vadd.f32 %v2816, %v2904
      %v2906 = vpop.f32.mrf.mxu0
      %v2907 = vadd.f32 %v2818, %v2906
      %2908 = vmatmul.bf16.gmra.mxu0 %v2134
      %v2909 = vpop.f32.mrf.mxu0
      %v2910 = vadd.f32 %v2821, %v2909
      %v2911 = vpop.f32.mrf.mxu0
      %v2912 = vadd.f32 %v2823, %v2911
      %2913 = vmatmul.bf16.gmra.mxu0 %v2137
      %v2914 = vpop.f32.mrf.mxu0
      %v2915 = vadd.f32 %v2826, %v2914
      %v2916 = vpop.f32.mrf.mxu0
      %v2917 = vadd.f32 %v2828, %v2916
      %2918 = vmatmul.bf16.gmra.mxu0 %v2140
      %v2919 = vpop.f32.mrf.mxu0
      %v2920 = vadd.f32 %v2831, %v2919
      %v2921 = vpop.f32.mrf.mxu0
      %v2922 = vadd.f32 %v2833, %v2921
      %2923 = vmatmul.bf16.gmra.mxu0 %v2143
      %v2924 = vpop.f32.mrf.mxu0
      %v2925 = vadd.f32 %v2836, %v2924
      %v2926 = vpop.f32.mrf.mxu0
      %v2927 = vadd.f32 %v2838, %v2926
      %2928 = vmatmul.bf16.gmra.mxu0 %v2146
      %v2929 = vpop.f32.mrf.mxu0
      %v2930 = vadd.f32 %v2841, %v2929
      %v2931 = vpop.f32.mrf.mxu0
      %v2932 = vadd.f32 %v2843, %v2931
      %2933 = vmatmul.bf16.gmra.mxu0 %v2149
      %v2934 = vpop.f32.mrf.mxu0
      %v2935 = vadd.f32 %v2846, %v2934
      %v2936 = vpop.f32.mrf.mxu0
      %v2937 = vadd.f32 %v2848, %v2936
      %2938 = vmatmul.bf16.gmra.mxu0 %v2152
      %v2939 = vpop.f32.mrf.mxu0
      %v2940 = vadd.f32 %v2851, %v2939
      %v2941 = vpop.f32.mrf.mxu0
      %v2942 = vadd.f32 %v2853, %v2941
      %2943 = vmatmul.bf16.gmra.mxu0 %v2155
      %v2944 = vpop.f32.mrf.mxu0
      %v2945 = vadd.f32 %v2856, %v2944
      %v2946 = vpop.f32.mrf.mxu0
      %v2947 = vadd.f32 %v2858, %v2946
      %2948 = vmatmul.bf16.gmra.mxu0 %v2158
      %v2949 = vpop.f32.mrf.mxu0
      %v2950 = vadd.f32 %v2861, %v2949
      %v2951 = vpop.f32.mrf.mxu0
      %v2952 = vadd.f32 %v2863, %v2951
      %2953 = vmatmul.bf16.gmra.mxu0 %v2161
      %v2954 = vpop.f32.mrf.mxu0
      %v2955 = vadd.f32 %v2866, %v2954
      %v2956 = vpop.f32.mrf.mxu0
      %v2957 = vadd.f32 %v2868, %v2956
      %2958 = vmatmul.bf16.gmra.mxu0 %v2164
      %v2959 = vpop.f32.mrf.mxu0
      %v2960 = vadd.f32 %v2871, %v2959
      %v2961 = vpop.f32.mrf.mxu0
      %v2962 = vadd.f32 %v2873, %v2961
      %2963 = vmatmul.bf16.gmra.mxu0 %v2167
      %v2964 = vpop.f32.mrf.mxu0
      %v2965 = vadd.f32 %v2876, %v2964
      %v2966 = vpop.f32.mrf.mxu0
      %v2967 = vadd.f32 %v2878, %v2966
      %2968 = vdwg.mxu0
      %2969 = vmatpush.bf16.msra.mxu0 %v2766
      %2970 = vmatpush.bf16.msra.mxu0 %v2765
      %2971 = vmatpush.bf16.msra.mxu0 %v2764
      %2972 = vmatpush.bf16.msra.mxu0 %v2763
      %2973 = vmatpush.bf16.msra.mxu0 %v2762
      %2974 = vmatpush.bf16.msra.mxu0 %v2761
      %2975 = vmatpush.bf16.msra.mxu0 %v2760
      %2976 = vmatpush.bf16.msra.mxu0 %v2759
      %2977 = vmatmul.bf16.gmra.mxu0 %v2643
      %v2978 = vpop.f32.mrf.mxu0
      %v2979 = vadd.f32 %v2890, %v2978
      %v2980 = vpop.f32.mrf.mxu0
      %v2981 = vadd.f32 %v2892, %v2980
      %2982 = vmatmul.bf16.gmra.mxu0 %v2126
      %v2983 = vpop.f32.mrf.mxu0
      %v2984 = vadd.f32 %v2895, %v2983
      %v2985 = vpop.f32.mrf.mxu0
      %v2986 = vadd.f32 %v2897, %v2985
      %2987 = vmatmul.bf16.gmra.mxu0 %v2129
      %v2988 = vpop.f32.mrf.mxu0
      %v2989 = vadd.f32 %v2900, %v2988
      %v2990 = vpop.f32.mrf.mxu0
      %v2991 = vadd.f32 %v2902, %v2990
      %2992 = vmatmul.bf16.gmra.mxu0 %v2132
      %v2993 = vpop.f32.mrf.mxu0
      %v2994 = vadd.f32 %v2905, %v2993
      %v2995 = vpop.f32.mrf.mxu0
      %v2996 = vadd.f32 %v2907, %v2995
      %2997 = vmatmul.bf16.gmra.mxu0 %v2135
      %v2998 = vpop.f32.mrf.mxu0
      %v2999 = vadd.f32 %v2910, %v2998
      %v3000 = vpop.f32.mrf.mxu0
      %v3001 = vadd.f32 %v2912, %v3000
      %3002 = vmatmul.bf16.gmra.mxu0 %v2138
      %v3003 = vpop.f32.mrf.mxu0
      %v3004 = vadd.f32 %v2915, %v3003
      %v3005 = vpop.f32.mrf.mxu0
      %v3006 = vadd.f32 %v2917, %v3005
      %3007 = vmatmul.bf16.gmra.mxu0 %v2141
      %v3008 = vpop.f32.mrf.mxu0
      %v3009 = vadd.f32 %v2920, %v3008
      %v3010 = vpop.f32.mrf.mxu0
      %v3011 = vadd.f32 %v2922, %v3010
      %3012 = vmatmul.bf16.gmra.mxu0 %v2144
      %v3013 = vpop.f32.mrf.mxu0
      %v3014 = vadd.f32 %v2925, %v3013
      %v3015 = vpop.f32.mrf.mxu0
      %v3016 = vadd.f32 %v2927, %v3015
      %3017 = vmatmul.bf16.gmra.mxu0 %v2147
      %v3018 = vpop.f32.mrf.mxu0
      %v3019 = vadd.f32 %v2930, %v3018
      %v3020 = vpop.f32.mrf.mxu0
      %v3021 = vadd.f32 %v2932, %v3020
      %3022 = vmatmul.bf16.gmra.mxu0 %v2150
      %v3023 = vpop.f32.mrf.mxu0
      %v3024 = vadd.f32 %v2935, %v3023
      %v3025 = vpop.f32.mrf.mxu0
      %v3026 = vadd.f32 %v2937, %v3025
      %3027 = vmatmul.bf16.gmra.mxu0 %v2153
      %v3028 = vpop.f32.mrf.mxu0
      %v3029 = vadd.f32 %v2940, %v3028
      %v3030 = vpop.f32.mrf.mxu0
      %v3031 = vadd.f32 %v2942, %v3030
      %3032 = vmatmul.bf16.gmra.mxu0 %v2156
      %v3033 = vpop.f32.mrf.mxu0
      %v3034 = vadd.f32 %v2945, %v3033
      %v3035 = vpop.f32.mrf.mxu0
      %v3036 = vadd.f32 %v2947, %v3035
      %3037 = vmatmul.bf16.gmra.mxu0 %v2159
      %v3038 = vpop.f32.mrf.mxu0
      %v3039 = vadd.f32 %v2950, %v3038
      %v3040 = vpop.f32.mrf.mxu0
      %v3041 = vadd.f32 %v2952, %v3040
      %3042 = vmatmul.bf16.gmra.mxu0 %v2162
      %v3043 = vpop.f32.mrf.mxu0
      %v3044 = vadd.f32 %v2955, %v3043
      %v3045 = vpop.f32.mrf.mxu0
      %v3046 = vadd.f32 %v2957, %v3045
      %3047 = vmatmul.bf16.gmra.mxu0 %v2165
      %v3048 = vpop.f32.mrf.mxu0
      %v3049 = vadd.f32 %v2960, %v3048
      %v3050 = vpop.f32.mrf.mxu0
      %v3051 = vadd.f32 %v2962, %v3050
      %3052 = vmatmul.bf16.gmra.mxu0 %v2168
      %v3053 = vpop.f32.mrf.mxu0
      %v3054 = vadd.f32 %v2965, %v3053
      %v3055 = vpop.f32.mrf.mxu0
      %v3056 = vadd.f32 %v2967, %v3055
      %3057 = vdwg.mxu0
      %v3058 = vld [vmem:[#allocation3 + $0x30] sm:$0xff]
      %v3059 = vld [vmem:[#allocation3 + $0x38] sm:$0xf]
      %v3060 = vld [vmem:[#allocation3 + $0x3c] sm:$0xff]
      %v3061 = vld [vmem:[#allocation3 + $0x44] sm:$0xf]
      %v3062 = vld [vmem:[#allocation3 + $0x48] sm:$0xff]
      %v3063 = vld [vmem:[#allocation3 + $0x50] sm:$0xf]
      %v3064 = vld [vmem:[#allocation3 + $0x54] sm:$0xff]
      %v3065 = vld [vmem:[#allocation3 + $0x5c] sm:$0xf]
      %v3066 = vld [vmem:[#allocation3 + $0x60] sm:$0xff]
      %v3067 = vld [vmem:[#allocation3 + $0x68] sm:$0xf]
      %v3068 = vld [vmem:[#allocation3 + $0x6c] sm:$0xff]
      %v3069 = vld [vmem:[#allocation3 + $0x74] sm:$0xf]
      %v3070 = vld [vmem:[#allocation3 + $0x78] sm:$0xff]
      %v3071 = vld [vmem:[#allocation3 + $0x80] sm:$0xf]
      %v3072 = vld [vmem:[#allocation3 + $0x84] sm:$0xff]
      %v3073 = vld [vmem:[#allocation3 + $0x8c] sm:$0xf]
      %v3074 = vld [vmem:[#allocation3 + $0x90] sm:$0xff]
      %v3075 = vld [vmem:[#allocation3 + $0x98] sm:$0xf]
      %v3076 = vld [vmem:[#allocation3 + $0x9c] sm:$0xff]
      %v3077 = vld [vmem:[#allocation3 + $0xa4] sm:$0xf]
      %v3078 = vld [vmem:[#allocation3 + $0xa8] sm:$0xff]
      %v3079 = vld [vmem:[#allocation3 + $0xb0] sm:$0xf]
      %v3080 = vld [vmem:[#allocation3 + $0xb4] sm:$0xff]
      %v3081 = vld [vmem:[#allocation3 + $0xbc] sm:$0xf]
      %v3082 = vld [vmem:[#allocation3 + $0xc0] sm:$0xff]
      %v3083 = vld [vmem:[#allocation3 + $0xc8] sm:$0xf]
      %v3084 = vld [vmem:[#allocation3 + $0xcc] sm:$0xff]
      %v3085 = vld [vmem:[#allocation3 + $0xd4] sm:$0xf]
      %v3086 = vld [vmem:[#allocation3 + $0xd8] sm:$0xff]
      %v3087 = vld [vmem:[#allocation3 + $0xe0] sm:$0xf]
      %v3088 = vld [vmem:[#allocation3 + $0xe4] sm:$0xff]
      %v3089 = vld [vmem:[#allocation3 + $0xec] sm:$0xf]
      %v3090 = vld [vmem:[#allocation3 + $0xf0] sm:$0xff]
      %v3091 = vld [vmem:[#allocation3 + $0xf8] sm:$0xf]
      %v3092 = vld [vmem:[#allocation3 + $0xfc] sm:$0xff]
      %v3093 = vld [vmem:[#allocation3 + $0x104] sm:$0xf]
      %v3094 = vld [vmem:[#allocation3 + $0x108] sm:$0xff]
      %v3095 = vld [vmem:[#allocation3 + $0x110] sm:$0xf]
      %v3096 = vld [vmem:[#allocation3 + $0x114] sm:$0xff]
      %v3097 = vld [vmem:[#allocation3 + $0x11c] sm:$0xf]
      %v3098 = vld [vmem:[#allocation3 + $0x120] sm:$0xff]
      %v3099 = vld [vmem:[#allocation3 + $0x128] sm:$0xf]
      %v3100 = vld [vmem:[#allocation3 + $0x12c] sm:$0xff]
      %v3101 = vld [vmem:[#allocation3 + $0x134] sm:$0xf]
      %v3102 = vld [vmem:[#allocation3 + $0x138] sm:$0xff]
      %v3103 = vld [vmem:[#allocation3 + $0x140] sm:$0xf]
      %v3104 = vld [vmem:[#allocation3 + $0x144] sm:$0xff]
      %v3105 = vld [vmem:[#allocation3 + $0x14c] sm:$0xf]
      %v3106 = vld [vmem:[#allocation3 + $0x150] sm:$0xff]
      %v3107 = vld [vmem:[#allocation3 + $0x158] sm:$0xf]
      %v3108 = vld [vmem:[#allocation3 + $0x15c] sm:$0xff]
      %v3109 = vld [vmem:[#allocation3 + $0x164] sm:$0xf]
      %v3110 = vld [vmem:[#allocation3 + $0x168] sm:$0xff]
      %v3111 = vld [vmem:[#allocation3 + $0x170] sm:$0xf]
      %v3112 = vld [vmem:[#allocation3 + $0x174] sm:$0xff]
      %v3113 = vld [vmem:[#allocation3 + $0x17c] sm:$0xf]
      %v3114 = vld [vmem:[#allocation3 + $0x180] sm:$0xff]
      %v3115 = vld [vmem:[#allocation3 + $0x188] sm:$0xf]
      %v3116 = vld [vmem:[#allocation3 + $0x18c] sm:$0xff]
      %v3117 = vld [vmem:[#allocation3 + $0x194] sm:$0xf]
      %v3118 = vld [vmem:[#allocation3 + $0x198] sm:$0xff]
      %v3119 = vld [vmem:[#allocation3 + $0x1a0] sm:$0xf]
      %v3120 = vld [vmem:[#allocation3 + $0x1a4] sm:$0xff]
      %v3121 = vld [vmem:[#allocation3 + $0x1ac] sm:$0xf]
      %s3122 = scalar_lea.vmem %s1, 384
      %v3123 = vld [vmem:[%s3122] sm:$0xf]
      %v3124 = vld [vmem:[%s3122 + $0x4] sm:$0xf]
      %v3125 = vld [vmem:[%s3122 + $0x8] sm:$0xf]
      %v3126 = vld [vmem:[%s3122 + $0xc] sm:$0xf]
      %v3127 = vld [vmem:[%s3122 + $0x10] sm:$0xf]
      %v3128 = vld [vmem:[%s3122 + $0x14] sm:$0xf]
      %v3129 = vld [vmem:[%s3122 + $0x18] sm:$0xf]
      %v3130 = vld [vmem:[%s3122 + $0x1c] sm:$0xf]
      %v3131 = vld [vmem:[%s3122 + $0x20] sm:$0xf]
      %v3132 = vld [vmem:[%s3122 + $0x24] sm:$0xf]
      %v3133 = vld [vmem:[%s3122 + $0x28] sm:$0xf]
      %v3134 = vld [vmem:[%s3122 + $0x2c] sm:$0xf]
      %v3135 = vld [vmem:[%s3122 + $0x30] sm:$0xf]
      %v3136 = vld [vmem:[%s3122 + $0x34] sm:$0xf]
      %v3137 = vld [vmem:[%s3122 + $0x38] sm:$0xf]
      %v3138 = vld [vmem:[%s3122 + $0x3c] sm:$0xf]
      %v3139 = vld [vmem:[%s3122 + $0x40] sm:$0xf]
      %v3140 = vld [vmem:[%s3122 + $0x44] sm:$0xf]
      %v3141 = vld [vmem:[%s3122 + $0x48] sm:$0xf]
      %v3142 = vld [vmem:[%s3122 + $0x4c] sm:$0xf]
      %v3143 = vld [vmem:[%s3122 + $0x50] sm:$0xf]
      %v3144 = vld [vmem:[%s3122 + $0x54] sm:$0xf]
      %v3145 = vld [vmem:[%s3122 + $0x58] sm:$0xf]
      %v3146 = vld [vmem:[%s3122 + $0x5c] sm:$0xf]
      %v3147 = vld [vmem:[%s3122 + $0x60] sm:$0xf]
      %v3148 = vld [vmem:[%s3122 + $0x64] sm:$0xf]
      %v3149 = vld [vmem:[%s3122 + $0x68] sm:$0xf]
      %v3150 = vld [vmem:[%s3122 + $0x6c] sm:$0xf]
      %v3151 = vld [vmem:[%s3122 + $0x70] sm:$0xf]
      %v3152 = vld [vmem:[%s3122 + $0x74] sm:$0xf]
      %v3153 = vld [vmem:[%s3122 + $0x78] sm:$0xf]
      %v3154 = vld [vmem:[%s3122 + $0x7c] sm:$0xf]
      %v3155 = vld [vmem:[%s3122 + $0x80] sm:$0xf]
      %v3156 = vld [vmem:[%s3122 + $0x84] sm:$0xf]
      %v3157 = vld [vmem:[%s3122 + $0x88] sm:$0xf]
      %v3158 = vld [vmem:[%s3122 + $0x8c] sm:$0xf]
      %v3159 = vld [vmem:[%s3122 + $0x90] sm:$0xf]
      %v3160 = vld [vmem:[%s3122 + $0x94] sm:$0xf]
      %v3161 = vld [vmem:[%s3122 + $0x98] sm:$0xf]
      %v3162 = vld [vmem:[%s3122 + $0x9c] sm:$0xf]
      %v3163 = vld [vmem:[%s3122 + $0xa0] sm:$0xf]
      %v3164 = vld [vmem:[%s3122 + $0xa4] sm:$0xf]
      %v3165 = vld [vmem:[%s3122 + $0xa8] sm:$0xf]
      %v3166 = vld [vmem:[%s3122 + $0xac] sm:$0xf]
      %v3167 = vld [vmem:[%s3122 + $0xb0] sm:$0xf]
      %v3168 = vld [vmem:[%s3122 + $0xb4] sm:$0xf]
      %v3169 = vld [vmem:[%s3122 + $0xb8] sm:$0xf]
      %v3170 = vld [vmem:[%s3122 + $0xbc] sm:$0xf]
      %v3235 = vunpack.c.l.b16 %v3058
      %v3236 = vunpack.c.h.b16 %v3058
      %v3237 = vunpack.c.l.b16 %v3059
      %v3238 = vunpack.c.l.b16 %v3060
      %v3239 = vunpack.c.h.b16 %v3060
      %v3240 = vunpack.c.l.b16 %v3061
      %v3241 = vunpack.c.l.b16 %v3062
      %v3242 = vunpack.c.h.b16 %v3062
      %v3243 = vunpack.c.l.b16 %v3063
      %v3244 = vunpack.c.l.b16 %v3064
      %v3245 = vunpack.c.h.b16 %v3064
      %v3246 = vunpack.c.l.b16 %v3065
      %v3247 = vunpack.c.l.b16 %v3066
      %v3248 = vunpack.c.h.b16 %v3066
      %v3249 = vunpack.c.l.b16 %v3067
      %v3250 = vunpack.c.l.b16 %v3068
      %v3251 = vunpack.c.h.b16 %v3068
      %v3252 = vunpack.c.l.b16 %v3069
      %v3253 = vunpack.c.l.b16 %v3070
      %v3254 = vunpack.c.h.b16 %v3070
      %v3255 = vunpack.c.l.b16 %v3071
      %v3256 = vunpack.c.l.b16 %v3072
      %v3257 = vunpack.c.h.b16 %v3072
      %v3258 = vunpack.c.l.b16 %v3073
      %v3259 = vunpack.c.l.b16 %v3074
      %v3260 = vunpack.c.h.b16 %v3074
      %v3261 = vunpack.c.l.b16 %v3075
      %v3262 = vunpack.c.l.b16 %v3076
      %v3263 = vunpack.c.h.b16 %v3076
      %v3264 = vunpack.c.l.b16 %v3077
      %v3265 = vunpack.c.l.b16 %v3078
      %v3266 = vunpack.c.h.b16 %v3078
      %v3267 = vunpack.c.l.b16 %v3079
      %v3268 = vunpack.c.l.b16 %v3080
      %v3269 = vunpack.c.h.b16 %v3080
      %v3270 = vunpack.c.l.b16 %v3081
      %v3271 = vunpack.c.l.b16 %v3082
      %v3272 = vunpack.c.h.b16 %v3082
      %v3273 = vunpack.c.l.b16 %v3083
      %v3274 = vunpack.c.l.b16 %v3084
      %v3275 = vunpack.c.h.b16 %v3084
      %v3276 = vunpack.c.l.b16 %v3085
      %v3277 = vunpack.c.l.b16 %v3086
      %v3278 = vunpack.c.h.b16 %v3086
      %v3279 = vunpack.c.l.b16 %v3087
      %v3280 = vunpack.c.l.b16 %v3088
      %v3281 = vunpack.c.h.b16 %v3088
      %v3282 = vunpack.c.l.b16 %v3089
      %v3283 = vunpack.c.l.b16 %v3090
      %v3284 = vunpack.c.h.b16 %v3090
      %v3285 = vunpack.c.l.b16 %v3091
      %v3286 = vunpack.c.l.b16 %v3092
      %v3287 = vunpack.c.h.b16 %v3092
      %v3288 = vunpack.c.l.b16 %v3093
      %v3289 = vunpack.c.l.b16 %v3094
      %v3290 = vunpack.c.h.b16 %v3094
      %v3291 = vunpack.c.l.b16 %v3095
      %v3292 = vunpack.c.l.b16 %v3096
      %v3293 = vunpack.c.h.b16 %v3096
      %v3294 = vunpack.c.l.b16 %v3097
      %v3295 = vunpack.c.l.b16 %v3098
      %v3296 = vunpack.c.h.b16 %v3098
      %v3297 = vunpack.c.l.b16 %v3099
      %v3298 = vunpack.c.l.b16 %v3100
      %v3299 = vunpack.c.h.b16 %v3100
      %v3300 = vunpack.c.l.b16 %v3101
      %v3301 = vunpack.c.l.b16 %v3102
      %v3302 = vunpack.c.h.b16 %v3102
      %v3303 = vunpack.c.l.b16 %v3103
      %v3304 = vunpack.c.l.b16 %v3104
      %v3305 = vunpack.c.h.b16 %v3104
      %v3306 = vunpack.c.l.b16 %v3105
      %v3307 = vunpack.c.l.b16 %v3106
      %v3308 = vunpack.c.h.b16 %v3106
      %v3309 = vunpack.c.l.b16 %v3107
      %v3310 = vunpack.c.l.b16 %v3108
      %v3311 = vunpack.c.h.b16 %v3108
      %v3312 = vunpack.c.l.b16 %v3109
      %v3313 = vunpack.c.l.b16 %v3110
      %v3314 = vunpack.c.h.b16 %v3110
      %v3315 = vunpack.c.l.b16 %v3111
      %v3316 = vunpack.c.l.b16 %v3112
      %v3317 = vunpack.c.h.b16 %v3112
      %v3318 = vunpack.c.l.b16 %v3113
      %v3319 = vunpack.c.l.b16 %v3114
      %v3320 = vunpack.c.h.b16 %v3114
      %v3321 = vunpack.c.l.b16 %v3115
      %v3322 = vunpack.c.l.b16 %v3116
      %v3323 = vunpack.c.h.b16 %v3116
      %v3324 = vunpack.c.l.b16 %v3117
      %v3325 = vunpack.c.l.b16 %v3118
      %v3326 = vunpack.c.h.b16 %v3118
      %v3327 = vunpack.c.l.b16 %v3119
      %v3328 = vunpack.c.l.b16 %v3120
      %v3329 = vunpack.c.h.b16 %v3120
      %v3330 = vunpack.c.l.b16 %v3121
      %v3331 = vpack.c.b16 %v3238, %v3235
      %v3332 = vpack.c.b16 %v3239, %v3236
      %v3333 = vpack.c.b16 %v3240, %v3237
      %v3334 = vpack.c.b16 %v3244, %v3241
      %v3335 = vpack.c.b16 %v3245, %v3242
      %v3336 = vpack.c.b16 %v3246, %v3243
      %v3337 = vpack.c.b16 %v3250, %v3247
      %v3338 = vpack.c.b16 %v3251, %v3248
      %v3339 = vpack.c.b16 %v3252, %v3249
      %v3340 = vpack.c.b16 %v3256, %v3253
      %v3341 = vpack.c.b16 %v3257, %v3254
      %v3342 = vpack.c.b16 %v3258, %v3255
      %v3343 = vpack.c.b16 %v3262, %v3259
      %v3344 = vpack.c.b16 %v3263, %v3260
      %v3345 = vpack.c.b16 %v3264, %v3261
      %v3346 = vpack.c.b16 %v3268, %v3265
      %v3347 = vpack.c.b16 %v3269, %v3266
      %v3348 = vpack.c.b16 %v3270, %v3267
      %v3349 = vpack.c.b16 %v3274, %v3271
      %v3350 = vpack.c.b16 %v3275, %v3272
      %v3351 = vpack.c.b16 %v3276, %v3273
      %v3352 = vpack.c.b16 %v3280, %v3277
      %v3353 = vpack.c.b16 %v3281, %v3278
      %v3354 = vpack.c.b16 %v3282, %v3279
      %v3355 = vpack.c.b16 %v3286, %v3283
      %v3356 = vpack.c.b16 %v3287, %v3284
      %v3357 = vpack.c.b16 %v3288, %v3285
      %v3358 = vpack.c.b16 %v3292, %v3289
      %v3359 = vpack.c.b16 %v3293, %v3290
      %v3360 = vpack.c.b16 %v3294, %v3291
      %v3361 = vpack.c.b16 %v3298, %v3295
      %v3362 = vpack.c.b16 %v3299, %v3296
      %v3363 = vpack.c.b16 %v3300, %v3297
      %v3364 = vpack.c.b16 %v3304, %v3301
      %v3365 = vpack.c.b16 %v3305, %v3302
      %v3366 = vpack.c.b16 %v3306, %v3303
      %v3367 = vpack.c.b16 %v3310, %v3307
      %v3368 = vpack.c.b16 %v3311, %v3308
      %v3369 = vpack.c.b16 %v3312, %v3309
      %v3370 = vpack.c.b16 %v3316, %v3313
      %v3371 = vpack.c.b16 %v3317, %v3314
      %v3372 = vpack.c.b16 %v3318, %v3315
      %v3373 = vpack.c.b16 %v3322, %v3319
      %v3374 = vpack.c.b16 %v3323, %v3320
      %v3375 = vpack.c.b16 %v3324, %v3321
      %v3376 = vpack.c.b16 %v3328, %v3325
      %v3377 = vpack.c.b16 %v3329, %v3326
      %v3378 = vpack.c.b16 %v3330, %v3327
      %v3475 = vunpack.c.l.b16 %v3123
      %v3476 = vunpack.c.l.b16 %v3124
      %v3477 = vunpack.c.l.b16 %v3125
      %v3478 = vunpack.c.l.b16 %v3126
      %v3479 = vunpack.c.l.b16 %v3127
      %v3480 = vunpack.c.l.b16 %v3128
      %v3481 = vunpack.c.l.b16 %v3129
      %v3482 = vunpack.c.l.b16 %v3130
      %v3483 = vunpack.c.l.b16 %v3131
      %v3484 = vunpack.c.l.b16 %v3132
      %v3485 = vunpack.c.l.b16 %v3133
      %v3486 = vunpack.c.l.b16 %v3134
      %v3487 = vunpack.c.l.b16 %v3135
      %v3488 = vunpack.c.l.b16 %v3136
      %v3489 = vunpack.c.l.b16 %v3137
      %v3490 = vunpack.c.l.b16 %v3138
      %v3491 = vunpack.c.l.b16 %v3139
      %v3492 = vunpack.c.l.b16 %v3140
      %v3493 = vunpack.c.l.b16 %v3141
      %v3494 = vunpack.c.l.b16 %v3142
      %v3495 = vunpack.c.l.b16 %v3143
      %v3496 = vunpack.c.l.b16 %v3144
      %v3497 = vunpack.c.l.b16 %v3145
      %v3498 = vunpack.c.l.b16 %v3146
      %v3499 = vunpack.c.l.b16 %v3147
      %v3500 = vunpack.c.l.b16 %v3148
      %v3501 = vunpack.c.l.b16 %v3149
      %v3502 = vunpack.c.l.b16 %v3150
      %v3503 = vunpack.c.l.b16 %v3151
      %v3504 = vunpack.c.l.b16 %v3152
      %v3505 = vunpack.c.l.b16 %v3153
      %v3506 = vunpack.c.l.b16 %v3154
      %v3507 = vunpack.c.l.b16 %v3155
      %v3508 = vunpack.c.l.b16 %v3156
      %v3509 = vunpack.c.l.b16 %v3157
      %v3510 = vunpack.c.l.b16 %v3158
      %v3511 = vunpack.c.l.b16 %v3159
      %v3512 = vunpack.c.l.b16 %v3160
      %v3513 = vunpack.c.l.b16 %v3161
      %v3514 = vunpack.c.l.b16 %v3162
      %v3515 = vunpack.c.l.b16 %v3163
      %v3516 = vunpack.c.l.b16 %v3164
      %v3517 = vunpack.c.l.b16 %v3165
      %v3518 = vunpack.c.l.b16 %v3166
      %v3519 = vunpack.c.l.b16 %v3167
      %v3520 = vunpack.c.l.b16 %v3168
      %v3521 = vunpack.c.l.b16 %v3169
      %v3522 = vunpack.c.l.b16 %v3170
      %v3523 = vpack.c.b16 %v3476, %v3475
      %v3524 = vpack.c.b16 %v3478, %v3477
      %v3525 = vpack.c.b16 %v3480, %v3479
      %v3526 = vpack.c.b16 %v3482, %v3481
      %v3527 = vpack.c.b16 %v3484, %v3483
      %v3528 = vpack.c.b16 %v3486, %v3485
      %v3529 = vpack.c.b16 %v3488, %v3487
      %v3530 = vpack.c.b16 %v3490, %v3489
      %v3531 = vpack.c.b16 %v3492, %v3491
      %v3532 = vpack.c.b16 %v3494, %v3493
      %v3533 = vpack.c.b16 %v3496, %v3495
      %v3534 = vpack.c.b16 %v3498, %v3497
      %v3535 = vpack.c.b16 %v3500, %v3499
      %v3536 = vpack.c.b16 %v3502, %v3501
      %v3537 = vpack.c.b16 %v3504, %v3503
      %v3538 = vpack.c.b16 %v3506, %v3505
      %v3539 = vpack.c.b16 %v3508, %v3507
      %v3540 = vpack.c.b16 %v3510, %v3509
      %v3541 = vpack.c.b16 %v3512, %v3511
      %v3542 = vpack.c.b16 %v3514, %v3513
      %v3543 = vpack.c.b16 %v3516, %v3515
      %v3544 = vpack.c.b16 %v3518, %v3517
      %v3545 = vpack.c.b16 %v3520, %v3519
      %v3546 = vpack.c.b16 %v3522, %v3521
      %3571 = vmatpush.bf16.msra.mxu0 %v3530
      %3572 = vmatpush.bf16.msra.mxu0 %v3529
      %3573 = vmatpush.bf16.msra.mxu0 %v3528
      %3574 = vmatpush.bf16.msra.mxu0 %v3527
      %3575 = vmatpush.bf16.msra.mxu0 %v3526
      %3576 = vmatpush.bf16.msra.mxu0 %v3525
      %3577 = vmatpush.bf16.msra.mxu0 %v3524
      %3578 = vmatpush.bf16.msra.mxu0 %v3523
      %3579 = vmatmul.bf16.gmra.mxu0 %v3331
      %v3580 = vpop.f32.mrf.mxu0
      %v3581 = vadd.f32 0.0, %v3580
      %v3582 = vpop.f32.mrf.mxu0
      %v3583 = vadd.f32 0.0, %v3582
      %3584 = vmatmul.bf16.gmra.mxu0 %v3334
      %v3585 = vpop.f32.mrf.mxu0
      %v3586 = vadd.f32 0.0, %v3585
      %v3587 = vpop.f32.mrf.mxu0
      %v3588 = vadd.f32 0.0, %v3587
      %3589 = vmatmul.bf16.gmra.mxu0 %v3337
      %v3590 = vpop.f32.mrf.mxu0
      %v3591 = vadd.f32 0.0, %v3590
      %v3592 = vpop.f32.mrf.mxu0
      %v3593 = vadd.f32 0.0, %v3592
      %3594 = vmatmul.bf16.gmra.mxu0 %v3340
      %v3595 = vpop.f32.mrf.mxu0
      %v3596 = vadd.f32 0.0, %v3595
      %v3597 = vpop.f32.mrf.mxu0
      %v3598 = vadd.f32 0.0, %v3597
      %3599 = vmatmul.bf16.gmra.mxu0 %v3343
      %v3600 = vpop.f32.mrf.mxu0
      %v3601 = vadd.f32 0.0, %v3600
      %v3602 = vpop.f32.mrf.mxu0
      %v3603 = vadd.f32 0.0, %v3602
      %3604 = vmatmul.bf16.gmra.mxu0 %v3346
      %v3605 = vpop.f32.mrf.mxu0
      %v3606 = vadd.f32 0.0, %v3605
      %v3607 = vpop.f32.mrf.mxu0
      %v3608 = vadd.f32 0.0, %v3607
      %3609 = vmatmul.bf16.gmra.mxu0 %v3349
      %v3610 = vpop.f32.mrf.mxu0
      %v3611 = vadd.f32 0.0, %v3610
      %v3612 = vpop.f32.mrf.mxu0
      %v3613 = vadd.f32 0.0, %v3612
      %3614 = vmatmul.bf16.gmra.mxu0 %v3352
      %v3615 = vpop.f32.mrf.mxu0
      %v3616 = vadd.f32 0.0, %v3615
      %v3617 = vpop.f32.mrf.mxu0
      %v3618 = vadd.f32 0.0, %v3617
      %3619 = vmatmul.bf16.gmra.mxu0 %v3355
      %v3620 = vpop.f32.mrf.mxu0
      %v3621 = vadd.f32 0.0, %v3620
      %v3622 = vpop.f32.mrf.mxu0
      %v3623 = vadd.f32 0.0, %v3622
      %3624 = vmatmul.bf16.gmra.mxu0 %v3358
      %v3625 = vpop.f32.mrf.mxu0
      %v3626 = vadd.f32 0.0, %v3625
      %v3627 = vpop.f32.mrf.mxu0
      %v3628 = vadd.f32 0.0, %v3627
      %3629 = vmatmul.bf16.gmra.mxu0 %v3361
      %v3630 = vpop.f32.mrf.mxu0
      %v3631 = vadd.f32 0.0, %v3630
      %v3632 = vpop.f32.mrf.mxu0
      %v3633 = vadd.f32 0.0, %v3632
      %3634 = vmatmul.bf16.gmra.mxu0 %v3364
      %v3635 = vpop.f32.mrf.mxu0
      %v3636 = vadd.f32 0.0, %v3635
      %v3637 = vpop.f32.mrf.mxu0
      %v3638 = vadd.f32 0.0, %v3637
      %3639 = vmatmul.bf16.gmra.mxu0 %v3367
      %v3640 = vpop.f32.mrf.mxu0
      %v3641 = vadd.f32 0.0, %v3640
      %v3642 = vpop.f32.mrf.mxu0
      %v3643 = vadd.f32 0.0, %v3642
      %3644 = vmatmul.bf16.gmra.mxu0 %v3370
      %v3645 = vpop.f32.mrf.mxu0
      %v3646 = vadd.f32 0.0, %v3645
      %v3647 = vpop.f32.mrf.mxu0
      %v3648 = vadd.f32 0.0, %v3647
      %3649 = vmatmul.bf16.gmra.mxu0 %v3373
      %v3650 = vpop.f32.mrf.mxu0
      %v3651 = vadd.f32 0.0, %v3650
      %v3652 = vpop.f32.mrf.mxu0
      %v3653 = vadd.f32 0.0, %v3652
      %3654 = vmatmul.bf16.gmra.mxu0 %v3376
      %v3655 = vpop.f32.mrf.mxu0
      %v3656 = vadd.f32 0.0, %v3655
      %v3657 = vpop.f32.mrf.mxu0
      %v3658 = vadd.f32 0.0, %v3657
      %3659 = vdwg.mxu0
      %3660 = vmatpush.bf16.msra.mxu0 %v3538
      %3661 = vmatpush.bf16.msra.mxu0 %v3537
      %3662 = vmatpush.bf16.msra.mxu0 %v3536
      %3663 = vmatpush.bf16.msra.mxu0 %v3535
      %3664 = vmatpush.bf16.msra.mxu0 %v3534
      %3665 = vmatpush.bf16.msra.mxu0 %v3533
      %3666 = vmatpush.bf16.msra.mxu0 %v3532
      %3667 = vmatpush.bf16.msra.mxu0 %v3531
      %3668 = vmatmul.bf16.gmra.mxu0 %v3332
      %v3669 = vpop.f32.mrf.mxu0
      %v3670 = vadd.f32 %v3581, %v3669
      %v3671 = vpop.f32.mrf.mxu0
      %v3672 = vadd.f32 %v3583, %v3671
      %3673 = vmatmul.bf16.gmra.mxu0 %v3335
      %v3674 = vpop.f32.mrf.mxu0
      %v3675 = vadd.f32 %v3586, %v3674
      %v3676 = vpop.f32.mrf.mxu0
      %v3677 = vadd.f32 %v3588, %v3676
      %3678 = vmatmul.bf16.gmra.mxu0 %v3338
      %v3679 = vpop.f32.mrf.mxu0
      %v3680 = vadd.f32 %v3591, %v3679
      %v3681 = vpop.f32.mrf.mxu0
      %v3682 = vadd.f32 %v3593, %v3681
      %3683 = vmatmul.bf16.gmra.mxu0 %v3341
      %v3684 = vpop.f32.mrf.mxu0
      %v3685 = vadd.f32 %v3596, %v3684
      %v3686 = vpop.f32.mrf.mxu0
      %v3687 = vadd.f32 %v3598, %v3686
      %3688 = vmatmul.bf16.gmra.mxu0 %v3344
      %v3689 = vpop.f32.mrf.mxu0
      %v3690 = vadd.f32 %v3601, %v3689
      %v3691 = vpop.f32.mrf.mxu0
      %v3692 = vadd.f32 %v3603, %v3691
      %3693 = vmatmul.bf16.gmra.mxu0 %v3347
      %v3694 = vpop.f32.mrf.mxu0
      %v3695 = vadd.f32 %v3606, %v3694
      %v3696 = vpop.f32.mrf.mxu0
      %v3697 = vadd.f32 %v3608, %v3696
      %3698 = vmatmul.bf16.gmra.mxu0 %v3350
      %v3699 = vpop.f32.mrf.mxu0
      %v3700 = vadd.f32 %v3611, %v3699
      %v3701 = vpop.f32.mrf.mxu0
      %v3702 = vadd.f32 %v3613, %v3701
      %3703 = vmatmul.bf16.gmra.mxu0 %v3353
      %v3704 = vpop.f32.mrf.mxu0
      %v3705 = vadd.f32 %v3616, %v3704
      %v3706 = vpop.f32.mrf.mxu0
      %v3707 = vadd.f32 %v3618, %v3706
      %3708 = vmatmul.bf16.gmra.mxu0 %v3356
      %v3709 = vpop.f32.mrf.mxu0
      %v3710 = vadd.f32 %v3621, %v3709
      %v3711 = vpop.f32.mrf.mxu0
      %v3712 = vadd.f32 %v3623, %v3711
      %3713 = vmatmul.bf16.gmra.mxu0 %v3359
      %v3714 = vpop.f32.mrf.mxu0
      %v3715 = vadd.f32 %v3626, %v3714
      %v3716 = vpop.f32.mrf.mxu0
      %v3717 = vadd.f32 %v3628, %v3716
      %3718 = vmatmul.bf16.gmra.mxu0 %v3362
      %v3719 = vpop.f32.mrf.mxu0
      %v3720 = vadd.f32 %v3631, %v3719
      %v3721 = vpop.f32.mrf.mxu0
      %v3722 = vadd.f32 %v3633, %v3721
      %3723 = vmatmul.bf16.gmra.mxu0 %v3365
      %v3724 = vpop.f32.mrf.mxu0
      %v3725 = vadd.f32 %v3636, %v3724
      %v3726 = vpop.f32.mrf.mxu0
      %v3727 = vadd.f32 %v3638, %v3726
      %3728 = vmatmul.bf16.gmra.mxu0 %v3368
      %v3729 = vpop.f32.mrf.mxu0
      %v3730 = vadd.f32 %v3641, %v3729
      %v3731 = vpop.f32.mrf.mxu0
      %v3732 = vadd.f32 %v3643, %v3731
      %3733 = vmatmul.bf16.gmra.mxu0 %v3371
      %v3734 = vpop.f32.mrf.mxu0
      %v3735 = vadd.f32 %v3646, %v3734
      %v3736 = vpop.f32.mrf.mxu0
      %v3737 = vadd.f32 %v3648, %v3736
      %3738 = vmatmul.bf16.gmra.mxu0 %v3374
      %v3739 = vpop.f32.mrf.mxu0
      %v3740 = vadd.f32 %v3651, %v3739
      %v3741 = vpop.f32.mrf.mxu0
      %v3742 = vadd.f32 %v3653, %v3741
      %3743 = vmatmul.bf16.gmra.mxu0 %v3377
      %v3744 = vpop.f32.mrf.mxu0
      %v3745 = vadd.f32 %v3656, %v3744
      %v3746 = vpop.f32.mrf.mxu0
      %v3747 = vadd.f32 %v3658, %v3746
      %3748 = vdwg.mxu0
      %3749 = vmatpush.bf16.msra.mxu0 %v3546
      %3750 = vmatpush.bf16.msra.mxu0 %v3545
      %3751 = vmatpush.bf16.msra.mxu0 %v3544
      %3752 = vmatpush.bf16.msra.mxu0 %v3543
      %3753 = vmatpush.bf16.msra.mxu0 %v3542
      %3754 = vmatpush.bf16.msra.mxu0 %v3541
      %3755 = vmatpush.bf16.msra.mxu0 %v3540
      %3756 = vmatpush.bf16.msra.mxu0 %v3539
      %3757 = vmatmul.bf16.gmra.mxu0 %v3333
      %v3758 = vpop.f32.mrf.mxu0
      %v3759 = vadd.f32 %v3670, %v3758
      %v3760 = vpop.f32.mrf.mxu0
      %v3761 = vadd.f32 %v3672, %v3760
      %3762 = vmatmul.bf16.gmra.mxu0 %v3336
      %v3763 = vpop.f32.mrf.mxu0
      %v3764 = vadd.f32 %v3675, %v3763
      %v3765 = vpop.f32.mrf.mxu0
      %v3766 = vadd.f32 %v3677, %v3765
      %3767 = vmatmul.bf16.gmra.mxu0 %v3339
      %v3768 = vpop.f32.mrf.mxu0
      %v3769 = vadd.f32 %v3680, %v3768
      %v3770 = vpop.f32.mrf.mxu0
      %v3771 = vadd.f32 %v3682, %v3770
      %3772 = vmatmul.bf16.gmra.mxu0 %v3342
      %v3773 = vpop.f32.mrf.mxu0
      %v3774 = vadd.f32 %v3685, %v3773
      %v3775 = vpop.f32.mrf.mxu0
      %v3776 = vadd.f32 %v3687, %v3775
      %3777 = vmatmul.bf16.gmra.mxu0 %v3345
      %v3778 = vpop.f32.mrf.mxu0
      %v3779 = vadd.f32 %v3690, %v3778
      %v3780 = vpop.f32.mrf.mxu0
      %v3781 = vadd.f32 %v3692, %v3780
      %3782 = vmatmul.bf16.gmra.mxu0 %v3348
      %v3783 = vpop.f32.mrf.mxu0
      %v3784 = vadd.f32 %v3695, %v3783
      %v3785 = vpop.f32.mrf.mxu0
      %v3786 = vadd.f32 %v3697, %v3785
      %3787 = vmatmul.bf16.gmra.mxu0 %v3351
      %v3788 = vpop.f32.mrf.mxu0
      %v3789 = vadd.f32 %v3700, %v3788
      %v3790 = vpop.f32.mrf.mxu0
      %v3791 = vadd.f32 %v3702, %v3790
      %3792 = vmatmul.bf16.gmra.mxu0 %v3354
      %v3793 = vpop.f32.mrf.mxu0
      %v3794 = vadd.f32 %v3705, %v3793
      %v3795 = vpop.f32.mrf.mxu0
      %v3796 = vadd.f32 %v3707, %v3795
      %3797 = vmatmul.bf16.gmra.mxu0 %v3357
      %v3798 = vpop.f32.mrf.mxu0
      %v3799 = vadd.f32 %v3710, %v3798
      %v3800 = vpop.f32.mrf.mxu0
      %v3801 = vadd.f32 %v3712, %v3800
      %3802 = vmatmul.bf16.gmra.mxu0 %v3360
      %v3803 = vpop.f32.mrf.mxu0
      %v3804 = vadd.f32 %v3715, %v3803
      %v3805 = vpop.f32.mrf.mxu0
      %v3806 = vadd.f32 %v3717, %v3805
      %3807 = vmatmul.bf16.gmra.mxu0 %v3363
      %v3808 = vpop.f32.mrf.mxu0
      %v3809 = vadd.f32 %v3720, %v3808
      %v3810 = vpop.f32.mrf.mxu0
      %v3811 = vadd.f32 %v3722, %v3810
      %3812 = vmatmul.bf16.gmra.mxu0 %v3366
      %v3813 = vpop.f32.mrf.mxu0
      %v3814 = vadd.f32 %v3725, %v3813
      %v3815 = vpop.f32.mrf.mxu0
      %v3816 = vadd.f32 %v3727, %v3815
      %3817 = vmatmul.bf16.gmra.mxu0 %v3369
      %v3818 = vpop.f32.mrf.mxu0
      %v3819 = vadd.f32 %v3730, %v3818
      %v3820 = vpop.f32.mrf.mxu0
      %v3821 = vadd.f32 %v3732, %v3820
      %3822 = vmatmul.bf16.gmra.mxu0 %v3372
      %v3823 = vpop.f32.mrf.mxu0
      %v3824 = vadd.f32 %v3735, %v3823
      %v3825 = vpop.f32.mrf.mxu0
      %v3826 = vadd.f32 %v3737, %v3825
      %3827 = vmatmul.bf16.gmra.mxu0 %v3375
      %v3828 = vpop.f32.mrf.mxu0
      %v3829 = vadd.f32 %v3740, %v3828
      %v3830 = vpop.f32.mrf.mxu0
      %v3831 = vadd.f32 %v3742, %v3830
      %3832 = vmatmul.bf16.gmra.mxu0 %v3378
      %v3833 = vpop.f32.mrf.mxu0
      %v3834 = vadd.f32 %v3745, %v3833
      %v3835 = vpop.f32.mrf.mxu0
      %v3836 = vadd.f32 %v3747, %v3835
      %3837 = vdwg.mxu0
      %v3838 = vadd.f32 %v2979, %v3759
      %v3839 = vadd.f32 %v2981, %v3761
      %v3840 = vadd.f32 %v2984, %v3764
      %v3841 = vadd.f32 %v2986, %v3766
      %v3842 = vadd.f32 %v2989, %v3769
      %v3843 = vadd.f32 %v2991, %v3771
      %v3844 = vadd.f32 %v2994, %v3774
      %v3845 = vadd.f32 %v2996, %v3776
      %v3846 = vadd.f32 %v2999, %v3779
      %v3847 = vadd.f32 %v3001, %v3781
      %v3848 = vadd.f32 %v3004, %v3784
      %v3849 = vadd.f32 %v3006, %v3786
      %v3850 = vadd.f32 %v3009, %v3789
      %v3851 = vadd.f32 %v3011, %v3791
      %v3852 = vadd.f32 %v3014, %v3794
      %v3853 = vadd.f32 %v3016, %v3796
      %v3854 = vadd.f32 %v3019, %v3799
      %v3855 = vadd.f32 %v3021, %v3801
      %v3856 = vadd.f32 %v3024, %v3804
      %v3857 = vadd.f32 %v3026, %v3806
      %v3858 = vadd.f32 %v3029, %v3809
      %v3859 = vadd.f32 %v3031, %v3811
      %v3860 = vadd.f32 %v3034, %v3814
      %v3861 = vadd.f32 %v3036, %v3816
      %v3862 = vadd.f32 %v3039, %v3819
      %v3863 = vadd.f32 %v3041, %v3821
      %v3864 = vadd.f32 %v3044, %v3824
      %v3865 = vadd.f32 %v3046, %v3826
      %v3866 = vadd.f32 %v3049, %v3829
      %v3867 = vadd.f32 %v3051, %v3831
      %v3868 = vadd.f32 %v3054, %v3834
      %v3869 = vadd.f32 %v3056, %v3836
      %v3870 = vld [vmem:[%s4] sm:$0x1]
      %v3872 = vperm.slane %v3870, 0
      %v3874 = vadd.f32 %v3838, %v3872
      %v3875 = vadd.f32 %v3839, %v3872
      %v3876 = vadd.f32 %v3840, %v3872
      %v3877 = vadd.f32 %v3841, %v3872
      %v3878 = vadd.f32 %v3842, %v3872
      %v3879 = vadd.f32 %v3843, %v3872
      %v3880 = vadd.f32 %v3844, %v3872
      %v3881 = vadd.f32 %v3845, %v3872
      %v3882 = vadd.f32 %v3846, %v3872
      %v3883 = vadd.f32 %v3847, %v3872
      %v3884 = vadd.f32 %v3848, %v3872
      %v3885 = vadd.f32 %v3849, %v3872
      %v3886 = vadd.f32 %v3850, %v3872
      %v3887 = vadd.f32 %v3851, %v3872
      %v3888 = vadd.f32 %v3852, %v3872
      %v3889 = vadd.f32 %v3853, %v3872
      %v3890 = vadd.f32 %v3854, %v3872
      %v3891 = vadd.f32 %v3855, %v3872
      %v3892 = vadd.f32 %v3856, %v3872
      %v3893 = vadd.f32 %v3857, %v3872
      %v3894 = vadd.f32 %v3858, %v3872
      %v3895 = vadd.f32 %v3859, %v3872
      %v3896 = vadd.f32 %v3860, %v3872
      %v3897 = vadd.f32 %v3861, %v3872
      %v3898 = vadd.f32 %v3862, %v3872
      %v3899 = vadd.f32 %v3863, %v3872
      %v3900 = vadd.f32 %v3864, %v3872
      %v3901 = vadd.f32 %v3865, %v3872
      %v3902 = vadd.f32 %v3866, %v3872
      %v3903 = vadd.f32 %v3867, %v3872
      %v3904 = vadd.f32 %v3868, %v3872
      %v3905 = vadd.f32 %v3869, %v3872
      %v3906 = vmax.f32 %v3874, 0.0
      %v3907 = vmax.f32 %v3875, 0.0
      %v3908 = vmax.f32 %v3876, 0.0
      %v3909 = vmax.f32 %v3877, 0.0
      %v3910 = vmax.f32 %v3878, 0.0
      %v3911 = vmax.f32 %v3879, 0.0
      %v3912 = vmax.f32 %v3880, 0.0
      %v3913 = vmax.f32 %v3881, 0.0
      %v3914 = vmax.f32 %v3882, 0.0
      %v3915 = vmax.f32 %v3883, 0.0
      %v3916 = vmax.f32 %v3884, 0.0
      %v3917 = vmax.f32 %v3885, 0.0
      %v3918 = vmax.f32 %v3886, 0.0
      %v3919 = vmax.f32 %v3887, 0.0
      %v3920 = vmax.f32 %v3888, 0.0
      %v3921 = vmax.f32 %v3889, 0.0
      %v3922 = vmax.f32 %v3890, 0.0
      %v3923 = vmax.f32 %v3891, 0.0
      %v3924 = vmax.f32 %v3892, 0.0
      %v3925 = vmax.f32 %v3893, 0.0
      %v3926 = vmax.f32 %v3894, 0.0
      %v3927 = vmax.f32 %v3895, 0.0
      %v3928 = vmax.f32 %v3896, 0.0
      %v3929 = vmax.f32 %v3897, 0.0
      %v3930 = vmax.f32 %v3898, 0.0
      %v3931 = vmax.f32 %v3899, 0.0
      %v3932 = vmax.f32 %v3900, 0.0
      %v3933 = vmax.f32 %v3901, 0.0
      %v3934 = vmax.f32 %v3902, 0.0
      %v3935 = vmax.f32 %v3903, 0.0
      %v3936 = vmax.f32 %v3904, 0.0
      %v3937 = vmax.f32 %v3905, 0.0
      %v3938 = vpack.c.bf16 %v3906, %v3906
      %v3939 = vpack.c.bf16 %v3907, %v3907
      %v3940 = vpack.c.bf16 %v3908, %v3908
      %v3941 = vpack.c.bf16 %v3909, %v3909
      %v3942 = vpack.c.bf16 %v3910, %v3910
      %v3943 = vpack.c.bf16 %v3911, %v3911
      %v3944 = vpack.c.bf16 %v3912, %v3912
      %v3945 = vpack.c.bf16 %v3913, %v3913
      %v3946 = vpack.c.bf16 %v3914, %v3914
      %v3947 = vpack.c.bf16 %v3915, %v3915
      %v3948 = vpack.c.bf16 %v3916, %v3916
      %v3949 = vpack.c.bf16 %v3917, %v3917
      %v3950 = vpack.c.bf16 %v3918, %v3918
      %v3951 = vpack.c.bf16 %v3919, %v3919
      %v3952 = vpack.c.bf16 %v3920, %v3920
      %v3953 = vpack.c.bf16 %v3921, %v3921
      %v3954 = vpack.c.bf16 %v3922, %v3922
      %v3955 = vpack.c.bf16 %v3923, %v3923
      %v3956 = vpack.c.bf16 %v3924, %v3924
      %v3957 = vpack.c.bf16 %v3925, %v3925
      %v3958 = vpack.c.bf16 %v3926, %v3926
      %v3959 = vpack.c.bf16 %v3927, %v3927
      %v3960 = vpack.c.bf16 %v3928, %v3928
      %v3961 = vpack.c.bf16 %v3929, %v3929
      %v3962 = vpack.c.bf16 %v3930, %v3930
      %v3963 = vpack.c.bf16 %v3931, %v3931
      %v3964 = vpack.c.bf16 %v3932, %v3932
      %v3965 = vpack.c.bf16 %v3933, %v3933
      %v3966 = vpack.c.bf16 %v3934, %v3934
      %v3967 = vpack.c.bf16 %v3935, %v3935
      %v3968 = vpack.c.bf16 %v3936, %v3936
      %v3969 = vpack.c.bf16 %v3937, %v3937
      %v3971 = vshrl.u32 %v3938, 16
      %v3973 = vrot.slane %v3971, 7
      %v3974 = vshll.u32 %v3938, 16
      %v3976 = vor.u32 %v3973, %v3974
      %v3977 = vrot.slane %v3973, 4
      %v3979 = vshrl.u32 %v3939, 16
      %v3981 = vrot.slane %v3979, 7
      %v3982 = vshll.u32 %v3939, 16
      %v3984 = vor.u32 %v3981, %v3982
      %v3985 = vsel %vm422, %v3977, %v3984
      %v3986 = vrot.slane %v3981, 4
      %v3988 = vshrl.u32 %v3940, 16
      %v3990 = vrot.slane %v3988, 7
      %v3991 = vshll.u32 %v3940, 16
      %v3993 = vor.u32 %v3990, %v3991
      %v3994 = vrot.slane %v3990, 4
      %v3996 = vshrl.u32 %v3941, 16
      %v3998 = vrot.slane %v3996, 7
      %v3999 = vshll.u32 %v3941, 16
      %v4001 = vor.u32 %v3998, %v3999
      %v4002 = vsel %vm422, %v3994, %v4001
      %v4003 = vrot.slane %v3998, 4
      %v4005 = vshrl.u32 %v3942, 16
      %v4007 = vrot.slane %v4005, 7
      %v4008 = vshll.u32 %v3942, 16
      %v4010 = vor.u32 %v4007, %v4008
      %v4011 = vrot.slane %v4007, 4
      %v4013 = vshrl.u32 %v3943, 16
      %v4015 = vrot.slane %v4013, 7
      %v4016 = vshll.u32 %v3943, 16
      %v4018 = vor.u32 %v4015, %v4016
      %v4019 = vsel %vm422, %v4011, %v4018
      %v4020 = vrot.slane %v4015, 4
      %v4022 = vshrl.u32 %v3944, 16
      %v4024 = vrot.slane %v4022, 7
      %v4025 = vshll.u32 %v3944, 16
      %v4027 = vor.u32 %v4024, %v4025
      %v4028 = vrot.slane %v4024, 4
      %v4030 = vshrl.u32 %v3945, 16
      %v4032 = vrot.slane %v4030, 7
      %v4033 = vshll.u32 %v3945, 16
      %v4035 = vor.u32 %v4032, %v4033
      %v4036 = vsel %vm422, %v4028, %v4035
      %v4037 = vrot.slane %v4032, 4
      %v4039 = vshrl.u32 %v3946, 16
      %v4041 = vrot.slane %v4039, 7
      %v4042 = vshll.u32 %v3946, 16
      %v4044 = vor.u32 %v4041, %v4042
      %v4045 = vrot.slane %v4041, 4
      %v4047 = vshrl.u32 %v3947, 16
      %v4049 = vrot.slane %v4047, 7
      %v4050 = vshll.u32 %v3947, 16
      %v4052 = vor.u32 %v4049, %v4050
      %v4053 = vsel %vm422, %v4045, %v4052
      %v4054 = vrot.slane %v4049, 4
      %v4056 = vshrl.u32 %v3948, 16
      %v4058 = vrot.slane %v4056, 7
      %v4059 = vshll.u32 %v3948, 16
      %v4061 = vor.u32 %v4058, %v4059
      %v4062 = vrot.slane %v4058, 4
      %v4064 = vshrl.u32 %v3949, 16
      %v4066 = vrot.slane %v4064, 7
      %v4067 = vshll.u32 %v3949, 16
      %v4069 = vor.u32 %v4066, %v4067
      %v4070 = vsel %vm422, %v4062, %v4069
      %v4071 = vrot.slane %v4066, 4
      %v4073 = vshrl.u32 %v3950, 16
      %v4075 = vrot.slane %v4073, 7
      %v4076 = vshll.u32 %v3950, 16
      %v4078 = vor.u32 %v4075, %v4076
      %v4079 = vrot.slane %v4075, 4
      %v4081 = vshrl.u32 %v3951, 16
      %v4083 = vrot.slane %v4081, 7
      %v4084 = vshll.u32 %v3951, 16
      %v4086 = vor.u32 %v4083, %v4084
      %v4087 = vsel %vm422, %v4079, %v4086
      %v4088 = vrot.slane %v4083, 4
      %v4090 = vshrl.u32 %v3952, 16
      %v4092 = vrot.slane %v4090, 7
      %v4093 = vshll.u32 %v3952, 16
      %v4095 = vor.u32 %v4092, %v4093
      %v4096 = vrot.slane %v4092, 4
      %v4098 = vshrl.u32 %v3953, 16
      %v4100 = vrot.slane %v4098, 7
      %v4101 = vshll.u32 %v3953, 16
      %v4103 = vor.u32 %v4100, %v4101
      %v4104 = vsel %vm422, %v4096, %v4103
      %v4105 = vrot.slane %v4100, 4
      %v4107 = vshrl.u32 %v3954, 16
      %v4109 = vrot.slane %v4107, 7
      %v4110 = vshll.u32 %v3954, 16
      %v4112 = vor.u32 %v4109, %v4110
      %v4113 = vrot.slane %v4109, 4
      %v4115 = vshrl.u32 %v3955, 16
      %v4117 = vrot.slane %v4115, 7
      %v4118 = vshll.u32 %v3955, 16
      %v4120 = vor.u32 %v4117, %v4118
      %v4121 = vsel %vm422, %v4113, %v4120
      %v4122 = vrot.slane %v4117, 4
      %v4124 = vshrl.u32 %v3956, 16
      %v4126 = vrot.slane %v4124, 7
      %v4127 = vshll.u32 %v3956, 16
      %v4129 = vor.u32 %v4126, %v4127
      %v4130 = vrot.slane %v4126, 4
      %v4132 = vshrl.u32 %v3957, 16
      %v4134 = vrot.slane %v4132, 7
      %v4135 = vshll.u32 %v3957, 16
      %v4137 = vor.u32 %v4134, %v4135
      %v4138 = vsel %vm422, %v4130, %v4137
      %v4139 = vrot.slane %v4134, 4
      %v4141 = vshrl.u32 %v3958, 16
      %v4143 = vrot.slane %v4141, 7
      %v4144 = vshll.u32 %v3958, 16
      %v4146 = vor.u32 %v4143, %v4144
      %v4147 = vrot.slane %v4143, 4
      %v4149 = vshrl.u32 %v3959, 16
      %v4151 = vrot.slane %v4149, 7
      %v4152 = vshll.u32 %v3959, 16
      %v4154 = vor.u32 %v4151, %v4152
      %v4155 = vsel %vm422, %v4147, %v4154
      %v4156 = vrot.slane %v4151, 4
      %v4158 = vshrl.u32 %v3960, 16
      %v4160 = vrot.slane %v4158, 7
      %v4161 = vshll.u32 %v3960, 16
      %v4163 = vor.u32 %v4160, %v4161
      %v4164 = vrot.slane %v4160, 4
      %v4166 = vshrl.u32 %v3961, 16
      %v4168 = vrot.slane %v4166, 7
      %v4169 = vshll.u32 %v3961, 16
      %v4171 = vor.u32 %v4168, %v4169
      %v4172 = vsel %vm422, %v4164, %v4171
      %v4173 = vrot.slane %v4168, 4
      %v4175 = vshrl.u32 %v3962, 16
      %v4177 = vrot.slane %v4175, 7
      %v4178 = vshll.u32 %v3962, 16
      %v4180 = vor.u32 %v4177, %v4178
      %v4181 = vrot.slane %v4177, 4
      %v4183 = vshrl.u32 %v3963, 16
      %v4185 = vrot.slane %v4183, 7
      %v4186 = vshll.u32 %v3963, 16
      %v4188 = vor.u32 %v4185, %v4186
      %v4189 = vsel %vm422, %v4181, %v4188
      %v4190 = vrot.slane %v4185, 4
      %v4192 = vshrl.u32 %v3964, 16
      %v4194 = vrot.slane %v4192, 7
      %v4195 = vshll.u32 %v3964, 16
      %v4197 = vor.u32 %v4194, %v4195
      %v4198 = vrot.slane %v4194, 4
      %v4200 = vshrl.u32 %v3965, 16
      %v4202 = vrot.slane %v4200, 7
      %v4203 = vshll.u32 %v3965, 16
      %v4205 = vor.u32 %v4202, %v4203
      %v4206 = vsel %vm422, %v4198, %v4205
      %v4207 = vrot.slane %v4202, 4
      %v4209 = vshrl.u32 %v3966, 16
      %v4211 = vrot.slane %v4209, 7
      %v4212 = vshll.u32 %v3966, 16
      %v4214 = vor.u32 %v4211, %v4212
      %v4215 = vrot.slane %v4211, 4
      %v4217 = vshrl.u32 %v3967, 16
      %v4219 = vrot.slane %v4217, 7
      %v4220 = vshll.u32 %v3967, 16
      %v4222 = vor.u32 %v4219, %v4220
      %v4223 = vsel %vm422, %v4215, %v4222
      %v4224 = vrot.slane %v4219, 4
      %v4226 = vshrl.u32 %v3968, 16
      %v4228 = vrot.slane %v4226, 7
      %v4229 = vshll.u32 %v3968, 16
      %v4231 = vor.u32 %v4228, %v4229
      %v4232 = vrot.slane %v4228, 4
      %v4234 = vshrl.u32 %v3969, 16
      %v4236 = vrot.slane %v4234, 7
      %v4237 = vshll.u32 %v3969, 16
      %v4239 = vor.u32 %v4236, %v4237
      %v4240 = vsel %vm422, %v4232, %v4239
      %v4241 = vrot.slane %v4236, 4
      %v4290 = vld [vmem:[%s287] sm:$0xf]
      %v4291 = vsel %vm744, %v3976, %v4290
      %4292 = vst [vmem:[%s287] sm:$0xf] %v4291
      %4293 = vst [vmem:[%s287 + $0x4] sm:$0xf] %v3985
      %v4294 = vld [vmem:[%s287 + $0x8] sm:$0x1]
      %v4295 = vsel %vm290, %v3986, %v4294
      %4296 = vst [vmem:[%s287 + $0x8] sm:$0x1] %v4295
      %v4297 = vld [vmem:[%s287 + $0xc] sm:$0xf]
      %v4298 = vsel %vm744, %v3993, %v4297
      %4299 = vst [vmem:[%s287 + $0xc] sm:$0xf] %v4298
      %4300 = vst [vmem:[%s287 + $0x10] sm:$0xf] %v4002
      %v4301 = vld [vmem:[%s287 + $0x14] sm:$0x1]
      %v4302 = vsel %vm290, %v4003, %v4301
      %4303 = vst [vmem:[%s287 + $0x14] sm:$0x1] %v4302
      %v4304 = vld [vmem:[%s287 + $0x18] sm:$0xf]
      %v4305 = vsel %vm744, %v4010, %v4304
      %4306 = vst [vmem:[%s287 + $0x18] sm:$0xf] %v4305
      %4307 = vst [vmem:[%s287 + $0x1c] sm:$0xf] %v4019
      %v4308 = vld [vmem:[%s287 + $0x20] sm:$0x1]
      %v4309 = vsel %vm290, %v4020, %v4308
      %4310 = vst [vmem:[%s287 + $0x20] sm:$0x1] %v4309
      %v4311 = vld [vmem:[%s287 + $0x24] sm:$0xf]
      %v4312 = vsel %vm744, %v4027, %v4311
      %4313 = vst [vmem:[%s287 + $0x24] sm:$0xf] %v4312
      %4314 = vst [vmem:[%s287 + $0x28] sm:$0xf] %v4036
      %v4315 = vld [vmem:[%s287 + $0x2c] sm:$0x1]
      %v4316 = vsel %vm290, %v4037, %v4315
      %4317 = vst [vmem:[%s287 + $0x2c] sm:$0x1] %v4316
      %v4318 = vld [vmem:[%s287 + $0x30] sm:$0xf]
      %v4319 = vsel %vm744, %v4044, %v4318
      %4320 = vst [vmem:[%s287 + $0x30] sm:$0xf] %v4319
      %4321 = vst [vmem:[%s287 + $0x34] sm:$0xf] %v4053
      %v4322 = vld [vmem:[%s287 + $0x38] sm:$0x1]
      %v4323 = vsel %vm290, %v4054, %v4322
      %4324 = vst [vmem:[%s287 + $0x38] sm:$0x1] %v4323
      %v4325 = vld [vmem:[%s287 + $0x3c] sm:$0xf]
      %v4326 = vsel %vm744, %v4061, %v4325
      %4327 = vst [vmem:[%s287 + $0x3c] sm:$0xf] %v4326
      %4328 = vst [vmem:[%s287 + $0x40] sm:$0xf] %v4070
      %v4329 = vld [vmem:[%s287 + $0x44] sm:$0x1]
      %v4330 = vsel %vm290, %v4071, %v4329
      %4331 = vst [vmem:[%s287 + $0x44] sm:$0x1] %v4330
      %v4332 = vld [vmem:[%s287 + $0x48] sm:$0xf]
      %v4333 = vsel %vm744, %v4078, %v4332
      %4334 = vst [vmem:[%s287 + $0x48] sm:$0xf] %v4333
      %4335 = vst [vmem:[%s287 + $0x4c] sm:$0xf] %v4087
      %v4336 = vld [vmem:[%s287 + $0x50] sm:$0x1]
      %v4337 = vsel %vm290, %v4088, %v4336
      %4338 = vst [vmem:[%s287 + $0x50] sm:$0x1] %v4337
      %v4339 = vld [vmem:[%s287 + $0x54] sm:$0xf]
      %v4340 = vsel %vm744, %v4095, %v4339
      %4341 = vst [vmem:[%s287 + $0x54] sm:$0xf] %v4340
      %4342 = vst [vmem:[%s287 + $0x58] sm:$0xf] %v4104
      %v4343 = vld [vmem:[%s287 + $0x5c] sm:$0x1]
      %v4344 = vsel %vm290, %v4105, %v4343
      %4345 = vst [vmem:[%s287 + $0x5c] sm:$0x1] %v4344
      %v4346 = vld [vmem:[%s287 + $0x60] sm:$0xf]
      %v4347 = vsel %vm744, %v4112, %v4346
      %4348 = vst [vmem:[%s287 + $0x60] sm:$0xf] %v4347
      %4349 = vst [vmem:[%s287 + $0x64] sm:$0xf] %v4121
      %v4350 = vld [vmem:[%s287 + $0x68] sm:$0x1]
      %v4351 = vsel %vm290, %v4122, %v4350
      %4352 = vst [vmem:[%s287 + $0x68] sm:$0x1] %v4351
      %v4353 = vld [vmem:[%s287 + $0x6c] sm:$0xf]
      %v4354 = vsel %vm744, %v4129, %v4353
      %4355 = vst [vmem:[%s287 + $0x6c] sm:$0xf] %v4354
      %4356 = vst [vmem:[%s287 + $0x70] sm:$0xf] %v4138
      %v4357 = vld [vmem:[%s287 + $0x74] sm:$0x1]
      %v4358 = vsel %vm290, %v4139, %v4357
      %4359 = vst [vmem:[%s287 + $0x74] sm:$0x1] %v4358
      %v4360 = vld [vmem:[%s287 + $0x78] sm:$0xf]
      %v4361 = vsel %vm744, %v4146, %v4360
      %4362 = vst [vmem:[%s287 + $0x78] sm:$0xf] %v4361
      %4363 = vst [vmem:[%s287 + $0x7c] sm:$0xf] %v4155
      %v4364 = vld [vmem:[%s287 + $0x80] sm:$0x1]
      %v4365 = vsel %vm290, %v4156, %v4364
      %4366 = vst [vmem:[%s287 + $0x80] sm:$0x1] %v4365
      %v4367 = vld [vmem:[%s287 + $0x84] sm:$0xf]
      %v4368 = vsel %vm744, %v4163, %v4367
      %4369 = vst [vmem:[%s287 + $0x84] sm:$0xf] %v4368
      %4370 = vst [vmem:[%s287 + $0x88] sm:$0xf] %v4172
      %v4371 = vld [vmem:[%s287 + $0x8c] sm:$0x1]
      %v4372 = vsel %vm290, %v4173, %v4371
      %4373 = vst [vmem:[%s287 + $0x8c] sm:$0x1] %v4372
      %v4374 = vld [vmem:[%s287 + $0x90] sm:$0xf]
      %v4375 = vsel %vm744, %v4180, %v4374
      %4376 = vst [vmem:[%s287 + $0x90] sm:$0xf] %v4375
      %4377 = vst [vmem:[%s287 + $0x94] sm:$0xf] %v4189
      %v4378 = vld [vmem:[%s287 + $0x98] sm:$0x1]
      %v4379 = vsel %vm290, %v4190, %v4378
      %4380 = vst [vmem:[%s287 + $0x98] sm:$0x1] %v4379
      %v4381 = vld [vmem:[%s287 + $0x9c] sm:$0xf]
      %v4382 = vsel %vm744, %v4197, %v4381
      %4383 = vst [vmem:[%s287 + $0x9c] sm:$0xf] %v4382
      %4384 = vst [vmem:[%s287 + $0xa0] sm:$0xf] %v4206
      %v4385 = vld [vmem:[%s287 + $0xa4] sm:$0x1]
      %v4386 = vsel %vm290, %v4207, %v4385
      %4387 = vst [vmem:[%s287 + $0xa4] sm:$0x1] %v4386
      %v4388 = vld [vmem:[%s287 + $0xa8] sm:$0xf]
      %v4389 = vsel %vm744, %v4214, %v4388
      %4390 = vst [vmem:[%s287 + $0xa8] sm:$0xf] %v4389
      %4391 = vst [vmem:[%s287 + $0xac] sm:$0xf] %v4223
      %v4392 = vld [vmem:[%s287 + $0xb0] sm:$0x1]
      %v4393 = vsel %vm290, %v4224, %v4392
      %4394 = vst [vmem:[%s287 + $0xb0] sm:$0x1] %v4393
      %v4395 = vld [vmem:[%s287 + $0xb4] sm:$0xf]
      %v4396 = vsel %vm744, %v4231, %v4395
      %4397 = vst [vmem:[%s287 + $0xb4] sm:$0xf] %v4396
      %4398 = vst [vmem:[%s287 + $0xb8] sm:$0xf] %v4240
      %v4399 = vld [vmem:[%s287 + $0xbc] sm:$0x1]
      %v4400 = vsel %vm290, %v4241, %v4399
      %4401 = vst [vmem:[%s287 + $0xbc] sm:$0x1] %v4400
      %v4402 = vld [vmem:[#allocation2] sm:$0xf]
      %v4403 = vld [vmem:[#allocation2 + $0x4] sm:$0xf]
      %v4404 = vld [vmem:[#allocation2 + $0xc] sm:$0xf]
      %v4405 = vld [vmem:[#allocation2 + $0x10] sm:$0xf]
      %v4406 = vld [vmem:[#allocation2 + $0x18] sm:$0xf]
      %v4407 = vld [vmem:[#allocation2 + $0x1c] sm:$0xf]
      %v4408 = vld [vmem:[#allocation2 + $0x24] sm:$0xf]
      %v4409 = vld [vmem:[#allocation2 + $0x28] sm:$0xf]
      %v4410 = vld [vmem:[#allocation2 + $0x30] sm:$0xf]
      %v4411 = vld [vmem:[#allocation2 + $0x34] sm:$0xf]
      %v4412 = vld [vmem:[#allocation2 + $0x3c] sm:$0xf]
      %v4413 = vld [vmem:[#allocation2 + $0x40] sm:$0xf]
      %v4414 = vld [vmem:[#allocation2 + $0x48] sm:$0xf]
      %v4415 = vld [vmem:[#allocation2 + $0x4c] sm:$0xf]
      %v4416 = vld [vmem:[#allocation2 + $0x54] sm:$0xf]
      %v4417 = vld [vmem:[#allocation2 + $0x58] sm:$0xf]
      %v4418 = vld [vmem:[#allocation2 + $0x60] sm:$0xf]
      %v4419 = vld [vmem:[#allocation2 + $0x64] sm:$0xf]
      %v4420 = vld [vmem:[#allocation2 + $0x6c] sm:$0xf]
      %v4421 = vld [vmem:[#allocation2 + $0x70] sm:$0xf]
      %v4422 = vld [vmem:[#allocation2 + $0x78] sm:$0xf]
      %v4423 = vld [vmem:[#allocation2 + $0x7c] sm:$0xf]
      %v4424 = vld [vmem:[#allocation2 + $0x84] sm:$0xf]
      %v4425 = vld [vmem:[#allocation2 + $0x88] sm:$0xf]
      %v4426 = vld [vmem:[#allocation2 + $0x90] sm:$0xf]
      %v4427 = vld [vmem:[#allocation2 + $0x94] sm:$0xf]
      %v4428 = vld [vmem:[#allocation2 + $0x9c] sm:$0xf]
      %v4429 = vld [vmem:[#allocation2 + $0xa0] sm:$0xf]
      %v4430 = vld [vmem:[#allocation2 + $0xa8] sm:$0xf]
      %v4431 = vld [vmem:[#allocation2 + $0xac] sm:$0xf]
      %v4432 = vld [vmem:[#allocation2 + $0xb4] sm:$0xf]
      %v4433 = vld [vmem:[#allocation2 + $0xb8] sm:$0xf]
      %v4434 = vld [vmem:[#allocation2 + $0xc0] sm:$0xf]
      %v4435 = vld [vmem:[#allocation2 + $0xc4] sm:$0xf]
      %v4436 = vld [vmem:[#allocation2 + $0xcc] sm:$0xf]
      %v4437 = vld [vmem:[#allocation2 + $0xd0] sm:$0xf]
      %4438 = vst [vmem:[#allocation3] sm:$0xf] %v4402
      %4439 = vst [vmem:[#allocation3 + $0xc] sm:$0xf] %v4403
      %4440 = vst [vmem:[#allocation3 + $0x18] sm:$0xf] %v4404
      %4441 = vst [vmem:[#allocation3 + $0x24] sm:$0xf] %v4405
      %4442 = vst [vmem:[#allocation3 + $0x30] sm:$0xf] %v4406
      %4443 = vst [vmem:[#allocation3 + $0x3c] sm:$0xf] %v4407
      %4444 = vst [vmem:[#allocation3 + $0x48] sm:$0xf] %v4408
      %4445 = vst [vmem:[#allocation3 + $0x54] sm:$0xf] %v4409
      %4446 = vst [vmem:[#allocation3 + $0x60] sm:$0xf] %v4410
      %4447 = vst [vmem:[#allocation3 + $0x6c] sm:$0xf] %v4411
      %4448 = vst [vmem:[#allocation3 + $0x78] sm:$0xf] %v4412
      %4449 = vst [vmem:[#allocation3 + $0x84] sm:$0xf] %v4413
      %4450 = vst [vmem:[#allocation3 + $0x90] sm:$0xf] %v4414
      %4451 = vst [vmem:[#allocation3 + $0x9c] sm:$0xf] %v4415
      %4452 = vst [vmem:[#allocation3 + $0xa8] sm:$0xf] %v4416
      %4453 = vst [vmem:[#allocation3 + $0xb4] sm:$0xf] %v4417
      %4454 = vst [vmem:[#allocation3 + $0xc0] sm:$0xf] %v4418
      %4455 = vst [vmem:[#allocation3 + $0xcc] sm:$0xf] %v4419
      %4456 = vst [vmem:[#allocation3 + $0xd8] sm:$0xf] %v4420
      %4457 = vst [vmem:[#allocation3 + $0xe4] sm:$0xf] %v4421
      %4458 = vst [vmem:[#allocation3 + $0xf0] sm:$0xf] %v4422
      %4459 = vst [vmem:[#allocation3 + $0xfc] sm:$0xf] %v4423
      %4460 = vst [vmem:[#allocation3 + $0x108] sm:$0xf] %v4424
      %4461 = vst [vmem:[#allocation3 + $0x114] sm:$0xf] %v4425
      %4462 = vst [vmem:[#allocation3 + $0x120] sm:$0xf] %v4426
      %4463 = vst [vmem:[#allocation3 + $0x12c] sm:$0xf] %v4427
      %4464 = vst [vmem:[#allocation3 + $0x138] sm:$0xf] %v4428
      %4465 = vst [vmem:[#allocation3 + $0x144] sm:$0xf] %v4429
      %4466 = vst [vmem:[#allocation3 + $0x150] sm:$0xf] %v4430
      %4467 = vst [vmem:[#allocation3 + $0x15c] sm:$0xf] %v4431
      %4468 = vst [vmem:[#allocation3 + $0x168] sm:$0xf] %v4432
      %4469 = vst [vmem:[#allocation3 + $0x174] sm:$0xf] %v4433
      %4470 = vst [vmem:[#allocation3 + $0x180] sm:$0xf] %v4434
      %4471 = vst [vmem:[#allocation3 + $0x18c] sm:$0xf] %v4435
      %4472 = vst [vmem:[#allocation3 + $0x198] sm:$0xf] %v4436
      %4473 = vst [vmem:[#allocation3 + $0x1a4] sm:$0xf] %v4437
      %v4474 = vld [vmem:[#allocation2] sm:$0xf]
      %v4475 = vld [vmem:[#allocation2 + $0x4] sm:$0xf]
      %v4476 = vld [vmem:[#allocation2 + $0x8] sm:$0x1]
      %v4477 = vld [vmem:[#allocation2 + $0xc] sm:$0xf]
      %v4478 = vld [vmem:[#allocation2 + $0x10] sm:$0xf]
      %v4479 = vld [vmem:[#allocation2 + $0x14] sm:$0x1]
      %v4480 = vld [vmem:[#allocation2 + $0x18] sm:$0xf]
      %v4481 = vld [vmem:[#allocation2 + $0x1c] sm:$0xf]
      %v4482 = vld [vmem:[#allocation2 + $0x20] sm:$0x1]
      %v4483 = vld [vmem:[#allocation2 + $0x24] sm:$0xf]
      %v4484 = vld [vmem:[#allocation2 + $0x28] sm:$0xf]
      %v4485 = vld [vmem:[#allocation2 + $0x2c] sm:$0x1]
      %v4486 = vld [vmem:[#allocation2 + $0x30] sm:$0xf]
      %v4487 = vld [vmem:[#allocation2 + $0x34] sm:$0xf]
      %v4488 = vld [vmem:[#allocation2 + $0x38] sm:$0x1]
      %v4489 = vld [vmem:[#allocation2 + $0x3c] sm:$0xf]
      %v4490 = vld [vmem:[#allocation2 + $0x40] sm:$0xf]
      %v4491 = vld [vmem:[#allocation2 + $0x44] sm:$0x1]
      %v4492 = vld [vmem:[#allocation2 + $0x48] sm:$0xf]
      %v4493 = vld [vmem:[#allocation2 + $0x4c] sm:$0xf]
      %v4494 = vld [vmem:[#allocation2 + $0x50] sm:$0x1]
      %v4495 = vld [vmem:[#allocation2 + $0x54] sm:$0xf]
      %v4496 = vld [vmem:[#allocation2 + $0x58] sm:$0xf]
      %v4497 = vld [vmem:[#allocation2 + $0x5c] sm:$0x1]
      %v4498 = vld [vmem:[#allocation2 + $0x60] sm:$0xf]
      %v4499 = vld [vmem:[#allocation2 + $0x64] sm:$0xf]
      %v4500 = vld [vmem:[#allocation2 + $0x68] sm:$0x1]
      %v4501 = vld [vmem:[#allocation2 + $0x6c] sm:$0xf]
      %v4502 = vld [vmem:[#allocation2 + $0x70] sm:$0xf]
      %v4503 = vld [vmem:[#allocation2 + $0x74] sm:$0x1]
      %v4504 = vld [vmem:[#allocation2 + $0x78] sm:$0xf]
      %v4505 = vld [vmem:[#allocation2 + $0x7c] sm:$0xf]
      %v4506 = vld [vmem:[#allocation2 + $0x80] sm:$0x1]
      %v4507 = vld [vmem:[#allocation2 + $0x84] sm:$0xf]
      %v4508 = vld [vmem:[#allocation2 + $0x88] sm:$0xf]
      %v4509 = vld [vmem:[#allocation2 + $0x8c] sm:$0x1]
      %v4510 = vld [vmem:[#allocation2 + $0x90] sm:$0xf]
      %v4511 = vld [vmem:[#allocation2 + $0x94] sm:$0xf]
      %v4512 = vld [vmem:[#allocation2 + $0x98] sm:$0x1]
      %v4513 = vld [vmem:[#allocation2 + $0x9c] sm:$0xf]
      %v4514 = vld [vmem:[#allocation2 + $0xa0] sm:$0xf]
      %v4515 = vld [vmem:[#allocation2 + $0xa4] sm:$0x1]
      %v4516 = vld [vmem:[#allocation2 + $0xa8] sm:$0xf]
      %v4517 = vld [vmem:[#allocation2 + $0xac] sm:$0xf]
      %v4518 = vld [vmem:[#allocation2 + $0xb0] sm:$0x1]
      %v4519 = vld [vmem:[#allocation2 + $0xb4] sm:$0xf]
      %v4520 = vld [vmem:[#allocation2 + $0xb8] sm:$0xf]
      %v4521 = vld [vmem:[#allocation2 + $0xbc] sm:$0x1]
      %v4522 = vld [vmem:[#allocation2 + $0xc0] sm:$0xf]
      %v4523 = vld [vmem:[#allocation2 + $0xc4] sm:$0xf]
      %v4524 = vld [vmem:[#allocation2 + $0xc8] sm:$0x1]
      %v4525 = vld [vmem:[#allocation2 + $0xcc] sm:$0xf]
      %v4526 = vld [vmem:[#allocation2 + $0xd0] sm:$0xf]
      %v4527 = vld [vmem:[#allocation2 + $0xd4] sm:$0x1]
      %v4529 = vshrl.u32 %v4474, 16
      %v4531 = vrot.slane %v4529, 4
      %v4532 = vshll.u32 %v4474, 16
      %v4534 = vrot.slane %v4532, 5
      %v4535 = vor.u32 %v4531, %v4534
      %v4536 = vrot.slane %v4535, 4
      %v4538 = vshll.u32 %v4475, 16
      %v4540 = vrot.slane %v4538, 5
      %v4541 = vsel %vm985, %v4536, %v4540
      %v4542 = vshrl.u32 %v4475, 16
      %v4544 = vrot.slane %v4542, 4
      %v4545 = vor.u32 %v4544, %v4540
      %v4546 = vrot.slane %v4545, 4
      %v4548 = vshll.u32 %v4476, 16
      %v4550 = vrot.slane %v4548, 5
      %v4551 = vsel %vm985, %v4546, %v4550
      %v4553 = vshrl.u32 %v4477, 16
      %v4555 = vrot.slane %v4553, 4
      %v4556 = vshll.u32 %v4477, 16
      %v4558 = vrot.slane %v4556, 5
      %v4559 = vor.u32 %v4555, %v4558
      %v4560 = vrot.slane %v4559, 4
      %v4562 = vshll.u32 %v4478, 16
      %v4564 = vrot.slane %v4562, 5
      %v4565 = vsel %vm985, %v4560, %v4564
      %v4566 = vshrl.u32 %v4478, 16
      %v4568 = vrot.slane %v4566, 4
      %v4569 = vor.u32 %v4568, %v4564
      %v4570 = vrot.slane %v4569, 4
      %v4572 = vshll.u32 %v4479, 16
      %v4574 = vrot.slane %v4572, 5
      %v4575 = vsel %vm985, %v4570, %v4574
      %v4577 = vshrl.u32 %v4480, 16
      %v4579 = vrot.slane %v4577, 4
      %v4580 = vshll.u32 %v4480, 16
      %v4582 = vrot.slane %v4580, 5
      %v4583 = vor.u32 %v4579, %v4582
      %v4584 = vrot.slane %v4583, 4
      %v4586 = vshll.u32 %v4481, 16
      %v4588 = vrot.slane %v4586, 5
      %v4589 = vsel %vm985, %v4584, %v4588
      %v4590 = vshrl.u32 %v4481, 16
      %v4592 = vrot.slane %v4590, 4
      %v4593 = vor.u32 %v4592, %v4588
      %v4594 = vrot.slane %v4593, 4
      %v4596 = vshll.u32 %v4482, 16
      %v4598 = vrot.slane %v4596, 5
      %v4599 = vsel %vm985, %v4594, %v4598
      %v4601 = vshrl.u32 %v4483, 16
      %v4603 = vrot.slane %v4601, 4
      %v4604 = vshll.u32 %v4483, 16
      %v4606 = vrot.slane %v4604, 5
      %v4607 = vor.u32 %v4603, %v4606
      %v4608 = vrot.slane %v4607, 4
      %v4610 = vshll.u32 %v4484, 16
      %v4612 = vrot.slane %v4610, 5
      %v4613 = vsel %vm985, %v4608, %v4612
      %v4614 = vshrl.u32 %v4484, 16
      %v4616 = vrot.slane %v4614, 4
      %v4617 = vor.u32 %v4616, %v4612
      %v4618 = vrot.slane %v4617, 4
      %v4620 = vshll.u32 %v4485, 16
      %v4622 = vrot.slane %v4620, 5
      %v4623 = vsel %vm985, %v4618, %v4622
      %v4625 = vshrl.u32 %v4486, 16
      %v4627 = vrot.slane %v4625, 4
      %v4628 = vshll.u32 %v4486, 16
      %v4630 = vrot.slane %v4628, 5
      %v4631 = vor.u32 %v4627, %v4630
      %v4632 = vrot.slane %v4631, 4
      %v4634 = vshll.u32 %v4487, 16
      %v4636 = vrot.slane %v4634, 5
      %v4637 = vsel %vm985, %v4632, %v4636
      %v4638 = vshrl.u32 %v4487, 16
      %v4640 = vrot.slane %v4638, 4
      %v4641 = vor.u32 %v4640, %v4636
      %v4642 = vrot.slane %v4641, 4
      %v4644 = vshll.u32 %v4488, 16
      %v4646 = vrot.slane %v4644, 5
      %v4647 = vsel %vm985, %v4642, %v4646
      %v4649 = vshrl.u32 %v4489, 16
      %v4651 = vrot.slane %v4649, 4
      %v4652 = vshll.u32 %v4489, 16
      %v4654 = vrot.slane %v4652, 5
      %v4655 = vor.u32 %v4651, %v4654
      %v4656 = vrot.slane %v4655, 4
      %v4658 = vshll.u32 %v4490, 16
      %v4660 = vrot.slane %v4658, 5
      %v4661 = vsel %vm985, %v4656, %v4660
      %v4662 = vshrl.u32 %v4490, 16
      %v4664 = vrot.slane %v4662, 4
      %v4665 = vor.u32 %v4664, %v4660
      %v4666 = vrot.slane %v4665, 4
      %v4668 = vshll.u32 %v4491, 16
      %v4670 = vrot.slane %v4668, 5
      %v4671 = vsel %vm985, %v4666, %v4670
      %v4673 = vshrl.u32 %v4492, 16
      %v4675 = vrot.slane %v4673, 4
      %v4676 = vshll.u32 %v4492, 16
      %v4678 = vrot.slane %v4676, 5
      %v4679 = vor.u32 %v4675, %v4678
      %v4680 = vrot.slane %v4679, 4
      %v4682 = vshll.u32 %v4493, 16
      %v4684 = vrot.slane %v4682, 5
      %v4685 = vsel %vm985, %v4680, %v4684
      %v4686 = vshrl.u32 %v4493, 16
      %v4688 = vrot.slane %v4686, 4
      %v4689 = vor.u32 %v4688, %v4684
      %v4690 = vrot.slane %v4689, 4
      %v4692 = vshll.u32 %v4494, 16
      %v4694 = vrot.slane %v4692, 5
      %v4695 = vsel %vm985, %v4690, %v4694
      %v4697 = vshrl.u32 %v4495, 16
      %v4699 = vrot.slane %v4697, 4
      %v4700 = vshll.u32 %v4495, 16
      %v4702 = vrot.slane %v4700, 5
      %v4703 = vor.u32 %v4699, %v4702
      %v4704 = vrot.slane %v4703, 4
      %v4706 = vshll.u32 %v4496, 16
      %v4708 = vrot.slane %v4706, 5
      %v4709 = vsel %vm985, %v4704, %v4708
      %v4710 = vshrl.u32 %v4496, 16
      %v4712 = vrot.slane %v4710, 4
      %v4713 = vor.u32 %v4712, %v4708
      %v4714 = vrot.slane %v4713, 4
      %v4716 = vshll.u32 %v4497, 16
      %v4718 = vrot.slane %v4716, 5
      %v4719 = vsel %vm985, %v4714, %v4718
      %v4721 = vshrl.u32 %v4498, 16
      %v4723 = vrot.slane %v4721, 4
      %v4724 = vshll.u32 %v4498, 16
      %v4726 = vrot.slane %v4724, 5
      %v4727 = vor.u32 %v4723, %v4726
      %v4728 = vrot.slane %v4727, 4
      %v4730 = vshll.u32 %v4499, 16
      %v4732 = vrot.slane %v4730, 5
      %v4733 = vsel %vm985, %v4728, %v4732
      %v4734 = vshrl.u32 %v4499, 16
      %v4736 = vrot.slane %v4734, 4
      %v4737 = vor.u32 %v4736, %v4732
      %v4738 = vrot.slane %v4737, 4
      %v4740 = vshll.u32 %v4500, 16
      %v4742 = vrot.slane %v4740, 5
      %v4743 = vsel %vm985, %v4738, %v4742
      %v4745 = vshrl.u32 %v4501, 16
      %v4747 = vrot.slane %v4745, 4
      %v4748 = vshll.u32 %v4501, 16
      %v4750 = vrot.slane %v4748, 5
      %v4751 = vor.u32 %v4747, %v4750
      %v4752 = vrot.slane %v4751, 4
      %v4754 = vshll.u32 %v4502, 16
      %v4756 = vrot.slane %v4754, 5
      %v4757 = vsel %vm985, %v4752, %v4756
      %v4758 = vshrl.u32 %v4502, 16
      %v4760 = vrot.slane %v4758, 4
      %v4761 = vor.u32 %v4760, %v4756
      %v4762 = vrot.slane %v4761, 4
      %v4764 = vshll.u32 %v4503, 16
      %v4766 = vrot.slane %v4764, 5
      %v4767 = vsel %vm985, %v4762, %v4766
      %v4769 = vshrl.u32 %v4504, 16
      %v4771 = vrot.slane %v4769, 4
      %v4772 = vshll.u32 %v4504, 16
      %v4774 = vrot.slane %v4772, 5
      %v4775 = vor.u32 %v4771, %v4774
      %v4776 = vrot.slane %v4775, 4
      %v4778 = vshll.u32 %v4505, 16
      %v4780 = vrot.slane %v4778, 5
      %v4781 = vsel %vm985, %v4776, %v4780
      %v4782 = vshrl.u32 %v4505, 16
      %v4784 = vrot.slane %v4782, 4
      %v4785 = vor.u32 %v4784, %v4780
      %v4786 = vrot.slane %v4785, 4
      %v4788 = vshll.u32 %v4506, 16
      %v4790 = vrot.slane %v4788, 5
      %v4791 = vsel %vm985, %v4786, %v4790
      %v4793 = vshrl.u32 %v4507, 16
      %v4795 = vrot.slane %v4793, 4
      %v4796 = vshll.u32 %v4507, 16
      %v4798 = vrot.slane %v4796, 5
      %v4799 = vor.u32 %v4795, %v4798
      %v4800 = vrot.slane %v4799, 4
      %v4802 = vshll.u32 %v4508, 16
      %v4804 = vrot.slane %v4802, 5
      %v4805 = vsel %vm985, %v4800, %v4804
      %v4806 = vshrl.u32 %v4508, 16
      %v4808 = vrot.slane %v4806, 4
      %v4809 = vor.u32 %v4808, %v4804
      %v4810 = vrot.slane %v4809, 4
      %v4812 = vshll.u32 %v4509, 16
      %v4814 = vrot.slane %v4812, 5
      %v4815 = vsel %vm985, %v4810, %v4814
      %v4817 = vshrl.u32 %v4510, 16
      %v4819 = vrot.slane %v4817, 4
      %v4820 = vshll.u32 %v4510, 16
      %v4822 = vrot.slane %v4820, 5
      %v4823 = vor.u32 %v4819, %v4822
      %v4824 = vrot.slane %v4823, 4
      %v4826 = vshll.u32 %v4511, 16
      %v4828 = vrot.slane %v4826, 5
      %v4829 = vsel %vm985, %v4824, %v4828
      %v4830 = vshrl.u32 %v4511, 16
      %v4832 = vrot.slane %v4830, 4
      %v4833 = vor.u32 %v4832, %v4828
      %v4834 = vrot.slane %v4833, 4
      %v4836 = vshll.u32 %v4512, 16
      %v4838 = vrot.slane %v4836, 5
      %v4839 = vsel %vm985, %v4834, %v4838
      %v4841 = vshrl.u32 %v4513, 16
      %v4843 = vrot.slane %v4841, 4
      %v4844 = vshll.u32 %v4513, 16
      %v4846 = vrot.slane %v4844, 5
      %v4847 = vor.u32 %v4843, %v4846
      %v4848 = vrot.slane %v4847, 4
      %v4850 = vshll.u32 %v4514, 16
      %v4852 = vrot.slane %v4850, 5
      %v4853 = vsel %vm985, %v4848, %v4852
      %v4854 = vshrl.u32 %v4514, 16
      %v4856 = vrot.slane %v4854, 4
      %v4857 = vor.u32 %v4856, %v4852
      %v4858 = vrot.slane %v4857, 4
      %v4860 = vshll.u32 %v4515, 16
      %v4862 = vrot.slane %v4860, 5
      %v4863 = vsel %vm985, %v4858, %v4862
      %v4865 = vshrl.u32 %v4516, 16
      %v4867 = vrot.slane %v4865, 4
      %v4868 = vshll.u32 %v4516, 16
      %v4870 = vrot.slane %v4868, 5
      %v4871 = vor.u32 %v4867, %v4870
      %v4872 = vrot.slane %v4871, 4
      %v4874 = vshll.u32 %v4517, 16
      %v4876 = vrot.slane %v4874, 5
      %v4877 = vsel %vm985, %v4872, %v4876
      %v4878 = vshrl.u32 %v4517, 16
      %v4880 = vrot.slane %v4878, 4
      %v4881 = vor.u32 %v4880, %v4876
      %v4882 = vrot.slane %v4881, 4
      %v4884 = vshll.u32 %v4518, 16
      %v4886 = vrot.slane %v4884, 5
      %v4887 = vsel %vm985, %v4882, %v4886
      %v4889 = vshrl.u32 %v4519, 16
      %v4891 = vrot.slane %v4889, 4
      %v4892 = vshll.u32 %v4519, 16
      %v4894 = vrot.slane %v4892, 5
      %v4895 = vor.u32 %v4891, %v4894
      %v4896 = vrot.slane %v4895, 4
      %v4898 = vshll.u32 %v4520, 16
      %v4900 = vrot.slane %v4898, 5
      %v4901 = vsel %vm985, %v4896, %v4900
      %v4902 = vshrl.u32 %v4520, 16
      %v4904 = vrot.slane %v4902, 4
      %v4905 = vor.u32 %v4904, %v4900
      %v4906 = vrot.slane %v4905, 4
      %v4908 = vshll.u32 %v4521, 16
      %v4910 = vrot.slane %v4908, 5
      %v4911 = vsel %vm985, %v4906, %v4910
      %v4913 = vshrl.u32 %v4522, 16
      %v4915 = vrot.slane %v4913, 4
      %v4916 = vshll.u32 %v4522, 16
      %v4918 = vrot.slane %v4916, 5
      %v4919 = vor.u32 %v4915, %v4918
      %v4920 = vrot.slane %v4919, 4
      %v4922 = vshll.u32 %v4523, 16
      %v4924 = vrot.slane %v4922, 5
      %v4925 = vsel %vm985, %v4920, %v4924
      %v4926 = vshrl.u32 %v4523, 16
      %v4928 = vrot.slane %v4926, 4
      %v4929 = vor.u32 %v4928, %v4924
      %v4930 = vrot.slane %v4929, 4
      %v4932 = vshll.u32 %v4524, 16
      %v4934 = vrot.slane %v4932, 5
      %v4935 = vsel %vm985, %v4930, %v4934
      %v4937 = vshrl.u32 %v4525, 16
      %v4939 = vrot.slane %v4937, 4
      %v4940 = vshll.u32 %v4525, 16
      %v4942 = vrot.slane %v4940, 5
      %v4943 = vor.u32 %v4939, %v4942
      %v4944 = vrot.slane %v4943, 4
      %v4946 = vshll.u32 %v4526, 16
      %v4948 = vrot.slane %v4946, 5
      %v4949 = vsel %vm985, %v4944, %v4948
      %v4950 = vshrl.u32 %v4526, 16
      %v4952 = vrot.slane %v4950, 4
      %v4953 = vor.u32 %v4952, %v4948
      %v4954 = vrot.slane %v4953, 4
      %v4956 = vshll.u32 %v4527, 16
      %v4958 = vrot.slane %v4956, 5
      %v4959 = vsel %vm985, %v4954, %v4958
      %4996 = vst [vmem:[#allocation3 + $0x4] sm:$0xf] %v4541
      %4997 = vst [vmem:[#allocation3 + $0x10] sm:$0xf] %v4551
      %4998 = vst [vmem:[#allocation3 + $0x1c] sm:$0xf] %v4565
      %4999 = vst [vmem:[#allocation3 + $0x28] sm:$0xf] %v4575
      %5000 = vst [vmem:[#allocation3 + $0x34] sm:$0xf] %v4589
      %5001 = vst [vmem:[#allocation3 + $0x40] sm:$0xf] %v4599
      %5002 = vst [vmem:[#allocation3 + $0x4c] sm:$0xf] %v4613
      %5003 = vst [vmem:[#allocation3 + $0x58] sm:$0xf] %v4623
      %5004 = vst [vmem:[#allocation3 + $0x64] sm:$0xf] %v4637
      %5005 = vst [vmem:[#allocation3 + $0x70] sm:$0xf] %v4647
      %5006 = vst [vmem:[#allocation3 + $0x7c] sm:$0xf] %v4661
      %5007 = vst [vmem:[#allocation3 + $0x88] sm:$0xf] %v4671
      %5008 = vst [vmem:[#allocation3 + $0x94] sm:$0xf] %v4685
      %5009 = vst [vmem:[#allocation3 + $0xa0] sm:$0xf] %v4695
      %5010 = vst [vmem:[#allocation3 + $0xac] sm:$0xf] %v4709
      %5011 = vst [vmem:[#allocation3 + $0xb8] sm:$0xf] %v4719
      %5012 = vst [vmem:[#allocation3 + $0xc4] sm:$0xf] %v4733
      %5013 = vst [vmem:[#allocation3 + $0xd0] sm:$0xf] %v4743
      %5014 = vst [vmem:[#allocation3 + $0xdc] sm:$0xf] %v4757
      %5015 = vst [vmem:[#allocation3 + $0xe8] sm:$0xf] %v4767
      %5016 = vst [vmem:[#allocation3 + $0xf4] sm:$0xf] %v4781
      %5017 = vst [vmem:[#allocation3 + $0x100] sm:$0xf] %v4791
      %5018 = vst [vmem:[#allocation3 + $0x10c] sm:$0xf] %v4805
      %5019 = vst [vmem:[#allocation3 + $0x118] sm:$0xf] %v4815
      %5020 = vst [vmem:[#allocation3 + $0x124] sm:$0xf] %v4829
      %5021 = vst [vmem:[#allocation3 + $0x130] sm:$0xf] %v4839
      %5022 = vst [vmem:[#allocation3 + $0x13c] sm:$0xf] %v4853
      %5023 = vst [vmem:[#allocation3 + $0x148] sm:$0xf] %v4863
      %5024 = vst [vmem:[#allocation3 + $0x154] sm:$0xf] %v4877
      %5025 = vst [vmem:[#allocation3 + $0x160] sm:$0xf] %v4887
      %5026 = vst [vmem:[#allocation3 + $0x16c] sm:$0xf] %v4901
      %5027 = vst [vmem:[#allocation3 + $0x178] sm:$0xf] %v4911
      %5028 = vst [vmem:[#allocation3 + $0x184] sm:$0xf] %v4925
      %5029 = vst [vmem:[#allocation3 + $0x190] sm:$0xf] %v4935
      %5030 = vst [vmem:[#allocation3 + $0x19c] sm:$0xf] %v4949
      %5031 = vst [vmem:[#allocation3 + $0x1a8] sm:$0xf] %v4959
      %v5032 = vld [vmem:[#allocation2] sm:$0xe]
      %v5033 = vld [vmem:[#allocation2 + $0x4] sm:$0xf]
      %v5034 = vld [vmem:[#allocation2 + $0x8] sm:$0x1]
      %v5035 = vld [vmem:[#allocation2 + $0xc] sm:$0xe]
      %v5036 = vld [vmem:[#allocation2 + $0x10] sm:$0xf]
      %v5037 = vld [vmem:[#allocation2 + $0x14] sm:$0x1]
      %v5038 = vld [vmem:[#allocation2 + $0x18] sm:$0xe]
      %v5039 = vld [vmem:[#allocation2 + $0x1c] sm:$0xf]
      %v5040 = vld [vmem:[#allocation2 + $0x20] sm:$0x1]
      %v5041 = vld [vmem:[#allocation2 + $0x24] sm:$0xe]
      %v5042 = vld [vmem:[#allocation2 + $0x28] sm:$0xf]
      %v5043 = vld [vmem:[#allocation2 + $0x2c] sm:$0x1]
      %v5044 = vld [vmem:[#allocation2 + $0x30] sm:$0xe]
      %v5045 = vld [vmem:[#allocation2 + $0x34] sm:$0xf]
      %v5046 = vld [vmem:[#allocation2 + $0x38] sm:$0x1]
      %v5047 = vld [vmem:[#allocation2 + $0x3c] sm:$0xe]
      %v5048 = vld [vmem:[#allocation2 + $0x40] sm:$0xf]
      %v5049 = vld [vmem:[#allocation2 + $0x44] sm:$0x1]
      %v5050 = vld [vmem:[#allocation2 + $0x48] sm:$0xe]
      %v5051 = vld [vmem:[#allocation2 + $0x4c] sm:$0xf]
      %v5052 = vld [vmem:[#allocation2 + $0x50] sm:$0x1]
      %v5053 = vld [vmem:[#allocation2 + $0x54] sm:$0xe]
      %v5054 = vld [vmem:[#allocation2 + $0x58] sm:$0xf]
      %v5055 = vld [vmem:[#allocation2 + $0x5c] sm:$0x1]
      %v5056 = vld [vmem:[#allocation2 + $0x60] sm:$0xe]
      %v5057 = vld [vmem:[#allocation2 + $0x64] sm:$0xf]
      %v5058 = vld [vmem:[#allocation2 + $0x68] sm:$0x1]
      %v5059 = vld [vmem:[#allocation2 + $0x6c] sm:$0xe]
      %v5060 = vld [vmem:[#allocation2 + $0x70] sm:$0xf]
      %v5061 = vld [vmem:[#allocation2 + $0x74] sm:$0x1]
      %v5062 = vld [vmem:[#allocation2 + $0x78] sm:$0xe]
      %v5063 = vld [vmem:[#allocation2 + $0x7c] sm:$0xf]
      %v5064 = vld [vmem:[#allocation2 + $0x80] sm:$0x1]
      %v5065 = vld [vmem:[#allocation2 + $0x84] sm:$0xe]
      %v5066 = vld [vmem:[#allocation2 + $0x88] sm:$0xf]
      %v5067 = vld [vmem:[#allocation2 + $0x8c] sm:$0x1]
      %v5068 = vld [vmem:[#allocation2 + $0x90] sm:$0xe]
      %v5069 = vld [vmem:[#allocation2 + $0x94] sm:$0xf]
      %v5070 = vld [vmem:[#allocation2 + $0x98] sm:$0x1]
      %v5071 = vld [vmem:[#allocation2 + $0x9c] sm:$0xe]
      %v5072 = vld [vmem:[#allocation2 + $0xa0] sm:$0xf]
      %v5073 = vld [vmem:[#allocation2 + $0xa4] sm:$0x1]
      %v5074 = vld [vmem:[#allocation2 + $0xa8] sm:$0xe]
      %v5075 = vld [vmem:[#allocation2 + $0xac] sm:$0xf]
      %v5076 = vld [vmem:[#allocation2 + $0xb0] sm:$0x1]
      %v5077 = vld [vmem:[#allocation2 + $0xb4] sm:$0xe]
      %v5078 = vld [vmem:[#allocation2 + $0xb8] sm:$0xf]
      %v5079 = vld [vmem:[#allocation2 + $0xbc] sm:$0x1]
      %v5080 = vld [vmem:[#allocation2 + $0xc0] sm:$0xe]
      %v5081 = vld [vmem:[#allocation2 + $0xc4] sm:$0xf]
      %v5082 = vld [vmem:[#allocation2 + $0xc8] sm:$0x1]
      %v5083 = vld [vmem:[#allocation2 + $0xcc] sm:$0xe]
      %v5084 = vld [vmem:[#allocation2 + $0xd0] sm:$0xf]
      %v5085 = vld [vmem:[#allocation2 + $0xd4] sm:$0x1]
      %v5140 = vrot.slane %v5032, 5
      %v5141 = vrot.slane %v5140, 4
      %v5142 = vrot.slane %v5033, 5
      %v5143 = vsel %vm1600, %v5141, %v5142
      %v5144 = vrot.slane %v5142, 4
      %v5145 = vrot.slane %v5034, 5
      %v5146 = vsel %vm1600, %v5144, %v5145
      %v5147 = vrot.slane %v5035, 5
      %v5148 = vrot.slane %v5147, 4
      %v5149 = vrot.slane %v5036, 5
      %v5150 = vsel %vm1600, %v5148, %v5149
      %v5151 = vrot.slane %v5149, 4
      %v5152 = vrot.slane %v5037, 5
      %v5153 = vsel %vm1600, %v5151, %v5152
      %v5154 = vrot.slane %v5038, 5
      %v5155 = vrot.slane %v5154, 4
      %v5156 = vrot.slane %v5039, 5
      %v5157 = vsel %vm1600, %v5155, %v5156
      %v5158 = vrot.slane %v5156, 4
      %v5159 = vrot.slane %v5040, 5
      %v5160 = vsel %vm1600, %v5158, %v5159
      %v5161 = vrot.slane %v5041, 5
      %v5162 = vrot.slane %v5161, 4
      %v5163 = vrot.slane %v5042, 5
      %v5164 = vsel %vm1600, %v5162, %v5163
      %v5165 = vrot.slane %v5163, 4
      %v5166 = vrot.slane %v5043, 5
      %v5167 = vsel %vm1600, %v5165, %v5166
      %v5168 = vrot.slane %v5044, 5
      %v5169 = vrot.slane %v5168, 4
      %v5170 = vrot.slane %v5045, 5
      %v5171 = vsel %vm1600, %v5169, %v5170
      %v5172 = vrot.slane %v5170, 4
      %v5173 = vrot.slane %v5046, 5
      %v5174 = vsel %vm1600, %v5172, %v5173
      %v5175 = vrot.slane %v5047, 5
      %v5176 = vrot.slane %v5175, 4
      %v5177 = vrot.slane %v5048, 5
      %v5178 = vsel %vm1600, %v5176, %v5177
      %v5179 = vrot.slane %v5177, 4
      %v5180 = vrot.slane %v5049, 5
      %v5181 = vsel %vm1600, %v5179, %v5180
      %v5182 = vrot.slane %v5050, 5
      %v5183 = vrot.slane %v5182, 4
      %v5184 = vrot.slane %v5051, 5
      %v5185 = vsel %vm1600, %v5183, %v5184
      %v5186 = vrot.slane %v5184, 4
      %v5187 = vrot.slane %v5052, 5
      %v5188 = vsel %vm1600, %v5186, %v5187
      %v5189 = vrot.slane %v5053, 5
      %v5190 = vrot.slane %v5189, 4
      %v5191 = vrot.slane %v5054, 5
      %v5192 = vsel %vm1600, %v5190, %v5191
      %v5193 = vrot.slane %v5191, 4
      %v5194 = vrot.slane %v5055, 5
      %v5195 = vsel %vm1600, %v5193, %v5194
      %v5196 = vrot.slane %v5056, 5
      %v5197 = vrot.slane %v5196, 4
      %v5198 = vrot.slane %v5057, 5
      %v5199 = vsel %vm1600, %v5197, %v5198
      %v5200 = vrot.slane %v5198, 4
      %v5201 = vrot.slane %v5058, 5
      %v5202 = vsel %vm1600, %v5200, %v5201
      %v5203 = vrot.slane %v5059, 5
      %v5204 = vrot.slane %v5203, 4
      %v5205 = vrot.slane %v5060, 5
      %v5206 = vsel %vm1600, %v5204, %v5205
      %v5207 = vrot.slane %v5205, 4
      %v5208 = vrot.slane %v5061, 5
      %v5209 = vsel %vm1600, %v5207, %v5208
      %v5210 = vrot.slane %v5062, 5
      %v5211 = vrot.slane %v5210, 4
      %v5212 = vrot.slane %v5063, 5
      %v5213 = vsel %vm1600, %v5211, %v5212
      %v5214 = vrot.slane %v5212, 4
      %v5215 = vrot.slane %v5064, 5
      %v5216 = vsel %vm1600, %v5214, %v5215
      %v5217 = vrot.slane %v5065, 5
      %v5218 = vrot.slane %v5217, 4
      %v5219 = vrot.slane %v5066, 5
      %v5220 = vsel %vm1600, %v5218, %v5219
      %v5221 = vrot.slane %v5219, 4
      %v5222 = vrot.slane %v5067, 5
      %v5223 = vsel %vm1600, %v5221, %v5222
      %v5224 = vrot.slane %v5068, 5
      %v5225 = vrot.slane %v5224, 4
      %v5226 = vrot.slane %v5069, 5
      %v5227 = vsel %vm1600, %v5225, %v5226
      %v5228 = vrot.slane %v5226, 4
      %v5229 = vrot.slane %v5070, 5
      %v5230 = vsel %vm1600, %v5228, %v5229
      %v5231 = vrot.slane %v5071, 5
      %v5232 = vrot.slane %v5231, 4
      %v5233 = vrot.slane %v5072, 5
      %v5234 = vsel %vm1600, %v5232, %v5233
      %v5235 = vrot.slane %v5233, 4
      %v5236 = vrot.slane %v5073, 5
      %v5237 = vsel %vm1600, %v5235, %v5236
      %v5238 = vrot.slane %v5074, 5
      %v5239 = vrot.slane %v5238, 4
      %v5240 = vrot.slane %v5075, 5
      %v5241 = vsel %vm1600, %v5239, %v5240
      %v5242 = vrot.slane %v5240, 4
      %v5243 = vrot.slane %v5076, 5
      %v5244 = vsel %vm1600, %v5242, %v5243
      %v5245 = vrot.slane %v5077, 5
      %v5246 = vrot.slane %v5245, 4
      %v5247 = vrot.slane %v5078, 5
      %v5248 = vsel %vm1600, %v5246, %v5247
      %v5249 = vrot.slane %v5247, 4
      %v5250 = vrot.slane %v5079, 5
      %v5251 = vsel %vm1600, %v5249, %v5250
      %v5252 = vrot.slane %v5080, 5
      %v5253 = vrot.slane %v5252, 4
      %v5254 = vrot.slane %v5081, 5
      %v5255 = vsel %vm1600, %v5253, %v5254
      %v5256 = vrot.slane %v5254, 4
      %v5257 = vrot.slane %v5082, 5
      %v5258 = vsel %vm1600, %v5256, %v5257
      %v5259 = vrot.slane %v5083, 5
      %v5260 = vrot.slane %v5259, 4
      %v5261 = vrot.slane %v5084, 5
      %v5262 = vsel %vm1600, %v5260, %v5261
      %v5263 = vrot.slane %v5261, 4
      %v5264 = vrot.slane %v5085, 5
      %v5265 = vsel %vm1600, %v5263, %v5264
      %5302 = vst [vmem:[#allocation3 + $0x8] sm:$0xf] %v5143
      %5303 = vst [vmem:[#allocation3 + $0x14] sm:$0xf] %v5146
      %5304 = vst [vmem:[#allocation3 + $0x20] sm:$0xf] %v5150
      %5305 = vst [vmem:[#allocation3 + $0x2c] sm:$0xf] %v5153
      %5306 = vst [vmem:[#allocation3 + $0x38] sm:$0xf] %v5157
      %5307 = vst [vmem:[#allocation3 + $0x44] sm:$0xf] %v5160
      %5308 = vst [vmem:[#allocation3 + $0x50] sm:$0xf] %v5164
      %5309 = vst [vmem:[#allocation3 + $0x5c] sm:$0xf] %v5167
      %5310 = vst [vmem:[#allocation3 + $0x68] sm:$0xf] %v5171
      %5311 = vst [vmem:[#allocation3 + $0x74] sm:$0xf] %v5174
      %5312 = vst [vmem:[#allocation3 + $0x80] sm:$0xf] %v5178
      %5313 = vst [vmem:[#allocation3 + $0x8c] sm:$0xf] %v5181
      %5314 = vst [vmem:[#allocation3 + $0x98] sm:$0xf] %v5185
      %5315 = vst [vmem:[#allocation3 + $0xa4] sm:$0xf] %v5188
      %5316 = vst [vmem:[#allocation3 + $0xb0] sm:$0xf] %v5192
      %5317 = vst [vmem:[#allocation3 + $0xbc] sm:$0xf] %v5195
      %5318 = vst [vmem:[#allocation3 + $0xc8] sm:$0xf] %v5199
      %5319 = vst [vmem:[#allocation3 + $0xd4] sm:$0xf] %v5202
      %5320 = vst [vmem:[#allocation3 + $0xe0] sm:$0xf] %v5206
      %5321 = vst [vmem:[#allocation3 + $0xec] sm:$0xf] %v5209
      %5322 = vst [vmem:[#allocation3 + $0xf8] sm:$0xf] %v5213
      %5323 = vst [vmem:[#allocation3 + $0x104] sm:$0xf] %v5216
      %5324 = vst [vmem:[#allocation3 + $0x110] sm:$0xf] %v5220
      %5325 = vst [vmem:[#allocation3 + $0x11c] sm:$0xf] %v5223
      %5326 = vst [vmem:[#allocation3 + $0x128] sm:$0xf] %v5227
      %5327 = vst [vmem:[#allocation3 + $0x134] sm:$0xf] %v5230
      %5328 = vst [vmem:[#allocation3 + $0x140] sm:$0xf] %v5234
      %5329 = vst [vmem:[#allocation3 + $0x14c] sm:$0xf] %v5237
      %5330 = vst [vmem:[#allocation3 + $0x158] sm:$0xf] %v5241
      %5331 = vst [vmem:[#allocation3 + $0x164] sm:$0xf] %v5244
      %5332 = vst [vmem:[#allocation3 + $0x170] sm:$0xf] %v5248
      %5333 = vst [vmem:[#allocation3 + $0x17c] sm:$0xf] %v5251
      %5334 = vst [vmem:[#allocation3 + $0x188] sm:$0xf] %v5255
      %5335 = vst [vmem:[#allocation3 + $0x194] sm:$0xf] %v5258
      %5336 = vst [vmem:[#allocation3 + $0x1a0] sm:$0xf] %v5262
      %5337 = vst [vmem:[#allocation3 + $0x1ac] sm:$0xf] %v5265
      %v5338 = vld [vmem:[#allocation3] sm:$0xff]
      %v5339 = vld [vmem:[#allocation3 + $0x8] sm:$0xf]
      %v5340 = vld [vmem:[#allocation3 + $0xc] sm:$0xff]
      %v5341 = vld [vmem:[#allocation3 + $0x14] sm:$0xf]
      %v5342 = vld [vmem:[#allocation3 + $0x18] sm:$0xff]
      %v5343 = vld [vmem:[#allocation3 + $0x20] sm:$0xf]
      %v5344 = vld [vmem:[#allocation3 + $0x24] sm:$0xff]
      %v5345 = vld [vmem:[#allocation3 + $0x2c] sm:$0xf]
      %v5346 = vld [vmem:[#allocation3 + $0x30] sm:$0xff]
      %v5347 = vld [vmem:[#allocation3 + $0x38] sm:$0xf]
      %v5348 = vld [vmem:[#allocation3 + $0x3c] sm:$0xff]
      %v5349 = vld [vmem:[#allocation3 + $0x44] sm:$0xf]
      %v5350 = vld [vmem:[#allocation3 + $0x48] sm:$0xff]
      %v5351 = vld [vmem:[#allocation3 + $0x50] sm:$0xf]
      %v5352 = vld [vmem:[#allocation3 + $0x54] sm:$0xff]
      %v5353 = vld [vmem:[#allocation3 + $0x5c] sm:$0xf]
      %v5354 = vld [vmem:[#allocation3 + $0x60] sm:$0xff]
      %v5355 = vld [vmem:[#allocation3 + $0x68] sm:$0xf]
      %v5356 = vld [vmem:[#allocation3 + $0x6c] sm:$0xff]
      %v5357 = vld [vmem:[#allocation3 + $0x74] sm:$0xf]
      %v5358 = vld [vmem:[#allocation3 + $0x78] sm:$0xff]
      %v5359 = vld [vmem:[#allocation3 + $0x80] sm:$0xf]
      %v5360 = vld [vmem:[#allocation3 + $0x84] sm:$0xff]
      %v5361 = vld [vmem:[#allocation3 + $0x8c] sm:$0xf]
      %v5362 = vld [vmem:[#allocation3 + $0x90] sm:$0xff]
      %v5363 = vld [vmem:[#allocation3 + $0x98] sm:$0xf]
      %v5364 = vld [vmem:[#allocation3 + $0x9c] sm:$0xff]
      %v5365 = vld [vmem:[#allocation3 + $0xa4] sm:$0xf]
      %v5366 = vld [vmem:[#allocation3 + $0xa8] sm:$0xff]
      %v5367 = vld [vmem:[#allocation3 + $0xb0] sm:$0xf]
      %v5368 = vld [vmem:[#allocation3 + $0xb4] sm:$0xff]
      %v5369 = vld [vmem:[#allocation3 + $0xbc] sm:$0xf]
      %v5370 = vld [vmem:[#allocation3 + $0xc0] sm:$0xff]
      %v5371 = vld [vmem:[#allocation3 + $0xc8] sm:$0xf]
      %v5372 = vld [vmem:[#allocation3 + $0xcc] sm:$0xff]
      %v5373 = vld [vmem:[#allocation3 + $0xd4] sm:$0xf]
      %v5374 = vld [vmem:[#allocation3 + $0xd8] sm:$0xff]
      %v5375 = vld [vmem:[#allocation3 + $0xe0] sm:$0xf]
      %v5376 = vld [vmem:[#allocation3 + $0xe4] sm:$0xff]
      %v5377 = vld [vmem:[#allocation3 + $0xec] sm:$0xf]
      %v5378 = vld [vmem:[#allocation3 + $0xf0] sm:$0xff]
      %v5379 = vld [vmem:[#allocation3 + $0xf8] sm:$0xf]
      %v5380 = vld [vmem:[#allocation3 + $0xfc] sm:$0xff]
      %v5381 = vld [vmem:[#allocation3 + $0x104] sm:$0xf]
      %v5382 = vld [vmem:[#allocation3 + $0x108] sm:$0xff]
      %v5383 = vld [vmem:[#allocation3 + $0x110] sm:$0xf]
      %v5384 = vld [vmem:[#allocation3 + $0x114] sm:$0xff]
      %v5385 = vld [vmem:[#allocation3 + $0x11c] sm:$0xf]
      %v5386 = vld [vmem:[#allocation3 + $0x120] sm:$0xff]
      %v5387 = vld [vmem:[#allocation3 + $0x128] sm:$0xf]
      %v5388 = vld [vmem:[#allocation3 + $0x12c] sm:$0xff]
      %v5389 = vld [vmem:[#allocation3 + $0x134] sm:$0xf]
      %v5390 = vld [vmem:[#allocation3 + $0x138] sm:$0xff]
      %v5391 = vld [vmem:[#allocation3 + $0x140] sm:$0xf]
      %v5392 = vld [vmem:[#allocation3 + $0x144] sm:$0xff]
      %v5393 = vld [vmem:[#allocation3 + $0x14c] sm:$0xf]
      %v5394 = vld [vmem:[#allocation3 + $0x150] sm:$0xff]
      %v5395 = vld [vmem:[#allocation3 + $0x158] sm:$0xf]
      %v5396 = vld [vmem:[#allocation3 + $0x15c] sm:$0xff]
      %v5397 = vld [vmem:[#allocation3 + $0x164] sm:$0xf]
      %v5398 = vld [vmem:[#allocation3 + $0x168] sm:$0xff]
      %v5399 = vld [vmem:[#allocation3 + $0x170] sm:$0xf]
      %v5400 = vld [vmem:[#allocation3 + $0x174] sm:$0xff]
      %v5401 = vld [vmem:[#allocation3 + $0x17c] sm:$0xf]
      %v5402 = vld [vmem:[%s2] sm:$0xf]
      %v5403 = vld [vmem:[%s2 + $0x4] sm:$0xf]
      %v5404 = vld [vmem:[%s2 + $0x8] sm:$0xf]
      %v5405 = vld [vmem:[%s2 + $0xc] sm:$0xf]
      %v5406 = vld [vmem:[%s2 + $0x10] sm:$0xf]
      %v5407 = vld [vmem:[%s2 + $0x14] sm:$0xf]
      %v5408 = vld [vmem:[%s2 + $0x18] sm:$0xf]
      %v5409 = vld [vmem:[%s2 + $0x1c] sm:$0xf]
      %v5410 = vld [vmem:[%s2 + $0x20] sm:$0xf]
      %v5411 = vld [vmem:[%s2 + $0x24] sm:$0xf]
      %v5412 = vld [vmem:[%s2 + $0x28] sm:$0xf]
      %v5413 = vld [vmem:[%s2 + $0x2c] sm:$0xf]
      %v5414 = vld [vmem:[%s2 + $0x30] sm:$0xf]
      %v5415 = vld [vmem:[%s2 + $0x34] sm:$0xf]
      %v5416 = vld [vmem:[%s2 + $0x38] sm:$0xf]
      %v5417 = vld [vmem:[%s2 + $0x3c] sm:$0xf]
      %v5418 = vld [vmem:[%s2 + $0x40] sm:$0xf]
      %v5419 = vld [vmem:[%s2 + $0x44] sm:$0xf]
      %v5420 = vld [vmem:[%s2 + $0x48] sm:$0xf]
      %v5421 = vld [vmem:[%s2 + $0x4c] sm:$0xf]
      %v5422 = vld [vmem:[%s2 + $0x50] sm:$0xf]
      %v5423 = vld [vmem:[%s2 + $0x54] sm:$0xf]
      %v5424 = vld [vmem:[%s2 + $0x58] sm:$0xf]
      %v5425 = vld [vmem:[%s2 + $0x5c] sm:$0xf]
      %v5426 = vld [vmem:[%s2 + $0x60] sm:$0xf]
      %v5427 = vld [vmem:[%s2 + $0x64] sm:$0xf]
      %v5428 = vld [vmem:[%s2 + $0x68] sm:$0xf]
      %v5429 = vld [vmem:[%s2 + $0x6c] sm:$0xf]
      %v5430 = vld [vmem:[%s2 + $0x70] sm:$0xf]
      %v5431 = vld [vmem:[%s2 + $0x74] sm:$0xf]
      %v5432 = vld [vmem:[%s2 + $0x78] sm:$0xf]
      %v5433 = vld [vmem:[%s2 + $0x7c] sm:$0xf]
      %v5434 = vld [vmem:[%s2 + $0x80] sm:$0xf]
      %v5435 = vld [vmem:[%s2 + $0x84] sm:$0xf]
      %v5436 = vld [vmem:[%s2 + $0x88] sm:$0xf]
      %v5437 = vld [vmem:[%s2 + $0x8c] sm:$0xf]
      %v5438 = vld [vmem:[%s2 + $0x90] sm:$0xf]
      %v5439 = vld [vmem:[%s2 + $0x94] sm:$0xf]
      %v5440 = vld [vmem:[%s2 + $0x98] sm:$0xf]
      %v5441 = vld [vmem:[%s2 + $0x9c] sm:$0xf]
      %v5442 = vld [vmem:[%s2 + $0xa0] sm:$0xf]
      %v5443 = vld [vmem:[%s2 + $0xa4] sm:$0xf]
      %v5444 = vld [vmem:[%s2 + $0xa8] sm:$0xf]
      %v5445 = vld [vmem:[%s2 + $0xac] sm:$0xf]
      %v5446 = vld [vmem:[%s2 + $0xb0] sm:$0xf]
      %v5447 = vld [vmem:[%s2 + $0xb4] sm:$0xf]
      %v5448 = vld [vmem:[%s2 + $0xb8] sm:$0xf]
      %v5449 = vld [vmem:[%s2 + $0xbc] sm:$0xf]
      %v5450 = vld [vmem:[#allocation3 + $0x180] sm:$0xff]
      %v5451 = vld [vmem:[#allocation3 + $0x188] sm:$0xf]
      %v5452 = vld [vmem:[#allocation3 + $0x18c] sm:$0xff]
      %v5453 = vld [vmem:[#allocation3 + $0x194] sm:$0xf]
      %s5454 = scalar_lea.vmem %s2, 192
      %v5455 = vld [vmem:[%s5454] sm:$0xf]
      %v5456 = vld [vmem:[%s5454 + $0x4] sm:$0xf]
      %v5457 = vld [vmem:[%s5454 + $0x8] sm:$0xf]
      %v5458 = vld [vmem:[%s5454 + $0xc] sm:$0xf]
      %v5459 = vld [vmem:[%s5454 + $0x10] sm:$0xf]
      %v5460 = vld [vmem:[%s5454 + $0x14] sm:$0xf]
      %v5461 = vld [vmem:[%s5454 + $0x18] sm:$0xf]
      %v5462 = vld [vmem:[%s5454 + $0x1c] sm:$0xf]
      %v5463 = vld [vmem:[%s5454 + $0x20] sm:$0xf]
      %v5464 = vld [vmem:[%s5454 + $0x24] sm:$0xf]
      %v5465 = vld [vmem:[%s5454 + $0x28] sm:$0xf]
      %v5466 = vld [vmem:[%s5454 + $0x2c] sm:$0xf]
      %v5467 = vld [vmem:[%s5454 + $0x30] sm:$0xf]
      %v5468 = vld [vmem:[%s5454 + $0x34] sm:$0xf]
      %v5469 = vld [vmem:[%s5454 + $0x38] sm:$0xf]
      %v5470 = vld [vmem:[%s5454 + $0x3c] sm:$0xf]
      %v5471 = vld [vmem:[%s5454 + $0x40] sm:$0xf]
      %v5472 = vld [vmem:[%s5454 + $0x44] sm:$0xf]
      %v5473 = vld [vmem:[%s5454 + $0x48] sm:$0xf]
      %v5474 = vld [vmem:[%s5454 + $0x4c] sm:$0xf]
      %v5475 = vld [vmem:[%s5454 + $0x50] sm:$0xf]
      %v5476 = vld [vmem:[%s5454 + $0x54] sm:$0xf]
      %v5477 = vld [vmem:[%s5454 + $0x58] sm:$0xf]
      %v5478 = vld [vmem:[%s5454 + $0x5c] sm:$0xf]
      %v5479 = vld [vmem:[%s5454 + $0x60] sm:$0xf]
      %v5480 = vld [vmem:[%s5454 + $0x64] sm:$0xf]
      %v5481 = vld [vmem:[%s5454 + $0x68] sm:$0xf]
      %v5482 = vld [vmem:[%s5454 + $0x6c] sm:$0xf]
      %v5483 = vld [vmem:[%s5454 + $0x70] sm:$0xf]
      %v5484 = vld [vmem:[%s5454 + $0x74] sm:$0xf]
      %v5485 = vld [vmem:[%s5454 + $0x78] sm:$0xf]
      %v5486 = vld [vmem:[%s5454 + $0x7c] sm:$0xf]
      %v5487 = vld [vmem:[%s5454 + $0x80] sm:$0xf]
      %v5488 = vld [vmem:[%s5454 + $0x84] sm:$0xf]
      %v5489 = vld [vmem:[%s5454 + $0x88] sm:$0xf]
      %v5490 = vld [vmem:[%s5454 + $0x8c] sm:$0xf]
      %v5491 = vld [vmem:[%s5454 + $0x90] sm:$0xf]
      %v5492 = vld [vmem:[%s5454 + $0x94] sm:$0xf]
      %v5493 = vld [vmem:[%s5454 + $0x98] sm:$0xf]
      %v5494 = vld [vmem:[%s5454 + $0x9c] sm:$0xf]
      %v5495 = vld [vmem:[%s5454 + $0xa0] sm:$0xf]
      %v5496 = vld [vmem:[%s5454 + $0xa4] sm:$0xf]
      %v5497 = vld [vmem:[%s5454 + $0xa8] sm:$0xf]
      %v5498 = vld [vmem:[%s5454 + $0xac] sm:$0xf]
      %v5499 = vld [vmem:[%s5454 + $0xb0] sm:$0xf]
      %v5500 = vld [vmem:[%s5454 + $0xb4] sm:$0xf]
      %v5501 = vld [vmem:[%s5454 + $0xb8] sm:$0xf]
      %v5502 = vld [vmem:[%s5454 + $0xbc] sm:$0xf]
      %v5567 = vunpack.c.l.b16 %v5342
      %v5568 = vunpack.c.h.b16 %v5342
      %v5569 = vunpack.c.l.b16 %v5343
      %v5570 = vunpack.c.l.b16 %v5344
      %v5571 = vunpack.c.h.b16 %v5344
      %v5572 = vunpack.c.l.b16 %v5345
      %v5573 = vunpack.c.l.b16 %v5346
      %v5574 = vunpack.c.h.b16 %v5346
      %v5575 = vunpack.c.l.b16 %v5347
      %v5576 = vunpack.c.l.b16 %v5348
      %v5577 = vunpack.c.h.b16 %v5348
      %v5578 = vunpack.c.l.b16 %v5349
      %v5579 = vunpack.c.l.b16 %v5350
      %v5580 = vunpack.c.h.b16 %v5350
      %v5581 = vunpack.c.l.b16 %v5351
      %v5582 = vunpack.c.l.b16 %v5352
      %v5583 = vunpack.c.h.b16 %v5352
      %v5584 = vunpack.c.l.b16 %v5353
      %v5585 = vunpack.c.l.b16 %v5354
      %v5586 = vunpack.c.h.b16 %v5354
      %v5587 = vunpack.c.l.b16 %v5355
      %v5588 = vunpack.c.l.b16 %v5356
      %v5589 = vunpack.c.h.b16 %v5356
      %v5590 = vunpack.c.l.b16 %v5357
      %v5591 = vunpack.c.l.b16 %v5358
      %v5592 = vunpack.c.h.b16 %v5358
      %v5593 = vunpack.c.l.b16 %v5359
      %v5594 = vunpack.c.l.b16 %v5360
      %v5595 = vunpack.c.h.b16 %v5360
      %v5596 = vunpack.c.l.b16 %v5361
      %v5597 = vunpack.c.l.b16 %v5362
      %v5598 = vunpack.c.h.b16 %v5362
      %v5599 = vunpack.c.l.b16 %v5363
      %v5600 = vunpack.c.l.b16 %v5364
      %v5601 = vunpack.c.h.b16 %v5364
      %v5602 = vunpack.c.l.b16 %v5365
      %v5603 = vunpack.c.l.b16 %v5366
      %v5604 = vunpack.c.h.b16 %v5366
      %v5605 = vunpack.c.l.b16 %v5367
      %v5606 = vunpack.c.l.b16 %v5368
      %v5607 = vunpack.c.h.b16 %v5368
      %v5608 = vunpack.c.l.b16 %v5369
      %v5609 = vunpack.c.l.b16 %v5370
      %v5610 = vunpack.c.h.b16 %v5370
      %v5611 = vunpack.c.l.b16 %v5371
      %v5612 = vunpack.c.l.b16 %v5372
      %v5613 = vunpack.c.h.b16 %v5372
      %v5614 = vunpack.c.l.b16 %v5373
      %v5615 = vunpack.c.l.b16 %v5374
      %v5616 = vunpack.c.h.b16 %v5374
      %v5617 = vunpack.c.l.b16 %v5375
      %v5618 = vunpack.c.l.b16 %v5376
      %v5619 = vunpack.c.h.b16 %v5376
      %v5620 = vunpack.c.l.b16 %v5377
      %v5621 = vunpack.c.l.b16 %v5378
      %v5622 = vunpack.c.h.b16 %v5378
      %v5623 = vunpack.c.l.b16 %v5379
      %v5624 = vunpack.c.l.b16 %v5380
      %v5625 = vunpack.c.h.b16 %v5380
      %v5626 = vunpack.c.l.b16 %v5381
      %v5627 = vunpack.c.l.b16 %v5382
      %v5628 = vunpack.c.h.b16 %v5382
      %v5629 = vunpack.c.l.b16 %v5383
      %v5630 = vunpack.c.l.b16 %v5384
      %v5631 = vunpack.c.h.b16 %v5384
      %v5632 = vunpack.c.l.b16 %v5385
      %v5633 = vunpack.c.l.b16 %v5386
      %v5634 = vunpack.c.h.b16 %v5386
      %v5635 = vunpack.c.l.b16 %v5387
      %v5636 = vunpack.c.l.b16 %v5388
      %v5637 = vunpack.c.h.b16 %v5388
      %v5638 = vunpack.c.l.b16 %v5389
      %v5639 = vunpack.c.l.b16 %v5390
      %v5640 = vunpack.c.h.b16 %v5390
      %v5641 = vunpack.c.l.b16 %v5391
      %v5642 = vunpack.c.l.b16 %v5392
      %v5643 = vunpack.c.h.b16 %v5392
      %v5644 = vunpack.c.l.b16 %v5393
      %v5645 = vunpack.c.l.b16 %v5394
      %v5646 = vunpack.c.h.b16 %v5394
      %v5647 = vunpack.c.l.b16 %v5395
      %v5648 = vunpack.c.l.b16 %v5396
      %v5649 = vunpack.c.h.b16 %v5396
      %v5650 = vunpack.c.l.b16 %v5397
      %v5651 = vunpack.c.l.b16 %v5398
      %v5652 = vunpack.c.h.b16 %v5398
      %v5653 = vunpack.c.l.b16 %v5399
      %v5654 = vunpack.c.l.b16 %v5400
      %v5655 = vunpack.c.h.b16 %v5400
      %v5656 = vunpack.c.l.b16 %v5401
      %v5657 = vunpack.c.l.b16 %v5450
      %v5658 = vunpack.c.h.b16 %v5450
      %v5659 = vunpack.c.l.b16 %v5451
      %v5660 = vunpack.c.l.b16 %v5452
      %v5661 = vunpack.c.h.b16 %v5452
      %v5662 = vunpack.c.l.b16 %v5453
      %v5663 = vpack.c.b16 %v5570, %v5567
      %v5664 = vpack.c.b16 %v5571, %v5568
      %v5665 = vpack.c.b16 %v5572, %v5569
      %v5666 = vpack.c.b16 %v5576, %v5573
      %v5667 = vpack.c.b16 %v5577, %v5574
      %v5668 = vpack.c.b16 %v5578, %v5575
      %v5669 = vpack.c.b16 %v5582, %v5579
      %v5670 = vpack.c.b16 %v5583, %v5580
      %v5671 = vpack.c.b16 %v5584, %v5581
      %v5672 = vpack.c.b16 %v5588, %v5585
      %v5673 = vpack.c.b16 %v5589, %v5586
      %v5674 = vpack.c.b16 %v5590, %v5587
      %v5675 = vpack.c.b16 %v5594, %v5591
      %v5676 = vpack.c.b16 %v5595, %v5592
      %v5677 = vpack.c.b16 %v5596, %v5593
      %v5678 = vpack.c.b16 %v5600, %v5597
      %v5679 = vpack.c.b16 %v5601, %v5598
      %v5680 = vpack.c.b16 %v5602, %v5599
      %v5681 = vpack.c.b16 %v5606, %v5603
      %v5682 = vpack.c.b16 %v5607, %v5604
      %v5683 = vpack.c.b16 %v5608, %v5605
      %v5684 = vpack.c.b16 %v5612, %v5609
      %v5685 = vpack.c.b16 %v5613, %v5610
      %v5686 = vpack.c.b16 %v5614, %v5611
      %v5687 = vpack.c.b16 %v5618, %v5615
      %v5688 = vpack.c.b16 %v5619, %v5616
      %v5689 = vpack.c.b16 %v5620, %v5617
      %v5690 = vpack.c.b16 %v5624, %v5621
      %v5691 = vpack.c.b16 %v5625, %v5622
      %v5692 = vpack.c.b16 %v5626, %v5623
      %v5693 = vpack.c.b16 %v5630, %v5627
      %v5694 = vpack.c.b16 %v5631, %v5628
      %v5695 = vpack.c.b16 %v5632, %v5629
      %v5696 = vpack.c.b16 %v5636, %v5633
      %v5697 = vpack.c.b16 %v5637, %v5634
      %v5698 = vpack.c.b16 %v5638, %v5635
      %v5699 = vpack.c.b16 %v5642, %v5639
      %v5700 = vpack.c.b16 %v5643, %v5640
      %v5701 = vpack.c.b16 %v5644, %v5641
      %v5702 = vpack.c.b16 %v5648, %v5645
      %v5703 = vpack.c.b16 %v5649, %v5646
      %v5704 = vpack.c.b16 %v5650, %v5647
      %v5705 = vpack.c.b16 %v5654, %v5651
      %v5706 = vpack.c.b16 %v5655, %v5652
      %v5707 = vpack.c.b16 %v5656, %v5653
      %v5708 = vpack.c.b16 %v5660, %v5657
      %v5709 = vpack.c.b16 %v5661, %v5658
      %v5710 = vpack.c.b16 %v5662, %v5659
      %v5807 = vunpack.c.l.b16 %v5455
      %v5808 = vunpack.c.l.b16 %v5456
      %v5809 = vunpack.c.l.b16 %v5457
      %v5810 = vunpack.c.l.b16 %v5458
      %v5811 = vunpack.c.l.b16 %v5459
      %v5812 = vunpack.c.l.b16 %v5460
      %v5813 = vunpack.c.l.b16 %v5461
      %v5814 = vunpack.c.l.b16 %v5462
      %v5815 = vunpack.c.l.b16 %v5463
      %v5816 = vunpack.c.l.b16 %v5464
      %v5817 = vunpack.c.l.b16 %v5465
      %v5818 = vunpack.c.l.b16 %v5466
      %v5819 = vunpack.c.l.b16 %v5467
      %v5820 = vunpack.c.l.b16 %v5468
      %v5821 = vunpack.c.l.b16 %v5469
      %v5822 = vunpack.c.l.b16 %v5470
      %v5823 = vunpack.c.l.b16 %v5471
      %v5824 = vunpack.c.l.b16 %v5472
      %v5825 = vunpack.c.l.b16 %v5473
      %v5826 = vunpack.c.l.b16 %v5474
      %v5827 = vunpack.c.l.b16 %v5475
      %v5828 = vunpack.c.l.b16 %v5476
      %v5829 = vunpack.c.l.b16 %v5477
      %v5830 = vunpack.c.l.b16 %v5478
      %v5831 = vunpack.c.l.b16 %v5479
      %v5832 = vunpack.c.l.b16 %v5480
      %v5833 = vunpack.c.l.b16 %v5481
      %v5834 = vunpack.c.l.b16 %v5482
      %v5835 = vunpack.c.l.b16 %v5483
      %v5836 = vunpack.c.l.b16 %v5484
      %v5837 = vunpack.c.l.b16 %v5485
      %v5838 = vunpack.c.l.b16 %v5486
      %v5839 = vunpack.c.l.b16 %v5487
      %v5840 = vunpack.c.l.b16 %v5488
      %v5841 = vunpack.c.l.b16 %v5489
      %v5842 = vunpack.c.l.b16 %v5490
      %v5843 = vunpack.c.l.b16 %v5491
      %v5844 = vunpack.c.l.b16 %v5492
      %v5845 = vunpack.c.l.b16 %v5493
      %v5846 = vunpack.c.l.b16 %v5494
      %v5847 = vunpack.c.l.b16 %v5495
      %v5848 = vunpack.c.l.b16 %v5496
      %v5849 = vunpack.c.l.b16 %v5497
      %v5850 = vunpack.c.l.b16 %v5498
      %v5851 = vunpack.c.l.b16 %v5499
      %v5852 = vunpack.c.l.b16 %v5500
      %v5853 = vunpack.c.l.b16 %v5501
      %v5854 = vunpack.c.l.b16 %v5502
      %v5855 = vpack.c.b16 %v5808, %v5807
      %v5856 = vpack.c.b16 %v5810, %v5809
      %v5857 = vpack.c.b16 %v5812, %v5811
      %v5858 = vpack.c.b16 %v5814, %v5813
      %v5859 = vpack.c.b16 %v5816, %v5815
      %v5860 = vpack.c.b16 %v5818, %v5817
      %v5861 = vpack.c.b16 %v5820, %v5819
      %v5862 = vpack.c.b16 %v5822, %v5821
      %v5863 = vpack.c.b16 %v5824, %v5823
      %v5864 = vpack.c.b16 %v5826, %v5825
      %v5865 = vpack.c.b16 %v5828, %v5827
      %v5866 = vpack.c.b16 %v5830, %v5829
      %v5867 = vpack.c.b16 %v5832, %v5831
      %v5868 = vpack.c.b16 %v5834, %v5833
      %v5869 = vpack.c.b16 %v5836, %v5835
      %v5870 = vpack.c.b16 %v5838, %v5837
      %v5871 = vpack.c.b16 %v5840, %v5839
      %v5872 = vpack.c.b16 %v5842, %v5841
      %v5873 = vpack.c.b16 %v5844, %v5843
      %v5874 = vpack.c.b16 %v5846, %v5845
      %v5875 = vpack.c.b16 %v5848, %v5847
      %v5876 = vpack.c.b16 %v5850, %v5849
      %v5877 = vpack.c.b16 %v5852, %v5851
      %v5878 = vpack.c.b16 %v5854, %v5853
      %5903 = vmatpush.bf16.msra.mxu0 %v5862
      %5904 = vmatpush.bf16.msra.mxu0 %v5861
      %5905 = vmatpush.bf16.msra.mxu0 %v5860
      %5906 = vmatpush.bf16.msra.mxu0 %v5859
      %5907 = vmatpush.bf16.msra.mxu0 %v5858
      %5908 = vmatpush.bf16.msra.mxu0 %v5857
      %5909 = vmatpush.bf16.msra.mxu0 %v5856
      %5910 = vmatpush.bf16.msra.mxu0 %v5855
      %5911 = vmatmul.bf16.gmra.mxu0 %v5663
      %v5912 = vpop.f32.mrf.mxu0
      %v5913 = vadd.f32 0.0, %v5912
      %v5914 = vpop.f32.mrf.mxu0
      %v5915 = vadd.f32 0.0, %v5914
      %5916 = vmatmul.bf16.gmra.mxu0 %v5666
      %v5917 = vpop.f32.mrf.mxu0
      %v5918 = vadd.f32 0.0, %v5917
      %v5919 = vpop.f32.mrf.mxu0
      %v5920 = vadd.f32 0.0, %v5919
      %5921 = vmatmul.bf16.gmra.mxu0 %v5669
      %v5922 = vpop.f32.mrf.mxu0
      %v5923 = vadd.f32 0.0, %v5922
      %v5924 = vpop.f32.mrf.mxu0
      %v5925 = vadd.f32 0.0, %v5924
      %5926 = vmatmul.bf16.gmra.mxu0 %v5672
      %v5927 = vpop.f32.mrf.mxu0
      %v5928 = vadd.f32 0.0, %v5927
      %v5929 = vpop.f32.mrf.mxu0
      %v5930 = vadd.f32 0.0, %v5929
      %5931 = vmatmul.bf16.gmra.mxu0 %v5675
      %v5932 = vpop.f32.mrf.mxu0
      %v5933 = vadd.f32 0.0, %v5932
      %v5934 = vpop.f32.mrf.mxu0
      %v5935 = vadd.f32 0.0, %v5934
      %5936 = vmatmul.bf16.gmra.mxu0 %v5678
      %v5937 = vpop.f32.mrf.mxu0
      %v5938 = vadd.f32 0.0, %v5937
      %v5939 = vpop.f32.mrf.mxu0
      %v5940 = vadd.f32 0.0, %v5939
      %5941 = vmatmul.bf16.gmra.mxu0 %v5681
      %v5942 = vpop.f32.mrf.mxu0
      %v5943 = vadd.f32 0.0, %v5942
      %v5944 = vpop.f32.mrf.mxu0
      %v5945 = vadd.f32 0.0, %v5944
      %5946 = vmatmul.bf16.gmra.mxu0 %v5684
      %v5947 = vpop.f32.mrf.mxu0
      %v5948 = vadd.f32 0.0, %v5947
      %v5949 = vpop.f32.mrf.mxu0
      %v5950 = vadd.f32 0.0, %v5949
      %5951 = vmatmul.bf16.gmra.mxu0 %v5687
      %v5952 = vpop.f32.mrf.mxu0
      %v5953 = vadd.f32 0.0, %v5952
      %v5954 = vpop.f32.mrf.mxu0
      %v5955 = vadd.f32 0.0, %v5954
      %5956 = vmatmul.bf16.gmra.mxu0 %v5690
      %v5957 = vpop.f32.mrf.mxu0
      %v5958 = vadd.f32 0.0, %v5957
      %v5959 = vpop.f32.mrf.mxu0
      %v5960 = vadd.f32 0.0, %v5959
      %5961 = vmatmul.bf16.gmra.mxu0 %v5693
      %v5962 = vpop.f32.mrf.mxu0
      %v5963 = vadd.f32 0.0, %v5962
      %v5964 = vpop.f32.mrf.mxu0
      %v5965 = vadd.f32 0.0, %v5964
      %5966 = vmatmul.bf16.gmra.mxu0 %v5696
      %v5967 = vpop.f32.mrf.mxu0
      %v5968 = vadd.f32 0.0, %v5967
      %v5969 = vpop.f32.mrf.mxu0
      %v5970 = vadd.f32 0.0, %v5969
      %5971 = vmatmul.bf16.gmra.mxu0 %v5699
      %v5972 = vpop.f32.mrf.mxu0
      %v5973 = vadd.f32 0.0, %v5972
      %v5974 = vpop.f32.mrf.mxu0
      %v5975 = vadd.f32 0.0, %v5974
      %5976 = vmatmul.bf16.gmra.mxu0 %v5702
      %v5977 = vpop.f32.mrf.mxu0
      %v5978 = vadd.f32 0.0, %v5977
      %v5979 = vpop.f32.mrf.mxu0
      %v5980 = vadd.f32 0.0, %v5979
      %5981 = vmatmul.bf16.gmra.mxu0 %v5705
      %v5982 = vpop.f32.mrf.mxu0
      %v5983 = vadd.f32 0.0, %v5982
      %v5984 = vpop.f32.mrf.mxu0
      %v5985 = vadd.f32 0.0, %v5984
      %5986 = vmatmul.bf16.gmra.mxu0 %v5708
      %v5987 = vpop.f32.mrf.mxu0
      %v5988 = vadd.f32 0.0, %v5987
      %v5989 = vpop.f32.mrf.mxu0
      %v5990 = vadd.f32 0.0, %v5989
      %5991 = vdwg.mxu0
      %5992 = vmatpush.bf16.msra.mxu0 %v5870
      %5993 = vmatpush.bf16.msra.mxu0 %v5869
      %5994 = vmatpush.bf16.msra.mxu0 %v5868
      %5995 = vmatpush.bf16.msra.mxu0 %v5867
      %5996 = vmatpush.bf16.msra.mxu0 %v5866
      %5997 = vmatpush.bf16.msra.mxu0 %v5865
      %5998 = vmatpush.bf16.msra.mxu0 %v5864
      %5999 = vmatpush.bf16.msra.mxu0 %v5863
      %6000 = vmatmul.bf16.gmra.mxu0 %v5664
      %v6001 = vpop.f32.mrf.mxu0
      %v6002 = vadd.f32 %v5913, %v6001
      %v6003 = vpop.f32.mrf.mxu0
      %v6004 = vadd.f32 %v5915, %v6003
      %6005 = vmatmul.bf16.gmra.mxu0 %v5667
      %v6006 = vpop.f32.mrf.mxu0
      %v6007 = vadd.f32 %v5918, %v6006
      %v6008 = vpop.f32.mrf.mxu0
      %v6009 = vadd.f32 %v5920, %v6008
      %6010 = vmatmul.bf16.gmra.mxu0 %v5670
      %v6011 = vpop.f32.mrf.mxu0
      %v6012 = vadd.f32 %v5923, %v6011
      %v6013 = vpop.f32.mrf.mxu0
      %v6014 = vadd.f32 %v5925, %v6013
      %6015 = vmatmul.bf16.gmra.mxu0 %v5673
      %v6016 = vpop.f32.mrf.mxu0
      %v6017 = vadd.f32 %v5928, %v6016
      %v6018 = vpop.f32.mrf.mxu0
      %v6019 = vadd.f32 %v5930, %v6018
      %6020 = vmatmul.bf16.gmra.mxu0 %v5676
      %v6021 = vpop.f32.mrf.mxu0
      %v6022 = vadd.f32 %v5933, %v6021
      %v6023 = vpop.f32.mrf.mxu0
      %v6024 = vadd.f32 %v5935, %v6023
      %6025 = vmatmul.bf16.gmra.mxu0 %v5679
      %v6026 = vpop.f32.mrf.mxu0
      %v6027 = vadd.f32 %v5938, %v6026
      %v6028 = vpop.f32.mrf.mxu0
      %v6029 = vadd.f32 %v5940, %v6028
      %6030 = vmatmul.bf16.gmra.mxu0 %v5682
      %v6031 = vpop.f32.mrf.mxu0
      %v6032 = vadd.f32 %v5943, %v6031
      %v6033 = vpop.f32.mrf.mxu0
      %v6034 = vadd.f32 %v5945, %v6033
      %6035 = vmatmul.bf16.gmra.mxu0 %v5685
      %v6036 = vpop.f32.mrf.mxu0
      %v6037 = vadd.f32 %v5948, %v6036
      %v6038 = vpop.f32.mrf.mxu0
      %v6039 = vadd.f32 %v5950, %v6038
      %6040 = vmatmul.bf16.gmra.mxu0 %v5688
      %v6041 = vpop.f32.mrf.mxu0
      %v6042 = vadd.f32 %v5953, %v6041
      %v6043 = vpop.f32.mrf.mxu0
      %v6044 = vadd.f32 %v5955, %v6043
      %6045 = vmatmul.bf16.gmra.mxu0 %v5691
      %v6046 = vpop.f32.mrf.mxu0
      %v6047 = vadd.f32 %v5958, %v6046
      %v6048 = vpop.f32.mrf.mxu0
      %v6049 = vadd.f32 %v5960, %v6048
      %6050 = vmatmul.bf16.gmra.mxu0 %v5694
      %v6051 = vpop.f32.mrf.mxu0
      %v6052 = vadd.f32 %v5963, %v6051
      %v6053 = vpop.f32.mrf.mxu0
      %v6054 = vadd.f32 %v5965, %v6053
      %6055 = vmatmul.bf16.gmra.mxu0 %v5697
      %v6056 = vpop.f32.mrf.mxu0
      %v6057 = vadd.f32 %v5968, %v6056
      %v6058 = vpop.f32.mrf.mxu0
      %v6059 = vadd.f32 %v5970, %v6058
      %6060 = vmatmul.bf16.gmra.mxu0 %v5700
      %v6061 = vpop.f32.mrf.mxu0
      %v6062 = vadd.f32 %v5973, %v6061
      %v6063 = vpop.f32.mrf.mxu0
      %v6064 = vadd.f32 %v5975, %v6063
      %6065 = vmatmul.bf16.gmra.mxu0 %v5703
      %v6066 = vpop.f32.mrf.mxu0
      %v6067 = vadd.f32 %v5978, %v6066
      %v6068 = vpop.f32.mrf.mxu0
      %v6069 = vadd.f32 %v5980, %v6068
      %6070 = vmatmul.bf16.gmra.mxu0 %v5706
      %v6071 = vpop.f32.mrf.mxu0
      %v6072 = vadd.f32 %v5983, %v6071
      %v6073 = vpop.f32.mrf.mxu0
      %v6074 = vadd.f32 %v5985, %v6073
      %6075 = vmatmul.bf16.gmra.mxu0 %v5709
      %v6076 = vpop.f32.mrf.mxu0
      %v6077 = vadd.f32 %v5988, %v6076
      %v6078 = vpop.f32.mrf.mxu0
      %v6079 = vadd.f32 %v5990, %v6078
      %6080 = vdwg.mxu0
      %6081 = vmatpush.bf16.msra.mxu0 %v5878
      %6082 = vmatpush.bf16.msra.mxu0 %v5877
      %6083 = vmatpush.bf16.msra.mxu0 %v5876
      %6084 = vmatpush.bf16.msra.mxu0 %v5875
      %6085 = vmatpush.bf16.msra.mxu0 %v5874
      %6086 = vmatpush.bf16.msra.mxu0 %v5873
      %6087 = vmatpush.bf16.msra.mxu0 %v5872
      %6088 = vmatpush.bf16.msra.mxu0 %v5871
      %6089 = vmatmul.bf16.gmra.mxu0 %v5665
      %v6090 = vpop.f32.mrf.mxu0
      %v6091 = vadd.f32 %v6002, %v6090
      %v6092 = vpop.f32.mrf.mxu0
      %v6093 = vadd.f32 %v6004, %v6092
      %6094 = vmatmul.bf16.gmra.mxu0 %v5668
      %v6095 = vpop.f32.mrf.mxu0
      %v6096 = vadd.f32 %v6007, %v6095
      %v6097 = vpop.f32.mrf.mxu0
      %v6098 = vadd.f32 %v6009, %v6097
      %6099 = vmatmul.bf16.gmra.mxu0 %v5671
      %v6100 = vpop.f32.mrf.mxu0
      %v6101 = vadd.f32 %v6012, %v6100
      %v6102 = vpop.f32.mrf.mxu0
      %v6103 = vadd.f32 %v6014, %v6102
      %6104 = vmatmul.bf16.gmra.mxu0 %v5674
      %v6105 = vpop.f32.mrf.mxu0
      %v6106 = vadd.f32 %v6017, %v6105
      %v6107 = vpop.f32.mrf.mxu0
      %v6108 = vadd.f32 %v6019, %v6107
      %6109 = vmatmul.bf16.gmra.mxu0 %v5677
      %v6110 = vpop.f32.mrf.mxu0
      %v6111 = vadd.f32 %v6022, %v6110
      %v6112 = vpop.f32.mrf.mxu0
      %v6113 = vadd.f32 %v6024, %v6112
      %6114 = vmatmul.bf16.gmra.mxu0 %v5680
      %v6115 = vpop.f32.mrf.mxu0
      %v6116 = vadd.f32 %v6027, %v6115
      %v6117 = vpop.f32.mrf.mxu0
      %v6118 = vadd.f32 %v6029, %v6117
      %6119 = vmatmul.bf16.gmra.mxu0 %v5683
      %v6120 = vpop.f32.mrf.mxu0
      %v6121 = vadd.f32 %v6032, %v6120
      %v6122 = vpop.f32.mrf.mxu0
      %v6123 = vadd.f32 %v6034, %v6122
      %6124 = vmatmul.bf16.gmra.mxu0 %v5686
      %v6125 = vpop.f32.mrf.mxu0
      %v6126 = vadd.f32 %v6037, %v6125
      %v6127 = vpop.f32.mrf.mxu0
      %v6128 = vadd.f32 %v6039, %v6127
      %6129 = vmatmul.bf16.gmra.mxu0 %v5689
      %v6130 = vpop.f32.mrf.mxu0
      %v6131 = vadd.f32 %v6042, %v6130
      %v6132 = vpop.f32.mrf.mxu0
      %v6133 = vadd.f32 %v6044, %v6132
      %6134 = vmatmul.bf16.gmra.mxu0 %v5692
      %v6135 = vpop.f32.mrf.mxu0
      %v6136 = vadd.f32 %v6047, %v6135
      %v6137 = vpop.f32.mrf.mxu0
      %v6138 = vadd.f32 %v6049, %v6137
      %6139 = vmatmul.bf16.gmra.mxu0 %v5695
      %v6140 = vpop.f32.mrf.mxu0
      %v6141 = vadd.f32 %v6052, %v6140
      %v6142 = vpop.f32.mrf.mxu0
      %v6143 = vadd.f32 %v6054, %v6142
      %6144 = vmatmul.bf16.gmra.mxu0 %v5698
      %v6145 = vpop.f32.mrf.mxu0
      %v6146 = vadd.f32 %v6057, %v6145
      %v6147 = vpop.f32.mrf.mxu0
      %v6148 = vadd.f32 %v6059, %v6147
      %6149 = vmatmul.bf16.gmra.mxu0 %v5701
      %v6150 = vpop.f32.mrf.mxu0
      %v6151 = vadd.f32 %v6062, %v6150
      %v6152 = vpop.f32.mrf.mxu0
      %v6153 = vadd.f32 %v6064, %v6152
      %6154 = vmatmul.bf16.gmra.mxu0 %v5704
      %v6155 = vpop.f32.mrf.mxu0
      %v6156 = vadd.f32 %v6067, %v6155
      %v6157 = vpop.f32.mrf.mxu0
      %v6158 = vadd.f32 %v6069, %v6157
      %6159 = vmatmul.bf16.gmra.mxu0 %v5707
      %v6160 = vpop.f32.mrf.mxu0
      %v6161 = vadd.f32 %v6072, %v6160
      %v6162 = vpop.f32.mrf.mxu0
      %v6163 = vadd.f32 %v6074, %v6162
      %6164 = vmatmul.bf16.gmra.mxu0 %v5710
      %v6165 = vpop.f32.mrf.mxu0
      %v6166 = vadd.f32 %v6077, %v6165
      %v6167 = vpop.f32.mrf.mxu0
      %v6168 = vadd.f32 %v6079, %v6167
      %6169 = vdwg.mxu0
      %v6174 = vunpack.c.l.b16 %v5338
      %v6175 = vunpack.c.h.b16 %v5338
      %v6176 = vunpack.c.l.b16 %v5339
      %v6177 = vunpack.c.l.b16 %v5340
      %v6178 = vunpack.c.h.b16 %v5340
      %v6179 = vunpack.c.l.b16 %v5341
      %v6180 = vpack.c.b16 %v6177, %v6174
      %v6181 = vpack.c.b16 %v6178, %v6175
      %v6182 = vpack.c.b16 %v6179, %v6176
      %v6234 = vunpack.c.l.b16 %v5402
      %v6235 = vunpack.c.l.b16 %v5403
      %v6236 = vunpack.c.l.b16 %v5404
      %v6237 = vunpack.c.l.b16 %v5405
      %v6238 = vunpack.c.l.b16 %v5406
      %v6239 = vunpack.c.l.b16 %v5407
      %v6240 = vunpack.c.l.b16 %v5408
      %v6241 = vunpack.c.l.b16 %v5409
      %v6242 = vunpack.c.l.b16 %v5410
      %v6243 = vunpack.c.l.b16 %v5411
      %v6244 = vunpack.c.l.b16 %v5412
      %v6245 = vunpack.c.l.b16 %v5413
      %v6246 = vunpack.c.l.b16 %v5414
      %v6247 = vunpack.c.l.b16 %v5415
      %v6248 = vunpack.c.l.b16 %v5416
      %v6249 = vunpack.c.l.b16 %v5417
      %v6250 = vunpack.c.l.b16 %v5418
      %v6251 = vunpack.c.l.b16 %v5419
      %v6252 = vunpack.c.l.b16 %v5420
      %v6253 = vunpack.c.l.b16 %v5421
      %v6254 = vunpack.c.l.b16 %v5422
      %v6255 = vunpack.c.l.b16 %v5423
      %v6256 = vunpack.c.l.b16 %v5424
      %v6257 = vunpack.c.l.b16 %v5425
      %v6258 = vunpack.c.l.b16 %v5426
      %v6259 = vunpack.c.l.b16 %v5427
      %v6260 = vunpack.c.l.b16 %v5428
      %v6261 = vunpack.c.l.b16 %v5429
      %v6262 = vunpack.c.l.b16 %v5430
      %v6263 = vunpack.c.l.b16 %v5431
      %v6264 = vunpack.c.l.b16 %v5432
      %v6265 = vunpack.c.l.b16 %v5433
      %v6266 = vunpack.c.l.b16 %v5434
      %v6267 = vunpack.c.l.b16 %v5435
      %v6268 = vunpack.c.l.b16 %v5436
      %v6269 = vunpack.c.l.b16 %v5437
      %v6270 = vunpack.c.l.b16 %v5438
      %v6271 = vunpack.c.l.b16 %v5439
      %v6272 = vunpack.c.l.b16 %v5440
      %v6273 = vunpack.c.l.b16 %v5441
      %v6274 = vunpack.c.l.b16 %v5442
      %v6275 = vunpack.c.l.b16 %v5443
      %v6276 = vunpack.c.l.b16 %v5444
      %v6277 = vunpack.c.l.b16 %v5445
      %v6278 = vunpack.c.l.b16 %v5446
      %v6279 = vunpack.c.l.b16 %v5447
      %v6280 = vunpack.c.l.b16 %v5448
      %v6281 = vunpack.c.l.b16 %v5449
      %v6282 = vpack.c.b16 %v6235, %v6234
      %v6283 = vpack.c.b16 %v6237, %v6236
      %v6284 = vpack.c.b16 %v6239, %v6238
      %v6285 = vpack.c.b16 %v6241, %v6240
      %v6286 = vpack.c.b16 %v6243, %v6242
      %v6287 = vpack.c.b16 %v6245, %v6244
      %v6288 = vpack.c.b16 %v6247, %v6246
      %v6289 = vpack.c.b16 %v6249, %v6248
      %v6290 = vpack.c.b16 %v6251, %v6250
      %v6291 = vpack.c.b16 %v6253, %v6252
      %v6292 = vpack.c.b16 %v6255, %v6254
      %v6293 = vpack.c.b16 %v6257, %v6256
      %v6294 = vpack.c.b16 %v6259, %v6258
      %v6295 = vpack.c.b16 %v6261, %v6260
      %v6296 = vpack.c.b16 %v6263, %v6262
      %v6297 = vpack.c.b16 %v6265, %v6264
      %v6298 = vpack.c.b16 %v6267, %v6266
      %v6299 = vpack.c.b16 %v6269, %v6268
      %v6300 = vpack.c.b16 %v6271, %v6270
      %v6301 = vpack.c.b16 %v6273, %v6272
      %v6302 = vpack.c.b16 %v6275, %v6274
      %v6303 = vpack.c.b16 %v6277, %v6276
      %v6304 = vpack.c.b16 %v6279, %v6278
      %v6305 = vpack.c.b16 %v6281, %v6280
      %6330 = vmatpush.bf16.msra.mxu0 %v6289
      %6331 = vmatpush.bf16.msra.mxu0 %v6288
      %6332 = vmatpush.bf16.msra.mxu0 %v6287
      %6333 = vmatpush.bf16.msra.mxu0 %v6286
      %6334 = vmatpush.bf16.msra.mxu0 %v6285
      %6335 = vmatpush.bf16.msra.mxu0 %v6284
      %6336 = vmatpush.bf16.msra.mxu0 %v6283
      %6337 = vmatpush.bf16.msra.mxu0 %v6282
      %6338 = vmatmul.bf16.gmra.mxu0 %v6180
      %v6339 = vpop.f32.mrf.mxu0
      %v6340 = vadd.f32 %v6091, %v6339
      %v6341 = vpop.f32.mrf.mxu0
      %v6342 = vadd.f32 %v6093, %v6341
      %6343 = vmatmul.bf16.gmra.mxu0 %v5663
      %v6344 = vpop.f32.mrf.mxu0
      %v6345 = vadd.f32 %v6096, %v6344
      %v6346 = vpop.f32.mrf.mxu0
      %v6347 = vadd.f32 %v6098, %v6346
      %6348 = vmatmul.bf16.gmra.mxu0 %v5666
      %v6349 = vpop.f32.mrf.mxu0
      %v6350 = vadd.f32 %v6101, %v6349
      %v6351 = vpop.f32.mrf.mxu0
      %v6352 = vadd.f32 %v6103, %v6351
      %6353 = vmatmul.bf16.gmra.mxu0 %v5669
      %v6354 = vpop.f32.mrf.mxu0
      %v6355 = vadd.f32 %v6106, %v6354
      %v6356 = vpop.f32.mrf.mxu0
      %v6357 = vadd.f32 %v6108, %v6356
      %6358 = vmatmul.bf16.gmra.mxu0 %v5672
      %v6359 = vpop.f32.mrf.mxu0
      %v6360 = vadd.f32 %v6111, %v6359
      %v6361 = vpop.f32.mrf.mxu0
      %v6362 = vadd.f32 %v6113, %v6361
      %6363 = vmatmul.bf16.gmra.mxu0 %v5675
      %v6364 = vpop.f32.mrf.mxu0
      %v6365 = vadd.f32 %v6116, %v6364
      %v6366 = vpop.f32.mrf.mxu0
      %v6367 = vadd.f32 %v6118, %v6366
      %6368 = vmatmul.bf16.gmra.mxu0 %v5678
      %v6369 = vpop.f32.mrf.mxu0
      %v6370 = vadd.f32 %v6121, %v6369
      %v6371 = vpop.f32.mrf.mxu0
      %v6372 = vadd.f32 %v6123, %v6371
      %6373 = vmatmul.bf16.gmra.mxu0 %v5681
      %v6374 = vpop.f32.mrf.mxu0
      %v6375 = vadd.f32 %v6126, %v6374
      %v6376 = vpop.f32.mrf.mxu0
      %v6377 = vadd.f32 %v6128, %v6376
      %6378 = vmatmul.bf16.gmra.mxu0 %v5684
      %v6379 = vpop.f32.mrf.mxu0
      %v6380 = vadd.f32 %v6131, %v6379
      %v6381 = vpop.f32.mrf.mxu0
      %v6382 = vadd.f32 %v6133, %v6381
      %6383 = vmatmul.bf16.gmra.mxu0 %v5687
      %v6384 = vpop.f32.mrf.mxu0
      %v6385 = vadd.f32 %v6136, %v6384
      %v6386 = vpop.f32.mrf.mxu0
      %v6387 = vadd.f32 %v6138, %v6386
      %6388 = vmatmul.bf16.gmra.mxu0 %v5690
      %v6389 = vpop.f32.mrf.mxu0
      %v6390 = vadd.f32 %v6141, %v6389
      %v6391 = vpop.f32.mrf.mxu0
      %v6392 = vadd.f32 %v6143, %v6391
      %6393 = vmatmul.bf16.gmra.mxu0 %v5693
      %v6394 = vpop.f32.mrf.mxu0
      %v6395 = vadd.f32 %v6146, %v6394
      %v6396 = vpop.f32.mrf.mxu0
      %v6397 = vadd.f32 %v6148, %v6396
      %6398 = vmatmul.bf16.gmra.mxu0 %v5696
      %v6399 = vpop.f32.mrf.mxu0
      %v6400 = vadd.f32 %v6151, %v6399
      %v6401 = vpop.f32.mrf.mxu0
      %v6402 = vadd.f32 %v6153, %v6401
      %6403 = vmatmul.bf16.gmra.mxu0 %v5699
      %v6404 = vpop.f32.mrf.mxu0
      %v6405 = vadd.f32 %v6156, %v6404
      %v6406 = vpop.f32.mrf.mxu0
      %v6407 = vadd.f32 %v6158, %v6406
      %6408 = vmatmul.bf16.gmra.mxu0 %v5702
      %v6409 = vpop.f32.mrf.mxu0
      %v6410 = vadd.f32 %v6161, %v6409
      %v6411 = vpop.f32.mrf.mxu0
      %v6412 = vadd.f32 %v6163, %v6411
      %6413 = vmatmul.bf16.gmra.mxu0 %v5705
      %v6414 = vpop.f32.mrf.mxu0
      %v6415 = vadd.f32 %v6166, %v6414
      %v6416 = vpop.f32.mrf.mxu0
      %v6417 = vadd.f32 %v6168, %v6416
      %6418 = vdwg.mxu0
      %6419 = vmatpush.bf16.msra.mxu0 %v6297
      %6420 = vmatpush.bf16.msra.mxu0 %v6296
      %6421 = vmatpush.bf16.msra.mxu0 %v6295
      %6422 = vmatpush.bf16.msra.mxu0 %v6294
      %6423 = vmatpush.bf16.msra.mxu0 %v6293
      %6424 = vmatpush.bf16.msra.mxu0 %v6292
      %6425 = vmatpush.bf16.msra.mxu0 %v6291
      %6426 = vmatpush.bf16.msra.mxu0 %v6290
      %6427 = vmatmul.bf16.gmra.mxu0 %v6181
      %v6428 = vpop.f32.mrf.mxu0
      %v6429 = vadd.f32 %v6340, %v6428
      %v6430 = vpop.f32.mrf.mxu0
      %v6431 = vadd.f32 %v6342, %v6430
      %6432 = vmatmul.bf16.gmra.mxu0 %v5664
      %v6433 = vpop.f32.mrf.mxu0
      %v6434 = vadd.f32 %v6345, %v6433
      %v6435 = vpop.f32.mrf.mxu0
      %v6436 = vadd.f32 %v6347, %v6435
      %6437 = vmatmul.bf16.gmra.mxu0 %v5667
      %v6438 = vpop.f32.mrf.mxu0
      %v6439 = vadd.f32 %v6350, %v6438
      %v6440 = vpop.f32.mrf.mxu0
      %v6441 = vadd.f32 %v6352, %v6440
      %6442 = vmatmul.bf16.gmra.mxu0 %v5670
      %v6443 = vpop.f32.mrf.mxu0
      %v6444 = vadd.f32 %v6355, %v6443
      %v6445 = vpop.f32.mrf.mxu0
      %v6446 = vadd.f32 %v6357, %v6445
      %6447 = vmatmul.bf16.gmra.mxu0 %v5673
      %v6448 = vpop.f32.mrf.mxu0
      %v6449 = vadd.f32 %v6360, %v6448
      %v6450 = vpop.f32.mrf.mxu0
      %v6451 = vadd.f32 %v6362, %v6450
      %6452 = vmatmul.bf16.gmra.mxu0 %v5676
      %v6453 = vpop.f32.mrf.mxu0
      %v6454 = vadd.f32 %v6365, %v6453
      %v6455 = vpop.f32.mrf.mxu0
      %v6456 = vadd.f32 %v6367, %v6455
      %6457 = vmatmul.bf16.gmra.mxu0 %v5679
      %v6458 = vpop.f32.mrf.mxu0
      %v6459 = vadd.f32 %v6370, %v6458
      %v6460 = vpop.f32.mrf.mxu0
      %v6461 = vadd.f32 %v6372, %v6460
      %6462 = vmatmul.bf16.gmra.mxu0 %v5682
      %v6463 = vpop.f32.mrf.mxu0
      %v6464 = vadd.f32 %v6375, %v6463
      %v6465 = vpop.f32.mrf.mxu0
      %v6466 = vadd.f32 %v6377, %v6465
      %6467 = vmatmul.bf16.gmra.mxu0 %v5685
      %v6468 = vpop.f32.mrf.mxu0
      %v6469 = vadd.f32 %v6380, %v6468
      %v6470 = vpop.f32.mrf.mxu0
      %v6471 = vadd.f32 %v6382, %v6470
      %6472 = vmatmul.bf16.gmra.mxu0 %v5688
      %v6473 = vpop.f32.mrf.mxu0
      %v6474 = vadd.f32 %v6385, %v6473
      %v6475 = vpop.f32.mrf.mxu0
      %v6476 = vadd.f32 %v6387, %v6475
      %6477 = vmatmul.bf16.gmra.mxu0 %v5691
      %v6478 = vpop.f32.mrf.mxu0
      %v6479 = vadd.f32 %v6390, %v6478
      %v6480 = vpop.f32.mrf.mxu0
      %v6481 = vadd.f32 %v6392, %v6480
      %6482 = vmatmul.bf16.gmra.mxu0 %v5694
      %v6483 = vpop.f32.mrf.mxu0
      %v6484 = vadd.f32 %v6395, %v6483
      %v6485 = vpop.f32.mrf.mxu0
      %v6486 = vadd.f32 %v6397, %v6485
      %6487 = vmatmul.bf16.gmra.mxu0 %v5697
      %v6488 = vpop.f32.mrf.mxu0
      %v6489 = vadd.f32 %v6400, %v6488
      %v6490 = vpop.f32.mrf.mxu0
      %v6491 = vadd.f32 %v6402, %v6490
      %6492 = vmatmul.bf16.gmra.mxu0 %v5700
      %v6493 = vpop.f32.mrf.mxu0
      %v6494 = vadd.f32 %v6405, %v6493
      %v6495 = vpop.f32.mrf.mxu0
      %v6496 = vadd.f32 %v6407, %v6495
      %6497 = vmatmul.bf16.gmra.mxu0 %v5703
      %v6498 = vpop.f32.mrf.mxu0
      %v6499 = vadd.f32 %v6410, %v6498
      %v6500 = vpop.f32.mrf.mxu0
      %v6501 = vadd.f32 %v6412, %v6500
      %6502 = vmatmul.bf16.gmra.mxu0 %v5706
      %v6503 = vpop.f32.mrf.mxu0
      %v6504 = vadd.f32 %v6415, %v6503
      %v6505 = vpop.f32.mrf.mxu0
      %v6506 = vadd.f32 %v6417, %v6505
      %6507 = vdwg.mxu0
      %6508 = vmatpush.bf16.msra.mxu0 %v6305
      %6509 = vmatpush.bf16.msra.mxu0 %v6304
      %6510 = vmatpush.bf16.msra.mxu0 %v6303
      %6511 = vmatpush.bf16.msra.mxu0 %v6302
      %6512 = vmatpush.bf16.msra.mxu0 %v6301
      %6513 = vmatpush.bf16.msra.mxu0 %v6300
      %6514 = vmatpush.bf16.msra.mxu0 %v6299
      %6515 = vmatpush.bf16.msra.mxu0 %v6298
      %6516 = vmatmul.bf16.gmra.mxu0 %v6182
      %v6517 = vpop.f32.mrf.mxu0
      %v6518 = vadd.f32 %v6429, %v6517
      %v6519 = vpop.f32.mrf.mxu0
      %v6520 = vadd.f32 %v6431, %v6519
      %6521 = vmatmul.bf16.gmra.mxu0 %v5665
      %v6522 = vpop.f32.mrf.mxu0
      %v6523 = vadd.f32 %v6434, %v6522
      %v6524 = vpop.f32.mrf.mxu0
      %v6525 = vadd.f32 %v6436, %v6524
      %6526 = vmatmul.bf16.gmra.mxu0 %v5668
      %v6527 = vpop.f32.mrf.mxu0
      %v6528 = vadd.f32 %v6439, %v6527
      %v6529 = vpop.f32.mrf.mxu0
      %v6530 = vadd.f32 %v6441, %v6529
      %6531 = vmatmul.bf16.gmra.mxu0 %v5671
      %v6532 = vpop.f32.mrf.mxu0
      %v6533 = vadd.f32 %v6444, %v6532
      %v6534 = vpop.f32.mrf.mxu0
      %v6535 = vadd.f32 %v6446, %v6534
      %6536 = vmatmul.bf16.gmra.mxu0 %v5674
      %v6537 = vpop.f32.mrf.mxu0
      %v6538 = vadd.f32 %v6449, %v6537
      %v6539 = vpop.f32.mrf.mxu0
      %v6540 = vadd.f32 %v6451, %v6539
      %6541 = vmatmul.bf16.gmra.mxu0 %v5677
      %v6542 = vpop.f32.mrf.mxu0
      %v6543 = vadd.f32 %v6454, %v6542
      %v6544 = vpop.f32.mrf.mxu0
      %v6545 = vadd.f32 %v6456, %v6544
      %6546 = vmatmul.bf16.gmra.mxu0 %v5680
      %v6547 = vpop.f32.mrf.mxu0
      %v6548 = vadd.f32 %v6459, %v6547
      %v6549 = vpop.f32.mrf.mxu0
      %v6550 = vadd.f32 %v6461, %v6549
      %6551 = vmatmul.bf16.gmra.mxu0 %v5683
      %v6552 = vpop.f32.mrf.mxu0
      %v6553 = vadd.f32 %v6464, %v6552
      %v6554 = vpop.f32.mrf.mxu0
      %v6555 = vadd.f32 %v6466, %v6554
      %6556 = vmatmul.bf16.gmra.mxu0 %v5686
      %v6557 = vpop.f32.mrf.mxu0
      %v6558 = vadd.f32 %v6469, %v6557
      %v6559 = vpop.f32.mrf.mxu0
      %v6560 = vadd.f32 %v6471, %v6559
      %6561 = vmatmul.bf16.gmra.mxu0 %v5689
      %v6562 = vpop.f32.mrf.mxu0
      %v6563 = vadd.f32 %v6474, %v6562
      %v6564 = vpop.f32.mrf.mxu0
      %v6565 = vadd.f32 %v6476, %v6564
      %6566 = vmatmul.bf16.gmra.mxu0 %v5692
      %v6567 = vpop.f32.mrf.mxu0
      %v6568 = vadd.f32 %v6479, %v6567
      %v6569 = vpop.f32.mrf.mxu0
      %v6570 = vadd.f32 %v6481, %v6569
      %6571 = vmatmul.bf16.gmra.mxu0 %v5695
      %v6572 = vpop.f32.mrf.mxu0
      %v6573 = vadd.f32 %v6484, %v6572
      %v6574 = vpop.f32.mrf.mxu0
      %v6575 = vadd.f32 %v6486, %v6574
      %6576 = vmatmul.bf16.gmra.mxu0 %v5698
      %v6577 = vpop.f32.mrf.mxu0
      %v6578 = vadd.f32 %v6489, %v6577
      %v6579 = vpop.f32.mrf.mxu0
      %v6580 = vadd.f32 %v6491, %v6579
      %6581 = vmatmul.bf16.gmra.mxu0 %v5701
      %v6582 = vpop.f32.mrf.mxu0
      %v6583 = vadd.f32 %v6494, %v6582
      %v6584 = vpop.f32.mrf.mxu0
      %v6585 = vadd.f32 %v6496, %v6584
      %6586 = vmatmul.bf16.gmra.mxu0 %v5704
      %v6587 = vpop.f32.mrf.mxu0
      %v6588 = vadd.f32 %v6499, %v6587
      %v6589 = vpop.f32.mrf.mxu0
      %v6590 = vadd.f32 %v6501, %v6589
      %6591 = vmatmul.bf16.gmra.mxu0 %v5707
      %v6592 = vpop.f32.mrf.mxu0
      %v6593 = vadd.f32 %v6504, %v6592
      %v6594 = vpop.f32.mrf.mxu0
      %v6595 = vadd.f32 %v6506, %v6594
      %6596 = vdwg.mxu0
      %v6597 = vld [vmem:[#allocation3 + $0x30] sm:$0xff]
      %v6598 = vld [vmem:[#allocation3 + $0x38] sm:$0xf]
      %v6599 = vld [vmem:[#allocation3 + $0x3c] sm:$0xff]
      %v6600 = vld [vmem:[#allocation3 + $0x44] sm:$0xf]
      %v6601 = vld [vmem:[#allocation3 + $0x48] sm:$0xff]
      %v6602 = vld [vmem:[#allocation3 + $0x50] sm:$0xf]
      %v6603 = vld [vmem:[#allocation3 + $0x54] sm:$0xff]
      %v6604 = vld [vmem:[#allocation3 + $0x5c] sm:$0xf]
      %v6605 = vld [vmem:[#allocation3 + $0x60] sm:$0xff]
      %v6606 = vld [vmem:[#allocation3 + $0x68] sm:$0xf]
      %v6607 = vld [vmem:[#allocation3 + $0x6c] sm:$0xff]
      %v6608 = vld [vmem:[#allocation3 + $0x74] sm:$0xf]
      %v6609 = vld [vmem:[#allocation3 + $0x78] sm:$0xff]
      %v6610 = vld [vmem:[#allocation3 + $0x80] sm:$0xf]
      %v6611 = vld [vmem:[#allocation3 + $0x84] sm:$0xff]
      %v6612 = vld [vmem:[#allocation3 + $0x8c] sm:$0xf]
      %v6613 = vld [vmem:[#allocation3 + $0x90] sm:$0xff]
      %v6614 = vld [vmem:[#allocation3 + $0x98] sm:$0xf]
      %v6615 = vld [vmem:[#allocation3 + $0x9c] sm:$0xff]
      %v6616 = vld [vmem:[#allocation3 + $0xa4] sm:$0xf]
      %v6617 = vld [vmem:[#allocation3 + $0xa8] sm:$0xff]
      %v6618 = vld [vmem:[#allocation3 + $0xb0] sm:$0xf]
      %v6619 = vld [vmem:[#allocation3 + $0xb4] sm:$0xff]
      %v6620 = vld [vmem:[#allocation3 + $0xbc] sm:$0xf]
      %v6621 = vld [vmem:[#allocation3 + $0xc0] sm:$0xff]
      %v6622 = vld [vmem:[#allocation3 + $0xc8] sm:$0xf]
      %v6623 = vld [vmem:[#allocation3 + $0xcc] sm:$0xff]
      %v6624 = vld [vmem:[#allocation3 + $0xd4] sm:$0xf]
      %v6625 = vld [vmem:[#allocation3 + $0xd8] sm:$0xff]
      %v6626 = vld [vmem:[#allocation3 + $0xe0] sm:$0xf]
      %v6627 = vld [vmem:[#allocation3 + $0xe4] sm:$0xff]
      %v6628 = vld [vmem:[#allocation3 + $0xec] sm:$0xf]
      %v6629 = vld [vmem:[#allocation3 + $0xf0] sm:$0xff]
      %v6630 = vld [vmem:[#allocation3 + $0xf8] sm:$0xf]
      %v6631 = vld [vmem:[#allocation3 + $0xfc] sm:$0xff]
      %v6632 = vld [vmem:[#allocation3 + $0x104] sm:$0xf]
      %v6633 = vld [vmem:[#allocation3 + $0x108] sm:$0xff]
      %v6634 = vld [vmem:[#allocation3 + $0x110] sm:$0xf]
      %v6635 = vld [vmem:[#allocation3 + $0x114] sm:$0xff]
      %v6636 = vld [vmem:[#allocation3 + $0x11c] sm:$0xf]
      %v6637 = vld [vmem:[#allocation3 + $0x120] sm:$0xff]
      %v6638 = vld [vmem:[#allocation3 + $0x128] sm:$0xf]
      %v6639 = vld [vmem:[#allocation3 + $0x12c] sm:$0xff]
      %v6640 = vld [vmem:[#allocation3 + $0x134] sm:$0xf]
      %v6641 = vld [vmem:[#allocation3 + $0x138] sm:$0xff]
      %v6642 = vld [vmem:[#allocation3 + $0x140] sm:$0xf]
      %v6643 = vld [vmem:[#allocation3 + $0x144] sm:$0xff]
      %v6644 = vld [vmem:[#allocation3 + $0x14c] sm:$0xf]
      %v6645 = vld [vmem:[#allocation3 + $0x150] sm:$0xff]
      %v6646 = vld [vmem:[#allocation3 + $0x158] sm:$0xf]
      %v6647 = vld [vmem:[#allocation3 + $0x15c] sm:$0xff]
      %v6648 = vld [vmem:[#allocation3 + $0x164] sm:$0xf]
      %v6649 = vld [vmem:[#allocation3 + $0x168] sm:$0xff]
      %v6650 = vld [vmem:[#allocation3 + $0x170] sm:$0xf]
      %v6651 = vld [vmem:[#allocation3 + $0x174] sm:$0xff]
      %v6652 = vld [vmem:[#allocation3 + $0x17c] sm:$0xf]
      %v6653 = vld [vmem:[#allocation3 + $0x180] sm:$0xff]
      %v6654 = vld [vmem:[#allocation3 + $0x188] sm:$0xf]
      %v6655 = vld [vmem:[#allocation3 + $0x18c] sm:$0xff]
      %v6656 = vld [vmem:[#allocation3 + $0x194] sm:$0xf]
      %v6657 = vld [vmem:[#allocation3 + $0x198] sm:$0xff]
      %v6658 = vld [vmem:[#allocation3 + $0x1a0] sm:$0xf]
      %v6659 = vld [vmem:[#allocation3 + $0x1a4] sm:$0xff]
      %v6660 = vld [vmem:[#allocation3 + $0x1ac] sm:$0xf]
      %s6661 = scalar_lea.vmem %s2, 384
      %v6662 = vld [vmem:[%s6661] sm:$0xf]
      %v6663 = vld [vmem:[%s6661 + $0x4] sm:$0xf]
      %v6664 = vld [vmem:[%s6661 + $0x8] sm:$0xf]
      %v6665 = vld [vmem:[%s6661 + $0xc] sm:$0xf]
      %v6666 = vld [vmem:[%s6661 + $0x10] sm:$0xf]
      %v6667 = vld [vmem:[%s6661 + $0x14] sm:$0xf]
      %v6668 = vld [vmem:[%s6661 + $0x18] sm:$0xf]
      %v6669 = vld [vmem:[%s6661 + $0x1c] sm:$0xf]
      %v6670 = vld [vmem:[%s6661 + $0x20] sm:$0xf]
      %v6671 = vld [vmem:[%s6661 + $0x24] sm:$0xf]
      %v6672 = vld [vmem:[%s6661 + $0x28] sm:$0xf]
      %v6673 = vld [vmem:[%s6661 + $0x2c] sm:$0xf]
      %v6674 = vld [vmem:[%s6661 + $0x30] sm:$0xf]
      %v6675 = vld [vmem:[%s6661 + $0x34] sm:$0xf]
      %v6676 = vld [vmem:[%s6661 + $0x38] sm:$0xf]
      %v6677 = vld [vmem:[%s6661 + $0x3c] sm:$0xf]
      %v6678 = vld [vmem:[%s6661 + $0x40] sm:$0xf]
      %v6679 = vld [vmem:[%s6661 + $0x44] sm:$0xf]
      %v6680 = vld [vmem:[%s6661 + $0x48] sm:$0xf]
      %v6681 = vld [vmem:[%s6661 + $0x4c] sm:$0xf]
      %v6682 = vld [vmem:[%s6661 + $0x50] sm:$0xf]
      %v6683 = vld [vmem:[%s6661 + $0x54] sm:$0xf]
      %v6684 = vld [vmem:[%s6661 + $0x58] sm:$0xf]
      %v6685 = vld [vmem:[%s6661 + $0x5c] sm:$0xf]
      %v6686 = vld [vmem:[%s6661 + $0x60] sm:$0xf]
      %v6687 = vld [vmem:[%s6661 + $0x64] sm:$0xf]
      %v6688 = vld [vmem:[%s6661 + $0x68] sm:$0xf]
      %v6689 = vld [vmem:[%s6661 + $0x6c] sm:$0xf]
      %v6690 = vld [vmem:[%s6661 + $0x70] sm:$0xf]
      %v6691 = vld [vmem:[%s6661 + $0x74] sm:$0xf]
      %v6692 = vld [vmem:[%s6661 + $0x78] sm:$0xf]
      %v6693 = vld [vmem:[%s6661 + $0x7c] sm:$0xf]
      %v6694 = vld [vmem:[%s6661 + $0x80] sm:$0xf]
      %v6695 = vld [vmem:[%s6661 + $0x84] sm:$0xf]
      %v6696 = vld [vmem:[%s6661 + $0x88] sm:$0xf]
      %v6697 = vld [vmem:[%s6661 + $0x8c] sm:$0xf]
      %v6698 = vld [vmem:[%s6661 + $0x90] sm:$0xf]
      %v6699 = vld [vmem:[%s6661 + $0x94] sm:$0xf]
      %v6700 = vld [vmem:[%s6661 + $0x98] sm:$0xf]
      %v6701 = vld [vmem:[%s6661 + $0x9c] sm:$0xf]
      %v6702 = vld [vmem:[%s6661 + $0xa0] sm:$0xf]
      %v6703 = vld [vmem:[%s6661 + $0xa4] sm:$0xf]
      %v6704 = vld [vmem:[%s6661 + $0xa8] sm:$0xf]
      %v6705 = vld [vmem:[%s6661 + $0xac] sm:$0xf]
      %v6706 = vld [vmem:[%s6661 + $0xb0] sm:$0xf]
      %v6707 = vld [vmem:[%s6661 + $0xb4] sm:$0xf]
      %v6708 = vld [vmem:[%s6661 + $0xb8] sm:$0xf]
      %v6709 = vld [vmem:[%s6661 + $0xbc] sm:$0xf]
      %v6774 = vunpack.c.l.b16 %v6597
      %v6775 = vunpack.c.h.b16 %v6597
      %v6776 = vunpack.c.l.b16 %v6598
      %v6777 = vunpack.c.l.b16 %v6599
      %v6778 = vunpack.c.h.b16 %v6599
      %v6779 = vunpack.c.l.b16 %v6600
      %v6780 = vunpack.c.l.b16 %v6601
      %v6781 = vunpack.c.h.b16 %v6601
      %v6782 = vunpack.c.l.b16 %v6602
      %v6783 = vunpack.c.l.b16 %v6603
      %v6784 = vunpack.c.h.b16 %v6603
      %v6785 = vunpack.c.l.b16 %v6604
      %v6786 = vunpack.c.l.b16 %v6605
      %v6787 = vunpack.c.h.b16 %v6605
      %v6788 = vunpack.c.l.b16 %v6606
      %v6789 = vunpack.c.l.b16 %v6607
      %v6790 = vunpack.c.h.b16 %v6607
      %v6791 = vunpack.c.l.b16 %v6608
      %v6792 = vunpack.c.l.b16 %v6609
      %v6793 = vunpack.c.h.b16 %v6609
      %v6794 = vunpack.c.l.b16 %v6610
      %v6795 = vunpack.c.l.b16 %v6611
      %v6796 = vunpack.c.h.b16 %v6611
      %v6797 = vunpack.c.l.b16 %v6612
      %v6798 = vunpack.c.l.b16 %v6613
      %v6799 = vunpack.c.h.b16 %v6613
      %v6800 = vunpack.c.l.b16 %v6614
      %v6801 = vunpack.c.l.b16 %v6615
      %v6802 = vunpack.c.h.b16 %v6615
      %v6803 = vunpack.c.l.b16 %v6616
      %v6804 = vunpack.c.l.b16 %v6617
      %v6805 = vunpack.c.h.b16 %v6617
      %v6806 = vunpack.c.l.b16 %v6618
      %v6807 = vunpack.c.l.b16 %v6619
      %v6808 = vunpack.c.h.b16 %v6619
      %v6809 = vunpack.c.l.b16 %v6620
      %v6810 = vunpack.c.l.b16 %v6621
      %v6811 = vunpack.c.h.b16 %v6621
      %v6812 = vunpack.c.l.b16 %v6622
      %v6813 = vunpack.c.l.b16 %v6623
      %v6814 = vunpack.c.h.b16 %v6623
      %v6815 = vunpack.c.l.b16 %v6624
      %v6816 = vunpack.c.l.b16 %v6625
      %v6817 = vunpack.c.h.b16 %v6625
      %v6818 = vunpack.c.l.b16 %v6626
      %v6819 = vunpack.c.l.b16 %v6627
      %v6820 = vunpack.c.h.b16 %v6627
      %v6821 = vunpack.c.l.b16 %v6628
      %v6822 = vunpack.c.l.b16 %v6629
      %v6823 = vunpack.c.h.b16 %v6629
      %v6824 = vunpack.c.l.b16 %v6630
      %v6825 = vunpack.c.l.b16 %v6631
      %v6826 = vunpack.c.h.b16 %v6631
      %v6827 = vunpack.c.l.b16 %v6632
      %v6828 = vunpack.c.l.b16 %v6633
      %v6829 = vunpack.c.h.b16 %v6633
      %v6830 = vunpack.c.l.b16 %v6634
      %v6831 = vunpack.c.l.b16 %v6635
      %v6832 = vunpack.c.h.b16 %v6635
      %v6833 = vunpack.c.l.b16 %v6636
      %v6834 = vunpack.c.l.b16 %v6637
      %v6835 = vunpack.c.h.b16 %v6637
      %v6836 = vunpack.c.l.b16 %v6638
      %v6837 = vunpack.c.l.b16 %v6639
      %v6838 = vunpack.c.h.b16 %v6639
      %v6839 = vunpack.c.l.b16 %v6640
      %v6840 = vunpack.c.l.b16 %v6641
      %v6841 = vunpack.c.h.b16 %v6641
      %v6842 = vunpack.c.l.b16 %v6642
      %v6843 = vunpack.c.l.b16 %v6643
      %v6844 = vunpack.c.h.b16 %v6643
      %v6845 = vunpack.c.l.b16 %v6644
      %v6846 = vunpack.c.l.b16 %v6645
      %v6847 = vunpack.c.h.b16 %v6645
      %v6848 = vunpack.c.l.b16 %v6646
      %v6849 = vunpack.c.l.b16 %v6647
      %v6850 = vunpack.c.h.b16 %v6647
      %v6851 = vunpack.c.l.b16 %v6648
      %v6852 = vunpack.c.l.b16 %v6649
      %v6853 = vunpack.c.h.b16 %v6649
      %v6854 = vunpack.c.l.b16 %v6650
      %v6855 = vunpack.c.l.b16 %v6651
      %v6856 = vunpack.c.h.b16 %v6651
      %v6857 = vunpack.c.l.b16 %v6652
      %v6858 = vunpack.c.l.b16 %v6653
      %v6859 = vunpack.c.h.b16 %v6653
      %v6860 = vunpack.c.l.b16 %v6654
      %v6861 = vunpack.c.l.b16 %v6655
      %v6862 = vunpack.c.h.b16 %v6655
      %v6863 = vunpack.c.l.b16 %v6656
      %v6864 = vunpack.c.l.b16 %v6657
      %v6865 = vunpack.c.h.b16 %v6657
      %v6866 = vunpack.c.l.b16 %v6658
      %v6867 = vunpack.c.l.b16 %v6659
      %v6868 = vunpack.c.h.b16 %v6659
      %v6869 = vunpack.c.l.b16 %v6660
      %v6870 = vpack.c.b16 %v6777, %v6774
      %v6871 = vpack.c.b16 %v6778, %v6775
      %v6872 = vpack.c.b16 %v6779, %v6776
      %v6873 = vpack.c.b16 %v6783, %v6780
      %v6874 = vpack.c.b16 %v6784, %v6781
      %v6875 = vpack.c.b16 %v6785, %v6782
      %v6876 = vpack.c.b16 %v6789, %v6786
      %v6877 = vpack.c.b16 %v6790, %v6787
      %v6878 = vpack.c.b16 %v6791, %v6788
      %v6879 = vpack.c.b16 %v6795, %v6792
      %v6880 = vpack.c.b16 %v6796, %v6793
      %v6881 = vpack.c.b16 %v6797, %v6794
      %v6882 = vpack.c.b16 %v6801, %v6798
      %v6883 = vpack.c.b16 %v6802, %v6799
      %v6884 = vpack.c.b16 %v6803, %v6800
      %v6885 = vpack.c.b16 %v6807, %v6804
      %v6886 = vpack.c.b16 %v6808, %v6805
      %v6887 = vpack.c.b16 %v6809, %v6806
      %v6888 = vpack.c.b16 %v6813, %v6810
      %v6889 = vpack.c.b16 %v6814, %v6811
      %v6890 = vpack.c.b16 %v6815, %v6812
      %v6891 = vpack.c.b16 %v6819, %v6816
      %v6892 = vpack.c.b16 %v6820, %v6817
      %v6893 = vpack.c.b16 %v6821, %v6818
      %v6894 = vpack.c.b16 %v6825, %v6822
      %v6895 = vpack.c.b16 %v6826, %v6823
      %v6896 = vpack.c.b16 %v6827, %v6824
      %v6897 = vpack.c.b16 %v6831, %v6828
      %v6898 = vpack.c.b16 %v6832, %v6829
      %v6899 = vpack.c.b16 %v6833, %v6830
      %v6900 = vpack.c.b16 %v6837, %v6834
      %v6901 = vpack.c.b16 %v6838, %v6835
      %v6902 = vpack.c.b16 %v6839, %v6836
      %v6903 = vpack.c.b16 %v6843, %v6840
      %v6904 = vpack.c.b16 %v6844, %v6841
      %v6905 = vpack.c.b16 %v6845, %v6842
      %v6906 = vpack.c.b16 %v6849, %v6846
      %v6907 = vpack.c.b16 %v6850, %v6847
      %v6908 = vpack.c.b16 %v6851, %v6848
      %v6909 = vpack.c.b16 %v6855, %v6852
      %v6910 = vpack.c.b16 %v6856, %v6853
      %v6911 = vpack.c.b16 %v6857, %v6854
      %v6912 = vpack.c.b16 %v6861, %v6858
      %v6913 = vpack.c.b16 %v6862, %v6859
      %v6914 = vpack.c.b16 %v6863, %v6860
      %v6915 = vpack.c.b16 %v6867, %v6864
      %v6916 = vpack.c.b16 %v6868, %v6865
      %v6917 = vpack.c.b16 %v6869, %v6866
      %v7014 = vunpack.c.l.b16 %v6662
      %v7015 = vunpack.c.l.b16 %v6663
      %v7016 = vunpack.c.l.b16 %v6664
      %v7017 = vunpack.c.l.b16 %v6665
      %v7018 = vunpack.c.l.b16 %v6666
      %v7019 = vunpack.c.l.b16 %v6667
      %v7020 = vunpack.c.l.b16 %v6668
      %v7021 = vunpack.c.l.b16 %v6669
      %v7022 = vunpack.c.l.b16 %v6670
      %v7023 = vunpack.c.l.b16 %v6671
      %v7024 = vunpack.c.l.b16 %v6672
      %v7025 = vunpack.c.l.b16 %v6673
      %v7026 = vunpack.c.l.b16 %v6674
      %v7027 = vunpack.c.l.b16 %v6675
      %v7028 = vunpack.c.l.b16 %v6676
      %v7029 = vunpack.c.l.b16 %v6677
      %v7030 = vunpack.c.l.b16 %v6678
      %v7031 = vunpack.c.l.b16 %v6679
      %v7032 = vunpack.c.l.b16 %v6680
      %v7033 = vunpack.c.l.b16 %v6681
      %v7034 = vunpack.c.l.b16 %v6682
      %v7035 = vunpack.c.l.b16 %v6683
      %v7036 = vunpack.c.l.b16 %v6684
      %v7037 = vunpack.c.l.b16 %v6685
      %v7038 = vunpack.c.l.b16 %v6686
      %v7039 = vunpack.c.l.b16 %v6687
      %v7040 = vunpack.c.l.b16 %v6688
      %v7041 = vunpack.c.l.b16 %v6689
      %v7042 = vunpack.c.l.b16 %v6690
      %v7043 = vunpack.c.l.b16 %v6691
      %v7044 = vunpack.c.l.b16 %v6692
      %v7045 = vunpack.c.l.b16 %v6693
      %v7046 = vunpack.c.l.b16 %v6694
      %v7047 = vunpack.c.l.b16 %v6695
      %v7048 = vunpack.c.l.b16 %v6696
      %v7049 = vunpack.c.l.b16 %v6697
      %v7050 = vunpack.c.l.b16 %v6698
      %v7051 = vunpack.c.l.b16 %v6699
      %v7052 = vunpack.c.l.b16 %v6700
      %v7053 = vunpack.c.l.b16 %v6701
      %v7054 = vunpack.c.l.b16 %v6702
      %v7055 = vunpack.c.l.b16 %v6703
      %v7056 = vunpack.c.l.b16 %v6704
      %v7057 = vunpack.c.l.b16 %v6705
      %v7058 = vunpack.c.l.b16 %v6706
      %v7059 = vunpack.c.l.b16 %v6707
      %v7060 = vunpack.c.l.b16 %v6708
      %v7061 = vunpack.c.l.b16 %v6709
      %v7062 = vpack.c.b16 %v7015, %v7014
      %v7063 = vpack.c.b16 %v7017, %v7016
      %v7064 = vpack.c.b16 %v7019, %v7018
      %v7065 = vpack.c.b16 %v7021, %v7020
      %v7066 = vpack.c.b16 %v7023, %v7022
      %v7067 = vpack.c.b16 %v7025, %v7024
      %v7068 = vpack.c.b16 %v7027, %v7026
      %v7069 = vpack.c.b16 %v7029, %v7028
      %v7070 = vpack.c.b16 %v7031, %v7030
      %v7071 = vpack.c.b16 %v7033, %v7032
      %v7072 = vpack.c.b16 %v7035, %v7034
      %v7073 = vpack.c.b16 %v7037, %v7036
      %v7074 = vpack.c.b16 %v7039, %v7038
      %v7075 = vpack.c.b16 %v7041, %v7040
      %v7076 = vpack.c.b16 %v7043, %v7042
      %v7077 = vpack.c.b16 %v7045, %v7044
      %v7078 = vpack.c.b16 %v7047, %v7046
      %v7079 = vpack.c.b16 %v7049, %v7048
      %v7080 = vpack.c.b16 %v7051, %v7050
      %v7081 = vpack.c.b16 %v7053, %v7052
      %v7082 = vpack.c.b16 %v7055, %v7054
      %v7083 = vpack.c.b16 %v7057, %v7056
      %v7084 = vpack.c.b16 %v7059, %v7058
      %v7085 = vpack.c.b16 %v7061, %v7060
      %7110 = vmatpush.bf16.msra.mxu0 %v7069
      %7111 = vmatpush.bf16.msra.mxu0 %v7068
      %7112 = vmatpush.bf16.msra.mxu0 %v7067
      %7113 = vmatpush.bf16.msra.mxu0 %v7066
      %7114 = vmatpush.bf16.msra.mxu0 %v7065
      %7115 = vmatpush.bf16.msra.mxu0 %v7064
      %7116 = vmatpush.bf16.msra.mxu0 %v7063
      %7117 = vmatpush.bf16.msra.mxu0 %v7062
      %7118 = vmatmul.bf16.gmra.mxu0 %v6870
      %v7119 = vpop.f32.mrf.mxu0
      %v7120 = vadd.f32 0.0, %v7119
      %v7121 = vpop.f32.mrf.mxu0
      %v7122 = vadd.f32 0.0, %v7121
      %7123 = vmatmul.bf16.gmra.mxu0 %v6873
      %v7124 = vpop.f32.mrf.mxu0
      %v7125 = vadd.f32 0.0, %v7124
      %v7126 = vpop.f32.mrf.mxu0
      %v7127 = vadd.f32 0.0, %v7126
      %7128 = vmatmul.bf16.gmra.mxu0 %v6876
      %v7129 = vpop.f32.mrf.mxu0
      %v7130 = vadd.f32 0.0, %v7129
      %v7131 = vpop.f32.mrf.mxu0
      %v7132 = vadd.f32 0.0, %v7131
      %7133 = vmatmul.bf16.gmra.mxu0 %v6879
      %v7134 = vpop.f32.mrf.mxu0
      %v7135 = vadd.f32 0.0, %v7134
      %v7136 = vpop.f32.mrf.mxu0
      %v7137 = vadd.f32 0.0, %v7136
      %7138 = vmatmul.bf16.gmra.mxu0 %v6882
      %v7139 = vpop.f32.mrf.mxu0
      %v7140 = vadd.f32 0.0, %v7139
      %v7141 = vpop.f32.mrf.mxu0
      %v7142 = vadd.f32 0.0, %v7141
      %7143 = vmatmul.bf16.gmra.mxu0 %v6885
      %v7144 = vpop.f32.mrf.mxu0
      %v7145 = vadd.f32 0.0, %v7144
      %v7146 = vpop.f32.mrf.mxu0
      %v7147 = vadd.f32 0.0, %v7146
      %7148 = vmatmul.bf16.gmra.mxu0 %v6888
      %v7149 = vpop.f32.mrf.mxu0
      %v7150 = vadd.f32 0.0, %v7149
      %v7151 = vpop.f32.mrf.mxu0
      %v7152 = vadd.f32 0.0, %v7151
      %7153 = vmatmul.bf16.gmra.mxu0 %v6891
      %v7154 = vpop.f32.mrf.mxu0
      %v7155 = vadd.f32 0.0, %v7154
      %v7156 = vpop.f32.mrf.mxu0
      %v7157 = vadd.f32 0.0, %v7156
      %7158 = vmatmul.bf16.gmra.mxu0 %v6894
      %v7159 = vpop.f32.mrf.mxu0
      %v7160 = vadd.f32 0.0, %v7159
      %v7161 = vpop.f32.mrf.mxu0
      %v7162 = vadd.f32 0.0, %v7161
      %7163 = vmatmul.bf16.gmra.mxu0 %v6897
      %v7164 = vpop.f32.mrf.mxu0
      %v7165 = vadd.f32 0.0, %v7164
      %v7166 = vpop.f32.mrf.mxu0
      %v7167 = vadd.f32 0.0, %v7166
      %7168 = vmatmul.bf16.gmra.mxu0 %v6900
      %v7169 = vpop.f32.mrf.mxu0
      %v7170 = vadd.f32 0.0, %v7169
      %v7171 = vpop.f32.mrf.mxu0
      %v7172 = vadd.f32 0.0, %v7171
      %7173 = vmatmul.bf16.gmra.mxu0 %v6903
      %v7174 = vpop.f32.mrf.mxu0
      %v7175 = vadd.f32 0.0, %v7174
      %v7176 = vpop.f32.mrf.mxu0
      %v7177 = vadd.f32 0.0, %v7176
      %7178 = vmatmul.bf16.gmra.mxu0 %v6906
      %v7179 = vpop.f32.mrf.mxu0
      %v7180 = vadd.f32 0.0, %v7179
      %v7181 = vpop.f32.mrf.mxu0
      %v7182 = vadd.f32 0.0, %v7181
      %7183 = vmatmul.bf16.gmra.mxu0 %v6909
      %v7184 = vpop.f32.mrf.mxu0
      %v7185 = vadd.f32 0.0, %v7184
      %v7186 = vpop.f32.mrf.mxu0
      %v7187 = vadd.f32 0.0, %v7186
      %7188 = vmatmul.bf16.gmra.mxu0 %v6912
      %v7189 = vpop.f32.mrf.mxu0
      %v7190 = vadd.f32 0.0, %v7189
      %v7191 = vpop.f32.mrf.mxu0
      %v7192 = vadd.f32 0.0, %v7191
      %7193 = vmatmul.bf16.gmra.mxu0 %v6915
      %v7194 = vpop.f32.mrf.mxu0
      %v7195 = vadd.f32 0.0, %v7194
      %v7196 = vpop.f32.mrf.mxu0
      %v7197 = vadd.f32 0.0, %v7196
      %7198 = vdwg.mxu0
      %7199 = vmatpush.bf16.msra.mxu0 %v7077
      %7200 = vmatpush.bf16.msra.mxu0 %v7076
      %7201 = vmatpush.bf16.msra.mxu0 %v7075
      %7202 = vmatpush.bf16.msra.mxu0 %v7074
      %7203 = vmatpush.bf16.msra.mxu0 %v7073
      %7204 = vmatpush.bf16.msra.mxu0 %v7072
      %7205 = vmatpush.bf16.msra.mxu0 %v7071
      %7206 = vmatpush.bf16.msra.mxu0 %v7070
      %7207 = vmatmul.bf16.gmra.mxu0 %v6871
      %v7208 = vpop.f32.mrf.mxu0
      %v7209 = vadd.f32 %v7120, %v7208
      %v7210 = vpop.f32.mrf.mxu0
      %v7211 = vadd.f32 %v7122, %v7210
      %7212 = vmatmul.bf16.gmra.mxu0 %v6874
      %v7213 = vpop.f32.mrf.mxu0
      %v7214 = vadd.f32 %v7125, %v7213
      %v7215 = vpop.f32.mrf.mxu0
      %v7216 = vadd.f32 %v7127, %v7215
      %7217 = vmatmul.bf16.gmra.mxu0 %v6877
      %v7218 = vpop.f32.mrf.mxu0
      %v7219 = vadd.f32 %v7130, %v7218
      %v7220 = vpop.f32.mrf.mxu0
      %v7221 = vadd.f32 %v7132, %v7220
      %7222 = vmatmul.bf16.gmra.mxu0 %v6880
      %v7223 = vpop.f32.mrf.mxu0
      %v7224 = vadd.f32 %v7135, %v7223
      %v7225 = vpop.f32.mrf.mxu0
      %v7226 = vadd.f32 %v7137, %v7225
      %7227 = vmatmul.bf16.gmra.mxu0 %v6883
      %v7228 = vpop.f32.mrf.mxu0
      %v7229 = vadd.f32 %v7140, %v7228
      %v7230 = vpop.f32.mrf.mxu0
      %v7231 = vadd.f32 %v7142, %v7230
      %7232 = vmatmul.bf16.gmra.mxu0 %v6886
      %v7233 = vpop.f32.mrf.mxu0
      %v7234 = vadd.f32 %v7145, %v7233
      %v7235 = vpop.f32.mrf.mxu0
      %v7236 = vadd.f32 %v7147, %v7235
      %7237 = vmatmul.bf16.gmra.mxu0 %v6889
      %v7238 = vpop.f32.mrf.mxu0
      %v7239 = vadd.f32 %v7150, %v7238
      %v7240 = vpop.f32.mrf.mxu0
      %v7241 = vadd.f32 %v7152, %v7240
      %7242 = vmatmul.bf16.gmra.mxu0 %v6892
      %v7243 = vpop.f32.mrf.mxu0
      %v7244 = vadd.f32 %v7155, %v7243
      %v7245 = vpop.f32.mrf.mxu0
      %v7246 = vadd.f32 %v7157, %v7245
      %7247 = vmatmul.bf16.gmra.mxu0 %v6895
      %v7248 = vpop.f32.mrf.mxu0
      %v7249 = vadd.f32 %v7160, %v7248
      %v7250 = vpop.f32.mrf.mxu0
      %v7251 = vadd.f32 %v7162, %v7250
      %7252 = vmatmul.bf16.gmra.mxu0 %v6898
      %v7253 = vpop.f32.mrf.mxu0
      %v7254 = vadd.f32 %v7165, %v7253
      %v7255 = vpop.f32.mrf.mxu0
      %v7256 = vadd.f32 %v7167, %v7255
      %7257 = vmatmul.bf16.gmra.mxu0 %v6901
      %v7258 = vpop.f32.mrf.mxu0
      %v7259 = vadd.f32 %v7170, %v7258
      %v7260 = vpop.f32.mrf.mxu0
      %v7261 = vadd.f32 %v7172, %v7260
      %7262 = vmatmul.bf16.gmra.mxu0 %v6904
      %v7263 = vpop.f32.mrf.mxu0
      %v7264 = vadd.f32 %v7175, %v7263
      %v7265 = vpop.f32.mrf.mxu0
      %v7266 = vadd.f32 %v7177, %v7265
      %7267 = vmatmul.bf16.gmra.mxu0 %v6907
      %v7268 = vpop.f32.mrf.mxu0
      %v7269 = vadd.f32 %v7180, %v7268
      %v7270 = vpop.f32.mrf.mxu0
      %v7271 = vadd.f32 %v7182, %v7270
      %7272 = vmatmul.bf16.gmra.mxu0 %v6910
      %v7273 = vpop.f32.mrf.mxu0
      %v7274 = vadd.f32 %v7185, %v7273
      %v7275 = vpop.f32.mrf.mxu0
      %v7276 = vadd.f32 %v7187, %v7275
      %7277 = vmatmul.bf16.gmra.mxu0 %v6913
      %v7278 = vpop.f32.mrf.mxu0
      %v7279 = vadd.f32 %v7190, %v7278
      %v7280 = vpop.f32.mrf.mxu0
      %v7281 = vadd.f32 %v7192, %v7280
      %7282 = vmatmul.bf16.gmra.mxu0 %v6916
      %v7283 = vpop.f32.mrf.mxu0
      %v7284 = vadd.f32 %v7195, %v7283
      %v7285 = vpop.f32.mrf.mxu0
      %v7286 = vadd.f32 %v7197, %v7285
      %7287 = vdwg.mxu0
      %7288 = vmatpush.bf16.msra.mxu0 %v7085
      %7289 = vmatpush.bf16.msra.mxu0 %v7084
      %7290 = vmatpush.bf16.msra.mxu0 %v7083
      %7291 = vmatpush.bf16.msra.mxu0 %v7082
      %7292 = vmatpush.bf16.msra.mxu0 %v7081
      %7293 = vmatpush.bf16.msra.mxu0 %v7080
      %7294 = vmatpush.bf16.msra.mxu0 %v7079
      %7295 = vmatpush.bf16.msra.mxu0 %v7078
      %7296 = vmatmul.bf16.gmra.mxu0 %v6872
      %v7297 = vpop.f32.mrf.mxu0
      %v7298 = vadd.f32 %v7209, %v7297
      %v7299 = vpop.f32.mrf.mxu0
      %v7300 = vadd.f32 %v7211, %v7299
      %7301 = vmatmul.bf16.gmra.mxu0 %v6875
      %v7302 = vpop.f32.mrf.mxu0
      %v7303 = vadd.f32 %v7214, %v7302
      %v7304 = vpop.f32.mrf.mxu0
      %v7305 = vadd.f32 %v7216, %v7304
      %7306 = vmatmul.bf16.gmra.mxu0 %v6878
      %v7307 = vpop.f32.mrf.mxu0
      %v7308 = vadd.f32 %v7219, %v7307
      %v7309 = vpop.f32.mrf.mxu0
      %v7310 = vadd.f32 %v7221, %v7309
      %7311 = vmatmul.bf16.gmra.mxu0 %v6881
      %v7312 = vpop.f32.mrf.mxu0
      %v7313 = vadd.f32 %v7224, %v7312
      %v7314 = vpop.f32.mrf.mxu0
      %v7315 = vadd.f32 %v7226, %v7314
      %7316 = vmatmul.bf16.gmra.mxu0 %v6884
      %v7317 = vpop.f32.mrf.mxu0
      %v7318 = vadd.f32 %v7229, %v7317
      %v7319 = vpop.f32.mrf.mxu0
      %v7320 = vadd.f32 %v7231, %v7319
      %7321 = vmatmul.bf16.gmra.mxu0 %v6887
      %v7322 = vpop.f32.mrf.mxu0
      %v7323 = vadd.f32 %v7234, %v7322
      %v7324 = vpop.f32.mrf.mxu0
      %v7325 = vadd.f32 %v7236, %v7324
      %7326 = vmatmul.bf16.gmra.mxu0 %v6890
      %v7327 = vpop.f32.mrf.mxu0
      %v7328 = vadd.f32 %v7239, %v7327
      %v7329 = vpop.f32.mrf.mxu0
      %v7330 = vadd.f32 %v7241, %v7329
      %7331 = vmatmul.bf16.gmra.mxu0 %v6893
      %v7332 = vpop.f32.mrf.mxu0
      %v7333 = vadd.f32 %v7244, %v7332
      %v7334 = vpop.f32.mrf.mxu0
      %v7335 = vadd.f32 %v7246, %v7334
      %7336 = vmatmul.bf16.gmra.mxu0 %v6896
      %v7337 = vpop.f32.mrf.mxu0
      %v7338 = vadd.f32 %v7249, %v7337
      %v7339 = vpop.f32.mrf.mxu0
      %v7340 = vadd.f32 %v7251, %v7339
      %7341 = vmatmul.bf16.gmra.mxu0 %v6899
      %v7342 = vpop.f32.mrf.mxu0
      %v7343 = vadd.f32 %v7254, %v7342
      %v7344 = vpop.f32.mrf.mxu0
      %v7345 = vadd.f32 %v7256, %v7344
      %7346 = vmatmul.bf16.gmra.mxu0 %v6902
      %v7347 = vpop.f32.mrf.mxu0
      %v7348 = vadd.f32 %v7259, %v7347
      %v7349 = vpop.f32.mrf.mxu0
      %v7350 = vadd.f32 %v7261, %v7349
      %7351 = vmatmul.bf16.gmra.mxu0 %v6905
      %v7352 = vpop.f32.mrf.mxu0
      %v7353 = vadd.f32 %v7264, %v7352
      %v7354 = vpop.f32.mrf.mxu0
      %v7355 = vadd.f32 %v7266, %v7354
      %7356 = vmatmul.bf16.gmra.mxu0 %v6908
      %v7357 = vpop.f32.mrf.mxu0
      %v7358 = vadd.f32 %v7269, %v7357
      %v7359 = vpop.f32.mrf.mxu0
      %v7360 = vadd.f32 %v7271, %v7359
      %7361 = vmatmul.bf16.gmra.mxu0 %v6911
      %v7362 = vpop.f32.mrf.mxu0
      %v7363 = vadd.f32 %v7274, %v7362
      %v7364 = vpop.f32.mrf.mxu0
      %v7365 = vadd.f32 %v7276, %v7364
      %7366 = vmatmul.bf16.gmra.mxu0 %v6914
      %v7367 = vpop.f32.mrf.mxu0
      %v7368 = vadd.f32 %v7279, %v7367
      %v7369 = vpop.f32.mrf.mxu0
      %v7370 = vadd.f32 %v7281, %v7369
      %7371 = vmatmul.bf16.gmra.mxu0 %v6917
      %v7372 = vpop.f32.mrf.mxu0
      %v7373 = vadd.f32 %v7284, %v7372
      %v7374 = vpop.f32.mrf.mxu0
      %v7375 = vadd.f32 %v7286, %v7374
      %7376 = vdwg.mxu0
      %v7377 = vadd.f32 %v6518, %v7298
      %v7378 = vadd.f32 %v6520, %v7300
      %v7379 = vadd.f32 %v6523, %v7303
      %v7380 = vadd.f32 %v6525, %v7305
      %v7381 = vadd.f32 %v6528, %v7308
      %v7382 = vadd.f32 %v6530, %v7310
      %v7383 = vadd.f32 %v6533, %v7313
      %v7384 = vadd.f32 %v6535, %v7315
      %v7385 = vadd.f32 %v6538, %v7318
      %v7386 = vadd.f32 %v6540, %v7320
      %v7387 = vadd.f32 %v6543, %v7323
      %v7388 = vadd.f32 %v6545, %v7325
      %v7389 = vadd.f32 %v6548, %v7328
      %v7390 = vadd.f32 %v6550, %v7330
      %v7391 = vadd.f32 %v6553, %v7333
      %v7392 = vadd.f32 %v6555, %v7335
      %v7393 = vadd.f32 %v6558, %v7338
      %v7394 = vadd.f32 %v6560, %v7340
      %v7395 = vadd.f32 %v6563, %v7343
      %v7396 = vadd.f32 %v6565, %v7345
      %v7397 = vadd.f32 %v6568, %v7348
      %v7398 = vadd.f32 %v6570, %v7350
      %v7399 = vadd.f32 %v6573, %v7353
      %v7400 = vadd.f32 %v6575, %v7355
      %v7401 = vadd.f32 %v6578, %v7358
      %v7402 = vadd.f32 %v6580, %v7360
      %v7403 = vadd.f32 %v6583, %v7363
      %v7404 = vadd.f32 %v6585, %v7365
      %v7405 = vadd.f32 %v6588, %v7368
      %v7406 = vadd.f32 %v6590, %v7370
      %v7407 = vadd.f32 %v6593, %v7373
      %v7408 = vadd.f32 %v6595, %v7375
      %v7409 = vld [vmem:[%s5] sm:$0x1]
      %v7411 = vperm.slane %v7409, 0
      %v7413 = vadd.f32 %v7377, %v7411
      %v7414 = vadd.f32 %v7378, %v7411
      %v7415 = vadd.f32 %v7379, %v7411
      %v7416 = vadd.f32 %v7380, %v7411
      %v7417 = vadd.f32 %v7381, %v7411
      %v7418 = vadd.f32 %v7382, %v7411
      %v7419 = vadd.f32 %v7383, %v7411
      %v7420 = vadd.f32 %v7384, %v7411
      %v7421 = vadd.f32 %v7385, %v7411
      %v7422 = vadd.f32 %v7386, %v7411
      %v7423 = vadd.f32 %v7387, %v7411
      %v7424 = vadd.f32 %v7388, %v7411
      %v7425 = vadd.f32 %v7389, %v7411
      %v7426 = vadd.f32 %v7390, %v7411
      %v7427 = vadd.f32 %v7391, %v7411
      %v7428 = vadd.f32 %v7392, %v7411
      %v7429 = vadd.f32 %v7393, %v7411
      %v7430 = vadd.f32 %v7394, %v7411
      %v7431 = vadd.f32 %v7395, %v7411
      %v7432 = vadd.f32 %v7396, %v7411
      %v7433 = vadd.f32 %v7397, %v7411
      %v7434 = vadd.f32 %v7398, %v7411
      %v7435 = vadd.f32 %v7399, %v7411
      %v7436 = vadd.f32 %v7400, %v7411
      %v7437 = vadd.f32 %v7401, %v7411
      %v7438 = vadd.f32 %v7402, %v7411
      %v7439 = vadd.f32 %v7403, %v7411
      %v7440 = vadd.f32 %v7404, %v7411
      %v7441 = vadd.f32 %v7405, %v7411
      %v7442 = vadd.f32 %v7406, %v7411
      %v7443 = vadd.f32 %v7407, %v7411
      %v7444 = vadd.f32 %v7408, %v7411
      %v7445 = vmax.f32 %v7413, 0.0
      %v7446 = vmax.f32 %v7414, 0.0
      %v7447 = vmax.f32 %v7415, 0.0
      %v7448 = vmax.f32 %v7416, 0.0
      %v7449 = vmax.f32 %v7417, 0.0
      %v7450 = vmax.f32 %v7418, 0.0
      %v7451 = vmax.f32 %v7419, 0.0
      %v7452 = vmax.f32 %v7420, 0.0
      %v7453 = vmax.f32 %v7421, 0.0
      %v7454 = vmax.f32 %v7422, 0.0
      %v7455 = vmax.f32 %v7423, 0.0
      %v7456 = vmax.f32 %v7424, 0.0
      %v7457 = vmax.f32 %v7425, 0.0
      %v7458 = vmax.f32 %v7426, 0.0
      %v7459 = vmax.f32 %v7427, 0.0
      %v7460 = vmax.f32 %v7428, 0.0
      %v7461 = vmax.f32 %v7429, 0.0
      %v7462 = vmax.f32 %v7430, 0.0
      %v7463 = vmax.f32 %v7431, 0.0
      %v7464 = vmax.f32 %v7432, 0.0
      %v7465 = vmax.f32 %v7433, 0.0
      %v7466 = vmax.f32 %v7434, 0.0
      %v7467 = vmax.f32 %v7435, 0.0
      %v7468 = vmax.f32 %v7436, 0.0
      %v7469 = vmax.f32 %v7437, 0.0
      %v7470 = vmax.f32 %v7438, 0.0
      %v7471 = vmax.f32 %v7439, 0.0
      %v7472 = vmax.f32 %v7440, 0.0
      %v7473 = vmax.f32 %v7441, 0.0
      %v7474 = vmax.f32 %v7442, 0.0
      %v7475 = vmax.f32 %v7443, 0.0
      %v7476 = vmax.f32 %v7444, 0.0
      %v7477 = vpack.c.bf16 %v7445, %v7445
      %v7478 = vpack.c.bf16 %v7446, %v7446
      %v7479 = vpack.c.bf16 %v7447, %v7447
      %v7480 = vpack.c.bf16 %v7448, %v7448
      %v7481 = vpack.c.bf16 %v7449, %v7449
      %v7482 = vpack.c.bf16 %v7450, %v7450
      %v7483 = vpack.c.bf16 %v7451, %v7451
      %v7484 = vpack.c.bf16 %v7452, %v7452
      %v7485 = vpack.c.bf16 %v7453, %v7453
      %v7486 = vpack.c.bf16 %v7454, %v7454
      %v7487 = vpack.c.bf16 %v7455, %v7455
      %v7488 = vpack.c.bf16 %v7456, %v7456
      %v7489 = vpack.c.bf16 %v7457, %v7457
      %v7490 = vpack.c.bf16 %v7458, %v7458
      %v7491 = vpack.c.bf16 %v7459, %v7459
      %v7492 = vpack.c.bf16 %v7460, %v7460
      %v7493 = vpack.c.bf16 %v7461, %v7461
      %v7494 = vpack.c.bf16 %v7462, %v7462
      %v7495 = vpack.c.bf16 %v7463, %v7463
      %v7496 = vpack.c.bf16 %v7464, %v7464
      %v7497 = vpack.c.bf16 %v7465, %v7465
      %v7498 = vpack.c.bf16 %v7466, %v7466
      %v7499 = vpack.c.bf16 %v7467, %v7467
      %v7500 = vpack.c.bf16 %v7468, %v7468
      %v7501 = vpack.c.bf16 %v7469, %v7469
      %v7502 = vpack.c.bf16 %v7470, %v7470
      %v7503 = vpack.c.bf16 %v7471, %v7471
      %v7504 = vpack.c.bf16 %v7472, %v7472
      %v7505 = vpack.c.bf16 %v7473, %v7473
      %v7506 = vpack.c.bf16 %v7474, %v7474
      %v7507 = vpack.c.bf16 %v7475, %v7475
      %v7508 = vpack.c.bf16 %v7476, %v7476
      %v7510 = vshrl.u32 %v7477, 16
      %v7512 = vrot.slane %v7510, 7
      %v7513 = vshll.u32 %v7477, 16
      %v7515 = vor.u32 %v7512, %v7513
      %v7516 = vrot.slane %v7512, 4
      %v7518 = vshrl.u32 %v7478, 16
      %v7520 = vrot.slane %v7518, 7
      %v7521 = vshll.u32 %v7478, 16
      %v7523 = vor.u32 %v7520, %v7521
      %v7524 = vsel %vm422, %v7516, %v7523
      %v7525 = vrot.slane %v7520, 4
      %v7527 = vshrl.u32 %v7479, 16
      %v7529 = vrot.slane %v7527, 7
      %v7530 = vshll.u32 %v7479, 16
      %v7532 = vor.u32 %v7529, %v7530
      %v7533 = vrot.slane %v7529, 4
      %v7535 = vshrl.u32 %v7480, 16
      %v7537 = vrot.slane %v7535, 7
      %v7538 = vshll.u32 %v7480, 16
      %v7540 = vor.u32 %v7537, %v7538
      %v7541 = vsel %vm422, %v7533, %v7540
      %v7542 = vrot.slane %v7537, 4
      %v7544 = vshrl.u32 %v7481, 16
      %v7546 = vrot.slane %v7544, 7
      %v7547 = vshll.u32 %v7481, 16
      %v7549 = vor.u32 %v7546, %v7547
      %v7550 = vrot.slane %v7546, 4
      %v7552 = vshrl.u32 %v7482, 16
      %v7554 = vrot.slane %v7552, 7
      %v7555 = vshll.u32 %v7482, 16
      %v7557 = vor.u32 %v7554, %v7555
      %v7558 = vsel %vm422, %v7550, %v7557
      %v7559 = vrot.slane %v7554, 4
      %v7561 = vshrl.u32 %v7483, 16
      %v7563 = vrot.slane %v7561, 7
      %v7564 = vshll.u32 %v7483, 16
      %v7566 = vor.u32 %v7563, %v7564
      %v7567 = vrot.slane %v7563, 4
      %v7569 = vshrl.u32 %v7484, 16
      %v7571 = vrot.slane %v7569, 7
      %v7572 = vshll.u32 %v7484, 16
      %v7574 = vor.u32 %v7571, %v7572
      %v7575 = vsel %vm422, %v7567, %v7574
      %v7576 = vrot.slane %v7571, 4
      %v7578 = vshrl.u32 %v7485, 16
      %v7580 = vrot.slane %v7578, 7
      %v7581 = vshll.u32 %v7485, 16
      %v7583 = vor.u32 %v7580, %v7581
      %v7584 = vrot.slane %v7580, 4
      %v7586 = vshrl.u32 %v7486, 16
      %v7588 = vrot.slane %v7586, 7
      %v7589 = vshll.u32 %v7486, 16
      %v7591 = vor.u32 %v7588, %v7589
      %v7592 = vsel %vm422, %v7584, %v7591
      %v7593 = vrot.slane %v7588, 4
      %v7595 = vshrl.u32 %v7487, 16
      %v7597 = vrot.slane %v7595, 7
      %v7598 = vshll.u32 %v7487, 16
      %v7600 = vor.u32 %v7597, %v7598
      %v7601 = vrot.slane %v7597, 4
      %v7603 = vshrl.u32 %v7488, 16
      %v7605 = vrot.slane %v7603, 7
      %v7606 = vshll.u32 %v7488, 16
      %v7608 = vor.u32 %v7605, %v7606
      %v7609 = vsel %vm422, %v7601, %v7608
      %v7610 = vrot.slane %v7605, 4
      %v7612 = vshrl.u32 %v7489, 16
      %v7614 = vrot.slane %v7612, 7
      %v7615 = vshll.u32 %v7489, 16
      %v7617 = vor.u32 %v7614, %v7615
      %v7618 = vrot.slane %v7614, 4
      %v7620 = vshrl.u32 %v7490, 16
      %v7622 = vrot.slane %v7620, 7
      %v7623 = vshll.u32 %v7490, 16
      %v7625 = vor.u32 %v7622, %v7623
      %v7626 = vsel %vm422, %v7618, %v7625
      %v7627 = vrot.slane %v7622, 4
      %v7629 = vshrl.u32 %v7491, 16
      %v7631 = vrot.slane %v7629, 7
      %v7632 = vshll.u32 %v7491, 16
      %v7634 = vor.u32 %v7631, %v7632
      %v7635 = vrot.slane %v7631, 4
      %v7637 = vshrl.u32 %v7492, 16
      %v7639 = vrot.slane %v7637, 7
      %v7640 = vshll.u32 %v7492, 16
      %v7642 = vor.u32 %v7639, %v7640
      %v7643 = vsel %vm422, %v7635, %v7642
      %v7644 = vrot.slane %v7639, 4
      %v7646 = vshrl.u32 %v7493, 16
      %v7648 = vrot.slane %v7646, 7
      %v7649 = vshll.u32 %v7493, 16
      %v7651 = vor.u32 %v7648, %v7649
      %v7652 = vrot.slane %v7648, 4
      %v7654 = vshrl.u32 %v7494, 16
      %v7656 = vrot.slane %v7654, 7
      %v7657 = vshll.u32 %v7494, 16
      %v7659 = vor.u32 %v7656, %v7657
      %v7660 = vsel %vm422, %v7652, %v7659
      %v7661 = vrot.slane %v7656, 4
      %v7663 = vshrl.u32 %v7495, 16
      %v7665 = vrot.slane %v7663, 7
      %v7666 = vshll.u32 %v7495, 16
      %v7668 = vor.u32 %v7665, %v7666
      %v7669 = vrot.slane %v7665, 4
      %v7671 = vshrl.u32 %v7496, 16
      %v7673 = vrot.slane %v7671, 7
      %v7674 = vshll.u32 %v7496, 16
      %v7676 = vor.u32 %v7673, %v7674
      %v7677 = vsel %vm422, %v7669, %v7676
      %v7678 = vrot.slane %v7673, 4
      %v7680 = vshrl.u32 %v7497, 16
      %v7682 = vrot.slane %v7680, 7
      %v7683 = vshll.u32 %v7497, 16
      %v7685 = vor.u32 %v7682, %v7683
      %v7686 = vrot.slane %v7682, 4
      %v7688 = vshrl.u32 %v7498, 16
      %v7690 = vrot.slane %v7688, 7
      %v7691 = vshll.u32 %v7498, 16
      %v7693 = vor.u32 %v7690, %v7691
      %v7694 = vsel %vm422, %v7686, %v7693
      %v7695 = vrot.slane %v7690, 4
      %v7697 = vshrl.u32 %v7499, 16
      %v7699 = vrot.slane %v7697, 7
      %v7700 = vshll.u32 %v7499, 16
      %v7702 = vor.u32 %v7699, %v7700
      %v7703 = vrot.slane %v7699, 4
      %v7705 = vshrl.u32 %v7500, 16
      %v7707 = vrot.slane %v7705, 7
      %v7708 = vshll.u32 %v7500, 16
      %v7710 = vor.u32 %v7707, %v7708
      %v7711 = vsel %vm422, %v7703, %v7710
      %v7712 = vrot.slane %v7707, 4
      %v7714 = vshrl.u32 %v7501, 16
      %v7716 = vrot.slane %v7714, 7
      %v7717 = vshll.u32 %v7501, 16
      %v7719 = vor.u32 %v7716, %v7717
      %v7720 = vrot.slane %v7716, 4
      %v7722 = vshrl.u32 %v7502, 16
      %v7724 = vrot.slane %v7722, 7
      %v7725 = vshll.u32 %v7502, 16
      %v7727 = vor.u32 %v7724, %v7725
      %v7728 = vsel %vm422, %v7720, %v7727
      %v7729 = vrot.slane %v7724, 4
      %v7731 = vshrl.u32 %v7503, 16
      %v7733 = vrot.slane %v7731, 7
      %v7734 = vshll.u32 %v7503, 16
      %v7736 = vor.u32 %v7733, %v7734
      %v7737 = vrot.slane %v7733, 4
      %v7739 = vshrl.u32 %v7504, 16
      %v7741 = vrot.slane %v7739, 7
      %v7742 = vshll.u32 %v7504, 16
      %v7744 = vor.u32 %v7741, %v7742
      %v7745 = vsel %vm422, %v7737, %v7744
      %v7746 = vrot.slane %v7741, 4
      %v7748 = vshrl.u32 %v7505, 16
      %v7750 = vrot.slane %v7748, 7
      %v7751 = vshll.u32 %v7505, 16
      %v7753 = vor.u32 %v7750, %v7751
      %v7754 = vrot.slane %v7750, 4
      %v7756 = vshrl.u32 %v7506, 16
      %v7758 = vrot.slane %v7756, 7
      %v7759 = vshll.u32 %v7506, 16
      %v7761 = vor.u32 %v7758, %v7759
      %v7762 = vsel %vm422, %v7754, %v7761
      %v7763 = vrot.slane %v7758, 4
      %v7765 = vshrl.u32 %v7507, 16
      %v7767 = vrot.slane %v7765, 7
      %v7768 = vshll.u32 %v7507, 16
      %v7770 = vor.u32 %v7767, %v7768
      %v7771 = vrot.slane %v7767, 4
      %v7773 = vshrl.u32 %v7508, 16
      %v7775 = vrot.slane %v7773, 7
      %v7776 = vshll.u32 %v7508, 16
      %v7778 = vor.u32 %v7775, %v7776
      %v7779 = vsel %vm422, %v7771, %v7778
      %v7780 = vrot.slane %v7775, 4
      %v7829 = vld [vmem:[%s287] sm:$0xf]
      %v7830 = vsel %vm744, %v7515, %v7829
      %7831 = vst [vmem:[%s287] sm:$0xf] %v7830
      %7832 = vst [vmem:[%s287 + $0x4] sm:$0xf] %v7524
      %v7833 = vld [vmem:[%s287 + $0x8] sm:$0x1]
      %v7834 = vsel %vm290, %v7525, %v7833
      %7835 = vst [vmem:[%s287 + $0x8] sm:$0x1] %v7834
      %v7836 = vld [vmem:[%s287 + $0xc] sm:$0xf]
      %v7837 = vsel %vm744, %v7532, %v7836
      %7838 = vst [vmem:[%s287 + $0xc] sm:$0xf] %v7837
      %7839 = vst [vmem:[%s287 + $0x10] sm:$0xf] %v7541
      %v7840 = vld [vmem:[%s287 + $0x14] sm:$0x1]
      %v7841 = vsel %vm290, %v7542, %v7840
      %7842 = vst [vmem:[%s287 + $0x14] sm:$0x1] %v7841
      %v7843 = vld [vmem:[%s287 + $0x18] sm:$0xf]
      %v7844 = vsel %vm744, %v7549, %v7843
      %7845 = vst [vmem:[%s287 + $0x18] sm:$0xf] %v7844
      %7846 = vst [vmem:[%s287 + $0x1c] sm:$0xf] %v7558
      %v7847 = vld [vmem:[%s287 + $0x20] sm:$0x1]
      %v7848 = vsel %vm290, %v7559, %v7847
      %7849 = vst [vmem:[%s287 + $0x20] sm:$0x1] %v7848
      %v7850 = vld [vmem:[%s287 + $0x24] sm:$0xf]
      %v7851 = vsel %vm744, %v7566, %v7850
      %7852 = vst [vmem:[%s287 + $0x24] sm:$0xf] %v7851
      %7853 = vst [vmem:[%s287 + $0x28] sm:$0xf] %v7575
      %v7854 = vld [vmem:[%s287 + $0x2c] sm:$0x1]
      %v7855 = vsel %vm290, %v7576, %v7854
      %7856 = vst [vmem:[%s287 + $0x2c] sm:$0x1] %v7855
      %v7857 = vld [vmem:[%s287 + $0x30] sm:$0xf]
      %v7858 = vsel %vm744, %v7583, %v7857
      %7859 = vst [vmem:[%s287 + $0x30] sm:$0xf] %v7858
      %7860 = vst [vmem:[%s287 + $0x34] sm:$0xf] %v7592
      %v7861 = vld [vmem:[%s287 + $0x38] sm:$0x1]
      %v7862 = vsel %vm290, %v7593, %v7861
      %7863 = vst [vmem:[%s287 + $0x38] sm:$0x1] %v7862
      %v7864 = vld [vmem:[%s287 + $0x3c] sm:$0xf]
      %v7865 = vsel %vm744, %v7600, %v7864
      %7866 = vst [vmem:[%s287 + $0x3c] sm:$0xf] %v7865
      %7867 = vst [vmem:[%s287 + $0x40] sm:$0xf] %v7609
      %v7868 = vld [vmem:[%s287 + $0x44] sm:$0x1]
      %v7869 = vsel %vm290, %v7610, %v7868
      %7870 = vst [vmem:[%s287 + $0x44] sm:$0x1] %v7869
      %v7871 = vld [vmem:[%s287 + $0x48] sm:$0xf]
      %v7872 = vsel %vm744, %v7617, %v7871
      %7873 = vst [vmem:[%s287 + $0x48] sm:$0xf] %v7872
      %7874 = vst [vmem:[%s287 + $0x4c] sm:$0xf] %v7626
      %v7875 = vld [vmem:[%s287 + $0x50] sm:$0x1]
      %v7876 = vsel %vm290, %v7627, %v7875
      %7877 = vst [vmem:[%s287 + $0x50] sm:$0x1] %v7876
      %v7878 = vld [vmem:[%s287 + $0x54] sm:$0xf]
      %v7879 = vsel %vm744, %v7634, %v7878
      %7880 = vst [vmem:[%s287 + $0x54] sm:$0xf] %v7879
      %7881 = vst [vmem:[%s287 + $0x58] sm:$0xf] %v7643
      %v7882 = vld [vmem:[%s287 + $0x5c] sm:$0x1]
      %v7883 = vsel %vm290, %v7644, %v7882
      %7884 = vst [vmem:[%s287 + $0x5c] sm:$0x1] %v7883
      %v7885 = vld [vmem:[%s287 + $0x60] sm:$0xf]
      %v7886 = vsel %vm744, %v7651, %v7885
      %7887 = vst [vmem:[%s287 + $0x60] sm:$0xf] %v7886
      %7888 = vst [vmem:[%s287 + $0x64] sm:$0xf] %v7660
      %v7889 = vld [vmem:[%s287 + $0x68] sm:$0x1]
      %v7890 = vsel %vm290, %v7661, %v7889
      %7891 = vst [vmem:[%s287 + $0x68] sm:$0x1] %v7890
      %v7892 = vld [vmem:[%s287 + $0x6c] sm:$0xf]
      %v7893 = vsel %vm744, %v7668, %v7892
      %7894 = vst [vmem:[%s287 + $0x6c] sm:$0xf] %v7893
      %7895 = vst [vmem:[%s287 + $0x70] sm:$0xf] %v7677
      %v7896 = vld [vmem:[%s287 + $0x74] sm:$0x1]
      %v7897 = vsel %vm290, %v7678, %v7896
      %7898 = vst [vmem:[%s287 + $0x74] sm:$0x1] %v7897
      %v7899 = vld [vmem:[%s287 + $0x78] sm:$0xf]
      %v7900 = vsel %vm744, %v7685, %v7899
      %7901 = vst [vmem:[%s287 + $0x78] sm:$0xf] %v7900
      %7902 = vst [vmem:[%s287 + $0x7c] sm:$0xf] %v7694
      %v7903 = vld [vmem:[%s287 + $0x80] sm:$0x1]
      %v7904 = vsel %vm290, %v7695, %v7903
      %7905 = vst [vmem:[%s287 + $0x80] sm:$0x1] %v7904
      %v7906 = vld [vmem:[%s287 + $0x84] sm:$0xf]
      %v7907 = vsel %vm744, %v7702, %v7906
      %7908 = vst [vmem:[%s287 + $0x84] sm:$0xf] %v7907
      %7909 = vst [vmem:[%s287 + $0x88] sm:$0xf] %v7711
      %v7910 = vld [vmem:[%s287 + $0x8c] sm:$0x1]
      %v7911 = vsel %vm290, %v7712, %v7910
      %7912 = vst [vmem:[%s287 + $0x8c] sm:$0x1] %v7911
      %v7913 = vld [vmem:[%s287 + $0x90] sm:$0xf]
      %v7914 = vsel %vm744, %v7719, %v7913
      %7915 = vst [vmem:[%s287 + $0x90] sm:$0xf] %v7914
      %7916 = vst [vmem:[%s287 + $0x94] sm:$0xf] %v7728
      %v7917 = vld [vmem:[%s287 + $0x98] sm:$0x1]
      %v7918 = vsel %vm290, %v7729, %v7917
      %7919 = vst [vmem:[%s287 + $0x98] sm:$0x1] %v7918
      %v7920 = vld [vmem:[%s287 + $0x9c] sm:$0xf]
      %v7921 = vsel %vm744, %v7736, %v7920
      %7922 = vst [vmem:[%s287 + $0x9c] sm:$0xf] %v7921
      %7923 = vst [vmem:[%s287 + $0xa0] sm:$0xf] %v7745
      %v7924 = vld [vmem:[%s287 + $0xa4] sm:$0x1]
      %v7925 = vsel %vm290, %v7746, %v7924
      %7926 = vst [vmem:[%s287 + $0xa4] sm:$0x1] %v7925
      %v7927 = vld [vmem:[%s287 + $0xa8] sm:$0xf]
      %v7928 = vsel %vm744, %v7753, %v7927
      %7929 = vst [vmem:[%s287 + $0xa8] sm:$0xf] %v7928
      %7930 = vst [vmem:[%s287 + $0xac] sm:$0xf] %v7762
      %v7931 = vld [vmem:[%s287 + $0xb0] sm:$0x1]
      %v7932 = vsel %vm290, %v7763, %v7931
      %7933 = vst [vmem:[%s287 + $0xb0] sm:$0x1] %v7932
      %v7934 = vld [vmem:[%s287 + $0xb4] sm:$0xf]
      %v7935 = vsel %vm744, %v7770, %v7934
      %7936 = vst [vmem:[%s287 + $0xb4] sm:$0xf] %v7935
      %7937 = vst [vmem:[%s287 + $0xb8] sm:$0xf] %v7779
      %v7938 = vld [vmem:[%s287 + $0xbc] sm:$0x1]
      %v7939 = vsel %vm290, %v7780, %v7938
      %7940 = vst [vmem:[%s287 + $0xbc] sm:$0x1] %v7939
      %v7941 = vld [vmem:[#allocation2] sm:$0xf]
      %v7942 = vld [vmem:[#allocation2 + $0x4] sm:$0xf]
      %v7943 = vld [vmem:[#allocation2 + $0xc] sm:$0xf]
      %v7944 = vld [vmem:[#allocation2 + $0x10] sm:$0xf]
      %v7945 = vld [vmem:[#allocation2 + $0x18] sm:$0xf]
      %v7946 = vld [vmem:[#allocation2 + $0x1c] sm:$0xf]
      %v7947 = vld [vmem:[#allocation2 + $0x24] sm:$0xf]
      %v7948 = vld [vmem:[#allocation2 + $0x28] sm:$0xf]
      %v7949 = vld [vmem:[#allocation2 + $0x30] sm:$0xf]
      %v7950 = vld [vmem:[#allocation2 + $0x34] sm:$0xf]
      %v7951 = vld [vmem:[#allocation2 + $0x3c] sm:$0xf]
      %v7952 = vld [vmem:[#allocation2 + $0x40] sm:$0xf]
      %v7953 = vld [vmem:[#allocation2 + $0x48] sm:$0xf]
      %v7954 = vld [vmem:[#allocation2 + $0x4c] sm:$0xf]
      %v7955 = vld [vmem:[#allocation2 + $0x54] sm:$0xf]
      %v7956 = vld [vmem:[#allocation2 + $0x58] sm:$0xf]
      %v7957 = vld [vmem:[#allocation2 + $0x60] sm:$0xf]
      %v7958 = vld [vmem:[#allocation2 + $0x64] sm:$0xf]
      %v7959 = vld [vmem:[#allocation2 + $0x6c] sm:$0xf]
      %v7960 = vld [vmem:[#allocation2 + $0x70] sm:$0xf]
      %v7961 = vld [vmem:[#allocation2 + $0x78] sm:$0xf]
      %v7962 = vld [vmem:[#allocation2 + $0x7c] sm:$0xf]
      %v7963 = vld [vmem:[#allocation2 + $0x84] sm:$0xf]
      %v7964 = vld [vmem:[#allocation2 + $0x88] sm:$0xf]
      %v7965 = vld [vmem:[#allocation2 + $0x90] sm:$0xf]
      %v7966 = vld [vmem:[#allocation2 + $0x94] sm:$0xf]
      %v7967 = vld [vmem:[#allocation2 + $0x9c] sm:$0xf]
      %v7968 = vld [vmem:[#allocation2 + $0xa0] sm:$0xf]
      %v7969 = vld [vmem:[#allocation2 + $0xa8] sm:$0xf]
      %v7970 = vld [vmem:[#allocation2 + $0xac] sm:$0xf]
      %v7971 = vld [vmem:[#allocation2 + $0xb4] sm:$0xf]
      %v7972 = vld [vmem:[#allocation2 + $0xb8] sm:$0xf]
      %v7973 = vld [vmem:[#allocation2 + $0xc0] sm:$0xf]
      %v7974 = vld [vmem:[#allocation2 + $0xc4] sm:$0xf]
      %v7975 = vld [vmem:[#allocation2 + $0xcc] sm:$0xf]
      %v7976 = vld [vmem:[#allocation2 + $0xd0] sm:$0xf]
      %7977 = vst [vmem:[#allocation3] sm:$0xf] %v7941
      %7978 = vst [vmem:[#allocation3 + $0xc] sm:$0xf] %v7942
      %7979 = vst [vmem:[#allocation3 + $0x18] sm:$0xf] %v7943
      %7980 = vst [vmem:[#allocation3 + $0x24] sm:$0xf] %v7944
      %7981 = vst [vmem:[#allocation3 + $0x30] sm:$0xf] %v7945
      %7982 = vst [vmem:[#allocation3 + $0x3c] sm:$0xf] %v7946
      %7983 = vst [vmem:[#allocation3 + $0x48] sm:$0xf] %v7947
      %7984 = vst [vmem:[#allocation3 + $0x54] sm:$0xf] %v7948
      %7985 = vst [vmem:[#allocation3 + $0x60] sm:$0xf] %v7949
      %7986 = vst [vmem:[#allocation3 + $0x6c] sm:$0xf] %v7950
      %7987 = vst [vmem:[#allocation3 + $0x78] sm:$0xf] %v7951
      %7988 = vst [vmem:[#allocation3 + $0x84] sm:$0xf] %v7952
      %7989 = vst [vmem:[#allocation3 + $0x90] sm:$0xf] %v7953
      %7990 = vst [vmem:[#allocation3 + $0x9c] sm:$0xf] %v7954
      %7991 = vst [vmem:[#allocation3 + $0xa8] sm:$0xf] %v7955
      %7992 = vst [vmem:[#allocation3 + $0xb4] sm:$0xf] %v7956
      %7993 = vst [vmem:[#allocation3 + $0xc0] sm:$0xf] %v7957
      %7994 = vst [vmem:[#allocation3 + $0xcc] sm:$0xf] %v7958
      %7995 = vst [vmem:[#allocation3 + $0xd8] sm:$0xf] %v7959
      %7996 = vst [vmem:[#allocation3 + $0xe4] sm:$0xf] %v7960
      %7997 = vst [vmem:[#allocation3 + $0xf0] sm:$0xf] %v7961
      %7998 = vst [vmem:[#allocation3 + $0xfc] sm:$0xf] %v7962
      %7999 = vst [vmem:[#allocation3 + $0x108] sm:$0xf] %v7963
      %8000 = vst [vmem:[#allocation3 + $0x114] sm:$0xf] %v7964
      %8001 = vst [vmem:[#allocation3 + $0x120] sm:$0xf] %v7965
      %8002 = vst [vmem:[#allocation3 + $0x12c] sm:$0xf] %v7966
      %8003 = vst [vmem:[#allocation3 + $0x138] sm:$0xf] %v7967
      %8004 = vst [vmem:[#allocation3 + $0x144] sm:$0xf] %v7968
      %8005 = vst [vmem:[#allocation3 + $0x150] sm:$0xf] %v7969
      %8006 = vst [vmem:[#allocation3 + $0x15c] sm:$0xf] %v7970
      %8007 = vst [vmem:[#allocation3 + $0x168] sm:$0xf] %v7971
      %8008 = vst [vmem:[#allocation3 + $0x174] sm:$0xf] %v7972
      %8009 = vst [vmem:[#allocation3 + $0x180] sm:$0xf] %v7973
      %8010 = vst [vmem:[#allocation3 + $0x18c] sm:$0xf] %v7974
      %8011 = vst [vmem:[#allocation3 + $0x198] sm:$0xf] %v7975
      %8012 = vst [vmem:[#allocation3 + $0x1a4] sm:$0xf] %v7976
      %v8013 = vld [vmem:[#allocation2] sm:$0xf]
      %v8014 = vld [vmem:[#allocation2 + $0x4] sm:$0xf]
      %v8015 = vld [vmem:[#allocation2 + $0x8] sm:$0x1]
      %v8016 = vld [vmem:[#allocation2 + $0xc] sm:$0xf]
      %v8017 = vld [vmem:[#allocation2 + $0x10] sm:$0xf]
      %v8018 = vld [vmem:[#allocation2 + $0x14] sm:$0x1]
      %v8019 = vld [vmem:[#allocation2 + $0x18] sm:$0xf]
      %v8020 = vld [vmem:[#allocation2 + $0x1c] sm:$0xf]
      %v8021 = vld [vmem:[#allocation2 + $0x20] sm:$0x1]
      %v8022 = vld [vmem:[#allocation2 + $0x24] sm:$0xf]
      %v8023 = vld [vmem:[#allocation2 + $0x28] sm:$0xf]
      %v8024 = vld [vmem:[#allocation2 + $0x2c] sm:$0x1]
      %v8025 = vld [vmem:[#allocation2 + $0x30] sm:$0xf]
      %v8026 = vld [vmem:[#allocation2 + $0x34] sm:$0xf]
      %v8027 = vld [vmem:[#allocation2 + $0x38] sm:$0x1]
      %v8028 = vld [vmem:[#allocation2 + $0x3c] sm:$0xf]
      %v8029 = vld [vmem:[#allocation2 + $0x40] sm:$0xf]
      %v8030 = vld [vmem:[#allocation2 + $0x44] sm:$0x1]
      %v8031 = vld [vmem:[#allocation2 + $0x48] sm:$0xf]
      %v8032 = vld [vmem:[#allocation2 + $0x4c] sm:$0xf]
      %v8033 = vld [vmem:[#allocation2 + $0x50] sm:$0x1]
      %v8034 = vld [vmem:[#allocation2 + $0x54] sm:$0xf]
      %v8035 = vld [vmem:[#allocation2 + $0x58] sm:$0xf]
      %v8036 = vld [vmem:[#allocation2 + $0x5c] sm:$0x1]
      %v8037 = vld [vmem:[#allocation2 + $0x60] sm:$0xf]
      %v8038 = vld [vmem:[#allocation2 + $0x64] sm:$0xf]
      %v8039 = vld [vmem:[#allocation2 + $0x68] sm:$0x1]
      %v8040 = vld [vmem:[#allocation2 + $0x6c] sm:$0xf]
      %v8041 = vld [vmem:[#allocation2 + $0x70] sm:$0xf]
      %v8042 = vld [vmem:[#allocation2 + $0x74] sm:$0x1]
      %v8043 = vld [vmem:[#allocation2 + $0x78] sm:$0xf]
      %v8044 = vld [vmem:[#allocation2 + $0x7c] sm:$0xf]
      %v8045 = vld [vmem:[#allocation2 + $0x80] sm:$0x1]
      %v8046 = vld [vmem:[#allocation2 + $0x84] sm:$0xf]
      %v8047 = vld [vmem:[#allocation2 + $0x88] sm:$0xf]
      %v8048 = vld [vmem:[#allocation2 + $0x8c] sm:$0x1]
      %v8049 = vld [vmem:[#allocation2 + $0x90] sm:$0xf]
      %v8050 = vld [vmem:[#allocation2 + $0x94] sm:$0xf]
      %v8051 = vld [vmem:[#allocation2 + $0x98] sm:$0x1]
      %v8052 = vld [vmem:[#allocation2 + $0x9c] sm:$0xf]
      %v8053 = vld [vmem:[#allocation2 + $0xa0] sm:$0xf]
      %v8054 = vld [vmem:[#allocation2 + $0xa4] sm:$0x1]
      %v8055 = vld [vmem:[#allocation2 + $0xa8] sm:$0xf]
      %v8056 = vld [vmem:[#allocation2 + $0xac] sm:$0xf]
      %v8057 = vld [vmem:[#allocation2 + $0xb0] sm:$0x1]
      %v8058 = vld [vmem:[#allocation2 + $0xb4] sm:$0xf]
      %v8059 = vld [vmem:[#allocation2 + $0xb8] sm:$0xf]
      %v8060 = vld [vmem:[#allocation2 + $0xbc] sm:$0x1]
      %v8061 = vld [vmem:[#allocation2 + $0xc0] sm:$0xf]
      %v8062 = vld [vmem:[#allocation2 + $0xc4] sm:$0xf]
      %v8063 = vld [vmem:[#allocation2 + $0xc8] sm:$0x1]
      %v8064 = vld [vmem:[#allocation2 + $0xcc] sm:$0xf]
      %v8065 = vld [vmem:[#allocation2 + $0xd0] sm:$0xf]
      %v8066 = vld [vmem:[#allocation2 + $0xd4] sm:$0x1]
      %v8068 = vshrl.u32 %v8013, 16
      %v8070 = vrot.slane %v8068, 4
      %v8071 = vshll.u32 %v8013, 16
      %v8073 = vrot.slane %v8071, 5
      %v8074 = vor.u32 %v8070, %v8073
      %v8075 = vrot.slane %v8074, 4
      %v8077 = vshll.u32 %v8014, 16
      %v8079 = vrot.slane %v8077, 5
      %v8080 = vsel %vm985, %v8075, %v8079
      %v8081 = vshrl.u32 %v8014, 16
      %v8083 = vrot.slane %v8081, 4
      %v8084 = vor.u32 %v8083, %v8079
      %v8085 = vrot.slane %v8084, 4
      %v8087 = vshll.u32 %v8015, 16
      %v8089 = vrot.slane %v8087, 5
      %v8090 = vsel %vm985, %v8085, %v8089
      %v8092 = vshrl.u32 %v8016, 16
      %v8094 = vrot.slane %v8092, 4
      %v8095 = vshll.u32 %v8016, 16
      %v8097 = vrot.slane %v8095, 5
      %v8098 = vor.u32 %v8094, %v8097
      %v8099 = vrot.slane %v8098, 4
      %v8101 = vshll.u32 %v8017, 16
      %v8103 = vrot.slane %v8101, 5
      %v8104 = vsel %vm985, %v8099, %v8103
      %v8105 = vshrl.u32 %v8017, 16
      %v8107 = vrot.slane %v8105, 4
      %v8108 = vor.u32 %v8107, %v8103
      %v8109 = vrot.slane %v8108, 4
      %v8111 = vshll.u32 %v8018, 16
      %v8113 = vrot.slane %v8111, 5
      %v8114 = vsel %vm985, %v8109, %v8113
      %v8116 = vshrl.u32 %v8019, 16
      %v8118 = vrot.slane %v8116, 4
      %v8119 = vshll.u32 %v8019, 16
      %v8121 = vrot.slane %v8119, 5
      %v8122 = vor.u32 %v8118, %v8121
      %v8123 = vrot.slane %v8122, 4
      %v8125 = vshll.u32 %v8020, 16
      %v8127 = vrot.slane %v8125, 5
      %v8128 = vsel %vm985, %v8123, %v8127
      %v8129 = vshrl.u32 %v8020, 16
      %v8131 = vrot.slane %v8129, 4
      %v8132 = vor.u32 %v8131, %v8127
      %v8133 = vrot.slane %v8132, 4
      %v8135 = vshll.u32 %v8021, 16
      %v8137 = vrot.slane %v8135, 5
      %v8138 = vsel %vm985, %v8133, %v8137
      %v8140 = vshrl.u32 %v8022, 16
      %v8142 = vrot.slane %v8140, 4
      %v8143 = vshll.u32 %v8022, 16
      %v8145 = vrot.slane %v8143, 5
      %v8146 = vor.u32 %v8142, %v8145
      %v8147 = vrot.slane %v8146, 4
      %v8149 = vshll.u32 %v8023, 16
      %v8151 = vrot.slane %v8149, 5
      %v8152 = vsel %vm985, %v8147, %v8151
      %v8153 = vshrl.u32 %v8023, 16
      %v8155 = vrot.slane %v8153, 4
      %v8156 = vor.u32 %v8155, %v8151
      %v8157 = vrot.slane %v8156, 4
      %v8159 = vshll.u32 %v8024, 16
      %v8161 = vrot.slane %v8159, 5
      %v8162 = vsel %vm985, %v8157, %v8161
      %v8164 = vshrl.u32 %v8025, 16
      %v8166 = vrot.slane %v8164, 4
      %v8167 = vshll.u32 %v8025, 16
      %v8169 = vrot.slane %v8167, 5
      %v8170 = vor.u32 %v8166, %v8169
      %v8171 = vrot.slane %v8170, 4
      %v8173 = vshll.u32 %v8026, 16
      %v8175 = vrot.slane %v8173, 5
      %v8176 = vsel %vm985, %v8171, %v8175
      %v8177 = vshrl.u32 %v8026, 16
      %v8179 = vrot.slane %v8177, 4
      %v8180 = vor.u32 %v8179, %v8175
      %v8181 = vrot.slane %v8180, 4
      %v8183 = vshll.u32 %v8027, 16
      %v8185 = vrot.slane %v8183, 5
      %v8186 = vsel %vm985, %v8181, %v8185
      %v8188 = vshrl.u32 %v8028, 16
      %v8190 = vrot.slane %v8188, 4
      %v8191 = vshll.u32 %v8028, 16
      %v8193 = vrot.slane %v8191, 5
      %v8194 = vor.u32 %v8190, %v8193
      %v8195 = vrot.slane %v8194, 4
      %v8197 = vshll.u32 %v8029, 16
      %v8199 = vrot.slane %v8197, 5
      %v8200 = vsel %vm985, %v8195, %v8199
      %v8201 = vshrl.u32 %v8029, 16
      %v8203 = vrot.slane %v8201, 4
      %v8204 = vor.u32 %v8203, %v8199
      %v8205 = vrot.slane %v8204, 4
      %v8207 = vshll.u32 %v8030, 16
      %v8209 = vrot.slane %v8207, 5
      %v8210 = vsel %vm985, %v8205, %v8209
      %v8212 = vshrl.u32 %v8031, 16
      %v8214 = vrot.slane %v8212, 4
      %v8215 = vshll.u32 %v8031, 16
      %v8217 = vrot.slane %v8215, 5
      %v8218 = vor.u32 %v8214, %v8217
      %v8219 = vrot.slane %v8218, 4
      %v8221 = vshll.u32 %v8032, 16
      %v8223 = vrot.slane %v8221, 5
      %v8224 = vsel %vm985, %v8219, %v8223
      %v8225 = vshrl.u32 %v8032, 16
      %v8227 = vrot.slane %v8225, 4
      %v8228 = vor.u32 %v8227, %v8223
      %v8229 = vrot.slane %v8228, 4
      %v8231 = vshll.u32 %v8033, 16
      %v8233 = vrot.slane %v8231, 5
      %v8234 = vsel %vm985, %v8229, %v8233
      %v8236 = vshrl.u32 %v8034, 16
      %v8238 = vrot.slane %v8236, 4
      %v8239 = vshll.u32 %v8034, 16
      %v8241 = vrot.slane %v8239, 5
      %v8242 = vor.u32 %v8238, %v8241
      %v8243 = vrot.slane %v8242, 4
      %v8245 = vshll.u32 %v8035, 16
      %v8247 = vrot.slane %v8245, 5
      %v8248 = vsel %vm985, %v8243, %v8247
      %v8249 = vshrl.u32 %v8035, 16
      %v8251 = vrot.slane %v8249, 4
      %v8252 = vor.u32 %v8251, %v8247
      %v8253 = vrot.slane %v8252, 4
      %v8255 = vshll.u32 %v8036, 16
      %v8257 = vrot.slane %v8255, 5
      %v8258 = vsel %vm985, %v8253, %v8257
      %v8260 = vshrl.u32 %v8037, 16
      %v8262 = vrot.slane %v8260, 4
      %v8263 = vshll.u32 %v8037, 16
      %v8265 = vrot.slane %v8263, 5
      %v8266 = vor.u32 %v8262, %v8265
      %v8267 = vrot.slane %v8266, 4
      %v8269 = vshll.u32 %v8038, 16
      %v8271 = vrot.slane %v8269, 5
      %v8272 = vsel %vm985, %v8267, %v8271
      %v8273 = vshrl.u32 %v8038, 16
      %v8275 = vrot.slane %v8273, 4
      %v8276 = vor.u32 %v8275, %v8271
      %v8277 = vrot.slane %v8276, 4
      %v8279 = vshll.u32 %v8039, 16
      %v8281 = vrot.slane %v8279, 5
      %v8282 = vsel %vm985, %v8277, %v8281
      %v8284 = vshrl.u32 %v8040, 16
      %v8286 = vrot.slane %v8284, 4
      %v8287 = vshll.u32 %v8040, 16
      %v8289 = vrot.slane %v8287, 5
      %v8290 = vor.u32 %v8286, %v8289
      %v8291 = vrot.slane %v8290, 4
      %v8293 = vshll.u32 %v8041, 16
      %v8295 = vrot.slane %v8293, 5
      %v8296 = vsel %vm985, %v8291, %v8295
      %v8297 = vshrl.u32 %v8041, 16
      %v8299 = vrot.slane %v8297, 4
      %v8300 = vor.u32 %v8299, %v8295
      %v8301 = vrot.slane %v8300, 4
      %v8303 = vshll.u32 %v8042, 16
      %v8305 = vrot.slane %v8303, 5
      %v8306 = vsel %vm985, %v8301, %v8305
      %v8308 = vshrl.u32 %v8043, 16
      %v8310 = vrot.slane %v8308, 4
      %v8311 = vshll.u32 %v8043, 16
      %v8313 = vrot.slane %v8311, 5
      %v8314 = vor.u32 %v8310, %v8313
      %v8315 = vrot.slane %v8314, 4
      %v8317 = vshll.u32 %v8044, 16
      %v8319 = vrot.slane %v8317, 5
      %v8320 = vsel %vm985, %v8315, %v8319
      %v8321 = vshrl.u32 %v8044, 16
      %v8323 = vrot.slane %v8321, 4
      %v8324 = vor.u32 %v8323, %v8319
      %v8325 = vrot.slane %v8324, 4
      %v8327 = vshll.u32 %v8045, 16
      %v8329 = vrot.slane %v8327, 5
      %v8330 = vsel %vm985, %v8325, %v8329
      %v8332 = vshrl.u32 %v8046, 16
      %v8334 = vrot.slane %v8332, 4
      %v8335 = vshll.u32 %v8046, 16
      %v8337 = vrot.slane %v8335, 5
      %v8338 = vor.u32 %v8334, %v8337
      %v8339 = vrot.slane %v8338, 4
      %v8341 = vshll.u32 %v8047, 16
      %v8343 = vrot.slane %v8341, 5
      %v8344 = vsel %vm985, %v8339, %v8343
      %v8345 = vshrl.u32 %v8047, 16
      %v8347 = vrot.slane %v8345, 4
      %v8348 = vor.u32 %v8347, %v8343
      %v8349 = vrot.slane %v8348, 4
      %v8351 = vshll.u32 %v8048, 16
      %v8353 = vrot.slane %v8351, 5
      %v8354 = vsel %vm985, %v8349, %v8353
      %v8356 = vshrl.u32 %v8049, 16
      %v8358 = vrot.slane %v8356, 4
      %v8359 = vshll.u32 %v8049, 16
      %v8361 = vrot.slane %v8359, 5
      %v8362 = vor.u32 %v8358, %v8361
      %v8363 = vrot.slane %v8362, 4
      %v8365 = vshll.u32 %v8050, 16
      %v8367 = vrot.slane %v8365, 5
      %v8368 = vsel %vm985, %v8363, %v8367
      %v8369 = vshrl.u32 %v8050, 16
      %v8371 = vrot.slane %v8369, 4
      %v8372 = vor.u32 %v8371, %v8367
      %v8373 = vrot.slane %v8372, 4
      %v8375 = vshll.u32 %v8051, 16
      %v8377 = vrot.slane %v8375, 5
      %v8378 = vsel %vm985, %v8373, %v8377
      %v8380 = vshrl.u32 %v8052, 16
      %v8382 = vrot.slane %v8380, 4
      %v8383 = vshll.u32 %v8052, 16
      %v8385 = vrot.slane %v8383, 5
      %v8386 = vor.u32 %v8382, %v8385
      %v8387 = vrot.slane %v8386, 4
      %v8389 = vshll.u32 %v8053, 16
      %v8391 = vrot.slane %v8389, 5
      %v8392 = vsel %vm985, %v8387, %v8391
      %v8393 = vshrl.u32 %v8053, 16
      %v8395 = vrot.slane %v8393, 4
      %v8396 = vor.u32 %v8395, %v8391
      %v8397 = vrot.slane %v8396, 4
      %v8399 = vshll.u32 %v8054, 16
      %v8401 = vrot.slane %v8399, 5
      %v8402 = vsel %vm985, %v8397, %v8401
      %v8404 = vshrl.u32 %v8055, 16
      %v8406 = vrot.slane %v8404, 4
      %v8407 = vshll.u32 %v8055, 16
      %v8409 = vrot.slane %v8407, 5
      %v8410 = vor.u32 %v8406, %v8409
      %v8411 = vrot.slane %v8410, 4
      %v8413 = vshll.u32 %v8056, 16
      %v8415 = vrot.slane %v8413, 5
      %v8416 = vsel %vm985, %v8411, %v8415
      %v8417 = vshrl.u32 %v8056, 16
      %v8419 = vrot.slane %v8417, 4
      %v8420 = vor.u32 %v8419, %v8415
      %v8421 = vrot.slane %v8420, 4
      %v8423 = vshll.u32 %v8057, 16
      %v8425 = vrot.slane %v8423, 5
      %v8426 = vsel %vm985, %v8421, %v8425
      %v8428 = vshrl.u32 %v8058, 16
      %v8430 = vrot.slane %v8428, 4
      %v8431 = vshll.u32 %v8058, 16
      %v8433 = vrot.slane %v8431, 5
      %v8434 = vor.u32 %v8430, %v8433
      %v8435 = vrot.slane %v8434, 4
      %v8437 = vshll.u32 %v8059, 16
      %v8439 = vrot.slane %v8437, 5
      %v8440 = vsel %vm985, %v8435, %v8439
      %v8441 = vshrl.u32 %v8059, 16
      %v8443 = vrot.slane %v8441, 4
      %v8444 = vor.u32 %v8443, %v8439
      %v8445 = vrot.slane %v8444, 4
      %v8447 = vshll.u32 %v8060, 16
      %v8449 = vrot.slane %v8447, 5
      %v8450 = vsel %vm985, %v8445, %v8449
      %v8452 = vshrl.u32 %v8061, 16
      %v8454 = vrot.slane %v8452, 4
      %v8455 = vshll.u32 %v8061, 16
      %v8457 = vrot.slane %v8455, 5
      %v8458 = vor.u32 %v8454, %v8457
      %v8459 = vrot.slane %v8458, 4
      %v8461 = vshll.u32 %v8062, 16
      %v8463 = vrot.slane %v8461, 5
      %v8464 = vsel %vm985, %v8459, %v8463
      %v8465 = vshrl.u32 %v8062, 16
      %v8467 = vrot.slane %v8465, 4
      %v8468 = vor.u32 %v8467, %v8463
      %v8469 = vrot.slane %v8468, 4
      %v8471 = vshll.u32 %v8063, 16
      %v8473 = vrot.slane %v8471, 5
      %v8474 = vsel %vm985, %v8469, %v8473
      %v8476 = vshrl.u32 %v8064, 16
      %v8478 = vrot.slane %v8476, 4
      %v8479 = vshll.u32 %v8064, 16
      %v8481 = vrot.slane %v8479, 5
      %v8482 = vor.u32 %v8478, %v8481
      %v8483 = vrot.slane %v8482, 4
      %v8485 = vshll.u32 %v8065, 16
      %v8487 = vrot.slane %v8485, 5
      %v8488 = vsel %vm985, %v8483, %v8487
      %v8489 = vshrl.u32 %v8065, 16
      %v8491 = vrot.slane %v8489, 4
      %v8492 = vor.u32 %v8491, %v8487
      %v8493 = vrot.slane %v8492, 4
      %v8495 = vshll.u32 %v8066, 16
      %v8497 = vrot.slane %v8495, 5
      %v8498 = vsel %vm985, %v8493, %v8497
      %8535 = vst [vmem:[#allocation3 + $0x4] sm:$0xf] %v8080
      %8536 = vst [vmem:[#allocation3 + $0x10] sm:$0xf] %v8090
      %8537 = vst [vmem:[#allocation3 + $0x1c] sm:$0xf] %v8104
      %8538 = vst [vmem:[#allocation3 + $0x28] sm:$0xf] %v8114
      %8539 = vst [vmem:[#allocation3 + $0x34] sm:$0xf] %v8128
      %8540 = vst [vmem:[#allocation3 + $0x40] sm:$0xf] %v8138
      %8541 = vst [vmem:[#allocation3 + $0x4c] sm:$0xf] %v8152
      %8542 = vst [vmem:[#allocation3 + $0x58] sm:$0xf] %v8162
      %8543 = vst [vmem:[#allocation3 + $0x64] sm:$0xf] %v8176
      %8544 = vst [vmem:[#allocation3 + $0x70] sm:$0xf] %v8186
      %8545 = vst [vmem:[#allocation3 + $0x7c] sm:$0xf] %v8200
      %8546 = vst [vmem:[#allocation3 + $0x88] sm:$0xf] %v8210
      %8547 = vst [vmem:[#allocation3 + $0x94] sm:$0xf] %v8224
      %8548 = vst [vmem:[#allocation3 + $0xa0] sm:$0xf] %v8234
      %8549 = vst [vmem:[#allocation3 + $0xac] sm:$0xf] %v8248
      %8550 = vst [vmem:[#allocation3 + $0xb8] sm:$0xf] %v8258
      %8551 = vst [vmem:[#allocation3 + $0xc4] sm:$0xf] %v8272
      %8552 = vst [vmem:[#allocation3 + $0xd0] sm:$0xf] %v8282
      %8553 = vst [vmem:[#allocation3 + $0xdc] sm:$0xf] %v8296
      %8554 = vst [vmem:[#allocation3 + $0xe8] sm:$0xf] %v8306
      %8555 = vst [vmem:[#allocation3 + $0xf4] sm:$0xf] %v8320
      %8556 = vst [vmem:[#allocation3 + $0x100] sm:$0xf] %v8330
      %8557 = vst [vmem:[#allocation3 + $0x10c] sm:$0xf] %v8344
      %8558 = vst [vmem:[#allocation3 + $0x118] sm:$0xf] %v8354
      %8559 = vst [vmem:[#allocation3 + $0x124] sm:$0xf] %v8368
      %8560 = vst [vmem:[#allocation3 + $0x130] sm:$0xf] %v8378
      %8561 = vst [vmem:[#allocation3 + $0x13c] sm:$0xf] %v8392
      %8562 = vst [vmem:[#allocation3 + $0x148] sm:$0xf] %v8402
      %8563 = vst [vmem:[#allocation3 + $0x154] sm:$0xf] %v8416
      %8564 = vst [vmem:[#allocation3 + $0x160] sm:$0xf] %v8426
      %8565 = vst [vmem:[#allocation3 + $0x16c] sm:$0xf] %v8440
      %8566 = vst [vmem:[#allocation3 + $0x178] sm:$0xf] %v8450
      %8567 = vst [vmem:[#allocation3 + $0x184] sm:$0xf] %v8464
      %8568 = vst [vmem:[#allocation3 + $0x190] sm:$0xf] %v8474
      %8569 = vst [vmem:[#allocation3 + $0x19c] sm:$0xf] %v8488
      %8570 = vst [vmem:[#allocation3 + $0x1a8] sm:$0xf] %v8498
      %v8571 = vld [vmem:[#allocation2] sm:$0xe]
      %v8572 = vld [vmem:[#allocation2 + $0x4] sm:$0xf]
      %v8573 = vld [vmem:[#allocation2 + $0x8] sm:$0x1]
      %v8574 = vld [vmem:[#allocation2 + $0xc] sm:$0xe]
      %v8575 = vld [vmem:[#allocation2 + $0x10] sm:$0xf]
      %v8576 = vld [vmem:[#allocation2 + $0x14] sm:$0x1]
      %v8577 = vld [vmem:[#allocation2 + $0x18] sm:$0xe]
      %v8578 = vld [vmem:[#allocation2 + $0x1c] sm:$0xf]
      %v8579 = vld [vmem:[#allocation2 + $0x20] sm:$0x1]
      %v8580 = vld [vmem:[#allocation2 + $0x24] sm:$0xe]
      %v8581 = vld [vmem:[#allocation2 + $0x28] sm:$0xf]
      %v8582 = vld [vmem:[#allocation2 + $0x2c] sm:$0x1]
      %v8583 = vld [vmem:[#allocation2 + $0x30] sm:$0xe]
      %v8584 = vld [vmem:[#allocation2 + $0x34] sm:$0xf]
      %v8585 = vld [vmem:[#allocation2 + $0x38] sm:$0x1]
      %v8586 = vld [vmem:[#allocation2 + $0x3c] sm:$0xe]
      %v8587 = vld [vmem:[#allocation2 + $0x40] sm:$0xf]
      %v8588 = vld [vmem:[#allocation2 + $0x44] sm:$0x1]
      %v8589 = vld [vmem:[#allocation2 + $0x48] sm:$0xe]
      %v8590 = vld [vmem:[#allocation2 + $0x4c] sm:$0xf]
      %v8591 = vld [vmem:[#allocation2 + $0x50] sm:$0x1]
      %v8592 = vld [vmem:[#allocation2 + $0x54] sm:$0xe]
      %v8593 = vld [vmem:[#allocation2 + $0x58] sm:$0xf]
      %v8594 = vld [vmem:[#allocation2 + $0x5c] sm:$0x1]
      %v8595 = vld [vmem:[#allocation2 + $0x60] sm:$0xe]
      %v8596 = vld [vmem:[#allocation2 + $0x64] sm:$0xf]
      %v8597 = vld [vmem:[#allocation2 + $0x68] sm:$0x1]
      %v8598 = vld [vmem:[#allocation2 + $0x6c] sm:$0xe]
      %v8599 = vld [vmem:[#allocation2 + $0x70] sm:$0xf]
      %v8600 = vld [vmem:[#allocation2 + $0x74] sm:$0x1]
      %v8601 = vld [vmem:[#allocation2 + $0x78] sm:$0xe]
      %v8602 = vld [vmem:[#allocation2 + $0x7c] sm:$0xf]
      %v8603 = vld [vmem:[#allocation2 + $0x80] sm:$0x1]
      %v8604 = vld [vmem:[#allocation2 + $0x84] sm:$0xe]
      %v8605 = vld [vmem:[#allocation2 + $0x88] sm:$0xf]
      %v8606 = vld [vmem:[#allocation2 + $0x8c] sm:$0x1]
      %v8607 = vld [vmem:[#allocation2 + $0x90] sm:$0xe]
      %v8608 = vld [vmem:[#allocation2 + $0x94] sm:$0xf]
      %v8609 = vld [vmem:[#allocation2 + $0x98] sm:$0x1]
      %v8610 = vld [vmem:[#allocation2 + $0x9c] sm:$0xe]
      %v8611 = vld [vmem:[#allocation2 + $0xa0] sm:$0xf]
      %v8612 = vld [vmem:[#allocation2 + $0xa4] sm:$0x1]
      %v8613 = vld [vmem:[#allocation2 + $0xa8] sm:$0xe]
      %v8614 = vld [vmem:[#allocation2 + $0xac] sm:$0xf]
      %v8615 = vld [vmem:[#allocation2 + $0xb0] sm:$0x1]
      %v8616 = vld [vmem:[#allocation2 + $0xb4] sm:$0xe]
      %v8617 = vld [vmem:[#allocation2 + $0xb8] sm:$0xf]
      %v8618 = vld [vmem:[#allocation2 + $0xbc] sm:$0x1]
      %v8619 = vld [vmem:[#allocation2 + $0xc0] sm:$0xe]
      %v8620 = vld [vmem:[#allocation2 + $0xc4] sm:$0xf]
      %v8621 = vld [vmem:[#allocation2 + $0xc8] sm:$0x1]
      %v8622 = vld [vmem:[#allocation2 + $0xcc] sm:$0xe]
      %v8623 = vld [vmem:[#allocation2 + $0xd0] sm:$0xf]
      %v8624 = vld [vmem:[#allocation2 + $0xd4] sm:$0x1]
      %v8679 = vrot.slane %v8571, 5
      %v8680 = vrot.slane %v8679, 4
      %v8681 = vrot.slane %v8572, 5
      %v8682 = vsel %vm1600, %v8680, %v8681
      %v8683 = vrot.slane %v8681, 4
      %v8684 = vrot.slane %v8573, 5
      %v8685 = vsel %vm1600, %v8683, %v8684
      %v8686 = vrot.slane %v8574, 5
      %v8687 = vrot.slane %v8686, 4
      %v8688 = vrot.slane %v8575, 5
      %v8689 = vsel %vm1600, %v8687, %v8688
      %v8690 = vrot.slane %v8688, 4
      %v8691 = vrot.slane %v8576, 5
      %v8692 = vsel %vm1600, %v8690, %v8691
      %v8693 = vrot.slane %v8577, 5
      %v8694 = vrot.slane %v8693, 4
      %v8695 = vrot.slane %v8578, 5
      %v8696 = vsel %vm1600, %v8694, %v8695
      %v8697 = vrot.slane %v8695, 4
      %v8698 = vrot.slane %v8579, 5
      %v8699 = vsel %vm1600, %v8697, %v8698
      %v8700 = vrot.slane %v8580, 5
      %v8701 = vrot.slane %v8700, 4
      %v8702 = vrot.slane %v8581, 5
      %v8703 = vsel %vm1600, %v8701, %v8702
      %v8704 = vrot.slane %v8702, 4
      %v8705 = vrot.slane %v8582, 5
      %v8706 = vsel %vm1600, %v8704, %v8705
      %v8707 = vrot.slane %v8583, 5
      %v8708 = vrot.slane %v8707, 4
      %v8709 = vrot.slane %v8584, 5
      %v8710 = vsel %vm1600, %v8708, %v8709
      %v8711 = vrot.slane %v8709, 4
      %v8712 = vrot.slane %v8585, 5
      %v8713 = vsel %vm1600, %v8711, %v8712
      %v8714 = vrot.slane %v8586, 5
      %v8715 = vrot.slane %v8714, 4
      %v8716 = vrot.slane %v8587, 5
      %v8717 = vsel %vm1600, %v8715, %v8716
      %v8718 = vrot.slane %v8716, 4
      %v8719 = vrot.slane %v8588, 5
      %v8720 = vsel %vm1600, %v8718, %v8719
      %v8721 = vrot.slane %v8589, 5
      %v8722 = vrot.slane %v8721, 4
      %v8723 = vrot.slane %v8590, 5
      %v8724 = vsel %vm1600, %v8722, %v8723
      %v8725 = vrot.slane %v8723, 4
      %v8726 = vrot.slane %v8591, 5
      %v8727 = vsel %vm1600, %v8725, %v8726
      %v8728 = vrot.slane %v8592, 5
      %v8729 = vrot.slane %v8728, 4
      %v8730 = vrot.slane %v8593, 5
      %v8731 = vsel %vm1600, %v8729, %v8730
      %v8732 = vrot.slane %v8730, 4
      %v8733 = vrot.slane %v8594, 5
      %v8734 = vsel %vm1600, %v8732, %v8733
      %v8735 = vrot.slane %v8595, 5
      %v8736 = vrot.slane %v8735, 4
      %v8737 = vrot.slane %v8596, 5
      %v8738 = vsel %vm1600, %v8736, %v8737
      %v8739 = vrot.slane %v8737, 4
      %v8740 = vrot.slane %v8597, 5
      %v8741 = vsel %vm1600, %v8739, %v8740
      %v8742 = vrot.slane %v8598, 5
      %v8743 = vrot.slane %v8742, 4
      %v8744 = vrot.slane %v8599, 5
      %v8745 = vsel %vm1600, %v8743, %v8744
      %v8746 = vrot.slane %v8744, 4
      %v8747 = vrot.slane %v8600, 5
      %v8748 = vsel %vm1600, %v8746, %v8747
      %v8749 = vrot.slane %v8601, 5
      %v8750 = vrot.slane %v8749, 4
      %v8751 = vrot.slane %v8602, 5
      %v8752 = vsel %vm1600, %v8750, %v8751
      %v8753 = vrot.slane %v8751, 4
      %v8754 = vrot.slane %v8603, 5
      %v8755 = vsel %vm1600, %v8753, %v8754
      %v8756 = vrot.slane %v8604, 5
      %v8757 = vrot.slane %v8756, 4
      %v8758 = vrot.slane %v8605, 5
      %v8759 = vsel %vm1600, %v8757, %v8758
      %v8760 = vrot.slane %v8758, 4
      %v8761 = vrot.slane %v8606, 5
      %v8762 = vsel %vm1600, %v8760, %v8761
      %v8763 = vrot.slane %v8607, 5
      %v8764 = vrot.slane %v8763, 4
      %v8765 = vrot.slane %v8608, 5
      %v8766 = vsel %vm1600, %v8764, %v8765
      %v8767 = vrot.slane %v8765, 4
      %v8768 = vrot.slane %v8609, 5
      %v8769 = vsel %vm1600, %v8767, %v8768
      %v8770 = vrot.slane %v8610, 5
      %v8771 = vrot.slane %v8770, 4
      %v8772 = vrot.slane %v8611, 5
      %v8773 = vsel %vm1600, %v8771, %v8772
      %v8774 = vrot.slane %v8772, 4
      %v8775 = vrot.slane %v8612, 5
      %v8776 = vsel %vm1600, %v8774, %v8775
      %v8777 = vrot.slane %v8613, 5
      %v8778 = vrot.slane %v8777, 4
      %v8779 = vrot.slane %v8614, 5
      %v8780 = vsel %vm1600, %v8778, %v8779
      %v8781 = vrot.slane %v8779, 4
      %v8782 = vrot.slane %v8615, 5
      %v8783 = vsel %vm1600, %v8781, %v8782
      %v8784 = vrot.slane %v8616, 5
      %v8785 = vrot.slane %v8784, 4
      %v8786 = vrot.slane %v8617, 5
      %v8787 = vsel %vm1600, %v8785, %v8786
      %v8788 = vrot.slane %v8786, 4
      %v8789 = vrot.slane %v8618, 5
      %v8790 = vsel %vm1600, %v8788, %v8789
      %v8791 = vrot.slane %v8619, 5
      %v8792 = vrot.slane %v8791, 4
      %v8793 = vrot.slane %v8620, 5
      %v8794 = vsel %vm1600, %v8792, %v8793
      %v8795 = vrot.slane %v8793, 4
      %v8796 = vrot.slane %v8621, 5
      %v8797 = vsel %vm1600, %v8795, %v8796
      %v8798 = vrot.slane %v8622, 5
      %v8799 = vrot.slane %v8798, 4
      %v8800 = vrot.slane %v8623, 5
      %v8801 = vsel %vm1600, %v8799, %v8800
      %v8802 = vrot.slane %v8800, 4
      %v8803 = vrot.slane %v8624, 5
      %v8804 = vsel %vm1600, %v8802, %v8803
      %8841 = vst [vmem:[#allocation3 + $0x8] sm:$0xf] %v8682
      %8842 = vst [vmem:[#allocation3 + $0x14] sm:$0xf] %v8685
      %8843 = vst [vmem:[#allocation3 + $0x20] sm:$0xf] %v8689
      %8844 = vst [vmem:[#allocation3 + $0x2c] sm:$0xf] %v8692
      %8845 = vst [vmem:[#allocation3 + $0x38] sm:$0xf] %v8696
      %8846 = vst [vmem:[#allocation3 + $0x44] sm:$0xf] %v8699
      %8847 = vst [vmem:[#allocation3 + $0x50] sm:$0xf] %v8703
      %8848 = vst [vmem:[#allocation3 + $0x5c] sm:$0xf] %v8706
      %8849 = vst [vmem:[#allocation3 + $0x68] sm:$0xf] %v8710
      %8850 = vst [vmem:[#allocation3 + $0x74] sm:$0xf] %v8713
      %8851 = vst [vmem:[#allocation3 + $0x80] sm:$0xf] %v8717
      %8852 = vst [vmem:[#allocation3 + $0x8c] sm:$0xf] %v8720
      %8853 = vst [vmem:[#allocation3 + $0x98] sm:$0xf] %v8724
      %8854 = vst [vmem:[#allocation3 + $0xa4] sm:$0xf] %v8727
      %8855 = vst [vmem:[#allocation3 + $0xb0] sm:$0xf] %v8731
      %8856 = vst [vmem:[#allocation3 + $0xbc] sm:$0xf] %v8734
      %8857 = vst [vmem:[#allocation3 + $0xc8] sm:$0xf] %v8738
      %8858 = vst [vmem:[#allocation3 + $0xd4] sm:$0xf] %v8741
      %8859 = vst [vmem:[#allocation3 + $0xe0] sm:$0xf] %v8745
      %8860 = vst [vmem:[#allocation3 + $0xec] sm:$0xf] %v8748
      %8861 = vst [vmem:[#allocation3 + $0xf8] sm:$0xf] %v8752
      %8862 = vst [vmem:[#allocation3 + $0x104] sm:$0xf] %v8755
      %8863 = vst [vmem:[#allocation3 + $0x110] sm:$0xf] %v8759
      %8864 = vst [vmem:[#allocation3 + $0x11c] sm:$0xf] %v8762
      %8865 = vst [vmem:[#allocation3 + $0x128] sm:$0xf] %v8766
      %8866 = vst [vmem:[#allocation3 + $0x134] sm:$0xf] %v8769
      %8867 = vst [vmem:[#allocation3 + $0x140] sm:$0xf] %v8773
      %8868 = vst [vmem:[#allocation3 + $0x14c] sm:$0xf] %v8776
      %8869 = vst [vmem:[#allocation3 + $0x158] sm:$0xf] %v8780
      %8870 = vst [vmem:[#allocation3 + $0x164] sm:$0xf] %v8783
      %8871 = vst [vmem:[#allocation3 + $0x170] sm:$0xf] %v8787
      %8872 = vst [vmem:[#allocation3 + $0x17c] sm:$0xf] %v8790
      %8873 = vst [vmem:[#allocation3 + $0x188] sm:$0xf] %v8794
      %8874 = vst [vmem:[#allocation3 + $0x194] sm:$0xf] %v8797
      %8875 = vst [vmem:[#allocation3 + $0x1a0] sm:$0xf] %v8801
      %8876 = vst [vmem:[#allocation3 + $0x1ac] sm:$0xf] %v8804
      %v8877 = vld [vmem:[#allocation3] sm:$0xff]
      %v8878 = vld [vmem:[#allocation3 + $0x8] sm:$0xf]
      %v8879 = vld [vmem:[#allocation3 + $0xc] sm:$0xff]
      %v8880 = vld [vmem:[#allocation3 + $0x14] sm:$0xf]
      %v8881 = vld [vmem:[#allocation3 + $0x18] sm:$0xff]
      %v8882 = vld [vmem:[#allocation3 + $0x20] sm:$0xf]
      %v8883 = vld [vmem:[#allocation3 + $0x24] sm:$0xff]
      %v8884 = vld [vmem:[#allocation3 + $0x2c] sm:$0xf]
      %v8885 = vld [vmem:[#allocation3 + $0x30] sm:$0xff]
      %v8886 = vld [vmem:[#allocation3 + $0x38] sm:$0xf]
      %v8887 = vld [vmem:[#allocation3 + $0x3c] sm:$0xff]
      %v8888 = vld [vmem:[#allocation3 + $0x44] sm:$0xf]
      %v8889 = vld [vmem:[#allocation3 + $0x48] sm:$0xff]
      %v8890 = vld [vmem:[#allocation3 + $0x50] sm:$0xf]
      %v8891 = vld [vmem:[#allocation3 + $0x54] sm:$0xff]
      %v8892 = vld [vmem:[#allocation3 + $0x5c] sm:$0xf]
      %v8893 = vld [vmem:[#allocation3 + $0x60] sm:$0xff]
      %v8894 = vld [vmem:[#allocation3 + $0x68] sm:$0xf]
      %v8895 = vld [vmem:[#allocation3 + $0x6c] sm:$0xff]
      %v8896 = vld [vmem:[#allocation3 + $0x74] sm:$0xf]
      %v8897 = vld [vmem:[#allocation3 + $0x78] sm:$0xff]
      %v8898 = vld [vmem:[#allocation3 + $0x80] sm:$0xf]
      %v8899 = vld [vmem:[#allocation3 + $0x84] sm:$0xff]
      %v8900 = vld [vmem:[#allocation3 + $0x8c] sm:$0xf]
      %v8901 = vld [vmem:[#allocation3 + $0x90] sm:$0xff]
      %v8902 = vld [vmem:[#allocation3 + $0x98] sm:$0xf]
      %v8903 = vld [vmem:[#allocation3 + $0x9c] sm:$0xff]
      %v8904 = vld [vmem:[#allocation3 + $0xa4] sm:$0xf]
      %v8905 = vld [vmem:[#allocation3 + $0xa8] sm:$0xff]
      %v8906 = vld [vmem:[#allocation3 + $0xb0] sm:$0xf]
      %v8907 = vld [vmem:[#allocation3 + $0xb4] sm:$0xff]
      %v8908 = vld [vmem:[#allocation3 + $0xbc] sm:$0xf]
      %v8909 = vld [vmem:[#allocation3 + $0xc0] sm:$0xff]
      %v8910 = vld [vmem:[#allocation3 + $0xc8] sm:$0xf]
      %v8911 = vld [vmem:[#allocation3 + $0xcc] sm:$0xff]
      %v8912 = vld [vmem:[#allocation3 + $0xd4] sm:$0xf]
      %v8913 = vld [vmem:[#allocation3 + $0xd8] sm:$0xff]
      %v8914 = vld [vmem:[#allocation3 + $0xe0] sm:$0xf]
      %v8915 = vld [vmem:[#allocation3 + $0xe4] sm:$0xff]
      %v8916 = vld [vmem:[#allocation3 + $0xec] sm:$0xf]
      %v8917 = vld [vmem:[#allocation3 + $0xf0] sm:$0xff]
      %v8918 = vld [vmem:[#allocation3 + $0xf8] sm:$0xf]
      %v8919 = vld [vmem:[#allocation3 + $0xfc] sm:$0xff]
      %v8920 = vld [vmem:[#allocation3 + $0x104] sm:$0xf]
      %v8921 = vld [vmem:[#allocation3 + $0x108] sm:$0xff]
      %v8922 = vld [vmem:[#allocation3 + $0x110] sm:$0xf]
      %v8923 = vld [vmem:[#allocation3 + $0x114] sm:$0xff]
      %v8924 = vld [vmem:[#allocation3 + $0x11c] sm:$0xf]
      %v8925 = vld [vmem:[#allocation3 + $0x120] sm:$0xff]
      %v8926 = vld [vmem:[#allocation3 + $0x128] sm:$0xf]
      %v8927 = vld [vmem:[#allocation3 + $0x12c] sm:$0xff]
      %v8928 = vld [vmem:[#allocation3 + $0x134] sm:$0xf]
      %v8929 = vld [vmem:[#allocation3 + $0x138] sm:$0xff]
      %v8930 = vld [vmem:[#allocation3 + $0x140] sm:$0xf]
      %v8931 = vld [vmem:[#allocation3 + $0x144] sm:$0xff]
      %v8932 = vld [vmem:[#allocation3 + $0x14c] sm:$0xf]
      %v8933 = vld [vmem:[#allocation3 + $0x150] sm:$0xff]
      %v8934 = vld [vmem:[#allocation3 + $0x158] sm:$0xf]
      %v8935 = vld [vmem:[#allocation3 + $0x15c] sm:$0xff]
      %v8936 = vld [vmem:[#allocation3 + $0x164] sm:$0xf]
      %v8937 = vld [vmem:[#allocation3 + $0x168] sm:$0xff]
      %v8938 = vld [vmem:[#allocation3 + $0x170] sm:$0xf]
      %v8939 = vld [vmem:[#allocation3 + $0x174] sm:$0xff]
      %v8940 = vld [vmem:[#allocation3 + $0x17c] sm:$0xf]
      %v8941 = vld [vmem:[%s3] sm:$0xf]
      %v8942 = vld [vmem:[%s3 + $0x4] sm:$0xf]
      %v8943 = vld [vmem:[%s3 + $0x8] sm:$0xf]
      %v8944 = vld [vmem:[%s3 + $0xc] sm:$0xf]
      %v8945 = vld [vmem:[%s3 + $0x10] sm:$0xf]
      %v8946 = vld [vmem:[%s3 + $0x14] sm:$0xf]
      %v8947 = vld [vmem:[%s3 + $0x18] sm:$0xf]
      %v8948 = vld [vmem:[%s3 + $0x1c] sm:$0xf]
      %v8949 = vld [vmem:[%s3 + $0x20] sm:$0xf]
      %v8950 = vld [vmem:[%s3 + $0x24] sm:$0xf]
      %v8951 = vld [vmem:[%s3 + $0x28] sm:$0xf]
      %v8952 = vld [vmem:[%s3 + $0x2c] sm:$0xf]
      %v8953 = vld [vmem:[%s3 + $0x30] sm:$0xf]
      %v8954 = vld [vmem:[%s3 + $0x34] sm:$0xf]
      %v8955 = vld [vmem:[%s3 + $0x38] sm:$0xf]
      %v8956 = vld [vmem:[%s3 + $0x3c] sm:$0xf]
      %v8957 = vld [vmem:[%s3 + $0x40] sm:$0xf]
      %v8958 = vld [vmem:[%s3 + $0x44] sm:$0xf]
      %v8959 = vld [vmem:[%s3 + $0x48] sm:$0xf]
      %v8960 = vld [vmem:[%s3 + $0x4c] sm:$0xf]
      %v8961 = vld [vmem:[%s3 + $0x50] sm:$0xf]
      %v8962 = vld [vmem:[%s3 + $0x54] sm:$0xf]
      %v8963 = vld [vmem:[%s3 + $0x58] sm:$0xf]
      %v8964 = vld [vmem:[%s3 + $0x5c] sm:$0xf]
      %v8965 = vld [vmem:[%s3 + $0x60] sm:$0xf]
      %v8966 = vld [vmem:[%s3 + $0x64] sm:$0xf]
      %v8967 = vld [vmem:[%s3 + $0x68] sm:$0xf]
      %v8968 = vld [vmem:[%s3 + $0x6c] sm:$0xf]
      %v8969 = vld [vmem:[%s3 + $0x70] sm:$0xf]
      %v8970 = vld [vmem:[%s3 + $0x74] sm:$0xf]
      %v8971 = vld [vmem:[%s3 + $0x78] sm:$0xf]
      %v8972 = vld [vmem:[%s3 + $0x7c] sm:$0xf]
      %v8973 = vld [vmem:[%s3 + $0x80] sm:$0xf]
      %v8974 = vld [vmem:[%s3 + $0x84] sm:$0xf]
      %v8975 = vld [vmem:[%s3 + $0x88] sm:$0xf]
      %v8976 = vld [vmem:[%s3 + $0x8c] sm:$0xf]
      %v8977 = vld [vmem:[%s3 + $0x90] sm:$0xf]
      %v8978 = vld [vmem:[%s3 + $0x94] sm:$0xf]
      %v8979 = vld [vmem:[%s3 + $0x98] sm:$0xf]
      %v8980 = vld [vmem:[%s3 + $0x9c] sm:$0xf]
      %v8981 = vld [vmem:[%s3 + $0xa0] sm:$0xf]
      %v8982 = vld [vmem:[%s3 + $0xa4] sm:$0xf]
      %v8983 = vld [vmem:[%s3 + $0xa8] sm:$0xf]
      %v8984 = vld [vmem:[%s3 + $0xac] sm:$0xf]
      %v8985 = vld [vmem:[%s3 + $0xb0] sm:$0xf]
      %v8986 = vld [vmem:[%s3 + $0xb4] sm:$0xf]
      %v8987 = vld [vmem:[%s3 + $0xb8] sm:$0xf]
      %v8988 = vld [vmem:[%s3 + $0xbc] sm:$0xf]
      %v8989 = vld [vmem:[#allocation3 + $0x180] sm:$0xff]
      %v8990 = vld [vmem:[#allocation3 + $0x188] sm:$0xf]
      %v8991 = vld [vmem:[#allocation3 + $0x18c] sm:$0xff]
      %v8992 = vld [vmem:[#allocation3 + $0x194] sm:$0xf]
      %s8993 = scalar_lea.vmem %s3, 192
      %v8994 = vld [vmem:[%s8993] sm:$0xf]
      %v8995 = vld [vmem:[%s8993 + $0x4] sm:$0xf]
      %v8996 = vld [vmem:[%s8993 + $0x8] sm:$0xf]
      %v8997 = vld [vmem:[%s8993 + $0xc] sm:$0xf]
      %v8998 = vld [vmem:[%s8993 + $0x10] sm:$0xf]
      %v8999 = vld [vmem:[%s8993 + $0x14] sm:$0xf]
      %v9000 = vld [vmem:[%s8993 + $0x18] sm:$0xf]
      %v9001 = vld [vmem:[%s8993 + $0x1c] sm:$0xf]
      %v9002 = vld [vmem:[%s8993 + $0x20] sm:$0xf]
      %v9003 = vld [vmem:[%s8993 + $0x24] sm:$0xf]
      %v9004 = vld [vmem:[%s8993 + $0x28] sm:$0xf]
      %v9005 = vld [vmem:[%s8993 + $0x2c] sm:$0xf]
      %v9006 = vld [vmem:[%s8993 + $0x30] sm:$0xf]
      %v9007 = vld [vmem:[%s8993 + $0x34] sm:$0xf]
      %v9008 = vld [vmem:[%s8993 + $0x38] sm:$0xf]
      %v9009 = vld [vmem:[%s8993 + $0x3c] sm:$0xf]
      %v9010 = vld [vmem:[%s8993 + $0x40] sm:$0xf]
      %v9011 = vld [vmem:[%s8993 + $0x44] sm:$0xf]
      %v9012 = vld [vmem:[%s8993 + $0x48] sm:$0xf]
      %v9013 = vld [vmem:[%s8993 + $0x4c] sm:$0xf]
      %v9014 = vld [vmem:[%s8993 + $0x50] sm:$0xf]
      %v9015 = vld [vmem:[%s8993 + $0x54] sm:$0xf]
      %v9016 = vld [vmem:[%s8993 + $0x58] sm:$0xf]
      %v9017 = vld [vmem:[%s8993 + $0x5c] sm:$0xf]
      %v9018 = vld [vmem:[%s8993 + $0x60] sm:$0xf]
      %v9019 = vld [vmem:[%s8993 + $0x64] sm:$0xf]
      %v9020 = vld [vmem:[%s8993 + $0x68] sm:$0xf]
      %v9021 = vld [vmem:[%s8993 + $0x6c] sm:$0xf]
      %v9022 = vld [vmem:[%s8993 + $0x70] sm:$0xf]
      %v9023 = vld [vmem:[%s8993 + $0x74] sm:$0xf]
      %v9024 = vld [vmem:[%s8993 + $0x78] sm:$0xf]
      %v9025 = vld [vmem:[%s8993 + $0x7c] sm:$0xf]
      %v9026 = vld [vmem:[%s8993 + $0x80] sm:$0xf]
      %v9027 = vld [vmem:[%s8993 + $0x84] sm:$0xf]
      %v9028 = vld [vmem:[%s8993 + $0x88] sm:$0xf]
      %v9029 = vld [vmem:[%s8993 + $0x8c] sm:$0xf]
      %v9030 = vld [vmem:[%s8993 + $0x90] sm:$0xf]
      %v9031 = vld [vmem:[%s8993 + $0x94] sm:$0xf]
      %v9032 = vld [vmem:[%s8993 + $0x98] sm:$0xf]
      %v9033 = vld [vmem:[%s8993 + $0x9c] sm:$0xf]
      %v9034 = vld [vmem:[%s8993 + $0xa0] sm:$0xf]
      %v9035 = vld [vmem:[%s8993 + $0xa4] sm:$0xf]
      %v9036 = vld [vmem:[%s8993 + $0xa8] sm:$0xf]
      %v9037 = vld [vmem:[%s8993 + $0xac] sm:$0xf]
      %v9038 = vld [vmem:[%s8993 + $0xb0] sm:$0xf]
      %v9039 = vld [vmem:[%s8993 + $0xb4] sm:$0xf]
      %v9040 = vld [vmem:[%s8993 + $0xb8] sm:$0xf]
      %v9041 = vld [vmem:[%s8993 + $0xbc] sm:$0xf]
      %v9106 = vunpack.c.l.b16 %v8881
      %v9107 = vunpack.c.h.b16 %v8881
      %v9108 = vunpack.c.l.b16 %v8882
      %v9109 = vunpack.c.l.b16 %v8883
      %v9110 = vunpack.c.h.b16 %v8883
      %v9111 = vunpack.c.l.b16 %v8884
      %v9112 = vunpack.c.l.b16 %v8885
      %v9113 = vunpack.c.h.b16 %v8885
      %v9114 = vunpack.c.l.b16 %v8886
      %v9115 = vunpack.c.l.b16 %v8887
      %v9116 = vunpack.c.h.b16 %v8887
      %v9117 = vunpack.c.l.b16 %v8888
      %v9118 = vunpack.c.l.b16 %v8889
      %v9119 = vunpack.c.h.b16 %v8889
      %v9120 = vunpack.c.l.b16 %v8890
      %v9121 = vunpack.c.l.b16 %v8891
      %v9122 = vunpack.c.h.b16 %v8891
      %v9123 = vunpack.c.l.b16 %v8892
      %v9124 = vunpack.c.l.b16 %v8893
      %v9125 = vunpack.c.h.b16 %v8893
      %v9126 = vunpack.c.l.b16 %v8894
      %v9127 = vunpack.c.l.b16 %v8895
      %v9128 = vunpack.c.h.b16 %v8895
      %v9129 = vunpack.c.l.b16 %v8896
      %v9130 = vunpack.c.l.b16 %v8897
      %v9131 = vunpack.c.h.b16 %v8897
      %v9132 = vunpack.c.l.b16 %v8898
      %v9133 = vunpack.c.l.b16 %v8899
      %v9134 = vunpack.c.h.b16 %v8899
      %v9135 = vunpack.c.l.b16 %v8900
      %v9136 = vunpack.c.l.b16 %v8901
      %v9137 = vunpack.c.h.b16 %v8901
      %v9138 = vunpack.c.l.b16 %v8902
      %v9139 = vunpack.c.l.b16 %v8903
      %v9140 = vunpack.c.h.b16 %v8903
      %v9141 = vunpack.c.l.b16 %v8904
      %v9142 = vunpack.c.l.b16 %v8905
      %v9143 = vunpack.c.h.b16 %v8905
      %v9144 = vunpack.c.l.b16 %v8906
      %v9145 = vunpack.c.l.b16 %v8907
      %v9146 = vunpack.c.h.b16 %v8907
      %v9147 = vunpack.c.l.b16 %v8908
      %v9148 = vunpack.c.l.b16 %v8909
      %v9149 = vunpack.c.h.b16 %v8909
      %v9150 = vunpack.c.l.b16 %v8910
      %v9151 = vunpack.c.l.b16 %v8911
      %v9152 = vunpack.c.h.b16 %v8911
      %v9153 = vunpack.c.l.b16 %v8912
      %v9154 = vunpack.c.l.b16 %v8913
      %v9155 = vunpack.c.h.b16 %v8913
      %v9156 = vunpack.c.l.b16 %v8914
      %v9157 = vunpack.c.l.b16 %v8915
      %v9158 = vunpack.c.h.b16 %v8915
      %v9159 = vunpack.c.l.b16 %v8916
      %v9160 = vunpack.c.l.b16 %v8917
      %v9161 = vunpack.c.h.b16 %v8917
      %v9162 = vunpack.c.l.b16 %v8918
      %v9163 = vunpack.c.l.b16 %v8919
      %v9164 = vunpack.c.h.b16 %v8919
      %v9165 = vunpack.c.l.b16 %v8920
      %v9166 = vunpack.c.l.b16 %v8921
      %v9167 = vunpack.c.h.b16 %v8921
      %v9168 = vunpack.c.l.b16 %v8922
      %v9169 = vunpack.c.l.b16 %v8923
      %v9170 = vunpack.c.h.b16 %v8923
      %v9171 = vunpack.c.l.b16 %v8924
      %v9172 = vunpack.c.l.b16 %v8925
      %v9173 = vunpack.c.h.b16 %v8925
      %v9174 = vunpack.c.l.b16 %v8926
      %v9175 = vunpack.c.l.b16 %v8927
      %v9176 = vunpack.c.h.b16 %v8927
      %v9177 = vunpack.c.l.b16 %v8928
      %v9178 = vunpack.c.l.b16 %v8929
      %v9179 = vunpack.c.h.b16 %v8929
      %v9180 = vunpack.c.l.b16 %v8930
      %v9181 = vunpack.c.l.b16 %v8931
      %v9182 = vunpack.c.h.b16 %v8931
      %v9183 = vunpack.c.l.b16 %v8932
      %v9184 = vunpack.c.l.b16 %v8933
      %v9185 = vunpack.c.h.b16 %v8933
      %v9186 = vunpack.c.l.b16 %v8934
      %v9187 = vunpack.c.l.b16 %v8935
      %v9188 = vunpack.c.h.b16 %v8935
      %v9189 = vunpack.c.l.b16 %v8936
      %v9190 = vunpack.c.l.b16 %v8937
      %v9191 = vunpack.c.h.b16 %v8937
      %v9192 = vunpack.c.l.b16 %v8938
      %v9193 = vunpack.c.l.b16 %v8939
      %v9194 = vunpack.c.h.b16 %v8939
      %v9195 = vunpack.c.l.b16 %v8940
      %v9196 = vunpack.c.l.b16 %v8989
      %v9197 = vunpack.c.h.b16 %v8989
      %v9198 = vunpack.c.l.b16 %v8990
      %v9199 = vunpack.c.l.b16 %v8991
      %v9200 = vunpack.c.h.b16 %v8991
      %v9201 = vunpack.c.l.b16 %v8992
      %v9202 = vpack.c.b16 %v9109, %v9106
      %v9203 = vpack.c.b16 %v9110, %v9107
      %v9204 = vpack.c.b16 %v9111, %v9108
      %v9205 = vpack.c.b16 %v9115, %v9112
      %v9206 = vpack.c.b16 %v9116, %v9113
      %v9207 = vpack.c.b16 %v9117, %v9114
      %v9208 = vpack.c.b16 %v9121, %v9118
      %v9209 = vpack.c.b16 %v9122, %v9119
      %v9210 = vpack.c.b16 %v9123, %v9120
      %v9211 = vpack.c.b16 %v9127, %v9124
      %v9212 = vpack.c.b16 %v9128, %v9125
      %v9213 = vpack.c.b16 %v9129, %v9126
      %v9214 = vpack.c.b16 %v9133, %v9130
      %v9215 = vpack.c.b16 %v9134, %v9131
      %v9216 = vpack.c.b16 %v9135, %v9132
      %v9217 = vpack.c.b16 %v9139, %v9136
      %v9218 = vpack.c.b16 %v9140, %v9137
      %v9219 = vpack.c.b16 %v9141, %v9138
      %v9220 = vpack.c.b16 %v9145, %v9142
      %v9221 = vpack.c.b16 %v9146, %v9143
      %v9222 = vpack.c.b16 %v9147, %v9144
      %v9223 = vpack.c.b16 %v9151, %v9148
      %v9224 = vpack.c.b16 %v9152, %v9149
      %v9225 = vpack.c.b16 %v9153, %v9150
      %v9226 = vpack.c.b16 %v9157, %v9154
      %v9227 = vpack.c.b16 %v9158, %v9155
      %v9228 = vpack.c.b16 %v9159, %v9156
      %v9229 = vpack.c.b16 %v9163, %v9160
      %v9230 = vpack.c.b16 %v9164, %v9161
      %v9231 = vpack.c.b16 %v9165, %v9162
      %v9232 = vpack.c.b16 %v9169, %v9166
      %v9233 = vpack.c.b16 %v9170, %v9167
      %v9234 = vpack.c.b16 %v9171, %v9168
      %v9235 = vpack.c.b16 %v9175, %v9172
      %v9236 = vpack.c.b16 %v9176, %v9173
      %v9237 = vpack.c.b16 %v9177, %v9174
      %v9238 = vpack.c.b16 %v9181, %v9178
      %v9239 = vpack.c.b16 %v9182, %v9179
      %v9240 = vpack.c.b16 %v9183, %v9180
      %v9241 = vpack.c.b16 %v9187, %v9184
      %v9242 = vpack.c.b16 %v9188, %v9185
      %v9243 = vpack.c.b16 %v9189, %v9186
      %v9244 = vpack.c.b16 %v9193, %v9190
      %v9245 = vpack.c.b16 %v9194, %v9191
      %v9246 = vpack.c.b16 %v9195, %v9192
      %v9247 = vpack.c.b16 %v9199, %v9196
      %v9248 = vpack.c.b16 %v9200, %v9197
      %v9249 = vpack.c.b16 %v9201, %v9198
      %v9346 = vunpack.c.l.b16 %v8994
      %v9347 = vunpack.c.l.b16 %v8995
      %v9348 = vunpack.c.l.b16 %v8996
      %v9349 = vunpack.c.l.b16 %v8997
      %v9350 = vunpack.c.l.b16 %v8998
      %v9351 = vunpack.c.l.b16 %v8999
      %v9352 = vunpack.c.l.b16 %v9000
      %v9353 = vunpack.c.l.b16 %v9001
      %v9354 = vunpack.c.l.b16 %v9002
      %v9355 = vunpack.c.l.b16 %v9003
      %v9356 = vunpack.c.l.b16 %v9004
      %v9357 = vunpack.c.l.b16 %v9005
      %v9358 = vunpack.c.l.b16 %v9006
      %v9359 = vunpack.c.l.b16 %v9007
      %v9360 = vunpack.c.l.b16 %v9008
      %v9361 = vunpack.c.l.b16 %v9009
      %v9362 = vunpack.c.l.b16 %v9010
      %v9363 = vunpack.c.l.b16 %v9011
      %v9364 = vunpack.c.l.b16 %v9012
      %v9365 = vunpack.c.l.b16 %v9013
      %v9366 = vunpack.c.l.b16 %v9014
      %v9367 = vunpack.c.l.b16 %v9015
      %v9368 = vunpack.c.l.b16 %v9016
      %v9369 = vunpack.c.l.b16 %v9017
      %v9370 = vunpack.c.l.b16 %v9018
      %v9371 = vunpack.c.l.b16 %v9019
      %v9372 = vunpack.c.l.b16 %v9020
      %v9373 = vunpack.c.l.b16 %v9021
      %v9374 = vunpack.c.l.b16 %v9022
      %v9375 = vunpack.c.l.b16 %v9023
      %v9376 = vunpack.c.l.b16 %v9024
      %v9377 = vunpack.c.l.b16 %v9025
      %v9378 = vunpack.c.l.b16 %v9026
      %v9379 = vunpack.c.l.b16 %v9027
      %v9380 = vunpack.c.l.b16 %v9028
      %v9381 = vunpack.c.l.b16 %v9029
      %v9382 = vunpack.c.l.b16 %v9030
      %v9383 = vunpack.c.l.b16 %v9031
      %v9384 = vunpack.c.l.b16 %v9032
      %v9385 = vunpack.c.l.b16 %v9033
      %v9386 = vunpack.c.l.b16 %v9034
      %v9387 = vunpack.c.l.b16 %v9035
      %v9388 = vunpack.c.l.b16 %v9036
      %v9389 = vunpack.c.l.b16 %v9037
      %v9390 = vunpack.c.l.b16 %v9038
      %v9391 = vunpack.c.l.b16 %v9039
      %v9392 = vunpack.c.l.b16 %v9040
      %v9393 = vunpack.c.l.b16 %v9041
      %v9394 = vpack.c.b16 %v9347, %v9346
      %v9395 = vpack.c.b16 %v9349, %v9348
      %v9396 = vpack.c.b16 %v9351, %v9350
      %v9397 = vpack.c.b16 %v9353, %v9352
      %v9398 = vpack.c.b16 %v9355, %v9354
      %v9399 = vpack.c.b16 %v9357, %v9356
      %v9400 = vpack.c.b16 %v9359, %v9358
      %v9401 = vpack.c.b16 %v9361, %v9360
      %v9402 = vpack.c.b16 %v9363, %v9362
      %v9403 = vpack.c.b16 %v9365, %v9364
      %v9404 = vpack.c.b16 %v9367, %v9366
      %v9405 = vpack.c.b16 %v9369, %v9368
      %v9406 = vpack.c.b16 %v9371, %v9370
      %v9407 = vpack.c.b16 %v9373, %v9372
      %v9408 = vpack.c.b16 %v9375, %v9374
      %v9409 = vpack.c.b16 %v9377, %v9376
      %v9410 = vpack.c.b16 %v9379, %v9378
      %v9411 = vpack.c.b16 %v9381, %v9380
      %v9412 = vpack.c.b16 %v9383, %v9382
      %v9413 = vpack.c.b16 %v9385, %v9384
      %v9414 = vpack.c.b16 %v9387, %v9386
      %v9415 = vpack.c.b16 %v9389, %v9388
      %v9416 = vpack.c.b16 %v9391, %v9390
      %v9417 = vpack.c.b16 %v9393, %v9392
      %9442 = vmatpush.bf16.msra.mxu0 %v9401
      %9443 = vmatpush.bf16.msra.mxu0 %v9400
      %9444 = vmatpush.bf16.msra.mxu0 %v9399
      %9445 = vmatpush.bf16.msra.mxu0 %v9398
      %9446 = vmatpush.bf16.msra.mxu0 %v9397
      %9447 = vmatpush.bf16.msra.mxu0 %v9396
      %9448 = vmatpush.bf16.msra.mxu0 %v9395
      %9449 = vmatpush.bf16.msra.mxu0 %v9394
      %9450 = vmatmul.bf16.gmra.mxu0 %v9202
      %v9451 = vpop.f32.mrf.mxu0
      %v9452 = vadd.f32 0.0, %v9451
      %v9453 = vpop.f32.mrf.mxu0
      %v9454 = vadd.f32 0.0, %v9453
      %9455 = vmatmul.bf16.gmra.mxu0 %v9205
      %v9456 = vpop.f32.mrf.mxu0
      %v9457 = vadd.f32 0.0, %v9456
      %v9458 = vpop.f32.mrf.mxu0
      %v9459 = vadd.f32 0.0, %v9458
      %9460 = vmatmul.bf16.gmra.mxu0 %v9208
      %v9461 = vpop.f32.mrf.mxu0
      %v9462 = vadd.f32 0.0, %v9461
      %v9463 = vpop.f32.mrf.mxu0
      %v9464 = vadd.f32 0.0, %v9463
      %9465 = vmatmul.bf16.gmra.mxu0 %v9211
      %v9466 = vpop.f32.mrf.mxu0
      %v9467 = vadd.f32 0.0, %v9466
      %v9468 = vpop.f32.mrf.mxu0
      %v9469 = vadd.f32 0.0, %v9468
      %9470 = vmatmul.bf16.gmra.mxu0 %v9214
      %v9471 = vpop.f32.mrf.mxu0
      %v9472 = vadd.f32 0.0, %v9471
      %v9473 = vpop.f32.mrf.mxu0
      %v9474 = vadd.f32 0.0, %v9473
      %9475 = vmatmul.bf16.gmra.mxu0 %v9217
      %v9476 = vpop.f32.mrf.mxu0
      %v9477 = vadd.f32 0.0, %v9476
      %v9478 = vpop.f32.mrf.mxu0
      %v9479 = vadd.f32 0.0, %v9478
      %9480 = vmatmul.bf16.gmra.mxu0 %v9220
      %v9481 = vpop.f32.mrf.mxu0
      %v9482 = vadd.f32 0.0, %v9481
      %v9483 = vpop.f32.mrf.mxu0
      %v9484 = vadd.f32 0.0, %v9483
      %9485 = vmatmul.bf16.gmra.mxu0 %v9223
      %v9486 = vpop.f32.mrf.mxu0
      %v9487 = vadd.f32 0.0, %v9486
      %v9488 = vpop.f32.mrf.mxu0
      %v9489 = vadd.f32 0.0, %v9488
      %9490 = vmatmul.bf16.gmra.mxu0 %v9226
      %v9491 = vpop.f32.mrf.mxu0
      %v9492 = vadd.f32 0.0, %v9491
      %v9493 = vpop.f32.mrf.mxu0
      %v9494 = vadd.f32 0.0, %v9493
      %9495 = vmatmul.bf16.gmra.mxu0 %v9229
      %v9496 = vpop.f32.mrf.mxu0
      %v9497 = vadd.f32 0.0, %v9496
      %v9498 = vpop.f32.mrf.mxu0
      %v9499 = vadd.f32 0.0, %v9498
      %9500 = vmatmul.bf16.gmra.mxu0 %v9232
      %v9501 = vpop.f32.mrf.mxu0
      %v9502 = vadd.f32 0.0, %v9501
      %v9503 = vpop.f32.mrf.mxu0
      %v9504 = vadd.f32 0.0, %v9503
      %9505 = vmatmul.bf16.gmra.mxu0 %v9235
      %v9506 = vpop.f32.mrf.mxu0
      %v9507 = vadd.f32 0.0, %v9506
      %v9508 = vpop.f32.mrf.mxu0
      %v9509 = vadd.f32 0.0, %v9508
      %9510 = vmatmul.bf16.gmra.mxu0 %v9238
      %v9511 = vpop.f32.mrf.mxu0
      %v9512 = vadd.f32 0.0, %v9511
      %v9513 = vpop.f32.mrf.mxu0
      %v9514 = vadd.f32 0.0, %v9513
      %9515 = vmatmul.bf16.gmra.mxu0 %v9241
      %v9516 = vpop.f32.mrf.mxu0
      %v9517 = vadd.f32 0.0, %v9516
      %v9518 = vpop.f32.mrf.mxu0
      %v9519 = vadd.f32 0.0, %v9518
      %9520 = vmatmul.bf16.gmra.mxu0 %v9244
      %v9521 = vpop.f32.mrf.mxu0
      %v9522 = vadd.f32 0.0, %v9521
      %v9523 = vpop.f32.mrf.mxu0
      %v9524 = vadd.f32 0.0, %v9523
      %9525 = vmatmul.bf16.gmra.mxu0 %v9247
      %v9526 = vpop.f32.mrf.mxu0
      %v9527 = vadd.f32 0.0, %v9526
      %v9528 = vpop.f32.mrf.mxu0
      %v9529 = vadd.f32 0.0, %v9528
      %9530 = vdwg.mxu0
      %9531 = vmatpush.bf16.msra.mxu0 %v9409
      %9532 = vmatpush.bf16.msra.mxu0 %v9408
      %9533 = vmatpush.bf16.msra.mxu0 %v9407
      %9534 = vmatpush.bf16.msra.mxu0 %v9406
      %9535 = vmatpush.bf16.msra.mxu0 %v9405
      %9536 = vmatpush.bf16.msra.mxu0 %v9404
      %9537 = vmatpush.bf16.msra.mxu0 %v9403
      %9538 = vmatpush.bf16.msra.mxu0 %v9402
      %9539 = vmatmul.bf16.gmra.mxu0 %v9203
      %v9540 = vpop.f32.mrf.mxu0
      %v9541 = vadd.f32 %v9452, %v9540
      %v9542 = vpop.f32.mrf.mxu0
      %v9543 = vadd.f32 %v9454, %v9542
      %9544 = vmatmul.bf16.gmra.mxu0 %v9206
      %v9545 = vpop.f32.mrf.mxu0
      %v9546 = vadd.f32 %v9457, %v9545
      %v9547 = vpop.f32.mrf.mxu0
      %v9548 = vadd.f32 %v9459, %v9547
      %9549 = vmatmul.bf16.gmra.mxu0 %v9209
      %v9550 = vpop.f32.mrf.mxu0
      %v9551 = vadd.f32 %v9462, %v9550
      %v9552 = vpop.f32.mrf.mxu0
      %v9553 = vadd.f32 %v9464, %v9552
      %9554 = vmatmul.bf16.gmra.mxu0 %v9212
      %v9555 = vpop.f32.mrf.mxu0
      %v9556 = vadd.f32 %v9467, %v9555
      %v9557 = vpop.f32.mrf.mxu0
      %v9558 = vadd.f32 %v9469, %v9557
      %9559 = vmatmul.bf16.gmra.mxu0 %v9215
      %v9560 = vpop.f32.mrf.mxu0
      %v9561 = vadd.f32 %v9472, %v9560
      %v9562 = vpop.f32.mrf.mxu0
      %v9563 = vadd.f32 %v9474, %v9562
      %9564 = vmatmul.bf16.gmra.mxu0 %v9218
      %v9565 = vpop.f32.mrf.mxu0
      %v9566 = vadd.f32 %v9477, %v9565
      %v9567 = vpop.f32.mrf.mxu0
      %v9568 = vadd.f32 %v9479, %v9567
      %9569 = vmatmul.bf16.gmra.mxu0 %v9221
      %v9570 = vpop.f32.mrf.mxu0
      %v9571 = vadd.f32 %v9482, %v9570
      %v9572 = vpop.f32.mrf.mxu0
      %v9573 = vadd.f32 %v9484, %v9572
      %9574 = vmatmul.bf16.gmra.mxu0 %v9224
      %v9575 = vpop.f32.mrf.mxu0
      %v9576 = vadd.f32 %v9487, %v9575
      %v9577 = vpop.f32.mrf.mxu0
      %v9578 = vadd.f32 %v9489, %v9577
      %9579 = vmatmul.bf16.gmra.mxu0 %v9227
      %v9580 = vpop.f32.mrf.mxu0
      %v9581 = vadd.f32 %v9492, %v9580
      %v9582 = vpop.f32.mrf.mxu0
      %v9583 = vadd.f32 %v9494, %v9582
      %9584 = vmatmul.bf16.gmra.mxu0 %v9230
      %v9585 = vpop.f32.mrf.mxu0
      %v9586 = vadd.f32 %v9497, %v9585
      %v9587 = vpop.f32.mrf.mxu0
      %v9588 = vadd.f32 %v9499, %v9587
      %9589 = vmatmul.bf16.gmra.mxu0 %v9233
      %v9590 = vpop.f32.mrf.mxu0
      %v9591 = vadd.f32 %v9502, %v9590
      %v9592 = vpop.f32.mrf.mxu0
      %v9593 = vadd.f32 %v9504, %v9592
      %9594 = vmatmul.bf16.gmra.mxu0 %v9236
      %v9595 = vpop.f32.mrf.mxu0
      %v9596 = vadd.f32 %v9507, %v9595
      %v9597 = vpop.f32.mrf.mxu0
      %v9598 = vadd.f32 %v9509, %v9597
      %9599 = vmatmul.bf16.gmra.mxu0 %v9239
      %v9600 = vpop.f32.mrf.mxu0
      %v9601 = vadd.f32 %v9512, %v9600
      %v9602 = vpop.f32.mrf.mxu0
      %v9603 = vadd.f32 %v9514, %v9602
      %9604 = vmatmul.bf16.gmra.mxu0 %v9242
      %v9605 = vpop.f32.mrf.mxu0
      %v9606 = vadd.f32 %v9517, %v9605
      %v9607 = vpop.f32.mrf.mxu0
      %v9608 = vadd.f32 %v9519, %v9607
      %9609 = vmatmul.bf16.gmra.mxu0 %v9245
      %v9610 = vpop.f32.mrf.mxu0
      %v9611 = vadd.f32 %v9522, %v9610
      %v9612 = vpop.f32.mrf.mxu0
      %v9613 = vadd.f32 %v9524, %v9612
      %9614 = vmatmul.bf16.gmra.mxu0 %v9248
      %v9615 = vpop.f32.mrf.mxu0
      %v9616 = vadd.f32 %v9527, %v9615
      %v9617 = vpop.f32.mrf.mxu0
      %v9618 = vadd.f32 %v9529, %v9617
      %9619 = vdwg.mxu0
      %9620 = vmatpush.bf16.msra.mxu0 %v9417
      %9621 = vmatpush.bf16.msra.mxu0 %v9416
      %9622 = vmatpush.bf16.msra.mxu0 %v9415
      %9623 = vmatpush.bf16.msra.mxu0 %v9414
      %9624 = vmatpush.bf16.msra.mxu0 %v9413
      %9625 = vmatpush.bf16.msra.mxu0 %v9412
      %9626 = vmatpush.bf16.msra.mxu0 %v9411
      %9627 = vmatpush.bf16.msra.mxu0 %v9410
      %9628 = vmatmul.bf16.gmra.mxu0 %v9204
      %v9629 = vpop.f32.mrf.mxu0
      %v9630 = vadd.f32 %v9541, %v9629
      %v9631 = vpop.f32.mrf.mxu0
      %v9632 = vadd.f32 %v9543, %v9631
      %9633 = vmatmul.bf16.gmra.mxu0 %v9207
      %v9634 = vpop.f32.mrf.mxu0
      %v9635 = vadd.f32 %v9546, %v9634
      %v9636 = vpop.f32.mrf.mxu0
      %v9637 = vadd.f32 %v9548, %v9636
      %9638 = vmatmul.bf16.gmra.mxu0 %v9210
      %v9639 = vpop.f32.mrf.mxu0
      %v9640 = vadd.f32 %v9551, %v9639
      %v9641 = vpop.f32.mrf.mxu0
      %v9642 = vadd.f32 %v9553, %v9641
      %9643 = vmatmul.bf16.gmra.mxu0 %v9213
      %v9644 = vpop.f32.mrf.mxu0
      %v9645 = vadd.f32 %v9556, %v9644
      %v9646 = vpop.f32.mrf.mxu0
      %v9647 = vadd.f32 %v9558, %v9646
      %9648 = vmatmul.bf16.gmra.mxu0 %v9216
      %v9649 = vpop.f32.mrf.mxu0
      %v9650 = vadd.f32 %v9561, %v9649
      %v9651 = vpop.f32.mrf.mxu0
      %v9652 = vadd.f32 %v9563, %v9651
      %9653 = vmatmul.bf16.gmra.mxu0 %v9219
      %v9654 = vpop.f32.mrf.mxu0
      %v9655 = vadd.f32 %v9566, %v9654
      %v9656 = vpop.f32.mrf.mxu0
      %v9657 = vadd.f32 %v9568, %v9656
      %9658 = vmatmul.bf16.gmra.mxu0 %v9222
      %v9659 = vpop.f32.mrf.mxu0
      %v9660 = vadd.f32 %v9571, %v9659
      %v9661 = vpop.f32.mrf.mxu0
      %v9662 = vadd.f32 %v9573, %v9661
      %9663 = vmatmul.bf16.gmra.mxu0 %v9225
      %v9664 = vpop.f32.mrf.mxu0
      %v9665 = vadd.f32 %v9576, %v9664
      %v9666 = vpop.f32.mrf.mxu0
      %v9667 = vadd.f32 %v9578, %v9666
      %9668 = vmatmul.bf16.gmra.mxu0 %v9228
      %v9669 = vpop.f32.mrf.mxu0
      %v9670 = vadd.f32 %v9581, %v9669
      %v9671 = vpop.f32.mrf.mxu0
      %v9672 = vadd.f32 %v9583, %v9671
      %9673 = vmatmul.bf16.gmra.mxu0 %v9231
      %v9674 = vpop.f32.mrf.mxu0
      %v9675 = vadd.f32 %v9586, %v9674
      %v9676 = vpop.f32.mrf.mxu0
      %v9677 = vadd.f32 %v9588, %v9676
      %9678 = vmatmul.bf16.gmra.mxu0 %v9234
      %v9679 = vpop.f32.mrf.mxu0
      %v9680 = vadd.f32 %v9591, %v9679
      %v9681 = vpop.f32.mrf.mxu0
      %v9682 = vadd.f32 %v9593, %v9681
      %9683 = vmatmul.bf16.gmra.mxu0 %v9237
      %v9684 = vpop.f32.mrf.mxu0
      %v9685 = vadd.f32 %v9596, %v9684
      %v9686 = vpop.f32.mrf.mxu0
      %v9687 = vadd.f32 %v9598, %v9686
      %9688 = vmatmul.bf16.gmra.mxu0 %v9240
      %v9689 = vpop.f32.mrf.mxu0
      %v9690 = vadd.f32 %v9601, %v9689
      %v9691 = vpop.f32.mrf.mxu0
      %v9692 = vadd.f32 %v9603, %v9691
      %9693 = vmatmul.bf16.gmra.mxu0 %v9243
      %v9694 = vpop.f32.mrf.mxu0
      %v9695 = vadd.f32 %v9606, %v9694
      %v9696 = vpop.f32.mrf.mxu0
      %v9697 = vadd.f32 %v9608, %v9696
      %9698 = vmatmul.bf16.gmra.mxu0 %v9246
      %v9699 = vpop.f32.mrf.mxu0
      %v9700 = vadd.f32 %v9611, %v9699
      %v9701 = vpop.f32.mrf.mxu0
      %v9702 = vadd.f32 %v9613, %v9701
      %9703 = vmatmul.bf16.gmra.mxu0 %v9249
      %v9704 = vpop.f32.mrf.mxu0
      %v9705 = vadd.f32 %v9616, %v9704
      %v9706 = vpop.f32.mrf.mxu0
      %v9707 = vadd.f32 %v9618, %v9706
      %9708 = vdwg.mxu0
      %v9713 = vunpack.c.l.b16 %v8877
      %v9714 = vunpack.c.h.b16 %v8877
      %v9715 = vunpack.c.l.b16 %v8878
      %v9716 = vunpack.c.l.b16 %v8879
      %v9717 = vunpack.c.h.b16 %v8879
      %v9718 = vunpack.c.l.b16 %v8880
      %v9719 = vpack.c.b16 %v9716, %v9713
      %v9720 = vpack.c.b16 %v9717, %v9714
      %v9721 = vpack.c.b16 %v9718, %v9715
      %v9773 = vunpack.c.l.b16 %v8941
      %v9774 = vunpack.c.l.b16 %v8942
      %v9775 = vunpack.c.l.b16 %v8943
      %v9776 = vunpack.c.l.b16 %v8944
      %v9777 = vunpack.c.l.b16 %v8945
      %v9778 = vunpack.c.l.b16 %v8946
      %v9779 = vunpack.c.l.b16 %v8947
      %v9780 = vunpack.c.l.b16 %v8948
      %v9781 = vunpack.c.l.b16 %v8949
      %v9782 = vunpack.c.l.b16 %v8950
      %v9783 = vunpack.c.l.b16 %v8951
      %v9784 = vunpack.c.l.b16 %v8952
      %v9785 = vunpack.c.l.b16 %v8953
      %v9786 = vunpack.c.l.b16 %v8954
      %v9787 = vunpack.c.l.b16 %v8955
      %v9788 = vunpack.c.l.b16 %v8956
      %v9789 = vunpack.c.l.b16 %v8957
      %v9790 = vunpack.c.l.b16 %v8958
      %v9791 = vunpack.c.l.b16 %v8959
      %v9792 = vunpack.c.l.b16 %v8960
      %v9793 = vunpack.c.l.b16 %v8961
      %v9794 = vunpack.c.l.b16 %v8962
      %v9795 = vunpack.c.l.b16 %v8963
      %v9796 = vunpack.c.l.b16 %v8964
      %v9797 = vunpack.c.l.b16 %v8965
      %v9798 = vunpack.c.l.b16 %v8966
      %v9799 = vunpack.c.l.b16 %v8967
      %v9800 = vunpack.c.l.b16 %v8968
      %v9801 = vunpack.c.l.b16 %v8969
      %v9802 = vunpack.c.l.b16 %v8970
      %v9803 = vunpack.c.l.b16 %v8971
      %v9804 = vunpack.c.l.b16 %v8972
      %v9805 = vunpack.c.l.b16 %v8973
      %v9806 = vunpack.c.l.b16 %v8974
      %v9807 = vunpack.c.l.b16 %v8975
      %v9808 = vunpack.c.l.b16 %v8976
      %v9809 = vunpack.c.l.b16 %v8977
      %v9810 = vunpack.c.l.b16 %v8978
      %v9811 = vunpack.c.l.b16 %v8979
      %v9812 = vunpack.c.l.b16 %v8980
      %v9813 = vunpack.c.l.b16 %v8981
      %v9814 = vunpack.c.l.b16 %v8982
      %v9815 = vunpack.c.l.b16 %v8983
      %v9816 = vunpack.c.l.b16 %v8984
      %v9817 = vunpack.c.l.b16 %v8985
      %v9818 = vunpack.c.l.b16 %v8986
      %v9819 = vunpack.c.l.b16 %v8987
      %v9820 = vunpack.c.l.b16 %v8988
      %v9821 = vpack.c.b16 %v9774, %v9773
      %v9822 = vpack.c.b16 %v9776, %v9775
      %v9823 = vpack.c.b16 %v9778, %v9777
      %v9824 = vpack.c.b16 %v9780, %v9779
      %v9825 = vpack.c.b16 %v9782, %v9781
      %v9826 = vpack.c.b16 %v9784, %v9783
      %v9827 = vpack.c.b16 %v9786, %v9785
      %v9828 = vpack.c.b16 %v9788, %v9787
      %v9829 = vpack.c.b16 %v9790, %v9789
      %v9830 = vpack.c.b16 %v9792, %v9791
      %v9831 = vpack.c.b16 %v9794, %v9793
      %v9832 = vpack.c.b16 %v9796, %v9795
      %v9833 = vpack.c.b16 %v9798, %v9797
      %v9834 = vpack.c.b16 %v9800, %v9799
      %v9835 = vpack.c.b16 %v9802, %v9801
      %v9836 = vpack.c.b16 %v9804, %v9803
      %v9837 = vpack.c.b16 %v9806, %v9805
      %v9838 = vpack.c.b16 %v9808, %v9807
      %v9839 = vpack.c.b16 %v9810, %v9809
      %v9840 = vpack.c.b16 %v9812, %v9811
      %v9841 = vpack.c.b16 %v9814, %v9813
      %v9842 = vpack.c.b16 %v9816, %v9815
      %v9843 = vpack.c.b16 %v9818, %v9817
      %v9844 = vpack.c.b16 %v9820, %v9819
      %9869 = vmatpush.bf16.msra.mxu0 %v9828
      %9870 = vmatpush.bf16.msra.mxu0 %v9827
      %9871 = vmatpush.bf16.msra.mxu0 %v9826
      %9872 = vmatpush.bf16.msra.mxu0 %v9825
      %9873 = vmatpush.bf16.msra.mxu0 %v9824
      %9874 = vmatpush.bf16.msra.mxu0 %v9823
      %9875 = vmatpush.bf16.msra.mxu0 %v9822
      %9876 = vmatpush.bf16.msra.mxu0 %v9821
      %9877 = vmatmul.bf16.gmra.mxu0 %v9719
      %v9878 = vpop.f32.mrf.mxu0
      %v9879 = vadd.f32 %v9630, %v9878
      %v9880 = vpop.f32.mrf.mxu0
      %v9881 = vadd.f32 %v9632, %v9880
      %9882 = vmatmul.bf16.gmra.mxu0 %v9202
      %v9883 = vpop.f32.mrf.mxu0
      %v9884 = vadd.f32 %v9635, %v9883
      %v9885 = vpop.f32.mrf.mxu0
      %v9886 = vadd.f32 %v9637, %v9885
      %9887 = vmatmul.bf16.gmra.mxu0 %v9205
      %v9888 = vpop.f32.mrf.mxu0
      %v9889 = vadd.f32 %v9640, %v9888
      %v9890 = vpop.f32.mrf.mxu0
      %v9891 = vadd.f32 %v9642, %v9890
      %9892 = vmatmul.bf16.gmra.mxu0 %v9208
      %v9893 = vpop.f32.mrf.mxu0
      %v9894 = vadd.f32 %v9645, %v9893
      %v9895 = vpop.f32.mrf.mxu0
      %v9896 = vadd.f32 %v9647, %v9895
      %9897 = vmatmul.bf16.gmra.mxu0 %v9211
      %v9898 = vpop.f32.mrf.mxu0
      %v9899 = vadd.f32 %v9650, %v9898
      %v9900 = vpop.f32.mrf.mxu0
      %v9901 = vadd.f32 %v9652, %v9900
      %9902 = vmatmul.bf16.gmra.mxu0 %v9214
      %v9903 = vpop.f32.mrf.mxu0
      %v9904 = vadd.f32 %v9655, %v9903
      %v9905 = vpop.f32.mrf.mxu0
      %v9906 = vadd.f32 %v9657, %v9905
      %9907 = vmatmul.bf16.gmra.mxu0 %v9217
      %v9908 = vpop.f32.mrf.mxu0
      %v9909 = vadd.f32 %v9660, %v9908
      %v9910 = vpop.f32.mrf.mxu0
      %v9911 = vadd.f32 %v9662, %v9910
      %9912 = vmatmul.bf16.gmra.mxu0 %v9220
      %v9913 = vpop.f32.mrf.mxu0
      %v9914 = vadd.f32 %v9665, %v9913
      %v9915 = vpop.f32.mrf.mxu0
      %v9916 = vadd.f32 %v9667, %v9915
      %9917 = vmatmul.bf16.gmra.mxu0 %v9223
      %v9918 = vpop.f32.mrf.mxu0
      %v9919 = vadd.f32 %v9670, %v9918
      %v9920 = vpop.f32.mrf.mxu0
      %v9921 = vadd.f32 %v9672, %v9920
      %9922 = vmatmul.bf16.gmra.mxu0 %v9226
      %v9923 = vpop.f32.mrf.mxu0
      %v9924 = vadd.f32 %v9675, %v9923
      %v9925 = vpop.f32.mrf.mxu0
      %v9926 = vadd.f32 %v9677, %v9925
      %9927 = vmatmul.bf16.gmra.mxu0 %v9229
      %v9928 = vpop.f32.mrf.mxu0
      %v9929 = vadd.f32 %v9680, %v9928
      %v9930 = vpop.f32.mrf.mxu0
      %v9931 = vadd.f32 %v9682, %v9930
      %9932 = vmatmul.bf16.gmra.mxu0 %v9232
      %v9933 = vpop.f32.mrf.mxu0
      %v9934 = vadd.f32 %v9685, %v9933
      %v9935 = vpop.f32.mrf.mxu0
      %v9936 = vadd.f32 %v9687, %v9935
      %9937 = vmatmul.bf16.gmra.mxu0 %v9235
      %v9938 = vpop.f32.mrf.mxu0
      %v9939 = vadd.f32 %v9690, %v9938
      %v9940 = vpop.f32.mrf.mxu0
      %v9941 = vadd.f32 %v9692, %v9940
      %9942 = vmatmul.bf16.gmra.mxu0 %v9238
      %v9943 = vpop.f32.mrf.mxu0
      %v9944 = vadd.f32 %v9695, %v9943
      %v9945 = vpop.f32.mrf.mxu0
      %v9946 = vadd.f32 %v9697, %v9945
      %9947 = vmatmul.bf16.gmra.mxu0 %v9241
      %v9948 = vpop.f32.mrf.mxu0
      %v9949 = vadd.f32 %v9700, %v9948
      %v9950 = vpop.f32.mrf.mxu0
      %v9951 = vadd.f32 %v9702, %v9950
      %9952 = vmatmul.bf16.gmra.mxu0 %v9244
      %v9953 = vpop.f32.mrf.mxu0
      %v9954 = vadd.f32 %v9705, %v9953
      %v9955 = vpop.f32.mrf.mxu0
      %v9956 = vadd.f32 %v9707, %v9955
      %9957 = vdwg.mxu0
      %9958 = vmatpush.bf16.msra.mxu0 %v9836
      %9959 = vmatpush.bf16.msra.mxu0 %v9835
      %9960 = vmatpush.bf16.msra.mxu0 %v9834
      %9961 = vmatpush.bf16.msra.mxu0 %v9833
      %9962 = vmatpush.bf16.msra.mxu0 %v9832
      %9963 = vmatpush.bf16.msra.mxu0 %v9831
      %9964 = vmatpush.bf16.msra.mxu0 %v9830
      %9965 = vmatpush.bf16.msra.mxu0 %v9829
      %9966 = vmatmul.bf16.gmra.mxu0 %v9720
      %v9967 = vpop.f32.mrf.mxu0
      %v9968 = vadd.f32 %v9879, %v9967
      %v9969 = vpop.f32.mrf.mxu0
      %v9970 = vadd.f32 %v9881, %v9969
      %9971 = vmatmul.bf16.gmra.mxu0 %v9203
      %v9972 = vpop.f32.mrf.mxu0
      %v9973 = vadd.f32 %v9884, %v9972
      %v9974 = vpop.f32.mrf.mxu0
      %v9975 = vadd.f32 %v9886, %v9974
      %9976 = vmatmul.bf16.gmra.mxu0 %v9206
      %v9977 = vpop.f32.mrf.mxu0
      %v9978 = vadd.f32 %v9889, %v9977
      %v9979 = vpop.f32.mrf.mxu0
      %v9980 = vadd.f32 %v9891, %v9979
      %9981 = vmatmul.bf16.gmra.mxu0 %v9209
      %v9982 = vpop.f32.mrf.mxu0
      %v9983 = vadd.f32 %v9894, %v9982
      %v9984 = vpop.f32.mrf.mxu0
      %v9985 = vadd.f32 %v9896, %v9984
      %9986 = vmatmul.bf16.gmra.mxu0 %v9212
      %v9987 = vpop.f32.mrf.mxu0
      %v9988 = vadd.f32 %v9899, %v9987
      %v9989 = vpop.f32.mrf.mxu0
      %v9990 = vadd.f32 %v9901, %v9989
      %9991 = vmatmul.bf16.gmra.mxu0 %v9215
      %v9992 = vpop.f32.mrf.mxu0
      %v9993 = vadd.f32 %v9904, %v9992
      %v9994 = vpop.f32.mrf.mxu0
      %v9995 = vadd.f32 %v9906, %v9994
      %9996 = vmatmul.bf16.gmra.mxu0 %v9218
      %v9997 = vpop.f32.mrf.mxu0
      %v9998 = vadd.f32 %v9909, %v9997
      %v9999 = vpop.f32.mrf.mxu0
      %v10000 = vadd.f32 %v9911, %v9999
      %10001 = vmatmul.bf16.gmra.mxu0 %v9221
      %v10002 = vpop.f32.mrf.mxu0
      %v10003 = vadd.f32 %v9914, %v10002
      %v10004 = vpop.f32.mrf.mxu0
      %v10005 = vadd.f32 %v9916, %v10004
      %10006 = vmatmul.bf16.gmra.mxu0 %v9224
      %v10007 = vpop.f32.mrf.mxu0
      %v10008 = vadd.f32 %v9919, %v10007
      %v10009 = vpop.f32.mrf.mxu0
      %v10010 = vadd.f32 %v9921, %v10009
      %10011 = vmatmul.bf16.gmra.mxu0 %v9227
      %v10012 = vpop.f32.mrf.mxu0
      %v10013 = vadd.f32 %v9924, %v10012
      %v10014 = vpop.f32.mrf.mxu0
      %v10015 = vadd.f32 %v9926, %v10014
      %10016 = vmatmul.bf16.gmra.mxu0 %v9230
      %v10017 = vpop.f32.mrf.mxu0
      %v10018 = vadd.f32 %v9929, %v10017
      %v10019 = vpop.f32.mrf.mxu0
      %v10020 = vadd.f32 %v9931, %v10019
      %10021 = vmatmul.bf16.gmra.mxu0 %v9233
      %v10022 = vpop.f32.mrf.mxu0
      %v10023 = vadd.f32 %v9934, %v10022
      %v10024 = vpop.f32.mrf.mxu0
      %v10025 = vadd.f32 %v9936, %v10024
      %10026 = vmatmul.bf16.gmra.mxu0 %v9236
      %v10027 = vpop.f32.mrf.mxu0
      %v10028 = vadd.f32 %v9939, %v10027
      %v10029 = vpop.f32.mrf.mxu0
      %v10030 = vadd.f32 %v9941, %v10029
      %10031 = vmatmul.bf16.gmra.mxu0 %v9239
      %v10032 = vpop.f32.mrf.mxu0
      %v10033 = vadd.f32 %v9944, %v10032
      %v10034 = vpop.f32.mrf.mxu0
      %v10035 = vadd.f32 %v9946, %v10034
      %10036 = vmatmul.bf16.gmra.mxu0 %v9242
      %v10037 = vpop.f32.mrf.mxu0
      %v10038 = vadd.f32 %v9949, %v10037
      %v10039 = vpop.f32.mrf.mxu0
      %v10040 = vadd.f32 %v9951, %v10039
      %10041 = vmatmul.bf16.gmra.mxu0 %v9245
      %v10042 = vpop.f32.mrf.mxu0
      %v10043 = vadd.f32 %v9954, %v10042
      %v10044 = vpop.f32.mrf.mxu0
      %v10045 = vadd.f32 %v9956, %v10044
      %10046 = vdwg.mxu0
      %10047 = vmatpush.bf16.msra.mxu0 %v9844
      %10048 = vmatpush.bf16.msra.mxu0 %v9843
      %10049 = vmatpush.bf16.msra.mxu0 %v9842
      %10050 = vmatpush.bf16.msra.mxu0 %v9841
      %10051 = vmatpush.bf16.msra.mxu0 %v9840
      %10052 = vmatpush.bf16.msra.mxu0 %v9839
      %10053 = vmatpush.bf16.msra.mxu0 %v9838
      %10054 = vmatpush.bf16.msra.mxu0 %v9837
      %10055 = vmatmul.bf16.gmra.mxu0 %v9721
      %v10056 = vpop.f32.mrf.mxu0
      %v10057 = vadd.f32 %v9968, %v10056
      %v10058 = vpop.f32.mrf.mxu0
      %v10059 = vadd.f32 %v9970, %v10058
      %10060 = vmatmul.bf16.gmra.mxu0 %v9204
      %v10061 = vpop.f32.mrf.mxu0
      %v10062 = vadd.f32 %v9973, %v10061
      %v10063 = vpop.f32.mrf.mxu0
      %v10064 = vadd.f32 %v9975, %v10063
      %10065 = vmatmul.bf16.gmra.mxu0 %v9207
      %v10066 = vpop.f32.mrf.mxu0
      %v10067 = vadd.f32 %v9978, %v10066
      %v10068 = vpop.f32.mrf.mxu0
      %v10069 = vadd.f32 %v9980, %v10068
      %10070 = vmatmul.bf16.gmra.mxu0 %v9210
      %v10071 = vpop.f32.mrf.mxu0
      %v10072 = vadd.f32 %v9983, %v10071
      %v10073 = vpop.f32.mrf.mxu0
      %v10074 = vadd.f32 %v9985, %v10073
      %10075 = vmatmul.bf16.gmra.mxu0 %v9213
      %v10076 = vpop.f32.mrf.mxu0
      %v10077 = vadd.f32 %v9988, %v10076
      %v10078 = vpop.f32.mrf.mxu0
      %v10079 = vadd.f32 %v9990, %v10078
      %10080 = vmatmul.bf16.gmra.mxu0 %v9216
      %v10081 = vpop.f32.mrf.mxu0
      %v10082 = vadd.f32 %v9993, %v10081
      %v10083 = vpop.f32.mrf.mxu0
      %v10084 = vadd.f32 %v9995, %v10083
      %10085 = vmatmul.bf16.gmra.mxu0 %v9219
      %v10086 = vpop.f32.mrf.mxu0
      %v10087 = vadd.f32 %v9998, %v10086
      %v10088 = vpop.f32.mrf.mxu0
      %v10089 = vadd.f32 %v10000, %v10088
      %10090 = vmatmul.bf16.gmra.mxu0 %v9222
      %v10091 = vpop.f32.mrf.mxu0
      %v10092 = vadd.f32 %v10003, %v10091
      %v10093 = vpop.f32.mrf.mxu0
      %v10094 = vadd.f32 %v10005, %v10093
      %10095 = vmatmul.bf16.gmra.mxu0 %v9225
      %v10096 = vpop.f32.mrf.mxu0
      %v10097 = vadd.f32 %v10008, %v10096
      %v10098 = vpop.f32.mrf.mxu0
      %v10099 = vadd.f32 %v10010, %v10098
      %10100 = vmatmul.bf16.gmra.mxu0 %v9228
      %v10101 = vpop.f32.mrf.mxu0
      %v10102 = vadd.f32 %v10013, %v10101
      %v10103 = vpop.f32.mrf.mxu0
      %v10104 = vadd.f32 %v10015, %v10103
      %10105 = vmatmul.bf16.gmra.mxu0 %v9231
      %v10106 = vpop.f32.mrf.mxu0
      %v10107 = vadd.f32 %v10018, %v10106
      %v10108 = vpop.f32.mrf.mxu0
      %v10109 = vadd.f32 %v10020, %v10108
      %10110 = vmatmul.bf16.gmra.mxu0 %v9234
      %v10111 = vpop.f32.mrf.mxu0
      %v10112 = vadd.f32 %v10023, %v10111
      %v10113 = vpop.f32.mrf.mxu0
      %v10114 = vadd.f32 %v10025, %v10113
      %10115 = vmatmul.bf16.gmra.mxu0 %v9237
      %v10116 = vpop.f32.mrf.mxu0
      %v10117 = vadd.f32 %v10028, %v10116
      %v10118 = vpop.f32.mrf.mxu0
      %v10119 = vadd.f32 %v10030, %v10118
      %10120 = vmatmul.bf16.gmra.mxu0 %v9240
      %v10121 = vpop.f32.mrf.mxu0
      %v10122 = vadd.f32 %v10033, %v10121
      %v10123 = vpop.f32.mrf.mxu0
      %v10124 = vadd.f32 %v10035, %v10123
      %10125 = vmatmul.bf16.gmra.mxu0 %v9243
      %v10126 = vpop.f32.mrf.mxu0
      %v10127 = vadd.f32 %v10038, %v10126
      %v10128 = vpop.f32.mrf.mxu0
      %v10129 = vadd.f32 %v10040, %v10128
      %10130 = vmatmul.bf16.gmra.mxu0 %v9246
      %v10131 = vpop.f32.mrf.mxu0
      %v10132 = vadd.f32 %v10043, %v10131
      %v10133 = vpop.f32.mrf.mxu0
      %v10134 = vadd.f32 %v10045, %v10133
      %10135 = vdwg.mxu0
      %v10136 = vld [vmem:[#allocation3 + $0x30] sm:$0xff]
      %v10137 = vld [vmem:[#allocation3 + $0x38] sm:$0xf]
      %v10138 = vld [vmem:[#allocation3 + $0x3c] sm:$0xff]
      %v10139 = vld [vmem:[#allocation3 + $0x44] sm:$0xf]
      %v10140 = vld [vmem:[#allocation3 + $0x48] sm:$0xff]
      %v10141 = vld [vmem:[#allocation3 + $0x50] sm:$0xf]
      %v10142 = vld [vmem:[#allocation3 + $0x54] sm:$0xff]
      %v10143 = vld [vmem:[#allocation3 + $0x5c] sm:$0xf]
      %v10144 = vld [vmem:[#allocation3 + $0x60] sm:$0xff]
      %v10145 = vld [vmem:[#allocation3 + $0x68] sm:$0xf]
      %v10146 = vld [vmem:[#allocation3 + $0x6c] sm:$0xff]
      %v10147 = vld [vmem:[#allocation3 + $0x74] sm:$0xf]
      %v10148 = vld [vmem:[#allocation3 + $0x78] sm:$0xff]
      %v10149 = vld [vmem:[#allocation3 + $0x80] sm:$0xf]
      %v10150 = vld [vmem:[#allocation3 + $0x84] sm:$0xff]
      %v10151 = vld [vmem:[#allocation3 + $0x8c] sm:$0xf]
      %v10152 = vld [vmem:[#allocation3 + $0x90] sm:$0xff]
      %v10153 = vld [vmem:[#allocation3 + $0x98] sm:$0xf]
      %v10154 = vld [vmem:[#allocation3 + $0x9c] sm:$0xff]
      %v10155 = vld [vmem:[#allocation3 + $0xa4] sm:$0xf]
      %v10156 = vld [vmem:[#allocation3 + $0xa8] sm:$0xff]
      %v10157 = vld [vmem:[#allocation3 + $0xb0] sm:$0xf]
      %v10158 = vld [vmem:[#allocation3 + $0xb4] sm:$0xff]
      %v10159 = vld [vmem:[#allocation3 + $0xbc] sm:$0xf]
      %v10160 = vld [vmem:[#allocation3 + $0xc0] sm:$0xff]
      %v10161 = vld [vmem:[#allocation3 + $0xc8] sm:$0xf]
      %v10162 = vld [vmem:[#allocation3 + $0xcc] sm:$0xff]
      %v10163 = vld [vmem:[#allocation3 + $0xd4] sm:$0xf]
      %v10164 = vld [vmem:[#allocation3 + $0xd8] sm:$0xff]
      %v10165 = vld [vmem:[#allocation3 + $0xe0] sm:$0xf]
      %v10166 = vld [vmem:[#allocation3 + $0xe4] sm:$0xff]
      %v10167 = vld [vmem:[#allocation3 + $0xec] sm:$0xf]
      %v10168 = vld [vmem:[#allocation3 + $0xf0] sm:$0xff]
      %v10169 = vld [vmem:[#allocation3 + $0xf8] sm:$0xf]
      %v10170 = vld [vmem:[#allocation3 + $0xfc] sm:$0xff]
      %v10171 = vld [vmem:[#allocation3 + $0x104] sm:$0xf]
      %v10172 = vld [vmem:[#allocation3 + $0x108] sm:$0xff]
      %v10173 = vld [vmem:[#allocation3 + $0x110] sm:$0xf]
      %v10174 = vld [vmem:[#allocation3 + $0x114] sm:$0xff]
      %v10175 = vld [vmem:[#allocation3 + $0x11c] sm:$0xf]
      %v10176 = vld [vmem:[#allocation3 + $0x120] sm:$0xff]
      %v10177 = vld [vmem:[#allocation3 + $0x128] sm:$0xf]
      %v10178 = vld [vmem:[#allocation3 + $0x12c] sm:$0xff]
      %v10179 = vld [vmem:[#allocation3 + $0x134] sm:$0xf]
      %v10180 = vld [vmem:[#allocation3 + $0x138] sm:$0xff]
      %v10181 = vld [vmem:[#allocation3 + $0x140] sm:$0xf]
      %v10182 = vld [vmem:[#allocation3 + $0x144] sm:$0xff]
      %v10183 = vld [vmem:[#allocation3 + $0x14c] sm:$0xf]
      %v10184 = vld [vmem:[#allocation3 + $0x150] sm:$0xff]
      %v10185 = vld [vmem:[#allocation3 + $0x158] sm:$0xf]
      %v10186 = vld [vmem:[#allocation3 + $0x15c] sm:$0xff]
      %v10187 = vld [vmem:[#allocation3 + $0x164] sm:$0xf]
      %v10188 = vld [vmem:[#allocation3 + $0x168] sm:$0xff]
      %v10189 = vld [vmem:[#allocation3 + $0x170] sm:$0xf]
      %v10190 = vld [vmem:[#allocation3 + $0x174] sm:$0xff]
      %v10191 = vld [vmem:[#allocation3 + $0x17c] sm:$0xf]
      %v10192 = vld [vmem:[#allocation3 + $0x180] sm:$0xff]
      %v10193 = vld [vmem:[#allocation3 + $0x188] sm:$0xf]
      %v10194 = vld [vmem:[#allocation3 + $0x18c] sm:$0xff]
      %v10195 = vld [vmem:[#allocation3 + $0x194] sm:$0xf]
      %v10196 = vld [vmem:[#allocation3 + $0x198] sm:$0xff]
      %v10197 = vld [vmem:[#allocation3 + $0x1a0] sm:$0xf]
      %v10198 = vld [vmem:[#allocation3 + $0x1a4] sm:$0xff]
      %v10199 = vld [vmem:[#allocation3 + $0x1ac] sm:$0xf]
      %s10200 = scalar_lea.vmem %s3, 384
      %v10201 = vld [vmem:[%s10200] sm:$0xf]
      %v10202 = vld [vmem:[%s10200 + $0x4] sm:$0xf]
      %v10203 = vld [vmem:[%s10200 + $0x8] sm:$0xf]
      %v10204 = vld [vmem:[%s10200 + $0xc] sm:$0xf]
      %v10205 = vld [vmem:[%s10200 + $0x10] sm:$0xf]
      %v10206 = vld [vmem:[%s10200 + $0x14] sm:$0xf]
      %v10207 = vld [vmem:[%s10200 + $0x18] sm:$0xf]
      %v10208 = vld [vmem:[%s10200 + $0x1c] sm:$0xf]
      %v10209 = vld [vmem:[%s10200 + $0x20] sm:$0xf]
      %v10210 = vld [vmem:[%s10200 + $0x24] sm:$0xf]
      %v10211 = vld [vmem:[%s10200 + $0x28] sm:$0xf]
      %v10212 = vld [vmem:[%s10200 + $0x2c] sm:$0xf]
      %v10213 = vld [vmem:[%s10200 + $0x30] sm:$0xf]
      %v10214 = vld [vmem:[%s10200 + $0x34] sm:$0xf]
      %v10215 = vld [vmem:[%s10200 + $0x38] sm:$0xf]
      %v10216 = vld [vmem:[%s10200 + $0x3c] sm:$0xf]
      %v10217 = vld [vmem:[%s10200 + $0x40] sm:$0xf]
      %v10218 = vld [vmem:[%s10200 + $0x44] sm:$0xf]
      %v10219 = vld [vmem:[%s10200 + $0x48] sm:$0xf]
      %v10220 = vld [vmem:[%s10200 + $0x4c] sm:$0xf]
      %v10221 = vld [vmem:[%s10200 + $0x50] sm:$0xf]
      %v10222 = vld [vmem:[%s10200 + $0x54] sm:$0xf]
      %v10223 = vld [vmem:[%s10200 + $0x58] sm:$0xf]
      %v10224 = vld [vmem:[%s10200 + $0x5c] sm:$0xf]
      %v10225 = vld [vmem:[%s10200 + $0x60] sm:$0xf]
      %v10226 = vld [vmem:[%s10200 + $0x64] sm:$0xf]
      %v10227 = vld [vmem:[%s10200 + $0x68] sm:$0xf]
      %v10228 = vld [vmem:[%s10200 + $0x6c] sm:$0xf]
      %v10229 = vld [vmem:[%s10200 + $0x70] sm:$0xf]
      %v10230 = vld [vmem:[%s10200 + $0x74] sm:$0xf]
      %v10231 = vld [vmem:[%s10200 + $0x78] sm:$0xf]
      %v10232 = vld [vmem:[%s10200 + $0x7c] sm:$0xf]
      %v10233 = vld [vmem:[%s10200 + $0x80] sm:$0xf]
      %v10234 = vld [vmem:[%s10200 + $0x84] sm:$0xf]
      %v10235 = vld [vmem:[%s10200 + $0x88] sm:$0xf]
      %v10236 = vld [vmem:[%s10200 + $0x8c] sm:$0xf]
      %v10237 = vld [vmem:[%s10200 + $0x90] sm:$0xf]
      %v10238 = vld [vmem:[%s10200 + $0x94] sm:$0xf]
      %v10239 = vld [vmem:[%s10200 + $0x98] sm:$0xf]
      %v10240 = vld [vmem:[%s10200 + $0x9c] sm:$0xf]
      %v10241 = vld [vmem:[%s10200 + $0xa0] sm:$0xf]
      %v10242 = vld [vmem:[%s10200 + $0xa4] sm:$0xf]
      %v10243 = vld [vmem:[%s10200 + $0xa8] sm:$0xf]
      %v10244 = vld [vmem:[%s10200 + $0xac] sm:$0xf]
      %v10245 = vld [vmem:[%s10200 + $0xb0] sm:$0xf]
      %v10246 = vld [vmem:[%s10200 + $0xb4] sm:$0xf]
      %v10247 = vld [vmem:[%s10200 + $0xb8] sm:$0xf]
      %v10248 = vld [vmem:[%s10200 + $0xbc] sm:$0xf]
      %v10313 = vunpack.c.l.b16 %v10136
      %v10314 = vunpack.c.h.b16 %v10136
      %v10315 = vunpack.c.l.b16 %v10137
      %v10316 = vunpack.c.l.b16 %v10138
      %v10317 = vunpack.c.h.b16 %v10138
      %v10318 = vunpack.c.l.b16 %v10139
      %v10319 = vunpack.c.l.b16 %v10140
      %v10320 = vunpack.c.h.b16 %v10140
      %v10321 = vunpack.c.l.b16 %v10141
      %v10322 = vunpack.c.l.b16 %v10142
      %v10323 = vunpack.c.h.b16 %v10142
      %v10324 = vunpack.c.l.b16 %v10143
      %v10325 = vunpack.c.l.b16 %v10144
      %v10326 = vunpack.c.h.b16 %v10144
      %v10327 = vunpack.c.l.b16 %v10145
      %v10328 = vunpack.c.l.b16 %v10146
      %v10329 = vunpack.c.h.b16 %v10146
      %v10330 = vunpack.c.l.b16 %v10147
      %v10331 = vunpack.c.l.b16 %v10148
      %v10332 = vunpack.c.h.b16 %v10148
      %v10333 = vunpack.c.l.b16 %v10149
      %v10334 = vunpack.c.l.b16 %v10150
      %v10335 = vunpack.c.h.b16 %v10150
      %v10336 = vunpack.c.l.b16 %v10151
      %v10337 = vunpack.c.l.b16 %v10152
      %v10338 = vunpack.c.h.b16 %v10152
      %v10339 = vunpack.c.l.b16 %v10153
      %v10340 = vunpack.c.l.b16 %v10154
      %v10341 = vunpack.c.h.b16 %v10154
      %v10342 = vunpack.c.l.b16 %v10155
      %v10343 = vunpack.c.l.b16 %v10156
      %v10344 = vunpack.c.h.b16 %v10156
      %v10345 = vunpack.c.l.b16 %v10157
      %v10346 = vunpack.c.l.b16 %v10158
      %v10347 = vunpack.c.h.b16 %v10158
      %v10348 = vunpack.c.l.b16 %v10159
      %v10349 = vunpack.c.l.b16 %v10160
      %v10350 = vunpack.c.h.b16 %v10160
      %v10351 = vunpack.c.l.b16 %v10161
      %v10352 = vunpack.c.l.b16 %v10162
      %v10353 = vunpack.c.h.b16 %v10162
      %v10354 = vunpack.c.l.b16 %v10163
      %v10355 = vunpack.c.l.b16 %v10164
      %v10356 = vunpack.c.h.b16 %v10164
      %v10357 = vunpack.c.l.b16 %v10165
      %v10358 = vunpack.c.l.b16 %v10166
      %v10359 = vunpack.c.h.b16 %v10166
      %v10360 = vunpack.c.l.b16 %v10167
      %v10361 = vunpack.c.l.b16 %v10168
      %v10362 = vunpack.c.h.b16 %v10168
      %v10363 = vunpack.c.l.b16 %v10169
      %v10364 = vunpack.c.l.b16 %v10170
      %v10365 = vunpack.c.h.b16 %v10170
      %v10366 = vunpack.c.l.b16 %v10171
      %v10367 = vunpack.c.l.b16 %v10172
      %v10368 = vunpack.c.h.b16 %v10172
      %v10369 = vunpack.c.l.b16 %v10173
      %v10370 = vunpack.c.l.b16 %v10174
      %v10371 = vunpack.c.h.b16 %v10174
      %v10372 = vunpack.c.l.b16 %v10175
      %v10373 = vunpack.c.l.b16 %v10176
      %v10374 = vunpack.c.h.b16 %v10176
      %v10375 = vunpack.c.l.b16 %v10177
      %v10376 = vunpack.c.l.b16 %v10178
      %v10377 = vunpack.c.h.b16 %v10178
      %v10378 = vunpack.c.l.b16 %v10179
      %v10379 = vunpack.c.l.b16 %v10180
      %v10380 = vunpack.c.h.b16 %v10180
      %v10381 = vunpack.c.l.b16 %v10181
      %v10382 = vunpack.c.l.b16 %v10182
      %v10383 = vunpack.c.h.b16 %v10182
      %v10384 = vunpack.c.l.b16 %v10183
      %v10385 = vunpack.c.l.b16 %v10184
      %v10386 = vunpack.c.h.b16 %v10184
      %v10387 = vunpack.c.l.b16 %v10185
      %v10388 = vunpack.c.l.b16 %v10186
      %v10389 = vunpack.c.h.b16 %v10186
      %v10390 = vunpack.c.l.b16 %v10187
      %v10391 = vunpack.c.l.b16 %v10188
      %v10392 = vunpack.c.h.b16 %v10188
      %v10393 = vunpack.c.l.b16 %v10189
      %v10394 = vunpack.c.l.b16 %v10190
      %v10395 = vunpack.c.h.b16 %v10190
      %v10396 = vunpack.c.l.b16 %v10191
      %v10397 = vunpack.c.l.b16 %v10192
      %v10398 = vunpack.c.h.b16 %v10192
      %v10399 = vunpack.c.l.b16 %v10193
      %v10400 = vunpack.c.l.b16 %v10194
      %v10401 = vunpack.c.h.b16 %v10194
      %v10402 = vunpack.c.l.b16 %v10195
      %v10403 = vunpack.c.l.b16 %v10196
      %v10404 = vunpack.c.h.b16 %v10196
      %v10405 = vunpack.c.l.b16 %v10197
      %v10406 = vunpack.c.l.b16 %v10198
      %v10407 = vunpack.c.h.b16 %v10198
      %v10408 = vunpack.c.l.b16 %v10199
      %v10409 = vpack.c.b16 %v10316, %v10313
      %v10410 = vpack.c.b16 %v10317, %v10314
      %v10411 = vpack.c.b16 %v10318, %v10315
      %v10412 = vpack.c.b16 %v10322, %v10319
      %v10413 = vpack.c.b16 %v10323, %v10320
      %v10414 = vpack.c.b16 %v10324, %v10321
      %v10415 = vpack.c.b16 %v10328, %v10325
      %v10416 = vpack.c.b16 %v10329, %v10326
      %v10417 = vpack.c.b16 %v10330, %v10327
      %v10418 = vpack.c.b16 %v10334, %v10331
      %v10419 = vpack.c.b16 %v10335, %v10332
      %v10420 = vpack.c.b16 %v10336, %v10333
      %v10421 = vpack.c.b16 %v10340, %v10337
      %v10422 = vpack.c.b16 %v10341, %v10338
      %v10423 = vpack.c.b16 %v10342, %v10339
      %v10424 = vpack.c.b16 %v10346, %v10343
      %v10425 = vpack.c.b16 %v10347, %v10344
      %v10426 = vpack.c.b16 %v10348, %v10345
      %v10427 = vpack.c.b16 %v10352, %v10349
      %v10428 = vpack.c.b16 %v10353, %v10350
      %v10429 = vpack.c.b16 %v10354, %v10351
      %v10430 = vpack.c.b16 %v10358, %v10355
      %v10431 = vpack.c.b16 %v10359, %v10356
      %v10432 = vpack.c.b16 %v10360, %v10357
      %v10433 = vpack.c.b16 %v10364, %v10361
      %v10434 = vpack.c.b16 %v10365, %v10362
      %v10435 = vpack.c.b16 %v10366, %v10363
      %v10436 = vpack.c.b16 %v10370, %v10367
      %v10437 = vpack.c.b16 %v10371, %v10368
      %v10438 = vpack.c.b16 %v10372, %v10369
      %v10439 = vpack.c.b16 %v10376, %v10373
      %v10440 = vpack.c.b16 %v10377, %v10374
      %v10441 = vpack.c.b16 %v10378, %v10375
      %v10442 = vpack.c.b16 %v10382, %v10379
      %v10443 = vpack.c.b16 %v10383, %v10380
      %v10444 = vpack.c.b16 %v10384, %v10381
      %v10445 = vpack.c.b16 %v10388, %v10385
      %v10446 = vpack.c.b16 %v10389, %v10386
      %v10447 = vpack.c.b16 %v10390, %v10387
      %v10448 = vpack.c.b16 %v10394, %v10391
      %v10449 = vpack.c.b16 %v10395, %v10392
      %v10450 = vpack.c.b16 %v10396, %v10393
      %v10451 = vpack.c.b16 %v10400, %v10397
      %v10452 = vpack.c.b16 %v10401, %v10398
      %v10453 = vpack.c.b16 %v10402, %v10399
      %v10454 = vpack.c.b16 %v10406, %v10403
      %v10455 = vpack.c.b16 %v10407, %v10404
      %v10456 = vpack.c.b16 %v10408, %v10405
      %v10553 = vunpack.c.l.b16 %v10201
      %v10554 = vunpack.c.l.b16 %v10202
      %v10555 = vunpack.c.l.b16 %v10203
      %v10556 = vunpack.c.l.b16 %v10204
      %v10557 = vunpack.c.l.b16 %v10205
      %v10558 = vunpack.c.l.b16 %v10206
      %v10559 = vunpack.c.l.b16 %v10207
      %v10560 = vunpack.c.l.b16 %v10208
      %v10561 = vunpack.c.l.b16 %v10209
      %v10562 = vunpack.c.l.b16 %v10210
      %v10563 = vunpack.c.l.b16 %v10211
      %v10564 = vunpack.c.l.b16 %v10212
      %v10565 = vunpack.c.l.b16 %v10213
      %v10566 = vunpack.c.l.b16 %v10214
      %v10567 = vunpack.c.l.b16 %v10215
      %v10568 = vunpack.c.l.b16 %v10216
      %v10569 = vunpack.c.l.b16 %v10217
      %v10570 = vunpack.c.l.b16 %v10218
      %v10571 = vunpack.c.l.b16 %v10219
      %v10572 = vunpack.c.l.b16 %v10220
      %v10573 = vunpack.c.l.b16 %v10221
      %v10574 = vunpack.c.l.b16 %v10222
      %v10575 = vunpack.c.l.b16 %v10223
      %v10576 = vunpack.c.l.b16 %v10224
      %v10577 = vunpack.c.l.b16 %v10225
      %v10578 = vunpack.c.l.b16 %v10226
      %v10579 = vunpack.c.l.b16 %v10227
      %v10580 = vunpack.c.l.b16 %v10228
      %v10581 = vunpack.c.l.b16 %v10229
      %v10582 = vunpack.c.l.b16 %v10230
      %v10583 = vunpack.c.l.b16 %v10231
      %v10584 = vunpack.c.l.b16 %v10232
      %v10585 = vunpack.c.l.b16 %v10233
      %v10586 = vunpack.c.l.b16 %v10234
      %v10587 = vunpack.c.l.b16 %v10235
      %v10588 = vunpack.c.l.b16 %v10236
      %v10589 = vunpack.c.l.b16 %v10237
      %v10590 = vunpack.c.l.b16 %v10238
      %v10591 = vunpack.c.l.b16 %v10239
      %v10592 = vunpack.c.l.b16 %v10240
      %v10593 = vunpack.c.l.b16 %v10241
      %v10594 = vunpack.c.l.b16 %v10242
      %v10595 = vunpack.c.l.b16 %v10243
      %v10596 = vunpack.c.l.b16 %v10244
      %v10597 = vunpack.c.l.b16 %v10245
      %v10598 = vunpack.c.l.b16 %v10246
      %v10599 = vunpack.c.l.b16 %v10247
      %v10600 = vunpack.c.l.b16 %v10248
      %v10601 = vpack.c.b16 %v10554, %v10553
      %v10602 = vpack.c.b16 %v10556, %v10555
      %v10603 = vpack.c.b16 %v10558, %v10557
      %v10604 = vpack.c.b16 %v10560, %v10559
      %v10605 = vpack.c.b16 %v10562, %v10561
      %v10606 = vpack.c.b16 %v10564, %v10563
      %v10607 = vpack.c.b16 %v10566, %v10565
      %v10608 = vpack.c.b16 %v10568, %v10567
      %v10609 = vpack.c.b16 %v10570, %v10569
      %v10610 = vpack.c.b16 %v10572, %v10571
      %v10611 = vpack.c.b16 %v10574, %v10573
      %v10612 = vpack.c.b16 %v10576, %v10575
      %v10613 = vpack.c.b16 %v10578, %v10577
      %v10614 = vpack.c.b16 %v10580, %v10579
      %v10615 = vpack.c.b16 %v10582, %v10581
      %v10616 = vpack.c.b16 %v10584, %v10583
      %v10617 = vpack.c.b16 %v10586, %v10585
      %v10618 = vpack.c.b16 %v10588, %v10587
      %v10619 = vpack.c.b16 %v10590, %v10589
      %v10620 = vpack.c.b16 %v10592, %v10591
      %v10621 = vpack.c.b16 %v10594, %v10593
      %v10622 = vpack.c.b16 %v10596, %v10595
      %v10623 = vpack.c.b16 %v10598, %v10597
      %v10624 = vpack.c.b16 %v10600, %v10599
      %10649 = vmatpush.bf16.msra.mxu0 %v10608
      %10650 = vmatpush.bf16.msra.mxu0 %v10607
      %10651 = vmatpush.bf16.msra.mxu0 %v10606
      %10652 = vmatpush.bf16.msra.mxu0 %v10605
      %10653 = vmatpush.bf16.msra.mxu0 %v10604
      %10654 = vmatpush.bf16.msra.mxu0 %v10603
      %10655 = vmatpush.bf16.msra.mxu0 %v10602
      %10656 = vmatpush.bf16.msra.mxu0 %v10601
      %10657 = vmatmul.bf16.gmra.mxu0 %v10409
      %v10658 = vpop.f32.mrf.mxu0
      %v10659 = vadd.f32 0.0, %v10658
      %v10660 = vpop.f32.mrf.mxu0
      %v10661 = vadd.f32 0.0, %v10660
      %10662 = vmatmul.bf16.gmra.mxu0 %v10412
      %v10663 = vpop.f32.mrf.mxu0
      %v10664 = vadd.f32 0.0, %v10663
      %v10665 = vpop.f32.mrf.mxu0
      %v10666 = vadd.f32 0.0, %v10665
      %10667 = vmatmul.bf16.gmra.mxu0 %v10415
      %v10668 = vpop.f32.mrf.mxu0
      %v10669 = vadd.f32 0.0, %v10668
      %v10670 = vpop.f32.mrf.mxu0
      %v10671 = vadd.f32 0.0, %v10670
      %10672 = vmatmul.bf16.gmra.mxu0 %v10418
      %v10673 = vpop.f32.mrf.mxu0
      %v10674 = vadd.f32 0.0, %v10673
      %v10675 = vpop.f32.mrf.mxu0
      %v10676 = vadd.f32 0.0, %v10675
      %10677 = vmatmul.bf16.gmra.mxu0 %v10421
      %v10678 = vpop.f32.mrf.mxu0
      %v10679 = vadd.f32 0.0, %v10678
      %v10680 = vpop.f32.mrf.mxu0
      %v10681 = vadd.f32 0.0, %v10680
      %10682 = vmatmul.bf16.gmra.mxu0 %v10424
      %v10683 = vpop.f32.mrf.mxu0
      %v10684 = vadd.f32 0.0, %v10683
      %v10685 = vpop.f32.mrf.mxu0
      %v10686 = vadd.f32 0.0, %v10685
      %10687 = vmatmul.bf16.gmra.mxu0 %v10427
      %v10688 = vpop.f32.mrf.mxu0
      %v10689 = vadd.f32 0.0, %v10688
      %v10690 = vpop.f32.mrf.mxu0
      %v10691 = vadd.f32 0.0, %v10690
      %10692 = vmatmul.bf16.gmra.mxu0 %v10430
      %v10693 = vpop.f32.mrf.mxu0
      %v10694 = vadd.f32 0.0, %v10693
      %v10695 = vpop.f32.mrf.mxu0
      %v10696 = vadd.f32 0.0, %v10695
      %10697 = vmatmul.bf16.gmra.mxu0 %v10433
      %v10698 = vpop.f32.mrf.mxu0
      %v10699 = vadd.f32 0.0, %v10698
      %v10700 = vpop.f32.mrf.mxu0
      %v10701 = vadd.f32 0.0, %v10700
      %10702 = vmatmul.bf16.gmra.mxu0 %v10436
      %v10703 = vpop.f32.mrf.mxu0
      %v10704 = vadd.f32 0.0, %v10703
      %v10705 = vpop.f32.mrf.mxu0
      %v10706 = vadd.f32 0.0, %v10705
      %10707 = vmatmul.bf16.gmra.mxu0 %v10439
      %v10708 = vpop.f32.mrf.mxu0
      %v10709 = vadd.f32 0.0, %v10708
      %v10710 = vpop.f32.mrf.mxu0
      %v10711 = vadd.f32 0.0, %v10710
      %10712 = vmatmul.bf16.gmra.mxu0 %v10442
      %v10713 = vpop.f32.mrf.mxu0
      %v10714 = vadd.f32 0.0, %v10713
      %v10715 = vpop.f32.mrf.mxu0
      %v10716 = vadd.f32 0.0, %v10715
      %10717 = vmatmul.bf16.gmra.mxu0 %v10445
      %v10718 = vpop.f32.mrf.mxu0
      %v10719 = vadd.f32 0.0, %v10718
      %v10720 = vpop.f32.mrf.mxu0
      %v10721 = vadd.f32 0.0, %v10720
      %10722 = vmatmul.bf16.gmra.mxu0 %v10448
      %v10723 = vpop.f32.mrf.mxu0
      %v10724 = vadd.f32 0.0, %v10723
      %v10725 = vpop.f32.mrf.mxu0
      %v10726 = vadd.f32 0.0, %v10725
      %10727 = vmatmul.bf16.gmra.mxu0 %v10451
      %v10728 = vpop.f32.mrf.mxu0
      %v10729 = vadd.f32 0.0, %v10728
      %v10730 = vpop.f32.mrf.mxu0
      %v10731 = vadd.f32 0.0, %v10730
      %10732 = vmatmul.bf16.gmra.mxu0 %v10454
      %v10733 = vpop.f32.mrf.mxu0
      %v10734 = vadd.f32 0.0, %v10733
      %v10735 = vpop.f32.mrf.mxu0
      %v10736 = vadd.f32 0.0, %v10735
      %10737 = vdwg.mxu0
      %10738 = vmatpush.bf16.msra.mxu0 %v10616
      %10739 = vmatpush.bf16.msra.mxu0 %v10615
      %10740 = vmatpush.bf16.msra.mxu0 %v10614
      %10741 = vmatpush.bf16.msra.mxu0 %v10613
      %10742 = vmatpush.bf16.msra.mxu0 %v10612
      %10743 = vmatpush.bf16.msra.mxu0 %v10611
      %10744 = vmatpush.bf16.msra.mxu0 %v10610
      %10745 = vmatpush.bf16.msra.mxu0 %v10609
      %10746 = vmatmul.bf16.gmra.mxu0 %v10410
      %v10747 = vpop.f32.mrf.mxu0
      %v10748 = vadd.f32 %v10659, %v10747
      %v10749 = vpop.f32.mrf.mxu0
      %v10750 = vadd.f32 %v10661, %v10749
      %10751 = vmatmul.bf16.gmra.mxu0 %v10413
      %v10752 = vpop.f32.mrf.mxu0
      %v10753 = vadd.f32 %v10664, %v10752
      %v10754 = vpop.f32.mrf.mxu0
      %v10755 = vadd.f32 %v10666, %v10754
      %10756 = vmatmul.bf16.gmra.mxu0 %v10416
      %v10757 = vpop.f32.mrf.mxu0
      %v10758 = vadd.f32 %v10669, %v10757
      %v10759 = vpop.f32.mrf.mxu0
      %v10760 = vadd.f32 %v10671, %v10759
      %10761 = vmatmul.bf16.gmra.mxu0 %v10419
      %v10762 = vpop.f32.mrf.mxu0
      %v10763 = vadd.f32 %v10674, %v10762
      %v10764 = vpop.f32.mrf.mxu0
      %v10765 = vadd.f32 %v10676, %v10764
      %10766 = vmatmul.bf16.gmra.mxu0 %v10422
      %v10767 = vpop.f32.mrf.mxu0
      %v10768 = vadd.f32 %v10679, %v10767
      %v10769 = vpop.f32.mrf.mxu0
      %v10770 = vadd.f32 %v10681, %v10769
      %10771 = vmatmul.bf16.gmra.mxu0 %v10425
      %v10772 = vpop.f32.mrf.mxu0
      %v10773 = vadd.f32 %v10684, %v10772
      %v10774 = vpop.f32.mrf.mxu0
      %v10775 = vadd.f32 %v10686, %v10774
      %10776 = vmatmul.bf16.gmra.mxu0 %v10428
      %v10777 = vpop.f32.mrf.mxu0
      %v10778 = vadd.f32 %v10689, %v10777
      %v10779 = vpop.f32.mrf.mxu0
      %v10780 = vadd.f32 %v10691, %v10779
      %10781 = vmatmul.bf16.gmra.mxu0 %v10431
      %v10782 = vpop.f32.mrf.mxu0
      %v10783 = vadd.f32 %v10694, %v10782
      %v10784 = vpop.f32.mrf.mxu0
      %v10785 = vadd.f32 %v10696, %v10784
      %10786 = vmatmul.bf16.gmra.mxu0 %v10434
      %v10787 = vpop.f32.mrf.mxu0
      %v10788 = vadd.f32 %v10699, %v10787
      %v10789 = vpop.f32.mrf.mxu0
      %v10790 = vadd.f32 %v10701, %v10789
      %10791 = vmatmul.bf16.gmra.mxu0 %v10437
      %v10792 = vpop.f32.mrf.mxu0
      %v10793 = vadd.f32 %v10704, %v10792
      %v10794 = vpop.f32.mrf.mxu0
      %v10795 = vadd.f32 %v10706, %v10794
      %10796 = vmatmul.bf16.gmra.mxu0 %v10440
      %v10797 = vpop.f32.mrf.mxu0
      %v10798 = vadd.f32 %v10709, %v10797
      %v10799 = vpop.f32.mrf.mxu0
      %v10800 = vadd.f32 %v10711, %v10799
      %10801 = vmatmul.bf16.gmra.mxu0 %v10443
      %v10802 = vpop.f32.mrf.mxu0
      %v10803 = vadd.f32 %v10714, %v10802
      %v10804 = vpop.f32.mrf.mxu0
      %v10805 = vadd.f32 %v10716, %v10804
      %10806 = vmatmul.bf16.gmra.mxu0 %v10446
      %v10807 = vpop.f32.mrf.mxu0
      %v10808 = vadd.f32 %v10719, %v10807
      %v10809 = vpop.f32.mrf.mxu0
      %v10810 = vadd.f32 %v10721, %v10809
      %10811 = vmatmul.bf16.gmra.mxu0 %v10449
      %v10812 = vpop.f32.mrf.mxu0
      %v10813 = vadd.f32 %v10724, %v10812
      %v10814 = vpop.f32.mrf.mxu0
      %v10815 = vadd.f32 %v10726, %v10814
      %10816 = vmatmul.bf16.gmra.mxu0 %v10452
      %v10817 = vpop.f32.mrf.mxu0
      %v10818 = vadd.f32 %v10729, %v10817
      %v10819 = vpop.f32.mrf.mxu0
      %v10820 = vadd.f32 %v10731, %v10819
      %10821 = vmatmul.bf16.gmra.mxu0 %v10455
      %v10822 = vpop.f32.mrf.mxu0
      %v10823 = vadd.f32 %v10734, %v10822
      %v10824 = vpop.f32.mrf.mxu0
      %v10825 = vadd.f32 %v10736, %v10824
      %10826 = vdwg.mxu0
      %10827 = vmatpush.bf16.msra.mxu0 %v10624
      %10828 = vmatpush.bf16.msra.mxu0 %v10623
      %10829 = vmatpush.bf16.msra.mxu0 %v10622
      %10830 = vmatpush.bf16.msra.mxu0 %v10621
      %10831 = vmatpush.bf16.msra.mxu0 %v10620
      %10832 = vmatpush.bf16.msra.mxu0 %v10619
      %10833 = vmatpush.bf16.msra.mxu0 %v10618
      %10834 = vmatpush.bf16.msra.mxu0 %v10617
      %10835 = vmatmul.bf16.gmra.mxu0 %v10411
      %v10836 = vpop.f32.mrf.mxu0
      %v10837 = vadd.f32 %v10748, %v10836
      %v10838 = vpop.f32.mrf.mxu0
      %v10839 = vadd.f32 %v10750, %v10838
      %10840 = vmatmul.bf16.gmra.mxu0 %v10414
      %v10841 = vpop.f32.mrf.mxu0
      %v10842 = vadd.f32 %v10753, %v10841
      %v10843 = vpop.f32.mrf.mxu0
      %v10844 = vadd.f32 %v10755, %v10843
      %10845 = vmatmul.bf16.gmra.mxu0 %v10417
      %v10846 = vpop.f32.mrf.mxu0
      %v10847 = vadd.f32 %v10758, %v10846
      %v10848 = vpop.f32.mrf.mxu0
      %v10849 = vadd.f32 %v10760, %v10848
      %10850 = vmatmul.bf16.gmra.mxu0 %v10420
      %v10851 = vpop.f32.mrf.mxu0
      %v10852 = vadd.f32 %v10763, %v10851
      %v10853 = vpop.f32.mrf.mxu0
      %v10854 = vadd.f32 %v10765, %v10853
      %10855 = vmatmul.bf16.gmra.mxu0 %v10423
      %v10856 = vpop.f32.mrf.mxu0
      %v10857 = vadd.f32 %v10768, %v10856
      %v10858 = vpop.f32.mrf.mxu0
      %v10859 = vadd.f32 %v10770, %v10858
      %10860 = vmatmul.bf16.gmra.mxu0 %v10426
      %v10861 = vpop.f32.mrf.mxu0
      %v10862 = vadd.f32 %v10773, %v10861
      %v10863 = vpop.f32.mrf.mxu0
      %v10864 = vadd.f32 %v10775, %v10863
      %10865 = vmatmul.bf16.gmra.mxu0 %v10429
      %v10866 = vpop.f32.mrf.mxu0
      %v10867 = vadd.f32 %v10778, %v10866
      %v10868 = vpop.f32.mrf.mxu0
      %v10869 = vadd.f32 %v10780, %v10868
      %10870 = vmatmul.bf16.gmra.mxu0 %v10432
      %v10871 = vpop.f32.mrf.mxu0
      %v10872 = vadd.f32 %v10783, %v10871
      %v10873 = vpop.f32.mrf.mxu0
      %v10874 = vadd.f32 %v10785, %v10873
      %10875 = vmatmul.bf16.gmra.mxu0 %v10435
      %v10876 = vpop.f32.mrf.mxu0
      %v10877 = vadd.f32 %v10788, %v10876
      %v10878 = vpop.f32.mrf.mxu0
      %v10879 = vadd.f32 %v10790, %v10878
      %10880 = vmatmul.bf16.gmra.mxu0 %v10438
      %v10881 = vpop.f32.mrf.mxu0
      %v10882 = vadd.f32 %v10793, %v10881
      %v10883 = vpop.f32.mrf.mxu0
      %v10884 = vadd.f32 %v10795, %v10883
      %10885 = vmatmul.bf16.gmra.mxu0 %v10441
      %v10886 = vpop.f32.mrf.mxu0
      %v10887 = vadd.f32 %v10798, %v10886
      %v10888 = vpop.f32.mrf.mxu0
      %v10889 = vadd.f32 %v10800, %v10888
      %10890 = vmatmul.bf16.gmra.mxu0 %v10444
      %v10891 = vpop.f32.mrf.mxu0
      %v10892 = vadd.f32 %v10803, %v10891
      %v10893 = vpop.f32.mrf.mxu0
      %v10894 = vadd.f32 %v10805, %v10893
      %10895 = vmatmul.bf16.gmra.mxu0 %v10447
      %v10896 = vpop.f32.mrf.mxu0
      %v10897 = vadd.f32 %v10808, %v10896
      %v10898 = vpop.f32.mrf.mxu0
      %v10899 = vadd.f32 %v10810, %v10898
      %10900 = vmatmul.bf16.gmra.mxu0 %v10450
      %v10901 = vpop.f32.mrf.mxu0
      %v10902 = vadd.f32 %v10813, %v10901
      %v10903 = vpop.f32.mrf.mxu0
      %v10904 = vadd.f32 %v10815, %v10903
      %10905 = vmatmul.bf16.gmra.mxu0 %v10453
      %v10906 = vpop.f32.mrf.mxu0
      %v10907 = vadd.f32 %v10818, %v10906
      %v10908 = vpop.f32.mrf.mxu0
      %v10909 = vadd.f32 %v10820, %v10908
      %10910 = vmatmul.bf16.gmra.mxu0 %v10456
      %v10911 = vpop.f32.mrf.mxu0
      %v10912 = vadd.f32 %v10823, %v10911
      %v10913 = vpop.f32.mrf.mxu0
      %v10914 = vadd.f32 %v10825, %v10913
      %10915 = vdwg.mxu0
      %v10916 = vadd.f32 %v10057, %v10837
      %v10917 = vadd.f32 %v10059, %v10839
      %v10918 = vadd.f32 %v10062, %v10842
      %v10919 = vadd.f32 %v10064, %v10844
      %v10920 = vadd.f32 %v10067, %v10847
      %v10921 = vadd.f32 %v10069, %v10849
      %v10922 = vadd.f32 %v10072, %v10852
      %v10923 = vadd.f32 %v10074, %v10854
      %v10924 = vadd.f32 %v10077, %v10857
      %v10925 = vadd.f32 %v10079, %v10859
      %v10926 = vadd.f32 %v10082, %v10862
      %v10927 = vadd.f32 %v10084, %v10864
      %v10928 = vadd.f32 %v10087, %v10867
      %v10929 = vadd.f32 %v10089, %v10869
      %v10930 = vadd.f32 %v10092, %v10872
      %v10931 = vadd.f32 %v10094, %v10874
      %v10932 = vadd.f32 %v10097, %v10877
      %v10933 = vadd.f32 %v10099, %v10879
      %v10934 = vadd.f32 %v10102, %v10882
      %v10935 = vadd.f32 %v10104, %v10884
      %v10936 = vadd.f32 %v10107, %v10887
      %v10937 = vadd.f32 %v10109, %v10889
      %v10938 = vadd.f32 %v10112, %v10892
      %v10939 = vadd.f32 %v10114, %v10894
      %v10940 = vadd.f32 %v10117, %v10897
      %v10941 = vadd.f32 %v10119, %v10899
      %v10942 = vadd.f32 %v10122, %v10902
      %v10943 = vadd.f32 %v10124, %v10904
      %v10944 = vadd.f32 %v10127, %v10907
      %v10945 = vadd.f32 %v10129, %v10909
      %v10946 = vadd.f32 %v10132, %v10912
      %v10947 = vadd.f32 %v10134, %v10914
      %v10948 = vld [vmem:[%s6] sm:$0x1]
      %v10950 = vperm.slane %v10948, 0
      %v10952 = vadd.f32 %v10916, %v10950
      %v10953 = vadd.f32 %v10917, %v10950
      %v10954 = vadd.f32 %v10918, %v10950
      %v10955 = vadd.f32 %v10919, %v10950
      %v10956 = vadd.f32 %v10920, %v10950
      %v10957 = vadd.f32 %v10921, %v10950
      %v10958 = vadd.f32 %v10922, %v10950
      %v10959 = vadd.f32 %v10923, %v10950
      %v10960 = vadd.f32 %v10924, %v10950
      %v10961 = vadd.f32 %v10925, %v10950
      %v10962 = vadd.f32 %v10926, %v10950
      %v10963 = vadd.f32 %v10927, %v10950
      %v10964 = vadd.f32 %v10928, %v10950
      %v10965 = vadd.f32 %v10929, %v10950
      %v10966 = vadd.f32 %v10930, %v10950
      %v10967 = vadd.f32 %v10931, %v10950
      %v10968 = vadd.f32 %v10932, %v10950
      %v10969 = vadd.f32 %v10933, %v10950
      %v10970 = vadd.f32 %v10934, %v10950
      %v10971 = vadd.f32 %v10935, %v10950
      %v10972 = vadd.f32 %v10936, %v10950
      %v10973 = vadd.f32 %v10937, %v10950
      %v10974 = vadd.f32 %v10938, %v10950
      %v10975 = vadd.f32 %v10939, %v10950
      %v10976 = vadd.f32 %v10940, %v10950
      %v10977 = vadd.f32 %v10941, %v10950
      %v10978 = vadd.f32 %v10942, %v10950
      %v10979 = vadd.f32 %v10943, %v10950
      %v10980 = vadd.f32 %v10944, %v10950
      %v10981 = vadd.f32 %v10945, %v10950
      %v10982 = vadd.f32 %v10946, %v10950
      %v10983 = vadd.f32 %v10947, %v10950
      %v10984 = vpack.c.bf16 %v10952, %v10952
      %v10985 = vpack.c.bf16 %v10953, %v10953
      %v10986 = vpack.c.bf16 %v10954, %v10954
      %v10987 = vpack.c.bf16 %v10955, %v10955
      %v10988 = vpack.c.bf16 %v10956, %v10956
      %v10989 = vpack.c.bf16 %v10957, %v10957
      %v10990 = vpack.c.bf16 %v10958, %v10958
      %v10991 = vpack.c.bf16 %v10959, %v10959
      %v10992 = vpack.c.bf16 %v10960, %v10960
      %v10993 = vpack.c.bf16 %v10961, %v10961
      %v10994 = vpack.c.bf16 %v10962, %v10962
      %v10995 = vpack.c.bf16 %v10963, %v10963
      %v10996 = vpack.c.bf16 %v10964, %v10964
      %v10997 = vpack.c.bf16 %v10965, %v10965
      %v10998 = vpack.c.bf16 %v10966, %v10966
      %v10999 = vpack.c.bf16 %v10967, %v10967
      %v11000 = vpack.c.bf16 %v10968, %v10968
      %v11001 = vpack.c.bf16 %v10969, %v10969
      %v11002 = vpack.c.bf16 %v10970, %v10970
      %v11003 = vpack.c.bf16 %v10971, %v10971
      %v11004 = vpack.c.bf16 %v10972, %v10972
      %v11005 = vpack.c.bf16 %v10973, %v10973
      %v11006 = vpack.c.bf16 %v10974, %v10974
      %v11007 = vpack.c.bf16 %v10975, %v10975
      %v11008 = vpack.c.bf16 %v10976, %v10976
      %v11009 = vpack.c.bf16 %v10977, %v10977
      %v11010 = vpack.c.bf16 %v10978, %v10978
      %v11011 = vpack.c.bf16 %v10979, %v10979
      %v11012 = vpack.c.bf16 %v10980, %v10980
      %v11013 = vpack.c.bf16 %v10981, %v10981
      %v11014 = vpack.c.bf16 %v10982, %v10982
      %v11015 = vpack.c.bf16 %v10983, %v10983
      %11016 = vst [vmem:[%s278] sm:$0xf] %v10984
      %11017 = vst [vmem:[%s278 + $0x4] sm:$0xf] %v10985
      %11018 = vst [vmem:[%s278 + $0x8] sm:$0xf] %v10986
      %11019 = vst [vmem:[%s278 + $0xc] sm:$0xf] %v10987
      %11020 = vst [vmem:[%s278 + $0x10] sm:$0xf] %v10988
      %11021 = vst [vmem:[%s278 + $0x14] sm:$0xf] %v10989
      %11022 = vst [vmem:[%s278 + $0x18] sm:$0xf] %v10990
      %11023 = vst [vmem:[%s278 + $0x1c] sm:$0xf] %v10991
      %11024 = vst [vmem:[%s278 + $0x20] sm:$0xf] %v10992
      %11025 = vst [vmem:[%s278 + $0x24] sm:$0xf] %v10993
      %11026 = vst [vmem:[%s278 + $0x28] sm:$0xf] %v10994
      %11027 = vst [vmem:[%s278 + $0x2c] sm:$0xf] %v10995
      %11028 = vst [vmem:[%s278 + $0x30] sm:$0xf] %v10996
      %11029 = vst [vmem:[%s278 + $0x34] sm:$0xf] %v10997
      %11030 = vst [vmem:[%s278 + $0x38] sm:$0xf] %v10998
      %11031 = vst [vmem:[%s278 + $0x3c] sm:$0xf] %v10999
      %11032 = vst [vmem:[%s278 + $0x40] sm:$0xf] %v11000
      %11033 = vst [vmem:[%s278 + $0x44] sm:$0xf] %v11001
      %11034 = vst [vmem:[%s278 + $0x48] sm:$0xf] %v11002
      %11035 = vst [vmem:[%s278 + $0x4c] sm:$0xf] %v11003
      %11036 = vst [vmem:[%s278 + $0x50] sm:$0xf] %v11004
      %11037 = vst [vmem:[%s278 + $0x54] sm:$0xf] %v11005
      %11038 = vst [vmem:[%s278 + $0x58] sm:$0xf] %v11006
      %11039 = vst [vmem:[%s278 + $0x5c] sm:$0xf] %v11007
      %11040 = vst [vmem:[%s278 + $0x60] sm:$0xf] %v11008
      %11041 = vst [vmem:[%s278 + $0x64] sm:$0xf] %v11009
      %11042 = vst [vmem:[%s278 + $0x68] sm:$0xf] %v11010
      %11043 = vst [vmem:[%s278 + $0x6c] sm:$0xf] %v11011
      %11044 = vst [vmem:[%s278 + $0x70] sm:$0xf] %v11012
      %11045 = vst [vmem:[%s278 + $0x74] sm:$0xf] %v11013
      %11046 = vst [vmem:[%s278 + $0x78] sm:$0xf] %v11014
      %11047 = vst [vmem:[%s278 + $0x7c] sm:$0xf] %v11015
      %p11048 = scmp.lt.s32.totalorder %s18, 1
      %s11049 = scalar_select %p11048, %s18, 1
      %s11050 = smul.addr %s11049, 32
      %s11051 = smul.addr %s11050, 4
      %s11052 = scalar_lea.vmem %s7, %s11051
      // Predicated region
      $region49: #{refinement_forward.1} parent=47 // pred_check
        %p11053 = pneg %p188
      $region50: #{refinement_forward.1} parent=47 // pred_check_branch
        %11055 = sbr.rel (%p11053) target = $region52
      $region51: #{refinement_forward.1} parent=47 // pred_region
        _
      $region52: #{refinement_forward.1} parent=47 // pred_fallthru
        _
    $region48: #{refinement_forward.1} parent=5 // pred_fallthru
      _
    %p11056 = scmp.le.s32.totalorder 2, %s13
    // Predicated region
    $region53: #{refinement_forward.1} parent=5 // pred_check
      %p11057 = pneg %p11056
    $region54: #{refinement_forward.1} parent=5 // pred_check_branch
      %11059 = sbr.rel (%p11057) target = $region56
    $region55: #{refinement_forward.1} parent=5 // pred_region
      %s11060 = ssub.s32 %s13, 2
      // Predicated region
      $region57: #{refinement_forward.1} parent=55 // pred_check
        %p11061 = pneg %p194
      $region58: #{refinement_forward.1} parent=55 // pred_check_branch
        %11063 = sbr.rel (%p11061) target = $region60
      $region59: #{refinement_forward.1} parent=55 // pred_region
        %p11064 = scmp.lt.s32.totalorder %s19, 1
        %s11065 = scalar_select %p11064, %s19, 1
        %s11066 = smul.addr %s11065, 32
        %s11067 = smul.addr %s11066, 4
        %s11068 = scalar_lea.vmem %s7, %s11067
      $region60: #{refinement_forward.1} parent=55 // pred_fallthru
        _
    $region56: #{refinement_forward.1} parent=5 // pred_fallthru
      _
  $region6: #{refinement_forward.1} parent=0 // loop_footer
    %s17 = sadd.s32 1, %s13
  $region7: #{refinement_forward.1} parent=0 // loop_footer_branch
    %12 = sbr.rel target = $region3
  $region8: #{refinement_forward.1} parent=0 // loop_exit
    _

</llo_original>
